<compile_context>
chip_gen: v5e
topology: v5e:2x2
jax: 0.10.0
libtpu: 0.0.40
codegen_flags: <defaults>
</compile_context>

<pallas_src>
import functools
import math

import jax
import jax.numpy as jnp
from jax.experimental import pallas as pl
from jax.experimental.pallas import tpu as pltpu


# -----------------------------------------------------------------------------
# In-kernel helpers
# -----------------------------------------------------------------------------

def _layernorm(y, g, b, eps):
    """LayerNorm over the last axis. y:(M,D) f32; g,b:(1,D)."""
    mean = jnp.mean(y, axis=-1, keepdims=True)
    var = jnp.mean(jnp.square(y - mean), axis=-1, keepdims=True)
    return (y - mean) * jax.lax.rsqrt(var + eps) * g + b


def _mha_to_out(q, k, v, wo, n_heads):
    """Per-head scaled-dot-product attention, then the output projection,
    expressed as a sum over heads so no lane-concat / reshape is needed.

    q:(Sq,D) (already scaled), k,v:(Sk,D), wo:(D,D) (layout W_o^T).
    Returns (Sq, D) = concat_h(softmax(q_h k_h^T) v_h) @ wo.
    """
    _, D = q.shape
    Dh = D // n_heads
    acc = None
    for h in range(n_heads):           # static unrolled loop (n_heads is small)
        sl = slice(h * Dh, (h + 1) * Dh)
        qh, kh, vh = q[:, sl], k[:, sl], v[:, sl]
        # q_h @ k_h^T without an explicit transpose (MXU handles contraction dims)
        s = jax.lax.dot_general(qh, kh, (((1,), (1,)), ((), ())),
                                preferred_element_type=jnp.float32)   # (Sq,Sk)
        s = s - jnp.max(s, axis=-1, keepdims=True)
        p = jnp.exp(s)
        p = p * pl.reciprocal(jnp.sum(p, axis=-1, keepdims=True), approx=True)
        oh = jnp.dot(p, vh, preferred_element_type=jnp.float32)       # (Sq,Dh)
        contrib = jnp.dot(oh, wo[sl, :],
                          preferred_element_type=jnp.float32)         # (Sq,D)
        acc = contrib if acc is None else acc + contrib
    return acc


# -----------------------------------------------------------------------------
# Pallas kernels
# -----------------------------------------------------------------------------

def _enc_input_kernel(x_ref, w_ref, b_ref, pe_ref, o_ref):
    """o = x @ w + b + pe     (encoder input projection fused with PE add).
    x:(1,S,Fi)  w:(Fi,D)  b:(1,D)  pe:(S,D)  o:(1,S,D)."""
    x = x_ref[0]
    y = jnp.dot(x, w_ref[...], preferred_element_type=jnp.float32)
    o_ref[0] = (y + b_ref[...] + pe_ref[...]).astype(o_ref.dtype)


def _self_attn_block_kernel(x_ref, wqkv_ref, bqkv_ref, wo_ref, bo_ref,
                            g_ref, beta_ref, o_ref, *, n_heads, scale, eps):
    """o = LayerNorm(x + MHA_self(x))   for one batch element.
    x:(1,S,D)  wqkv:(D,3D)  bqkv:(1,3D)  wo:(D,D)  bo:(1,D)  g,beta:(1,D)."""
    x = x_ref[0]                                                # (S, D)
    D = x.shape[1]
    qkv = jnp.dot(x, wqkv_ref[...],
                  preferred_element_type=jnp.float32) + bqkv_ref[...]  # (S,3D)
    q = qkv[:, :D] * scale
    k = qkv[:, D:2 * D]
    v = qkv[:, 2 * D:]
    out = _mha_to_out(q, k, v, wo_ref[...], n_heads) + bo_ref[...]
    y = x.astype(jnp.float32) + out
    o_ref[0] = _layernorm(y, g_ref[...], beta_ref[...], eps).astype(o_ref.dtype)


def _cross_attn_block_kernel(x_ref, mem_ref, wq_ref, bq_ref, wkv_ref, bkv_ref,
                             wo_ref, bo_ref, g_ref, beta_ref, o_ref,
                             *, n_heads, scale, eps):
    """o = LayerNorm(x + MHA(x, mem, mem))   for one batch element.
    x:(1,St,D)  mem:(1,Ss,D)  wq:(D,D)  wkv:(D,2D)."""
    x = x_ref[0]                                                # (St, D)
    mem = mem_ref[0]                                            # (Ss, D)
    D = x.shape[1]
    q = (jnp.dot(x, wq_ref[...],
                 preferred_element_type=jnp.float32) + bq_ref[...]) * scale
    kv = jnp.dot(mem, wkv_ref[...],
                 preferred_element_type=jnp.float32) + bkv_ref[...]    # (Ss,2D)
    k = kv[:, :D]
    v = kv[:, D:]
    out = _mha_to_out(q, k, v, wo_ref[...], n_heads) + bo_ref[...]
    y = x.astype(jnp.float32) + out
    o_ref[0] = _layernorm(y, g_ref[...], beta_ref[...], eps).astype(o_ref.dtype)


def _ffn_block_kernel(x_ref, w1_ref, b1_ref, w2_ref, b2_ref,
                      g_ref, beta_ref, o_ref, *, eps):
    """o = LayerNorm(x + lin2(relu(lin1(x))))  — the (TM, dim_ff) intermediate
    stays in VMEM (kernel-local value)."""
    x = x_ref[...].astype(jnp.float32)                          # (TM, D)
    h = jnp.dot(x, w1_ref[...], preferred_element_type=jnp.float32) + b1_ref[...]
    h = jnp.maximum(h, 0.0)
    y = jnp.dot(h, w2_ref[...], preferred_element_type=jnp.float32) + b2_ref[...]
    z = x + y
    o_ref[...] = _layernorm(z, g_ref[...], beta_ref[...], eps).astype(o_ref.dtype)


# -----------------------------------------------------------------------------
# pallas_call wrappers
# -----------------------------------------------------------------------------

def _row_tile(M, target=512):
    """Largest multiple-of-8 divisor of M not exceeding `target`, else M."""
    if M <= target:
        return M
    for tm in range(target, 7, -8):
        if M % tm == 0:
            return tm
    return M


def encoder_input(src, w, b, pe):
    """src:(B,S,Fi) -> (B,S,D) with positional encoding added."""
    B, S, Fi = src.shape
    D = w.shape[1]
    return pl.pallas_call(
        _enc_input_kernel,
        out_shape=jax.ShapeDtypeStruct((B, S, D), jnp.float32),
        grid=(B,),
        in_specs=[
            pl.BlockSpec((1, S, Fi), lambda bb: (bb, 0, 0)),
            pl.BlockSpec((Fi, D), lambda bb: (0, 0)),
            pl.BlockSpec((1, D), lambda bb: (0, 0)),
            pl.BlockSpec((S, D), lambda bb: (0, 0)),
        ],
        out_specs=pl.BlockSpec((1, S, D), lambda bb: (bb, 0, 0)),
        compiler_params=pltpu.CompilerParams(dimension_semantics=("parallel",)),
    )(src, w, b.reshape(1, D), pe)


def self_attn_block(x, attn_p, ln_p, n_heads, eps=1e-5):
    """x:(B,S,D) -> LayerNorm(x + SelfMHA(x)), fused in one kernel per batch."""
    B, S, D = x.shape
    scale = 1.0 / math.sqrt(D // n_heads)
    kernel = functools.partial(_self_attn_block_kernel,
                               n_heads=n_heads, scale=scale, eps=eps)
    return pl.pallas_call(
        kernel,
        out_shape=jax.ShapeDtypeStruct((B, S, D), jnp.float32),
        grid=(B,),
        in_specs=[
            pl.BlockSpec((1, S, D), lambda bb: (bb, 0, 0)),
            pl.BlockSpec((D, 3 * D), lambda bb: (0, 0)),
            pl.BlockSpec((1, 3 * D), lambda bb: (0, 0)),
            pl.BlockSpec((D, D), lambda bb: (0, 0)),
            pl.BlockSpec((1, D), lambda bb: (0, 0)),
            pl.BlockSpec((1, D), lambda bb: (0, 0)),
            pl.BlockSpec((1, D), lambda bb: (0, 0)),
        ],
        out_specs=pl.BlockSpec((1, S, D), lambda bb: (bb, 0, 0)),
        compiler_params=pltpu.CompilerParams(dimension_semantics=("parallel",)),
    )(x, attn_p["wqkv"], attn_p["bqkv"].reshape(1, 3 * D),
      attn_p["wo"], attn_p["bo"].reshape(1, D),
      ln_p["g"].reshape(1, D), ln_p["b"].reshape(1, D))


def cross_attn_block(x, mem, attn_p, ln_p, n_heads, eps=1e-5):
    """x:(B,St,D), mem:(B,Ss,D) -> LayerNorm(x + MHA(x, mem, mem))."""
    B, St, D = x.shape
    Ss = mem.shape[1]
    scale = 1.0 / math.sqrt(D // n_heads)
    kernel = functools.partial(_cross_attn_block_kernel,
                               n_heads=n_heads, scale=scale, eps=eps)
    return pl.pallas_call(
        kernel,
        out_shape=jax.ShapeDtypeStruct((B, St, D), jnp.float32),
        grid=(B,),
        in_specs=[
            pl.BlockSpec((1, St, D), lambda bb: (bb, 0, 0)),
            pl.BlockSpec((1, Ss, D), lambda bb: (bb, 0, 0)),
            pl.BlockSpec((D, D), lambda bb: (0, 0)),
            pl.BlockSpec((1, D), lambda bb: (0, 0)),
            pl.BlockSpec((D, 2 * D), lambda bb: (0, 0)),
            pl.BlockSpec((1, 2 * D), lambda bb: (0, 0)),
            pl.BlockSpec((D, D), lambda bb: (0, 0)),
            pl.BlockSpec((1, D), lambda bb: (0, 0)),
            pl.BlockSpec((1, D), lambda bb: (0, 0)),
            pl.BlockSpec((1, D), lambda bb: (0, 0)),
        ],
        out_specs=pl.BlockSpec((1, St, D), lambda bb: (bb, 0, 0)),
        compiler_params=pltpu.CompilerParams(dimension_semantics=("parallel",)),
    )(x, mem,
      attn_p["wq"], attn_p["bq"].reshape(1, D),
      attn_p["wkv"], attn_p["bkv"].reshape(1, 2 * D),
      attn_p["wo"], attn_p["bo"].reshape(1, D),
      ln_p["g"].reshape(1, D), ln_p["b"].reshape(1, D))


def ffn_block(x3d, lin1, lin2, ln_p, eps=1e-5):
    """x:(B,S,D) -> LayerNorm(x + FFN(x)), M-tiled grid over flattened rows."""
    B, S, D = x3d.shape
    M = B * S
    Dff = lin1["w"].shape[1]
    x = x3d.reshape(M, D)
    TM = _row_tile(M)
    out = pl.pallas_call(
        functools.partial(_ffn_block_kernel, eps=eps),
        out_shape=jax.ShapeDtypeStruct((M, D), jnp.float32),
        grid=(M // TM,),
        in_specs=[
            pl.BlockSpec((TM, D), lambda i: (i, 0)),
            pl.BlockSpec((D, Dff), lambda i: (0, 0)),
            pl.BlockSpec((1, Dff), lambda i: (0, 0)),
            pl.BlockSpec((Dff, D), lambda i: (0, 0)),
            pl.BlockSpec((1, D), lambda i: (0, 0)),
            pl.BlockSpec((1, D), lambda i: (0, 0)),
            pl.BlockSpec((1, D), lambda i: (0, 0)),
        ],
        out_specs=pl.BlockSpec((TM, D), lambda i: (i, 0)),
        compiler_params=pltpu.CompilerParams(dimension_semantics=("parallel",)),
    )(x, lin1["w"], lin1["b"].reshape(1, Dff),
      lin2["w"], lin2["b"].reshape(1, D),
      ln_p["g"].reshape(1, D), ln_p["b"].reshape(1, D))
    return out.reshape(B, S, D)


# -----------------------------------------------------------------------------
# Model components
# -----------------------------------------------------------------------------

def encoder_layer(x, p, n_heads):
    """nn.TransformerEncoderLayer, post-LN, relu activation, eval mode."""
    x = self_attn_block(x, p["self_attn"], p["ln1"], n_heads)
    x = ffn_block(x, p["lin1"], p["lin2"], p["ln2"])
    return x


def decoder_layer(x, memory, p, n_heads):
    """nn.TransformerDecoderLayer, post-LN, relu activation, eval mode."""
    x = self_attn_block(x, p["self_attn"], p["ln1"], n_heads)
    x = cross_attn_block(x, memory, p["cross_attn"], p["ln2"], n_heads)
    x = ffn_block(x, p["lin1"], p["lin2"], p["ln3"])
    return x


def sinusoidal_pe(max_len, d_model):
    pos = jnp.arange(max_len, dtype=jnp.float32)[:, None]
    div = jnp.exp(jnp.arange(0, d_model, 2, dtype=jnp.float32)
                  * (-math.log(10000.0) / d_model))
    pe = jnp.zeros((max_len, d_model), jnp.float32)
    pe = pe.at[:, 0::2].set(jnp.sin(pos * div))
    pe = pe.at[:, 1::2].set(jnp.cos(pos * div))
    return pe


def time_series_transformer(params, src, tgt, n_heads):
    """Forward pass matching TimeSeriesTransformer.forward (masks=None, eval)."""
    B, Ss, _ = src.shape
    _, St, Fp = tgt.shape
    D = params["enc_in"]["w"].shape[1]

    # encoder_input_layer + positional encoding, fused (dropout = identity in eval)
    pe = params["pe"][:Ss, :]
    x = encoder_input(src, params["enc_in"]["w"], params["enc_in"]["b"], pe)

    # encoder stack (norm=None at the top level, as in the reference)
    for lp in params["encoder"]:
        x = encoder_layer(x, lp, n_heads)

    # decoder_input_layer: (M,1)@(1,D) — contraction dim of 1, left to XLA
    # (a dedicated pallas_call here would be pure launch / masked-lane overhead).
    # NOTE: reference does NOT add PE to the decoder input.
    y = (jnp.einsum("bsf,fd->bsd", tgt, params["dec_in"]["w"])
         + params["dec_in"]["b"])

    # decoder stack
    for lp in params["decoder"]:
        y = decoder_layer(y, x, lp, n_heads)

    # linear_mapping: (M,D)@(D,1) — output lane dim of 1, left to XLA.
    out = (jnp.einsum("bsd,df->bsf", y, params["map"]["w"])
           + params["map"]["b"])
    return out.reshape(B, St, -1)


# -----------------------------------------------------------------------------
# Deterministic parameter init
# -----------------------------------------------------------------------------

def _init_linear(key, in_f, out_f, scale=0.02):
    k1, k2 = jax.random.split(key)
    return {
        "w": jax.random.normal(k1, (in_f, out_f), jnp.float32) * scale,  # (in, out) == W^T
        "b": jax.random.normal(k2, (out_f,), jnp.float32) * scale,
    }


def _init_ln(d):
    return {"g": jnp.ones((d,), jnp.float32), "b": jnp.zeros((d,), jnp.float32)}


def _init_mha_self(key, d):
    ks = jax.random.split(key, 2)
    qkv = _init_linear(ks[0], d, 3 * d)     # packed W_q|W_k|W_v (transposed layout)
    out = _init_linear(ks[1], d, d)
    return {"wqkv": qkv["w"], "bqkv": qkv["b"], "wo": out["w"], "bo": out["b"]}


def _init_mha_cross(key, d):
    ks = jax.random.split(key, 3)
    q = _init_linear(ks[0], d, d)
    kv = _init_linear(ks[1], d, 2 * d)      # packed W_k|W_v (transposed layout)
    out = _init_linear(ks[2], d, d)
    return {"wq": q["w"], "bq": q["b"], "wkv": kv["w"], "bkv": kv["b"],
            "wo": out["w"], "bo": out["b"]}


def _init_enc_layer(key, d, dff):
    ks = jax.random.split(key, 3)
    return {"self_attn": _init_mha_self(ks[0], d),
            "lin1": _init_linear(ks[1], d, dff),
            "lin2": _init_linear(ks[2], dff, d),
            "ln1": _init_ln(d), "ln2": _init_ln(d)}


def _init_dec_layer(key, d, dff):
    ks = jax.random.split(key, 4)
    return {"self_attn": _init_mha_self(ks[0], d),
            "cross_attn": _init_mha_cross(ks[1], d),
            "lin1": _init_linear(ks[2], d, dff),
            "lin2": _init_linear(ks[3], dff, d),
            "ln1": _init_ln(d), "ln2": _init_ln(d), "ln3": _init_ln(d)}


def init_params(key, *, input_size, dim_val, dim_ff, n_enc, n_dec,
                num_predicted_features, max_len):
    ks = jax.random.split(key, 3 + n_enc + n_dec)
    return {
        "enc_in": _init_linear(ks[0], input_size, dim_val),
        "dec_in": _init_linear(ks[1], num_predicted_features, dim_val),
        "map": _init_linear(ks[2], dim_val, num_predicted_features),
        "encoder": [_init_enc_layer(ks[3 + i], dim_val, dim_ff)
                    for i in range(n_enc)],
        "decoder": [_init_dec_layer(ks[3 + n_enc + i], dim_val, dim_ff)
                    for i in range(n_dec)],
        "pe": sinusoidal_pe(max_len, dim_val),
    }


# -----------------------------------------------------------------------------
# Main
# -----------------------------------------------------------------------------

if __name__ == "__main__":
    # Small shapes consistent with the module (scaled-down dim_val / layers).
    B = 2
    INPUT_SIZE = 4            # input_size
    ENC_SEQ = 16              # encoder sequence length
    DEC_SEQ = 8               # dec_seq_len
    DIM_VAL = 32              # dim_val
    N_HEADS = 4               # n_heads
    DIM_FF = 64               # dim_feedforward_*
    N_ENC = 2                 # n_encoder_layers
    N_DEC = 2                 # n_decoder_layers
    NUM_PRED = 1              # num_predicted_features
    MAX_LEN = 64              # PE table length (>= ENC_SEQ)

    key = jax.random.PRNGKey(0)
    kp, ks, kt = jax.random.split(key, 3)

    params = init_params(kp, input_size=INPUT_SIZE, dim_val=DIM_VAL,
                         dim_ff=DIM_FF, n_enc=N_ENC, n_dec=N_DEC,
                         num_predicted_features=NUM_PRED, max_len=MAX_LEN)

    src = jax.random.normal(ks, (B, ENC_SEQ, INPUT_SIZE), jnp.float32)
    tgt = jax.random.normal(kt, (B, DEC_SEQ, NUM_PRED), jnp.float32)

    fwd = jax.jit(functools.partial(time_series_transformer, n_heads=N_HEADS))
    out = fwd(params, src, tgt)
    out = jax.block_until_ready(out)

    assert out.shape == (B, DEC_SEQ, NUM_PRED), out.shape
    assert bool(jnp.all(jnp.isfinite(out)))
    print("KERNEL_OK")
</pallas_src>

<mosaic_0001>
module attributes {stable_mosaic.version = 11 : i64} {
  func.func @_enc_input_kernel(%arg0: i32, %arg1: memref<1x16x4xf32, #tpu.memory_space<vmem>>, %arg2: memref<4x32xf32, #tpu.memory_space<vmem>>, %arg3: memref<1x32xf32, #tpu.memory_space<vmem>>, %arg4: memref<16x32xf32, #tpu.memory_space<vmem>>, %arg5: memref<1x16x32xf32, #tpu.memory_space<vmem>>) attributes {dimension_semantics = [#tpu.dimension_semantics<parallel>], iteration_bounds = array<i64: 2>, scalar_prefetch = 0 : i64, scratch_operands = 0 : i64, tpu.core_type = #tpu.core_type<tc>, window_params = [{transform_indices = @transform_0, window_bounds = array<i64: 1, 16, 4>}, {pipeline_mode = #tpu.pipeline_mode<synchronous>, transform_indices = @transform_1, window_bounds = array<i64: 4, 32>}, {pipeline_mode = #tpu.pipeline_mode<synchronous>, transform_indices = @transform_2, window_bounds = array<i64: 1, 32>}, {pipeline_mode = #tpu.pipeline_mode<synchronous>, transform_indices = @transform_3, window_bounds = array<i64: 16, 32>}, {transform_indices = @transform_4, window_bounds = array<i64: 1, 16, 32>}]} {
    %c0 = arith.constant 0 : index
    %c0_0 = arith.constant 0 : index
    %c0_1 = arith.constant 0 : index
    %0 = vector.load %arg1[%c0, %c0_0, %c0_1] : memref<1x16x4xf32, #tpu.memory_space<vmem>>, vector<1x16x4xf32>
    %1 = vector.shape_cast %0 : vector<1x16x4xf32> to vector<16x4xf32>
    %c0_2 = arith.constant 0 : index
    %c0_3 = arith.constant 0 : index
    %2 = vector.load %arg2[%c0_2, %c0_3] : memref<4x32xf32, #tpu.memory_space<vmem>>, vector<4x32xf32>
    %cst = arith.constant dense<0.000000e+00> : vector<16x32xf32>
    %3 = tpu.matmul %1, %2, %cst {dimension_numbers = #tpu.dot_dimension_numbers<[1], [0], [0], [1], [0, 0, 1, 1], [], []>} : vector<16x4xf32>, vector<4x32xf32>, vector<16x32xf32> -> vector<16x32xf32>
    %c0_4 = arith.constant 0 : index
    %c0_5 = arith.constant 0 : index
    %4 = vector.load %arg3[%c0_4, %c0_5] : memref<1x32xf32, #tpu.memory_space<vmem>>, vector<1x32xf32>
    %5 = vector.broadcast %4 : vector<1x32xf32> to vector<16x32xf32>
    %6 = arith.addf %3, %5 : vector<16x32xf32>
    %c0_6 = arith.constant 0 : index
    %c0_7 = arith.constant 0 : index
    %7 = vector.load %arg4[%c0_6, %c0_7] : memref<16x32xf32, #tpu.memory_space<vmem>>, vector<16x32xf32>
    %8 = arith.addf %6, %7 : vector<16x32xf32>
    %c0_8 = arith.constant 0 : index
    %c0_9 = arith.constant 0 : index
    %c0_10 = arith.constant 0 : index
    %9 = vector.load %arg5[%c0_8, %c0_9, %c0_10] : memref<1x16x32xf32, #tpu.memory_space<vmem>>, vector<1x16x32xf32>
    %10 = vector.shape_cast %9 : vector<1x16x32xf32> to vector<16x32xf32>
    %11 = vector.shape_cast %8 : vector<16x32xf32> to vector<1x16x32xf32>
    tpu.vector_store %arg5[%c0_8, %c0_9, %c0_10], %11 {strides = array<i32>} : memref<1x16x32xf32, #tpu.memory_space<vmem>>, vector<1x16x32xf32>,
    return
  }
  func.func @transform_0(%arg0: i32) -> (i32, i32, i32) {
    %c0_i32 = arith.constant 0 : i32
    %c0_i32_0 = arith.constant 0 : i32
    %c0_i32_1 = arith.constant 0 : i32
    return %arg0, %c0_i32, %c0_i32_0 : i32, i32, i32
  }
  func.func @transform_1(%arg0: i32) -> (i32, i32) {
    %c0_i32 = arith.constant 0 : i32
    %c0_i32_0 = arith.constant 0 : i32
    %c0_i32_1 = arith.constant 0 : i32
    return %c0_i32, %c0_i32_0 : i32, i32
  }
  func.func @transform_2(%arg0: i32) -> (i32, i32) {
    %c0_i32 = arith.constant 0 : i32
    %c0_i32_0 = arith.constant 0 : i32
    %c0_i32_1 = arith.constant 0 : i32
    return %c0_i32, %c0_i32_0 : i32, i32
  }
  func.func @transform_3(%arg0: i32) -> (i32, i32) {
    %c0_i32 = arith.constant 0 : i32
    %c0_i32_0 = arith.constant 0 : i32
    %c0_i32_1 = arith.constant 0 : i32
    return %c0_i32, %c0_i32_0 : i32, i32
  }
  func.func @transform_4(%arg0: i32) -> (i32, i32, i32) {
    %c0_i32 = arith.constant 0 : i32
    %c0_i32_0 = arith.constant 0 : i32
    %c0_i32_1 = arith.constant 0 : i32
    return %arg0, %c0_i32, %c0_i32_0 : i32, i32, i32
  }
}

module attributes {stable_mosaic.version = 11 : i64} {
  func.func @_self_attn_block_kernel(%arg0: i32, %arg1: memref<1x16x32xf32, #tpu.memory_space<vmem>>, %arg2: memref<32x96xf32, #tpu.memory_space<vmem>>, %arg3: memref<1x96xf32, #tpu.memory_space<vmem>>, %arg4: memref<32x32xf32, #tpu.memory_space<vmem>>, %arg5: memref<1x32xf32, #tpu.memory_space<vmem>>, %arg6: memref<1x32xf32, #tpu.memory_space<vmem>>, %arg7: memref<1x32xf32, #tpu.memory_space<vmem>>, %arg8: memref<1x16x32xf32, #tpu.memory_space<vmem>>) attributes {dimension_semantics = [#tpu.dimension_semantics<parallel>], iteration_bounds = array<i64: 2>, scalar_prefetch = 0 : i64, scratch_operands = 0 : i64, tpu.core_type = #tpu.core_type<tc>, window_params = [{transform_indices = @transform_0, window_bounds = array<i64: 1, 16, 32>}, {pipeline_mode = #tpu.pipeline_mode<synchronous>, transform_indices = @transform_1, window_bounds = array<i64: 32, 96>}, {pipeline_mode = #tpu.pipeline_mode<synchronous>, transform_indices = @transform_2, window_bounds = array<i64: 1, 96>}, {pipeline_mode = #tpu.pipeline_mode<synchronous>, transform_indices = @transform_3, window_bounds = array<i64: 32, 32>}, {pipeline_mode = #tpu.pipeline_mode<synchronous>, transform_indices = @transform_4, window_bounds = array<i64: 1, 32>}, {pipeline_mode = #tpu.pipeline_mode<synchronous>, transform_indices = @transform_5, window_bounds = array<i64: 1, 32>}, {pipeline_mode = #tpu.pipeline_mode<synchronous>, transform_indices = @transform_6, window_bounds = array<i64: 1, 32>}, {transform_indices = @transform_7, window_bounds = array<i64: 1, 16, 32>}]} {
    %c0 = arith.constant 0 : index
    %c0_0 = arith.constant 0 : index
    %c0_1 = arith.constant 0 : index
    %0 = vector.load %arg1[%c0, %c0_0, %c0_1] : memref<1x16x32xf32, #tpu.memory_space<vmem>>, vector<1x16x32xf32>
    %1 = vector.shape_cast %0 : vector<1x16x32xf32> to vector<16x32xf32>
    %c0_2 = arith.constant 0 : index
    %c0_3 = arith.constant 0 : index
    %2 = vector.load %arg2[%c0_2, %c0_3] : memref<32x96xf32, #tpu.memory_space<vmem>>, vector<32x96xf32>
    %cst = arith.constant dense<0.000000e+00> : vector<16x96xf32>
    %3 = tpu.matmul %1, %2, %cst {dimension_numbers = #tpu.dot_dimension_numbers<[1], [0], [0], [1], [0, 0, 1, 1], [], []>} : vector<16x32xf32>, vector<32x96xf32>, vector<16x96xf32> -> vector<16x96xf32>
    %c0_4 = arith.constant 0 : index
    %c0_5 = arith.constant 0 : index
    %4 = vector.load %arg3[%c0_4, %c0_5] : memref<1x96xf32, #tpu.memory_space<vmem>>, vector<1x96xf32>
    %5 = vector.broadcast %4 : vector<1x96xf32> to vector<16x96xf32>
    %6 = arith.addf %3, %5 : vector<16x96xf32>
    %7 = vector.extract_strided_slice %6 {offsets = [0, 0], sizes = [16, 32], strides = [1, 1]} : vector<16x96xf32> to vector<16x32xf32>
    %cst_6 = arith.constant 0.353553385 : f32
    %8 = vector.broadcast %cst_6 : f32 to vector<16x32xf32>
    %9 = arith.mulf %7, %8 : vector<16x32xf32>
    %10 = vector.extract_strided_slice %6 {offsets = [0, 32], sizes = [16, 32], strides = [1, 1]} : vector<16x96xf32> to vector<16x32xf32>
    %11 = vector.extract_strided_slice %6 {offsets = [0, 64], sizes = [16, 32], strides = [1, 1]} : vector<16x96xf32> to vector<16x32xf32>
    %c0_7 = arith.constant 0 : index
    %c0_8 = arith.constant 0 : index
    %12 = vector.load %arg4[%c0_7, %c0_8] : memref<32x32xf32, #tpu.memory_space<vmem>>, vector<32x32xf32>
    %13 = vector.extract_strided_slice %9 {offsets = [0, 0], sizes = [16, 8], strides = [1, 1]} : vector<16x32xf32> to vector<16x8xf32>
    %14 = vector.extract_strided_slice %10 {offsets = [0, 0], sizes = [16, 8], strides = [1, 1]} : vector<16x32xf32> to vector<16x8xf32>
    %15 = vector.extract_strided_slice %11 {offsets = [0, 0], sizes = [16, 8], strides = [1, 1]} : vector<16x32xf32> to vector<16x8xf32>
    %cst_9 = arith.constant dense<0.000000e+00> : vector<16x16xf32>
    %16 = tpu.matmul %13, %14, %cst_9 {dimension_numbers = #tpu.dot_dimension_numbers<[1], [1], [0], [0], [0, 0, 1, 0], [], []>} : vector<16x8xf32>, vector<16x8xf32>, vector<16x16xf32> -> vector<16x16xf32>
    %cst_10 = arith.constant dense<0xFF800000> : vector<16xf32>
    %17 = vector.multi_reduction <maximumf>, %16, %cst_10 [1] : vector<16x16xf32> to vector<16xf32>
    %18 = vector.shape_cast %17 : vector<16xf32> to vector<16x1xf32>
    %19 = vector.broadcast %18 : vector<16x1xf32> to vector<16x16xf32>
    %20 = arith.subf %16, %19 : vector<16x16xf32>
    %21 = math.exp %20 : vector<16x16xf32>
    %cst_11 = arith.constant dense<0.000000e+00> : vector<16xf32>
    %22 = vector.multi_reduction <add>, %21, %cst_11 [1] : vector<16x16xf32> to vector<16xf32>
    %23 = vector.shape_cast %22 : vector<16xf32> to vector<16x1xf32>
    %24 = tpu.reciprocal %23 {approx = true} : vector<16x1xf32> -> vector<16x1xf32>
    %25 = vector.broadcast %24 : vector<16x1xf32> to vector<16x16xf32>
    %26 = arith.mulf %21, %25 : vector<16x16xf32>
    %cst_12 = arith.constant dense<0.000000e+00> : vector<16x8xf32>
    %27 = tpu.matmul %26, %15, %cst_12 {dimension_numbers = #tpu.dot_dimension_numbers<[1], [0], [0], [1], [0, 0, 1, 1], [], []>} : vector<16x16xf32>, vector<16x8xf32>, vector<16x8xf32> -> vector<16x8xf32>
    %28 = vector.extract_strided_slice %12 {offsets = [0, 0], sizes = [8, 32], strides = [1, 1]} : vector<32x32xf32> to vector<8x32xf32>
    %cst_13 = arith.constant dense<0.000000e+00> : vector<16x32xf32>
    %29 = tpu.matmul %27, %28, %cst_13 {dimension_numbers = #tpu.dot_dimension_numbers<[1], [0], [0], [1], [0, 0, 1, 1], [], []>} : vector<16x8xf32>, vector<8x32xf32>, vector<16x32xf32> -> vector<16x32xf32>
    %30 = vector.extract_strided_slice %9 {offsets = [0, 8], sizes = [16, 8], strides = [1, 1]} : vector<16x32xf32> to vector<16x8xf32>
    %31 = vector.extract_strided_slice %10 {offsets = [0, 8], sizes = [16, 8], strides = [1, 1]} : vector<16x32xf32> to vector<16x8xf32>
    %32 = vector.extract_strided_slice %11 {offsets = [0, 8], sizes = [16, 8], strides = [1, 1]} : vector<16x32xf32> to vector<16x8xf32>
    %cst_14 = arith.constant dense<0.000000e+00> : vector<16x16xf32>
    %33 = tpu.matmul %30, %31, %cst_14 {dimension_numbers = #tpu.dot_dimension_numbers<[1], [1], [0], [0], [0, 0, 1, 0], [], []>} : vector<16x8xf32>, vector<16x8xf32>, vector<16x16xf32> -> vector<16x16xf32>
    %cst_15 = arith.constant dense<0xFF800000> : vector<16xf32>
    %34 = vector.multi_reduction <maximumf>, %33, %cst_15 [1] : vector<16x16xf32> to vector<16xf32>
    %35 = vector.shape_cast %34 : vector<16xf32> to vector<16x1xf32>
    %36 = vector.broadcast %35 : vector<16x1xf32> to vector<16x16xf32>
    %37 = arith.subf %33, %36 : vector<16x16xf32>
    %38 = math.exp %37 : vector<16x16xf32>
    %cst_16 = arith.constant dense<0.000000e+00> : vector<16xf32>
    %39 = vector.multi_reduction <add>, %38, %cst_16 [1] : vector<16x16xf32> to vector<16xf32>
    %40 = vector.shape_cast %39 : vector<16xf32> to vector<16x1xf32>
    %41 = tpu.reciprocal %40 {approx = true} : vector<16x1xf32> -> vector<16x1xf32>
    %42 = vector.broadcast %41 : vector<16x1xf32> to vector<16x16xf32>
    %43 = arith.mulf %38, %42 : vector<16x16xf32>
    %cst_17 = arith.constant dense<0.000000e+00> : vector<16x8xf32>
    %44 = tpu.matmul %43, %32, %cst_17 {dimension_numbers = #tpu.dot_dimension_numbers<[1], [0], [0], [1], [0, 0, 1, 1], [], []>} : vector<16x16xf32>, vector<16x8xf32>, vector<16x8xf32> -> vector<16x8xf32>
    %45 = vector.extract_strided_slice %12 {offsets = [8, 0], sizes = [8, 32], strides = [1, 1]} : vector<32x32xf32> to vector<8x32xf32>
    %cst_18 = arith.constant dense<0.000000e+00> : vector<16x32xf32>
    %46 = tpu.matmul %44, %45, %cst_18 {dimension_numbers = #tpu.dot_dimension_numbers<[1], [0], [0], [1], [0, 0, 1, 1], [], []>} : vector<16x8xf32>, vector<8x32xf32>, vector<16x32xf32> -> vector<16x32xf32>
    %47 = arith.addf %29, %46 : vector<16x32xf32>
    %48 = vector.extract_strided_slice %9 {offsets = [0, 16], sizes = [16, 8], strides = [1, 1]} : vector<16x32xf32> to vector<16x8xf32>
    %49 = vector.extract_strided_slice %10 {offsets = [0, 16], sizes = [16, 8], strides = [1, 1]} : vector<16x32xf32> to vector<16x8xf32>
    %50 = vector.extract_strided_slice %11 {offsets = [0, 16], sizes = [16, 8], strides = [1, 1]} : vector<16x32xf32> to vector<16x8xf32>
    %cst_19 = arith.constant dense<0.000000e+00> : vector<16x16xf32>
    %51 = tpu.matmul %48, %49, %cst_19 {dimension_numbers = #tpu.dot_dimension_numbers<[1], [1], [0], [0], [0, 0, 1, 0], [], []>} : vector<16x8xf32>, vector<16x8xf32>, vector<16x16xf32> -> vector<16x16xf32>
    %cst_20 = arith.constant dense<0xFF800000> : vector<16xf32>
    %52 = vector.multi_reduction <maximumf>, %51, %cst_20 [1] : vector<16x16xf32> to vector<16xf32>
    %53 = vector.shape_cast %52 : vector<16xf32> to vector<16x1xf32>
    %54 = vector.broadcast %53 : vector<16x1xf32> to vector<16x16xf32>
    %55 = arith.subf %51, %54 : vector<16x16xf32>
    %56 = math.exp %55 : vector<16x16xf32>
    %cst_21 = arith.constant dense<0.000000e+00> : vector<16xf32>
    %57 = vector.multi_reduction <add>, %56, %cst_21 [1] : vector<16x16xf32> to vector<16xf32>
    %58 = vector.shape_cast %57 : vector<16xf32> to vector<16x1xf32>
    %59 = tpu.reciprocal %58 {approx = true} : vector<16x1xf32> -> vector<16x1xf32>
    %60 = vector.broadcast %59 : vector<16x1xf32> to vector<16x16xf32>
    %61 = arith.mulf %56, %60 : vector<16x16xf32>
    %cst_22 = arith.constant dense<0.000000e+00> : vector<16x8xf32>
    %62 = tpu.matmul %61, %50, %cst_22 {dimension_numbers = #tpu.dot_dimension_numbers<[1], [0], [0], [1], [0, 0, 1, 1], [], []>} : vector<16x16xf32>, vector<16x8xf32>, vector<16x8xf32> -> vector<16x8xf32>
    %63 = vector.extract_strided_slice %12 {offsets = [16, 0], sizes = [8, 32], strides = [1, 1]} : vector<32x32xf32> to vector<8x32xf32>
    %cst_23 = arith.constant dense<0.000000e+00> : vector<16x32xf32>
    %64 = tpu.matmul %62, %63, %cst_23 {dimension_numbers = #tpu.dot_dimension_numbers<[1], [0], [0], [1], [0, 0, 1, 1], [], []>} : vector<16x8xf32>, vector<8x32xf32>, vector<16x32xf32> -> vector<16x32xf32>
    %65 = arith.addf %47, %64 : vector<16x32xf32>
    %66 = vector.extract_strided_slice %9 {offsets = [0, 24], sizes = [16, 8], strides = [1, 1]} : vector<16x32xf32> to vector<16x8xf32>
    %67 = vector.extract_strided_slice %10 {offsets = [0, 24], sizes = [16, 8], strides = [1, 1]} : vector<16x32xf32> to vector<16x8xf32>
    %68 = vector.extract_strided_slice %11 {offsets = [0, 24], sizes = [16, 8], strides = [1, 1]} : vector<16x32xf32> to vector<16x8xf32>
    %cst_24 = arith.constant dense<0.000000e+00> : vector<16x16xf32>
    %69 = tpu.matmul %66, %67, %cst_24 {dimension_numbers = #tpu.dot_dimension_numbers<[1], [1], [0], [0], [0, 0, 1, 0], [], []>} : vector<16x8xf32>, vector<16x8xf32>, vector<16x16xf32> -> vector<16x16xf32>
    %cst_25 = arith.constant dense<0xFF800000> : vector<16xf32>
    %70 = vector.multi_reduction <maximumf>, %69, %cst_25 [1] : vector<16x16xf32> to vector<16xf32>
    %71 = vector.shape_cast %70 : vector<16xf32> to vector<16x1xf32>
    %72 = vector.broadcast %71 : vector<16x1xf32> to vector<16x16xf32>
    %73 = arith.subf %69, %72 : vector<16x16xf32>
    %74 = math.exp %73 : vector<16x16xf32>
    %cst_26 = arith.constant dense<0.000000e+00> : vector<16xf32>
    %75 = vector.multi_reduction <add>, %74, %cst_26 [1] : vector<16x16xf32> to vector<16xf32>
    %76 = vector.shape_cast %75 : vector<16xf32> to vector<16x1xf32>
    %77 = tpu.reciprocal %76 {approx = true} : vector<16x1xf32> -> vector<16x1xf32>
    %78 = vector.broadcast %77 : vector<16x1xf32> to vector<16x16xf32>
    %79 = arith.mulf %74, %78 : vector<16x16xf32>
    %cst_27 = arith.constant dense<0.000000e+00> : vector<16x8xf32>
    %80 = tpu.matmul %79, %68, %cst_27 {dimension_numbers = #tpu.dot_dimension_numbers<[1], [0], [0], [1], [0, 0, 1, 1], [], []>} : vector<16x16xf32>, vector<16x8xf32>, vector<16x8xf32> -> vector<16x8xf32>
    %81 = vector.extract_strided_slice %12 {offsets = [24, 0], sizes = [8, 32], strides = [1, 1]} : vector<32x32xf32> to vector<8x32xf32>
    %cst_28 = arith.constant dense<0.000000e+00> : vector<16x32xf32>
    %82 = tpu.matmul %80, %81, %cst_28 {dimension_numbers = #tpu.dot_dimension_numbers<[1], [0], [0], [1], [0, 0, 1, 1], [], []>} : vector<16x8xf32>, vector<8x32xf32>, vector<16x32xf32> -> vector<16x32xf32>
    %83 = arith.addf %65, %82 : vector<16x32xf32>
    %c0_29 = arith.constant 0 : index
    %c0_30 = arith.constant 0 : index
    %84 = vector.load %arg5[%c0_29, %c0_30] : memref<1x32xf32, #tpu.memory_space<vmem>>, vector<1x32xf32>
    %85 = vector.broadcast %84 : vector<1x32xf32> to vector<16x32xf32>
    %86 = arith.addf %83, %85 : vector<16x32xf32>
    %87 = arith.addf %1, %86 : vector<16x32xf32>
    %c0_31 = arith.constant 0 : index
    %c0_32 = arith.constant 0 : index
    %88 = vector.load %arg6[%c0_31, %c0_32] : memref<1x32xf32, #tpu.memory_space<vmem>>, vector<1x32xf32>
    %c0_33 = arith.constant 0 : index
    %c0_34 = arith.constant 0 : index
    %89 = vector.load %arg7[%c0_33, %c0_34] : memref<1x32xf32, #tpu.memory_space<vmem>>, vector<1x32xf32>
    %cst_35 = arith.constant dense<0.000000e+00> : vector<16xf32>
    %90 = vector.multi_reduction <add>, %87, %cst_35 [1] : vector<16x32xf32> to vector<16xf32>
    %91 = vector.shape_cast %90 : vector<16xf32> to vector<16x1xf32>
    %cst_36 = arith.constant 3.200000e+01 : f32
    %92 = vector.broadcast %cst_36 : f32 to vector<16x1xf32>
    %93 = arith.divf %91, %92 : vector<16x1xf32>
    %94 = vector.broadcast %93 : vector<16x1xf32> to vector<16x32xf32>
    %95 = arith.subf %87, %94 : vector<16x32xf32>
    %96 = arith.mulf %95, %95 : vector<16x32xf32>
    %cst_37 = arith.constant dense<0.000000e+00> : vector<16xf32>
    %97 = vector.multi_reduction <add>, %96, %cst_37 [1] : vector<16x32xf32> to vector<16xf32>
    %98 = vector.shape_cast %97 : vector<16xf32> to vector<16x1xf32>
    %cst_38 = arith.constant 3.200000e+01 : f32
    %99 = vector.broadcast %cst_38 : f32 to vector<16x1xf32>
    %100 = arith.divf %98, %99 : vector<16x1xf32>
    %101 = vector.broadcast %93 : vector<16x1xf32> to vector<16x32xf32>
    %102 = arith.subf %87, %101 : vector<16x32xf32>
    %cst_39 = arith.constant 9.99999974E-6 : f32
    %103 = vector.broadcast %cst_39 : f32 to vector<16x1xf32>
    %104 = arith.addf %100, %103 : vector<16x1xf32>
    %105 = math.rsqrt %104 : vector<16x1xf32>
    %106 = vector.broadcast %105 : vector<16x1xf32> to vector<16x32xf32>
    %107 = arith.mulf %102, %106 : vector<16x32xf32>
    %108 = vector.broadcast %88 : vector<1x32xf32> to vector<16x32xf32>
    %109 = arith.mulf %107, %108 : vector<16x32xf32>
    %110 = vector.broadcast %89 : vector<1x32xf32> to vector<16x32xf32>
    %111 = arith.addf %109, %110 : vector<16x32xf32>
    %c0_40 = arith.constant 0 : index
    %c0_41 = arith.constant 0 : index
    %c0_42 = arith.constant 0 : index
    %112 = vector.load %arg8[%c0_40, %c0_41, %c0_42] : memref<1x16x32xf32, #tpu.memory_space<vmem>>, vector<1x16x32xf32>
    %113 = vector.shape_cast %112 : vector<1x16x32xf32> to vector<16x32xf32>
    %114 = vector.shape_cast %111 : vector<16x32xf32> to vector<1x16x32xf32>
    tpu.vector_store %arg8[%c0_40, %c0_41, %c0_42], %114 {strides = array<i32>} : memref<1x16x32xf32, #tpu.memory_space<vmem>>, vector<1x16x32xf32>,
    return
  }
  func.func @transform_0(%arg0: i32) -> (i32, i32, i32) {
    %c0_i32 = arith.constant 0 : i32
    %c0_i32_0 = arith.constant 0 : i32
    %c0_i32_1 = arith.constant 0 : i32
    return %arg0, %c0_i32, %c0_i32_0 : i32, i32, i32
  }
  func.func @transform_1(%arg0: i32) -> (i32, i32) {
    %c0_i32 = arith.constant 0 : i32
    %c0_i32_0 = arith.constant 0 : i32
    %c0_i32_1 = arith.constant 0 : i32
    return %c0_i32, %c0_i32_0 : i32, i32
  }
  func.func @transform_2(%arg0: i32) -> (i32, i32) {
    %c0_i32 = arith.constant 0 : i32
    %c0_i32_0 = arith.constant 0 : i32
    %c0_i32_1 = arith.constant 0 : i32
    return %c0_i32, %c0_i32_0 : i32, i32
  }
  func.func @transform_3(%arg0: i32) -> (i32, i32) {
    %c0_i32 = arith.constant 0 : i32
    %c0_i32_0 = arith.constant 0 : i32
    %c0_i32_1 = arith.constant 0 : i32
    return %c0_i32, %c0_i32_0 : i32, i32
  }
  func.func @transform_4(%arg0: i32) -> (i32, i32) {
    %c0_i32 = arith.constant 0 : i32
    %c0_i32_0 = arith.constant 0 : i32
    %c0_i32_1 = arith.constant 0 : i32
    return %c0_i32, %c0_i32_0 : i32, i32
  }
  func.func @transform_5(%arg0: i32) -> (i32, i32) {
    %c0_i32 = arith.constant 0 : i32
    %c0_i32_0 = arith.constant 0 : i32
    %c0_i32_1 = arith.constant 0 : i32
    return %c0_i32, %c0_i32_0 : i32, i32
  }
  func.func @transform_6(%arg0: i32) -> (i32, i32) {
    %c0_i32 = arith.constant 0 : i32
    %c0_i32_0 = arith.constant 0 : i32
    %c0_i32_1 = arith.constant 0 : i32
    return %c0_i32, %c0_i32_0 : i32, i32
  }
  func.func @transform_7(%arg0: i32) -> (i32, i32, i32) {
    %c0_i32 = arith.constant 0 : i32
    %c0_i32_0 = arith.constant 0 : i32
    %c0_i32_1 = arith.constant 0 : i32
    return %arg0, %c0_i32, %c0_i32_0 : i32, i32, i32
  }
}

module attributes {stable_mosaic.version = 11 : i64} {
  func.func @_ffn_block_kernel(%arg0: i32, %arg1: memref<32x32xf32, #tpu.memory_space<vmem>>, %arg2: memref<32x64xf32, #tpu.memory_space<vmem>>, %arg3: memref<1x64xf32, #tpu.memory_space<vmem>>, %arg4: memref<64x32xf32, #tpu.memory_space<vmem>>, %arg5: memref<1x32xf32, #tpu.memory_space<vmem>>, %arg6: memref<1x32xf32, #tpu.memory_space<vmem>>, %arg7: memref<1x32xf32, #tpu.memory_space<vmem>>, %arg8: memref<32x32xf32, #tpu.memory_space<vmem>>) attributes {dimension_semantics = [#tpu.dimension_semantics<parallel>], iteration_bounds = array<i64: 1>, scalar_prefetch = 0 : i64, scratch_operands = 0 : i64, tpu.core_type = #tpu.core_type<tc>, window_params = [{transform_indices = @transform_0, window_bounds = array<i64: 32, 32>}, {pipeline_mode = #tpu.pipeline_mode<synchronous>, transform_indices = @transform_1, window_bounds = array<i64: 32, 64>}, {pipeline_mode = #tpu.pipeline_mode<synchronous>, transform_indices = @transform_2, window_bounds = array<i64: 1, 64>}, {pipeline_mode = #tpu.pipeline_mode<synchronous>, transform_indices = @transform_3, window_bounds = array<i64: 64, 32>}, {pipeline_mode = #tpu.pipeline_mode<synchronous>, transform_indices = @transform_4, window_bounds = array<i64: 1, 32>}, {pipeline_mode = #tpu.pipeline_mode<synchronous>, transform_indices = @transform_5, window_bounds = array<i64: 1, 32>}, {pipeline_mode = #tpu.pipeline_mode<synchronous>, transform_indices = @transform_6, window_bounds = array<i64: 1, 32>}, {transform_indices = @transform_7, window_bounds = array<i64: 32, 32>}]} {
    %c0 = arith.constant 0 : index
    %c0_0 = arith.constant 0 : index
    %0 = vector.load %arg1[%c0, %c0_0] : memref<32x32xf32, #tpu.memory_space<vmem>>, vector<32x32xf32>
    %c0_1 = arith.constant 0 : index
    %c0_2 = arith.constant 0 : index
    %1 = vector.load %arg2[%c0_1, %c0_2] : memref<32x64xf32, #tpu.memory_space<vmem>>, vector<32x64xf32>
    %cst = arith.constant dense<0.000000e+00> : vector<32x64xf32>
    %2 = tpu.matmul %0, %1, %cst {dimension_numbers = #tpu.dot_dimension_numbers<[1], [0], [0], [1], [0, 0, 1, 1], [], []>} : vector<32x32xf32>, vector<32x64xf32>, vector<32x64xf32> -> vector<32x64xf32>
    %c0_3 = arith.constant 0 : index
    %c0_4 = arith.constant 0 : index
    %3 = vector.load %arg3[%c0_3, %c0_4] : memref<1x64xf32, #tpu.memory_space<vmem>>, vector<1x64xf32>
    %4 = vector.broadcast %3 : vector<1x64xf32> to vector<32x64xf32>
    %5 = arith.addf %2, %4 : vector<32x64xf32>
    %cst_5 = arith.constant 0.000000e+00 : f32
    %6 = vector.broadcast %cst_5 : f32 to vector<32x64xf32>
    %7 = arith.maximumf %5, %6 : vector<32x64xf32>
    %c0_6 = arith.constant 0 : index
    %c0_7 = arith.constant 0 : index
    %8 = vector.load %arg4[%c0_6, %c0_7] : memref<64x32xf32, #tpu.memory_space<vmem>>, vector<64x32xf32>
    %cst_8 = arith.constant dense<0.000000e+00> : vector<32x32xf32>
    %9 = tpu.matmul %7, %8, %cst_8 {dimension_numbers = #tpu.dot_dimension_numbers<[1], [0], [0], [1], [0, 0, 1, 1], [], []>} : vector<32x64xf32>, vector<64x32xf32>, vector<32x32xf32> -> vector<32x32xf32>
    %c0_9 = arith.constant 0 : index
    %c0_10 = arith.constant 0 : index
    %10 = vector.load %arg5[%c0_9, %c0_10] : memref<1x32xf32, #tpu.memory_space<vmem>>, vector<1x32xf32>
    %11 = vector.broadcast %10 : vector<1x32xf32> to vector<32x32xf32>
    %12 = arith.addf %9, %11 : vector<32x32xf32>
    %13 = arith.addf %0, %12 : vector<32x32xf32>
    %c0_11 = arith.constant 0 : index
    %c0_12 = arith.constant 0 : index
    %14 = vector.load %arg6[%c0_11, %c0_12] : memref<1x32xf32, #tpu.memory_space<vmem>>, vector<1x32xf32>
    %c0_13 = arith.constant 0 : index
    %c0_14 = arith.constant 0 : index
    %15 = vector.load %arg7[%c0_13, %c0_14] : memref<1x32xf32, #tpu.memory_space<vmem>>, vector<1x32xf32>
    %cst_15 = arith.constant dense<0.000000e+00> : vector<32xf32>
    %16 = vector.multi_reduction <add>, %13, %cst_15 [1] : vector<32x32xf32> to vector<32xf32>
    %17 = vector.shape_cast %16 : vector<32xf32> to vector<32x1xf32>
    %cst_16 = arith.constant 3.200000e+01 : f32
    %18 = vector.broadcast %cst_16 : f32 to vector<32x1xf32>
    %19 = arith.divf %17, %18 : vector<32x1xf32>
    %20 = vector.broadcast %19 : vector<32x1xf32> to vector<32x32xf32>
    %21 = arith.subf %13, %20 : vector<32x32xf32>
    %22 = arith.mulf %21, %21 : vector<32x32xf32>
    %cst_17 = arith.constant dense<0.000000e+00> : vector<32xf32>
    %23 = vector.multi_reduction <add>, %22, %cst_17 [1] : vector<32x32xf32> to vector<32xf32>
    %24 = vector.shape_cast %23 : vector<32xf32> to vector<32x1xf32>
    %cst_18 = arith.constant 3.200000e+01 : f32
    %25 = vector.broadcast %cst_18 : f32 to vector<32x1xf32>
    %26 = arith.divf %24, %25 : vector<32x1xf32>
    %27 = vector.broadcast %19 : vector<32x1xf32> to vector<32x32xf32>
    %28 = arith.subf %13, %27 : vector<32x32xf32>
    %cst_19 = arith.constant 9.99999974E-6 : f32
    %29 = vector.broadcast %cst_19 : f32 to vector<32x1xf32>
    %30 = arith.addf %26, %29 : vector<32x1xf32>
    %31 = math.rsqrt %30 : vector<32x1xf32>
    %32 = vector.broadcast %31 : vector<32x1xf32> to vector<32x32xf32>
    %33 = arith.mulf %28, %32 : vector<32x32xf32>
    %34 = vector.broadcast %14 : vector<1x32xf32> to vector<32x32xf32>
    %35 = arith.mulf %33, %34 : vector<32x32xf32>
    %36 = vector.broadcast %15 : vector<1x32xf32> to vector<32x32xf32>
    %37 = arith.addf %35, %36 : vector<32x32xf32>
    %c0_20 = arith.constant 0 : index
    %c0_21 = arith.constant 0 : index
    %38 = vector.load %arg8[%c0_20, %c0_21] : memref<32x32xf32, #tpu.memory_space<vmem>>, vector<32x32xf32>
    tpu.vector_store %arg8[%c0_20, %c0_21], %37 {strides = array<i32>} : memref<32x32xf32, #tpu.memory_space<vmem>>, vector<32x32xf32>,
    return
  }
  func.func @transform_0(%arg0: i32) -> (i32, i32) {
    %c0_i32 = arith.constant 0 : i32
    %c0_i32_0 = arith.constant 0 : i32
    return %arg0, %c0_i32 : i32, i32
  }
  func.func @transform_1(%arg0: i32) -> (i32, i32) {
    %c0_i32 = arith.constant 0 : i32
    %c0_i32_0 = arith.constant 0 : i32
    %c0_i32_1 = arith.constant 0 : i32
    return %c0_i32, %c0_i32_0 : i32, i32
  }
  func.func @transform_2(%arg0: i32) -> (i32, i32) {
    %c0_i32 = arith.constant 0 : i32
    %c0_i32_0 = arith.constant 0 : i32
    %c0_i32_1 = arith.constant 0 : i32
    return %c0_i32, %c0_i32_0 : i32, i32
  }
  func.func @transform_3(%arg0: i32) -> (i32, i32) {
    %c0_i32 = arith.constant 0 : i32
    %c0_i32_0 = arith.constant 0 : i32
    %c0_i32_1 = arith.constant 0 : i32
    return %c0_i32, %c0_i32_0 : i32, i32
  }
  func.func @transform_4(%arg0: i32) -> (i32, i32) {
    %c0_i32 = arith.constant 0 : i32
    %c0_i32_0 = arith.constant 0 : i32
    %c0_i32_1 = arith.constant 0 : i32
    return %c0_i32, %c0_i32_0 : i32, i32
  }
  func.func @transform_5(%arg0: i32) -> (i32, i32) {
    %c0_i32 = arith.constant 0 : i32
    %c0_i32_0 = arith.constant 0 : i32
    %c0_i32_1 = arith.constant 0 : i32
    return %c0_i32, %c0_i32_0 : i32, i32
  }
  func.func @transform_6(%arg0: i32) -> (i32, i32) {
    %c0_i32 = arith.constant 0 : i32
    %c0_i32_0 = arith.constant 0 : i32
    %c0_i32_1 = arith.constant 0 : i32
    return %c0_i32, %c0_i32_0 : i32, i32
  }
  func.func @transform_7(%arg0: i32) -> (i32, i32) {
    %c0_i32 = arith.constant 0 : i32
    %c0_i32_0 = arith.constant 0 : i32
    return %arg0, %c0_i32 : i32, i32
  }
}

module attributes {stable_mosaic.version = 11 : i64} {
  func.func @_self_attn_block_kernel(%arg0: i32, %arg1: memref<1x16x32xf32, #tpu.memory_space<vmem>>, %arg2: memref<32x96xf32, #tpu.memory_space<vmem>>, %arg3: memref<1x96xf32, #tpu.memory_space<vmem>>, %arg4: memref<32x32xf32, #tpu.memory_space<vmem>>, %arg5: memref<1x32xf32, #tpu.memory_space<vmem>>, %arg6: memref<1x32xf32, #tpu.memory_space<vmem>>, %arg7: memref<1x32xf32, #tpu.memory_space<vmem>>, %arg8: memref<1x16x32xf32, #tpu.memory_space<vmem>>) attributes {dimension_semantics = [#tpu.dimension_semantics<parallel>], iteration_bounds = array<i64: 2>, scalar_prefetch = 0 : i64, scratch_operands = 0 : i64, tpu.core_type = #tpu.core_type<tc>, window_params = [{transform_indices = @transform_0, window_bounds = array<i64: 1, 16, 32>}, {pipeline_mode = #tpu.pipeline_mode<synchronous>, transform_indices = @transform_1, window_bounds = array<i64: 32, 96>}, {pipeline_mode = #tpu.pipeline_mode<synchronous>, transform_indices = @transform_2, window_bounds = array<i64: 1, 96>}, {pipeline_mode = #tpu.pipeline_mode<synchronous>, transform_indices = @transform_3, window_bounds = array<i64: 32, 32>}, {pipeline_mode = #tpu.pipeline_mode<synchronous>, transform_indices = @transform_4, window_bounds = array<i64: 1, 32>}, {pipeline_mode = #tpu.pipeline_mode<synchronous>, transform_indices = @transform_5, window_bounds = array<i64: 1, 32>}, {pipeline_mode = #tpu.pipeline_mode<synchronous>, transform_indices = @transform_6, window_bounds = array<i64: 1, 32>}, {transform_indices = @transform_7, window_bounds = array<i64: 1, 16, 32>}]} {
    %c0 = arith.constant 0 : index
    %c0_0 = arith.constant 0 : index
    %c0_1 = arith.constant 0 : index
    %0 = vector.load %arg1[%c0, %c0_0, %c0_1] : memref<1x16x32xf32, #tpu.memory_space<vmem>>, vector<1x16x32xf32>
    %1 = vector.shape_cast %0 : vector<1x16x32xf32> to vector<16x32xf32>
    %c0_2 = arith.constant 0 : index
    %c0_3 = arith.constant 0 : index
    %2 = vector.load %arg2[%c0_2, %c0_3] : memref<32x96xf32, #tpu.memory_space<vmem>>, vector<32x96xf32>
    %cst = arith.constant dense<0.000000e+00> : vector<16x96xf32>
    %3 = tpu.matmul %1, %2, %cst {dimension_numbers = #tpu.dot_dimension_numbers<[1], [0], [0], [1], [0, 0, 1, 1], [], []>} : vector<16x32xf32>, vector<32x96xf32>, vector<16x96xf32> -> vector<16x96xf32>
    %c0_4 = arith.constant 0 : index
    %c0_5 = arith.constant 0 : index
    %4 = vector.load %arg3[%c0_4, %c0_5] : memref<1x96xf32, #tpu.memory_space<vmem>>, vector<1x96xf32>
    %5 = vector.broadcast %4 : vector<1x96xf32> to vector<16x96xf32>
    %6 = arith.addf %3, %5 : vector<16x96xf32>
    %7 = vector.extract_strided_slice %6 {offsets = [0, 0], sizes = [16, 32], strides = [1, 1]} : vector<16x96xf32> to vector<16x32xf32>
    %cst_6 = arith.constant 0.353553385 : f32
    %8 = vector.broadcast %cst_6 : f32 to vector<16x32xf32>
    %9 = arith.mulf %7, %8 : vector<16x32xf32>
    %10 = vector.extract_strided_slice %6 {offsets = [0, 32], sizes = [16, 32], strides = [1, 1]} : vector<16x96xf32> to vector<16x32xf32>
    %11 = vector.extract_strided_slice %6 {offsets = [0, 64], sizes = [16, 32], strides = [1, 1]} : vector<16x96xf32> to vector<16x32xf32>
    %c0_7 = arith.constant 0 : index
    %c0_8 = arith.constant 0 : index
    %12 = vector.load %arg4[%c0_7, %c0_8] : memref<32x32xf32, #tpu.memory_space<vmem>>, vector<32x32xf32>
    %13 = vector.extract_strided_slice %9 {offsets = [0, 0], sizes = [16, 8], strides = [1, 1]} : vector<16x32xf32> to vector<16x8xf32>
    %14 = vector.extract_strided_slice %10 {offsets = [0, 0], sizes = [16, 8], strides = [1, 1]} : vector<16x32xf32> to vector<16x8xf32>
    %15 = vector.extract_strided_slice %11 {offsets = [0, 0], sizes = [16, 8], strides = [1, 1]} : vector<16x32xf32> to vector<16x8xf32>
    %cst_9 = arith.constant dense<0.000000e+00> : vector<16x16xf32>
    %16 = tpu.matmul %13, %14, %cst_9 {dimension_numbers = #tpu.dot_dimension_numbers<[1], [1], [0], [0], [0, 0, 1, 0], [], []>} : vector<16x8xf32>, vector<16x8xf32>, vector<16x16xf32> -> vector<16x16xf32>
    %cst_10 = arith.constant dense<0xFF800000> : vector<16xf32>
    %17 = vector.multi_reduction <maximumf>, %16, %cst_10 [1] : vector<16x16xf32> to vector<16xf32>
    %18 = vector.shape_cast %17 : vector<16xf32> to vector<16x1xf32>
    %19 = vector.broadcast %18 : vector<16x1xf32> to vector<16x16xf32>
    %20 = arith.subf %16, %19 : vector<16x16xf32>
    %21 = math.exp %20 : vector<16x16xf32>
    %cst_11 = arith.constant dense<0.000000e+00> : vector<16xf32>
    %22 = vector.multi_reduction <add>, %21, %cst_11 [1] : vector<16x16xf32> to vector<16xf32>
    %23 = vector.shape_cast %22 : vector<16xf32> to vector<16x1xf32>
    %24 = tpu.reciprocal %23 {approx = true} : vector<16x1xf32> -> vector<16x1xf32>
    %25 = vector.broadcast %24 : vector<16x1xf32> to vector<16x16xf32>
    %26 = arith.mulf %21, %25 : vector<16x16xf32>
    %cst_12 = arith.constant dense<0.000000e+00> : vector<16x8xf32>
    %27 = tpu.matmul %26, %15, %cst_12 {dimension_numbers = #tpu.dot_dimension_numbers<[1], [0], [0], [1], [0, 0, 1, 1], [], []>} : vector<16x16xf32>, vector<16x8xf32>, vector<16x8xf32> -> vector<16x8xf32>
    %28 = vector.extract_strided_slice %12 {offsets = [0, 0], sizes = [8, 32], strides = [1, 1]} : vector<32x32xf32> to vector<8x32xf32>
    %cst_13 = arith.constant dense<0.000000e+00> : vector<16x32xf32>
    %29 = tpu.matmul %27, %28, %cst_13 {dimension_numbers = #tpu.dot_dimension_numbers<[1], [0], [0], [1], [0, 0, 1, 1], [], []>} : vector<16x8xf32>, vector<8x32xf32>, vector<16x32xf32> -> vector<16x32xf32>
    %30 = vector.extract_strided_slice %9 {offsets = [0, 8], sizes = [16, 8], strides = [1, 1]} : vector<16x32xf32> to vector<16x8xf32>
    %31 = vector.extract_strided_slice %10 {offsets = [0, 8], sizes = [16, 8], strides = [1, 1]} : vector<16x32xf32> to vector<16x8xf32>
    %32 = vector.extract_strided_slice %11 {offsets = [0, 8], sizes = [16, 8], strides = [1, 1]} : vector<16x32xf32> to vector<16x8xf32>
    %cst_14 = arith.constant dense<0.000000e+00> : vector<16x16xf32>
    %33 = tpu.matmul %30, %31, %cst_14 {dimension_numbers = #tpu.dot_dimension_numbers<[1], [1], [0], [0], [0, 0, 1, 0], [], []>} : vector<16x8xf32>, vector<16x8xf32>, vector<16x16xf32> -> vector<16x16xf32>
    %cst_15 = arith.constant dense<0xFF800000> : vector<16xf32>
    %34 = vector.multi_reduction <maximumf>, %33, %cst_15 [1] : vector<16x16xf32> to vector<16xf32>
    %35 = vector.shape_cast %34 : vector<16xf32> to vector<16x1xf32>
    %36 = vector.broadcast %35 : vector<16x1xf32> to vector<16x16xf32>
    %37 = arith.subf %33, %36 : vector<16x16xf32>
    %38 = math.exp %37 : vector<16x16xf32>
    %cst_16 = arith.constant dense<0.000000e+00> : vector<16xf32>
    %39 = vector.multi_reduction <add>, %38, %cst_16 [1] : vector<16x16xf32> to vector<16xf32>
    %40 = vector.shape_cast %39 : vector<16xf32> to vector<16x1xf32>
    %41 = tpu.reciprocal %40 {approx = true} : vector<16x1xf32> -> vector<16x1xf32>
    %42 = vector.broadcast %41 : vector<16x1xf32> to vector<16x16xf32>
    %43 = arith.mulf %38, %42 : vector<16x16xf32>
    %cst_17 = arith.constant dense<0.000000e+00> : vector<16x8xf32>
    %44 = tpu.matmul %43, %32, %cst_17 {dimension_numbers = #tpu.dot_dimension_numbers<[1], [0], [0], [1], [0, 0, 1, 1], [], []>} : vector<16x16xf32>, vector<16x8xf32>, vector<16x8xf32> -> vector<16x8xf32>
    %45 = vector.extract_strided_slice %12 {offsets = [8, 0], sizes = [8, 32], strides = [1, 1]} : vector<32x32xf32> to vector<8x32xf32>
    %cst_18 = arith.constant dense<0.000000e+00> : vector<16x32xf32>
    %46 = tpu.matmul %44, %45, %cst_18 {dimension_numbers = #tpu.dot_dimension_numbers<[1], [0], [0], [1], [0, 0, 1, 1], [], []>} : vector<16x8xf32>, vector<8x32xf32>, vector<16x32xf32> -> vector<16x32xf32>
    %47 = arith.addf %29, %46 : vector<16x32xf32>
    %48 = vector.extract_strided_slice %9 {offsets = [0, 16], sizes = [16, 8], strides = [1, 1]} : vector<16x32xf32> to vector<16x8xf32>
    %49 = vector.extract_strided_slice %10 {offsets = [0, 16], sizes = [16, 8], strides = [1, 1]} : vector<16x32xf32> to vector<16x8xf32>
    %50 = vector.extract_strided_slice %11 {offsets = [0, 16], sizes = [16, 8], strides = [1, 1]} : vector<16x32xf32> to vector<16x8xf32>
    %cst_19 = arith.constant dense<0.000000e+00> : vector<16x16xf32>
    %51 = tpu.matmul %48, %49, %cst_19 {dimension_numbers = #tpu.dot_dimension_numbers<[1], [1], [0], [0], [0, 0, 1, 0], [], []>} : vector<16x8xf32>, vector<16x8xf32>, vector<16x16xf32> -> vector<16x16xf32>
    %cst_20 = arith.constant dense<0xFF800000> : vector<16xf32>
    %52 = vector.multi_reduction <maximumf>, %51, %cst_20 [1] : vector<16x16xf32> to vector<16xf32>
    %53 = vector.shape_cast %52 : vector<16xf32> to vector<16x1xf32>
    %54 = vector.broadcast %53 : vector<16x1xf32> to vector<16x16xf32>
    %55 = arith.subf %51, %54 : vector<16x16xf32>
    %56 = math.exp %55 : vector<16x16xf32>
    %cst_21 = arith.constant dense<0.000000e+00> : vector<16xf32>
    %57 = vector.multi_reduction <add>, %56, %cst_21 [1] : vector<16x16xf32> to vector<16xf32>
    %58 = vector.shape_cast %57 : vector<16xf32> to vector<16x1xf32>
    %59 = tpu.reciprocal %58 {approx = true} : vector<16x1xf32> -> vector<16x1xf32>
    %60 = vector.broadcast %59 : vector<16x1xf32> to vector<16x16xf32>
    %61 = arith.mulf %56, %60 : vector<16x16xf32>
    %cst_22 = arith.constant dense<0.000000e+00> : vector<16x8xf32>
    %62 = tpu.matmul %61, %50, %cst_22 {dimension_numbers = #tpu.dot_dimension_numbers<[1], [0], [0], [1], [0, 0, 1, 1], [], []>} : vector<16x16xf32>, vector<16x8xf32>, vector<16x8xf32> -> vector<16x8xf32>
    %63 = vector.extract_strided_slice %12 {offsets = [16, 0], sizes = [8, 32], strides = [1, 1]} : vector<32x32xf32> to vector<8x32xf32>
    %cst_23 = arith.constant dense<0.000000e+00> : vector<16x32xf32>
    %64 = tpu.matmul %62, %63, %cst_23 {dimension_numbers = #tpu.dot_dimension_numbers<[1], [0], [0], [1], [0, 0, 1, 1], [], []>} : vector<16x8xf32>, vector<8x32xf32>, vector<16x32xf32> -> vector<16x32xf32>
    %65 = arith.addf %47, %64 : vector<16x32xf32>
    %66 = vector.extract_strided_slice %9 {offsets = [0, 24], sizes = [16, 8], strides = [1, 1]} : vector<16x32xf32> to vector<16x8xf32>
    %67 = vector.extract_strided_slice %10 {offsets = [0, 24], sizes = [16, 8], strides = [1, 1]} : vector<16x32xf32> to vector<16x8xf32>
    %68 = vector.extract_strided_slice %11 {offsets = [0, 24], sizes = [16, 8], strides = [1, 1]} : vector<16x32xf32> to vector<16x8xf32>
    %cst_24 = arith.constant dense<0.000000e+00> : vector<16x16xf32>
    %69 = tpu.matmul %66, %67, %cst_24 {dimension_numbers = #tpu.dot_dimension_numbers<[1], [1], [0], [0], [0, 0, 1, 0], [], []>} : vector<16x8xf32>, vector<16x8xf32>, vector<16x16xf32> -> vector<16x16xf32>
    %cst_25 = arith.constant dense<0xFF800000> : vector<16xf32>
    %70 = vector.multi_reduction <maximumf>, %69, %cst_25 [1] : vector<16x16xf32> to vector<16xf32>
    %71 = vector.shape_cast %70 : vector<16xf32> to vector<16x1xf32>
    %72 = vector.broadcast %71 : vector<16x1xf32> to vector<16x16xf32>
    %73 = arith.subf %69, %72 : vector<16x16xf32>
    %74 = math.exp %73 : vector<16x16xf32>
    %cst_26 = arith.constant dense<0.000000e+00> : vector<16xf32>
    %75 = vector.multi_reduction <add>, %74, %cst_26 [1] : vector<16x16xf32> to vector<16xf32>
    %76 = vector.shape_cast %75 : vector<16xf32> to vector<16x1xf32>
    %77 = tpu.reciprocal %76 {approx = true} : vector<16x1xf32> -> vector<16x1xf32>
    %78 = vector.broadcast %77 : vector<16x1xf32> to vector<16x16xf32>
    %79 = arith.mulf %74, %78 : vector<16x16xf32>
    %cst_27 = arith.constant dense<0.000000e+00> : vector<16x8xf32>
    %80 = tpu.matmul %79, %68, %cst_27 {dimension_numbers = #tpu.dot_dimension_numbers<[1], [0], [0], [1], [0, 0, 1, 1], [], []>} : vector<16x16xf32>, vector<16x8xf32>, vector<16x8xf32> -> vector<16x8xf32>
    %81 = vector.extract_strided_slice %12 {offsets = [24, 0], sizes = [8, 32], strides = [1, 1]} : vector<32x32xf32> to vector<8x32xf32>
    %cst_28 = arith.constant dense<0.000000e+00> : vector<16x32xf32>
    %82 = tpu.matmul %80, %81, %cst_28 {dimension_numbers = #tpu.dot_dimension_numbers<[1], [0], [0], [1], [0, 0, 1, 1], [], []>} : vector<16x8xf32>, vector<8x32xf32>, vector<16x32xf32> -> vector<16x32xf32>
    %83 = arith.addf %65, %82 : vector<16x32xf32>
    %c0_29 = arith.constant 0 : index
    %c0_30 = arith.constant 0 : index
    %84 = vector.load %arg5[%c0_29, %c0_30] : memref<1x32xf32, #tpu.memory_space<vmem>>, vector<1x32xf32>
    %85 = vector.broadcast %84 : vector<1x32xf32> to vector<16x32xf32>
    %86 = arith.addf %83, %85 : vector<16x32xf32>
    %87 = arith.addf %1, %86 : vector<16x32xf32>
    %c0_31 = arith.constant 0 : index
    %c0_32 = arith.constant 0 : index
    %88 = vector.load %arg6[%c0_31, %c0_32] : memref<1x32xf32, #tpu.memory_space<vmem>>, vector<1x32xf32>
    %c0_33 = arith.constant 0 : index
    %c0_34 = arith.constant 0 : index
    %89 = vector.load %arg7[%c0_33, %c0_34] : memref<1x32xf32, #tpu.memory_space<vmem>>, vector<1x32xf32>
    %cst_35 = arith.constant dense<0.000000e+00> : vector<16xf32>
    %90 = vector.multi_reduction <add>, %87, %cst_35 [1] : vector<16x32xf32> to vector<16xf32>
    %91 = vector.shape_cast %90 : vector<16xf32> to vector<16x1xf32>
    %cst_36 = arith.constant 3.200000e+01 : f32
    %92 = vector.broadcast %cst_36 : f32 to vector<16x1xf32>
    %93 = arith.divf %91, %92 : vector<16x1xf32>
    %94 = vector.broadcast %93 : vector<16x1xf32> to vector<16x32xf32>
    %95 = arith.subf %87, %94 : vector<16x32xf32>
    %96 = arith.mulf %95, %95 : vector<16x32xf32>
    %cst_37 = arith.constant dense<0.000000e+00> : vector<16xf32>
    %97 = vector.multi_reduction <add>, %96, %cst_37 [1] : vector<16x32xf32> to vector<16xf32>
    %98 = vector.shape_cast %97 : vector<16xf32> to vector<16x1xf32>
    %cst_38 = arith.constant 3.200000e+01 : f32
    %99 = vector.broadcast %cst_38 : f32 to vector<16x1xf32>
    %100 = arith.divf %98, %99 : vector<16x1xf32>
    %101 = vector.broadcast %93 : vector<16x1xf32> to vector<16x32xf32>
    %102 = arith.subf %87, %101 : vector<16x32xf32>
    %cst_39 = arith.constant 9.99999974E-6 : f32
    %103 = vector.broadcast %cst_39 : f32 to vector<16x1xf32>
    %104 = arith.addf %100, %103 : vector<16x1xf32>
    %105 = math.rsqrt %104 : vector<16x1xf32>
    %106 = vector.broadcast %105 : vector<16x1xf32> to vector<16x32xf32>
    %107 = arith.mulf %102, %106 : vector<16x32xf32>
    %108 = vector.broadcast %88 : vector<1x32xf32> to vector<16x32xf32>
    %109 = arith.mulf %107, %108 : vector<16x32xf32>
    %110 = vector.broadcast %89 : vector<1x32xf32> to vector<16x32xf32>
    %111 = arith.addf %109, %110 : vector<16x32xf32>
    %c0_40 = arith.constant 0 : index
    %c0_41 = arith.constant 0 : index
    %c0_42 = arith.constant 0 : index
    %112 = vector.load %arg8[%c0_40, %c0_41, %c0_42] : memref<1x16x32xf32, #tpu.memory_space<vmem>>, vector<1x16x32xf32>
    %113 = vector.shape_cast %112 : vector<1x16x32xf32> to vector<16x32xf32>
    %114 = vector.shape_cast %111 : vector<16x32xf32> to vector<1x16x32xf32>
    tpu.vector_store %arg8[%c0_40, %c0_41, %c0_42], %114 {strides = array<i32>} : memref<1x16x32xf32, #tpu.memory_space<vmem>>, vector<1x16x32xf32>,
    return
  }
  func.func @transform_0(%arg0: i32) -> (i32, i32, i32) {
    %c0_i32 = arith.constant 0 : i32
    %c0_i32_0 = arith.constant 0 : i32
    %c0_i32_1 = arith.constant 0 : i32
    return %arg0, %c0_i32, %c0_i32_0 : i32, i32, i32
  }
  func.func @transform_1(%arg0: i32) -> (i32, i32) {
    %c0_i32 = arith.constant 0 : i32
    %c0_i32_0 = arith.constant 0 : i32
    %c0_i32_1 = arith.constant 0 : i32
    return %c0_i32, %c0_i32_0 : i32, i32
  }
  func.func @transform_2(%arg0: i32) -> (i32, i32) {
    %c0_i32 = arith.constant 0 : i32
    %c0_i32_0 = arith.constant 0 : i32
    %c0_i32_1 = arith.constant 0 : i32
    return %c0_i32, %c0_i32_0 : i32, i32
  }
  func.func @transform_3(%arg0: i32) -> (i32, i32) {
    %c0_i32 = arith.constant 0 : i32
    %c0_i32_0 = arith.constant 0 : i32
    %c0_i32_1 = arith.constant 0 : i32
    return %c0_i32, %c0_i32_0 : i32, i32
  }
  func.func @transform_4(%arg0: i32) -> (i32, i32) {
    %c0_i32 = arith.constant 0 : i32
    %c0_i32_0 = arith.constant 0 : i32
    %c0_i32_1 = arith.constant 0 : i32
    return %c0_i32, %c0_i32_0 : i32, i32
  }
  func.func @transform_5(%arg0: i32) -> (i32, i32) {
    %c0_i32 = arith.constant 0 : i32
    %c0_i32_0 = arith.constant 0 : i32
    %c0_i32_1 = arith.constant 0 : i32
    return %c0_i32, %c0_i32_0 : i32, i32
  }
  func.func @transform_6(%arg0: i32) -> (i32, i32) {
    %c0_i32 = arith.constant 0 : i32
    %c0_i32_0 = arith.constant 0 : i32
    %c0_i32_1 = arith.constant 0 : i32
    return %c0_i32, %c0_i32_0 : i32, i32
  }
  func.func @transform_7(%arg0: i32) -> (i32, i32, i32) {
    %c0_i32 = arith.constant 0 : i32
    %c0_i32_0 = arith.constant 0 : i32
    %c0_i32_1 = arith.constant 0 : i32
    return %arg0, %c0_i32, %c0_i32_0 : i32, i32, i32
  }
}

module attributes {stable_mosaic.version = 11 : i64} {
  func.func @_self_attn_block_kernel(%arg0: i32, %arg1: memref<1x8x32xf32, #tpu.memory_space<vmem>>, %arg2: memref<32x96xf32, #tpu.memory_space<vmem>>, %arg3: memref<1x96xf32, #tpu.memory_space<vmem>>, %arg4: memref<32x32xf32, #tpu.memory_space<vmem>>, %arg5: memref<1x32xf32, #tpu.memory_space<vmem>>, %arg6: memref<1x32xf32, #tpu.memory_space<vmem>>, %arg7: memref<1x32xf32, #tpu.memory_space<vmem>>, %arg8: memref<1x8x32xf32, #tpu.memory_space<vmem>>) attributes {dimension_semantics = [#tpu.dimension_semantics<parallel>], iteration_bounds = array<i64: 2>, scalar_prefetch = 0 : i64, scratch_operands = 0 : i64, tpu.core_type = #tpu.core_type<tc>, window_params = [{transform_indices = @transform_0, window_bounds = array<i64: 1, 8, 32>}, {pipeline_mode = #tpu.pipeline_mode<synchronous>, transform_indices = @transform_1, window_bounds = array<i64: 32, 96>}, {pipeline_mode = #tpu.pipeline_mode<synchronous>, transform_indices = @transform_2, window_bounds = array<i64: 1, 96>}, {pipeline_mode = #tpu.pipeline_mode<synchronous>, transform_indices = @transform_3, window_bounds = array<i64: 32, 32>}, {pipeline_mode = #tpu.pipeline_mode<synchronous>, transform_indices = @transform_4, window_bounds = array<i64: 1, 32>}, {pipeline_mode = #tpu.pipeline_mode<synchronous>, transform_indices = @transform_5, window_bounds = array<i64: 1, 32>}, {pipeline_mode = #tpu.pipeline_mode<synchronous>, transform_indices = @transform_6, window_bounds = array<i64: 1, 32>}, {transform_indices = @transform_7, window_bounds = array<i64: 1, 8, 32>}]} {
    %c0 = arith.constant 0 : index
    %c0_0 = arith.constant 0 : index
    %c0_1 = arith.constant 0 : index
    %0 = vector.load %arg1[%c0, %c0_0, %c0_1] : memref<1x8x32xf32, #tpu.memory_space<vmem>>, vector<1x8x32xf32>
    %1 = vector.shape_cast %0 : vector<1x8x32xf32> to vector<8x32xf32>
    %c0_2 = arith.constant 0 : index
    %c0_3 = arith.constant 0 : index
    %2 = vector.load %arg2[%c0_2, %c0_3] : memref<32x96xf32, #tpu.memory_space<vmem>>, vector<32x96xf32>
    %cst = arith.constant dense<0.000000e+00> : vector<8x96xf32>
    %3 = tpu.matmul %1, %2, %cst {dimension_numbers = #tpu.dot_dimension_numbers<[1], [0], [0], [1], [0, 0, 1, 1], [], []>} : vector<8x32xf32>, vector<32x96xf32>, vector<8x96xf32> -> vector<8x96xf32>
    %c0_4 = arith.constant 0 : index
    %c0_5 = arith.constant 0 : index
    %4 = vector.load %arg3[%c0_4, %c0_5] : memref<1x96xf32, #tpu.memory_space<vmem>>, vector<1x96xf32>
    %5 = vector.broadcast %4 : vector<1x96xf32> to vector<8x96xf32>
    %6 = arith.addf %3, %5 : vector<8x96xf32>
    %7 = vector.extract_strided_slice %6 {offsets = [0, 0], sizes = [8, 32], strides = [1, 1]} : vector<8x96xf32> to vector<8x32xf32>
    %cst_6 = arith.constant 0.353553385 : f32
    %8 = vector.broadcast %cst_6 : f32 to vector<8x32xf32>
    %9 = arith.mulf %7, %8 : vector<8x32xf32>
    %10 = vector.extract_strided_slice %6 {offsets = [0, 32], sizes = [8, 32], strides = [1, 1]} : vector<8x96xf32> to vector<8x32xf32>
    %11 = vector.extract_strided_slice %6 {offsets = [0, 64], sizes = [8, 32], strides = [1, 1]} : vector<8x96xf32> to vector<8x32xf32>
    %c0_7 = arith.constant 0 : index
    %c0_8 = arith.constant 0 : index
    %12 = vector.load %arg4[%c0_7, %c0_8] : memref<32x32xf32, #tpu.memory_space<vmem>>, vector<32x32xf32>
    %13 = vector.extract_strided_slice %9 {offsets = [0, 0], sizes = [8, 8], strides = [1, 1]} : vector<8x32xf32> to vector<8x8xf32>
    %14 = vector.extract_strided_slice %10 {offsets = [0, 0], sizes = [8, 8], strides = [1, 1]} : vector<8x32xf32> to vector<8x8xf32>
    %15 = vector.extract_strided_slice %11 {offsets = [0, 0], sizes = [8, 8], strides = [1, 1]} : vector<8x32xf32> to vector<8x8xf32>
    %cst_9 = arith.constant dense<0.000000e+00> : vector<8x8xf32>
    %16 = tpu.matmul %13, %14, %cst_9 {dimension_numbers = #tpu.dot_dimension_numbers<[1], [1], [0], [0], [0, 0, 1, 0], [], []>} : vector<8x8xf32>, vector<8x8xf32>, vector<8x8xf32> -> vector<8x8xf32>
    %cst_10 = arith.constant dense<0xFF800000> : vector<8xf32>
    %17 = vector.multi_reduction <maximumf>, %16, %cst_10 [1] : vector<8x8xf32> to vector<8xf32>
    %18 = vector.shape_cast %17 : vector<8xf32> to vector<8x1xf32>
    %19 = vector.broadcast %18 : vector<8x1xf32> to vector<8x8xf32>
    %20 = arith.subf %16, %19 : vector<8x8xf32>
    %21 = math.exp %20 : vector<8x8xf32>
    %cst_11 = arith.constant dense<0.000000e+00> : vector<8xf32>
    %22 = vector.multi_reduction <add>, %21, %cst_11 [1] : vector<8x8xf32> to vector<8xf32>
    %23 = vector.shape_cast %22 : vector<8xf32> to vector<8x1xf32>
    %24 = tpu.reciprocal %23 {approx = true} : vector<8x1xf32> -> vector<8x1xf32>
    %25 = vector.broadcast %24 : vector<8x1xf32> to vector<8x8xf32>
    %26 = arith.mulf %21, %25 : vector<8x8xf32>
    %cst_12 = arith.constant dense<0.000000e+00> : vector<8x8xf32>
    %27 = tpu.matmul %26, %15, %cst_12 {dimension_numbers = #tpu.dot_dimension_numbers<[1], [0], [0], [1], [0, 0, 1, 1], [], []>} : vector<8x8xf32>, vector<8x8xf32>, vector<8x8xf32> -> vector<8x8xf32>
    %28 = vector.extract_strided_slice %12 {offsets = [0, 0], sizes = [8, 32], strides = [1, 1]} : vector<32x32xf32> to vector<8x32xf32>
    %cst_13 = arith.constant dense<0.000000e+00> : vector<8x32xf32>
    %29 = tpu.matmul %27, %28, %cst_13 {dimension_numbers = #tpu.dot_dimension_numbers<[1], [0], [0], [1], [0, 0, 1, 1], [], []>} : vector<8x8xf32>, vector<8x32xf32>, vector<8x32xf32> -> vector<8x32xf32>
    %30 = vector.extract_strided_slice %9 {offsets = [0, 8], sizes = [8, 8], strides = [1, 1]} : vector<8x32xf32> to vector<8x8xf32>
    %31 = vector.extract_strided_slice %10 {offsets = [0, 8], sizes = [8, 8], strides = [1, 1]} : vector<8x32xf32> to vector<8x8xf32>
    %32 = vector.extract_strided_slice %11 {offsets = [0, 8], sizes = [8, 8], strides = [1, 1]} : vector<8x32xf32> to vector<8x8xf32>
    %cst_14 = arith.constant dense<0.000000e+00> : vector<8x8xf32>
    %33 = tpu.matmul %30, %31, %cst_14 {dimension_numbers = #tpu.dot_dimension_numbers<[1], [1], [0], [0], [0, 0, 1, 0], [], []>} : vector<8x8xf32>, vector<8x8xf32>, vector<8x8xf32> -> vector<8x8xf32>
    %cst_15 = arith.constant dense<0xFF800000> : vector<8xf32>
    %34 = vector.multi_reduction <maximumf>, %33, %cst_15 [1] : vector<8x8xf32> to vector<8xf32>
    %35 = vector.shape_cast %34 : vector<8xf32> to vector<8x1xf32>
    %36 = vector.broadcast %35 : vector<8x1xf32> to vector<8x8xf32>
    %37 = arith.subf %33, %36 : vector<8x8xf32>
    %38 = math.exp %37 : vector<8x8xf32>
    %cst_16 = arith.constant dense<0.000000e+00> : vector<8xf32>
    %39 = vector.multi_reduction <add>, %38, %cst_16 [1] : vector<8x8xf32> to vector<8xf32>
    %40 = vector.shape_cast %39 : vector<8xf32> to vector<8x1xf32>
    %41 = tpu.reciprocal %40 {approx = true} : vector<8x1xf32> -> vector<8x1xf32>
    %42 = vector.broadcast %41 : vector<8x1xf32> to vector<8x8xf32>
    %43 = arith.mulf %38, %42 : vector<8x8xf32>
    %cst_17 = arith.constant dense<0.000000e+00> : vector<8x8xf32>
    %44 = tpu.matmul %43, %32, %cst_17 {dimension_numbers = #tpu.dot_dimension_numbers<[1], [0], [0], [1], [0, 0, 1, 1], [], []>} : vector<8x8xf32>, vector<8x8xf32>, vector<8x8xf32> -> vector<8x8xf32>
    %45 = vector.extract_strided_slice %12 {offsets = [8, 0], sizes = [8, 32], strides = [1, 1]} : vector<32x32xf32> to vector<8x32xf32>
    %cst_18 = arith.constant dense<0.000000e+00> : vector<8x32xf32>
    %46 = tpu.matmul %44, %45, %cst_18 {dimension_numbers = #tpu.dot_dimension_numbers<[1], [0], [0], [1], [0, 0, 1, 1], [], []>} : vector<8x8xf32>, vector<8x32xf32>, vector<8x32xf32> -> vector<8x32xf32>
    %47 = arith.addf %29, %46 : vector<8x32xf32>
    %48 = vector.extract_strided_slice %9 {offsets = [0, 16], sizes = [8, 8], strides = [1, 1]} : vector<8x32xf32> to vector<8x8xf32>
    %49 = vector.extract_strided_slice %10 {offsets = [0, 16], sizes = [8, 8], strides = [1, 1]} : vector<8x32xf32> to vector<8x8xf32>
    %50 = vector.extract_strided_slice %11 {offsets = [0, 16], sizes = [8, 8], strides = [1, 1]} : vector<8x32xf32> to vector<8x8xf32>
    %cst_19 = arith.constant dense<0.000000e+00> : vector<8x8xf32>
    %51 = tpu.matmul %48, %49, %cst_19 {dimension_numbers = #tpu.dot_dimension_numbers<[1], [1], [0], [0], [0, 0, 1, 0], [], []>} : vector<8x8xf32>, vector<8x8xf32>, vector<8x8xf32> -> vector<8x8xf32>
    %cst_20 = arith.constant dense<0xFF800000> : vector<8xf32>
    %52 = vector.multi_reduction <maximumf>, %51, %cst_20 [1] : vector<8x8xf32> to vector<8xf32>
    %53 = vector.shape_cast %52 : vector<8xf32> to vector<8x1xf32>
    %54 = vector.broadcast %53 : vector<8x1xf32> to vector<8x8xf32>
    %55 = arith.subf %51, %54 : vector<8x8xf32>
    %56 = math.exp %55 : vector<8x8xf32>
    %cst_21 = arith.constant dense<0.000000e+00> : vector<8xf32>
    %57 = vector.multi_reduction <add>, %56, %cst_21 [1] : vector<8x8xf32> to vector<8xf32>
    %58 = vector.shape_cast %57 : vector<8xf32> to vector<8x1xf32>
    %59 = tpu.reciprocal %58 {approx = true} : vector<8x1xf32> -> vector<8x1xf32>
    %60 = vector.broadcast %59 : vector<8x1xf32> to vector<8x8xf32>
    %61 = arith.mulf %56, %60 : vector<8x8xf32>
    %cst_22 = arith.constant dense<0.000000e+00> : vector<8x8xf32>
    %62 = tpu.matmul %61, %50, %cst_22 {dimension_numbers = #tpu.dot_dimension_numbers<[1], [0], [0], [1], [0, 0, 1, 1], [], []>} : vector<8x8xf32>, vector<8x8xf32>, vector<8x8xf32> -> vector<8x8xf32>
    %63 = vector.extract_strided_slice %12 {offsets = [16, 0], sizes = [8, 32], strides = [1, 1]} : vector<32x32xf32> to vector<8x32xf32>
    %cst_23 = arith.constant dense<0.000000e+00> : vector<8x32xf32>
    %64 = tpu.matmul %62, %63, %cst_23 {dimension_numbers = #tpu.dot_dimension_numbers<[1], [0], [0], [1], [0, 0, 1, 1], [], []>} : vector<8x8xf32>, vector<8x32xf32>, vector<8x32xf32> -> vector<8x32xf32>
    %65 = arith.addf %47, %64 : vector<8x32xf32>
    %66 = vector.extract_strided_slice %9 {offsets = [0, 24], sizes = [8, 8], strides = [1, 1]} : vector<8x32xf32> to vector<8x8xf32>
    %67 = vector.extract_strided_slice %10 {offsets = [0, 24], sizes = [8, 8], strides = [1, 1]} : vector<8x32xf32> to vector<8x8xf32>
    %68 = vector.extract_strided_slice %11 {offsets = [0, 24], sizes = [8, 8], strides = [1, 1]} : vector<8x32xf32> to vector<8x8xf32>
    %cst_24 = arith.constant dense<0.000000e+00> : vector<8x8xf32>
    %69 = tpu.matmul %66, %67, %cst_24 {dimension_numbers = #tpu.dot_dimension_numbers<[1], [1], [0], [0], [0, 0, 1, 0], [], []>} : vector<8x8xf32>, vector<8x8xf32>, vector<8x8xf32> -> vector<8x8xf32>
    %cst_25 = arith.constant dense<0xFF800000> : vector<8xf32>
    %70 = vector.multi_reduction <maximumf>, %69, %cst_25 [1] : vector<8x8xf32> to vector<8xf32>
    %71 = vector.shape_cast %70 : vector<8xf32> to vector<8x1xf32>
    %72 = vector.broadcast %71 : vector<8x1xf32> to vector<8x8xf32>
    %73 = arith.subf %69, %72 : vector<8x8xf32>
    %74 = math.exp %73 : vector<8x8xf32>
    %cst_26 = arith.constant dense<0.000000e+00> : vector<8xf32>
    %75 = vector.multi_reduction <add>, %74, %cst_26 [1] : vector<8x8xf32> to vector<8xf32>
    %76 = vector.shape_cast %75 : vector<8xf32> to vector<8x1xf32>
    %77 = tpu.reciprocal %76 {approx = true} : vector<8x1xf32> -> vector<8x1xf32>
    %78 = vector.broadcast %77 : vector<8x1xf32> to vector<8x8xf32>
    %79 = arith.mulf %74, %78 : vector<8x8xf32>
    %cst_27 = arith.constant dense<0.000000e+00> : vector<8x8xf32>
    %80 = tpu.matmul %79, %68, %cst_27 {dimension_numbers = #tpu.dot_dimension_numbers<[1], [0], [0], [1], [0, 0, 1, 1], [], []>} : vector<8x8xf32>, vector<8x8xf32>, vector<8x8xf32> -> vector<8x8xf32>
    %81 = vector.extract_strided_slice %12 {offsets = [24, 0], sizes = [8, 32], strides = [1, 1]} : vector<32x32xf32> to vector<8x32xf32>
    %cst_28 = arith.constant dense<0.000000e+00> : vector<8x32xf32>
    %82 = tpu.matmul %80, %81, %cst_28 {dimension_numbers = #tpu.dot_dimension_numbers<[1], [0], [0], [1], [0, 0, 1, 1], [], []>} : vector<8x8xf32>, vector<8x32xf32>, vector<8x32xf32> -> vector<8x32xf32>
    %83 = arith.addf %65, %82 : vector<8x32xf32>
    %c0_29 = arith.constant 0 : index
    %c0_30 = arith.constant 0 : index
    %84 = vector.load %arg5[%c0_29, %c0_30] : memref<1x32xf32, #tpu.memory_space<vmem>>, vector<1x32xf32>
    %85 = vector.broadcast %84 : vector<1x32xf32> to vector<8x32xf32>
    %86 = arith.addf %83, %85 : vector<8x32xf32>
    %87 = arith.addf %1, %86 : vector<8x32xf32>
    %c0_31 = arith.constant 0 : index
    %c0_32 = arith.constant 0 : index
    %88 = vector.load %arg6[%c0_31, %c0_32] : memref<1x32xf32, #tpu.memory_space<vmem>>, vector<1x32xf32>
    %c0_33 = arith.constant 0 : index
    %c0_34 = arith.constant 0 : index
    %89 = vector.load %arg7[%c0_33, %c0_34] : memref<1x32xf32, #tpu.memory_space<vmem>>, vector<1x32xf32>
    %cst_35 = arith.constant dense<0.000000e+00> : vector<8xf32>
    %90 = vector.multi_reduction <add>, %87, %cst_35 [1] : vector<8x32xf32> to vector<8xf32>
    %91 = vector.shape_cast %90 : vector<8xf32> to vector<8x1xf32>
    %cst_36 = arith.constant 3.200000e+01 : f32
    %92 = vector.broadcast %cst_36 : f32 to vector<8x1xf32>
    %93 = arith.divf %91, %92 : vector<8x1xf32>
    %94 = vector.broadcast %93 : vector<8x1xf32> to vector<8x32xf32>
    %95 = arith.subf %87, %94 : vector<8x32xf32>
    %96 = arith.mulf %95, %95 : vector<8x32xf32>
    %cst_37 = arith.constant dense<0.000000e+00> : vector<8xf32>
    %97 = vector.multi_reduction <add>, %96, %cst_37 [1] : vector<8x32xf32> to vector<8xf32>
    %98 = vector.shape_cast %97 : vector<8xf32> to vector<8x1xf32>
    %cst_38 = arith.constant 3.200000e+01 : f32
    %99 = vector.broadcast %cst_38 : f32 to vector<8x1xf32>
    %100 = arith.divf %98, %99 : vector<8x1xf32>
    %101 = vector.broadcast %93 : vector<8x1xf32> to vector<8x32xf32>
    %102 = arith.subf %87, %101 : vector<8x32xf32>
    %cst_39 = arith.constant 9.99999974E-6 : f32
    %103 = vector.broadcast %cst_39 : f32 to vector<8x1xf32>
    %104 = arith.addf %100, %103 : vector<8x1xf32>
    %105 = math.rsqrt %104 : vector<8x1xf32>
    %106 = vector.broadcast %105 : vector<8x1xf32> to vector<8x32xf32>
    %107 = arith.mulf %102, %106 : vector<8x32xf32>
    %108 = vector.broadcast %88 : vector<1x32xf32> to vector<8x32xf32>
    %109 = arith.mulf %107, %108 : vector<8x32xf32>
    %110 = vector.broadcast %89 : vector<1x32xf32> to vector<8x32xf32>
    %111 = arith.addf %109, %110 : vector<8x32xf32>
    %c0_40 = arith.constant 0 : index
    %c0_41 = arith.constant 0 : index
    %c0_42 = arith.constant 0 : index
    %112 = vector.load %arg8[%c0_40, %c0_41, %c0_42] : memref<1x8x32xf32, #tpu.memory_space<vmem>>, vector<1x8x32xf32>
    %113 = vector.shape_cast %112 : vector<1x8x32xf32> to vector<8x32xf32>
    %114 = vector.shape_cast %111 : vector<8x32xf32> to vector<1x8x32xf32>
    tpu.vector_store %arg8[%c0_40, %c0_41, %c0_42], %114 {strides = array<i32>} : memref<1x8x32xf32, #tpu.memory_space<vmem>>, vector<1x8x32xf32>,
    return
  }
  func.func @transform_0(%arg0: i32) -> (i32, i32, i32) {
    %c0_i32 = arith.constant 0 : i32
    %c0_i32_0 = arith.constant 0 : i32
    %c0_i32_1 = arith.constant 0 : i32
    return %arg0, %c0_i32, %c0_i32_0 : i32, i32, i32
  }
  func.func @transform_1(%arg0: i32) -> (i32, i32) {
    %c0_i32 = arith.constant 0 : i32
    %c0_i32_0 = arith.constant 0 : i32
    %c0_i32_1 = arith.constant 0 : i32
    return %c0_i32, %c0_i32_0 : i32, i32
  }
  func.func @transform_2(%arg0: i32) -> (i32, i32) {
    %c0_i32 = arith.constant 0 : i32
    %c0_i32_0 = arith.constant 0 : i32
    %c0_i32_1 = arith.constant 0 : i32
    return %c0_i32, %c0_i32_0 : i32, i32
  }
  func.func @transform_3(%arg0: i32) -> (i32, i32) {
    %c0_i32 = arith.constant 0 : i32
    %c0_i32_0 = arith.constant 0 : i32
    %c0_i32_1 = arith.constant 0 : i32
    return %c0_i32, %c0_i32_0 : i32, i32
  }
  func.func @transform_4(%arg0: i32) -> (i32, i32) {
    %c0_i32 = arith.constant 0 : i32
    %c0_i32_0 = arith.constant 0 : i32
    %c0_i32_1 = arith.constant 0 : i32
    return %c0_i32, %c0_i32_0 : i32, i32
  }
  func.func @transform_5(%arg0: i32) -> (i32, i32) {
    %c0_i32 = arith.constant 0 : i32
    %c0_i32_0 = arith.constant 0 : i32
    %c0_i32_1 = arith.constant 0 : i32
    return %c0_i32, %c0_i32_0 : i32, i32
  }
  func.func @transform_6(%arg0: i32) -> (i32, i32) {
    %c0_i32 = arith.constant 0 : i32
    %c0_i32_0 = arith.constant 0 : i32
    %c0_i32_1 = arith.constant 0 : i32
    return %c0_i32, %c0_i32_0 : i32, i32
  }
  func.func @transform_7(%arg0: i32) -> (i32, i32, i32) {
    %c0_i32 = arith.constant 0 : i32
    %c0_i32_0 = arith.constant 0 : i32
    %c0_i32_1 = arith.constant 0 : i32
    return %arg0, %c0_i32, %c0_i32_0 : i32, i32, i32
  }
}

module attributes {stable_mosaic.version = 11 : i64} {
  func.func @_cross_attn_block_kernel(%arg0: i32, %arg1: memref<1x8x32xf32, #tpu.memory_space<vmem>>, %arg2: memref<1x16x32xf32, #tpu.memory_space<vmem>>, %arg3: memref<32x32xf32, #tpu.memory_space<vmem>>, %arg4: memref<1x32xf32, #tpu.memory_space<vmem>>, %arg5: memref<32x64xf32, #tpu.memory_space<vmem>>, %arg6: memref<1x64xf32, #tpu.memory_space<vmem>>, %arg7: memref<32x32xf32, #tpu.memory_space<vmem>>, %arg8: memref<1x32xf32, #tpu.memory_space<vmem>>, %arg9: memref<1x32xf32, #tpu.memory_space<vmem>>, %arg10: memref<1x32xf32, #tpu.memory_space<vmem>>, %arg11: memref<1x8x32xf32, #tpu.memory_space<vmem>>) attributes {dimension_semantics = [#tpu.dimension_semantics<parallel>], iteration_bounds = array<i64: 2>, scalar_prefetch = 0 : i64, scratch_operands = 0 : i64, tpu.core_type = #tpu.core_type<tc>, window_params = [{transform_indices = @transform_0, window_bounds = array<i64: 1, 8, 32>}, {transform_indices = @transform_1, window_bounds = array<i64: 1, 16, 32>}, {pipeline_mode = #tpu.pipeline_mode<synchronous>, transform_indices = @transform_2, window_bounds = array<i64: 32, 32>}, {pipeline_mode = #tpu.pipeline_mode<synchronous>, transform_indices = @transform_3, window_bounds = array<i64: 1, 32>}, {pipeline_mode = #tpu.pipeline_mode<synchronous>, transform_indices = @transform_4, window_bounds = array<i64: 32, 64>}, {pipeline_mode = #tpu.pipeline_mode<synchronous>, transform_indices = @transform_5, window_bounds = array<i64: 1, 64>}, {pipeline_mode = #tpu.pipeline_mode<synchronous>, transform_indices = @transform_6, window_bounds = array<i64: 32, 32>}, {pipeline_mode = #tpu.pipeline_mode<synchronous>, transform_indices = @transform_7, window_bounds = array<i64: 1, 32>}, {pipeline_mode = #tpu.pipeline_mode<synchronous>, transform_indices = @transform_8, window_bounds = array<i64: 1, 32>}, {pipeline_mode = #tpu.pipeline_mode<synchronous>, transform_indices = @transform_9, window_bounds = array<i64: 1, 32>}, {transform_indices = @transform_10, window_bounds = array<i64: 1, 8, 32>}]} {
    %c0 = arith.constant 0 : index
    %c0_0 = arith.constant 0 : index
    %c0_1 = arith.constant 0 : index
    %0 = vector.load %arg1[%c0, %c0_0, %c0_1] : memref<1x8x32xf32, #tpu.memory_space<vmem>>, vector<1x8x32xf32>
    %1 = vector.shape_cast %0 : vector<1x8x32xf32> to vector<8x32xf32>
    %c0_2 = arith.constant 0 : index
    %c0_3 = arith.constant 0 : index
    %c0_4 = arith.constant 0 : index
    %2 = vector.load %arg2[%c0_2, %c0_3, %c0_4] : memref<1x16x32xf32, #tpu.memory_space<vmem>>, vector<1x16x32xf32>
    %3 = vector.shape_cast %2 : vector<1x16x32xf32> to vector<16x32xf32>
    %c0_5 = arith.constant 0 : index
    %c0_6 = arith.constant 0 : index
    %4 = vector.load %arg3[%c0_5, %c0_6] : memref<32x32xf32, #tpu.memory_space<vmem>>, vector<32x32xf32>
    %cst = arith.constant dense<0.000000e+00> : vector<8x32xf32>
    %5 = tpu.matmul %1, %4, %cst {dimension_numbers = #tpu.dot_dimension_numbers<[1], [0], [0], [1], [0, 0, 1, 1], [], []>} : vector<8x32xf32>, vector<32x32xf32>, vector<8x32xf32> -> vector<8x32xf32>
    %c0_7 = arith.constant 0 : index
    %c0_8 = arith.constant 0 : index
    %6 = vector.load %arg4[%c0_7, %c0_8] : memref<1x32xf32, #tpu.memory_space<vmem>>, vector<1x32xf32>
    %7 = vector.broadcast %6 : vector<1x32xf32> to vector<8x32xf32>
    %8 = arith.addf %5, %7 : vector<8x32xf32>
    %cst_9 = arith.constant 0.353553385 : f32
    %9 = vector.broadcast %cst_9 : f32 to vector<8x32xf32>
    %10 = arith.mulf %8, %9 : vector<8x32xf32>
    %c0_10 = arith.constant 0 : index
    %c0_11 = arith.constant 0 : index
    %11 = vector.load %arg5[%c0_10, %c0_11] : memref<32x64xf32, #tpu.memory_space<vmem>>, vector<32x64xf32>
    %cst_12 = arith.constant dense<0.000000e+00> : vector<16x64xf32>
    %12 = tpu.matmul %3, %11, %cst_12 {dimension_numbers = #tpu.dot_dimension_numbers<[1], [0], [0], [1], [0, 0, 1, 1], [], []>} : vector<16x32xf32>, vector<32x64xf32>, vector<16x64xf32> -> vector<16x64xf32>
    %c0_13 = arith.constant 0 : index
    %c0_14 = arith.constant 0 : index
    %13 = vector.load %arg6[%c0_13, %c0_14] : memref<1x64xf32, #tpu.memory_space<vmem>>, vector<1x64xf32>
    %14 = vector.broadcast %13 : vector<1x64xf32> to vector<16x64xf32>
    %15 = arith.addf %12, %14 : vector<16x64xf32>
    %16 = vector.extract_strided_slice %15 {offsets = [0, 0], sizes = [16, 32], strides = [1, 1]} : vector<16x64xf32> to vector<16x32xf32>
    %17 = vector.extract_strided_slice %15 {offsets = [0, 32], sizes = [16, 32], strides = [1, 1]} : vector<16x64xf32> to vector<16x32xf32>
    %c0_15 = arith.constant 0 : index
    %c0_16 = arith.constant 0 : index
    %18 = vector.load %arg7[%c0_15, %c0_16] : memref<32x32xf32, #tpu.memory_space<vmem>>, vector<32x32xf32>
    %19 = vector.extract_strided_slice %10 {offsets = [0, 0], sizes = [8, 8], strides = [1, 1]} : vector<8x32xf32> to vector<8x8xf32>
    %20 = vector.extract_strided_slice %16 {offsets = [0, 0], sizes = [16, 8], strides = [1, 1]} : vector<16x32xf32> to vector<16x8xf32>
    %21 = vector.extract_strided_slice %17 {offsets = [0, 0], sizes = [16, 8], strides = [1, 1]} : vector<16x32xf32> to vector<16x8xf32>
    %cst_17 = arith.constant dense<0.000000e+00> : vector<8x16xf32>
    %22 = tpu.matmul %19, %20, %cst_17 {dimension_numbers = #tpu.dot_dimension_numbers<[1], [1], [0], [0], [0, 0, 1, 0], [], []>} : vector<8x8xf32>, vector<16x8xf32>, vector<8x16xf32> -> vector<8x16xf32>
    %cst_18 = arith.constant dense<0xFF800000> : vector<8xf32>
    %23 = vector.multi_reduction <maximumf>, %22, %cst_18 [1] : vector<8x16xf32> to vector<8xf32>
    %24 = vector.shape_cast %23 : vector<8xf32> to vector<8x1xf32>
    %25 = vector.broadcast %24 : vector<8x1xf32> to vector<8x16xf32>
    %26 = arith.subf %22, %25 : vector<8x16xf32>
    %27 = math.exp %26 : vector<8x16xf32>
    %cst_19 = arith.constant dense<0.000000e+00> : vector<8xf32>
    %28 = vector.multi_reduction <add>, %27, %cst_19 [1] : vector<8x16xf32> to vector<8xf32>
    %29 = vector.shape_cast %28 : vector<8xf32> to vector<8x1xf32>
    %30 = tpu.reciprocal %29 {approx = true} : vector<8x1xf32> -> vector<8x1xf32>
    %31 = vector.broadcast %30 : vector<8x1xf32> to vector<8x16xf32>
    %32 = arith.mulf %27, %31 : vector<8x16xf32>
    %cst_20 = arith.constant dense<0.000000e+00> : vector<8x8xf32>
    %33 = tpu.matmul %32, %21, %cst_20 {dimension_numbers = #tpu.dot_dimension_numbers<[1], [0], [0], [1], [0, 0, 1, 1], [], []>} : vector<8x16xf32>, vector<16x8xf32>, vector<8x8xf32> -> vector<8x8xf32>
    %34 = vector.extract_strided_slice %18 {offsets = [0, 0], sizes = [8, 32], strides = [1, 1]} : vector<32x32xf32> to vector<8x32xf32>
    %cst_21 = arith.constant dense<0.000000e+00> : vector<8x32xf32>
    %35 = tpu.matmul %33, %34, %cst_21 {dimension_numbers = #tpu.dot_dimension_numbers<[1], [0], [0], [1], [0, 0, 1, 1], [], []>} : vector<8x8xf32>, vector<8x32xf32>, vector<8x32xf32> -> vector<8x32xf32>
    %36 = vector.extract_strided_slice %10 {offsets = [0, 8], sizes = [8, 8], strides = [1, 1]} : vector<8x32xf32> to vector<8x8xf32>
    %37 = vector.extract_strided_slice %16 {offsets = [0, 8], sizes = [16, 8], strides = [1, 1]} : vector<16x32xf32> to vector<16x8xf32>
    %38 = vector.extract_strided_slice %17 {offsets = [0, 8], sizes = [16, 8], strides = [1, 1]} : vector<16x32xf32> to vector<16x8xf32>
    %cst_22 = arith.constant dense<0.000000e+00> : vector<8x16xf32>
    %39 = tpu.matmul %36, %37, %cst_22 {dimension_numbers = #tpu.dot_dimension_numbers<[1], [1], [0], [0], [0, 0, 1, 0], [], []>} : vector<8x8xf32>, vector<16x8xf32>, vector<8x16xf32> -> vector<8x16xf32>
    %cst_23 = arith.constant dense<0xFF800000> : vector<8xf32>
    %40 = vector.multi_reduction <maximumf>, %39, %cst_23 [1] : vector<8x16xf32> to vector<8xf32>
    %41 = vector.shape_cast %40 : vector<8xf32> to vector<8x1xf32>
    %42 = vector.broadcast %41 : vector<8x1xf32> to vector<8x16xf32>
    %43 = arith.subf %39, %42 : vector<8x16xf32>
    %44 = math.exp %43 : vector<8x16xf32>
    %cst_24 = arith.constant dense<0.000000e+00> : vector<8xf32>
    %45 = vector.multi_reduction <add>, %44, %cst_24 [1] : vector<8x16xf32> to vector<8xf32>
    %46 = vector.shape_cast %45 : vector<8xf32> to vector<8x1xf32>
    %47 = tpu.reciprocal %46 {approx = true} : vector<8x1xf32> -> vector<8x1xf32>
    %48 = vector.broadcast %47 : vector<8x1xf32> to vector<8x16xf32>
    %49 = arith.mulf %44, %48 : vector<8x16xf32>
    %cst_25 = arith.constant dense<0.000000e+00> : vector<8x8xf32>
    %50 = tpu.matmul %49, %38, %cst_25 {dimension_numbers = #tpu.dot_dimension_numbers<[1], [0], [0], [1], [0, 0, 1, 1], [], []>} : vector<8x16xf32>, vector<16x8xf32>, vector<8x8xf32> -> vector<8x8xf32>
    %51 = vector.extract_strided_slice %18 {offsets = [8, 0], sizes = [8, 32], strides = [1, 1]} : vector<32x32xf32> to vector<8x32xf32>
    %cst_26 = arith.constant dense<0.000000e+00> : vector<8x32xf32>
    %52 = tpu.matmul %50, %51, %cst_26 {dimension_numbers = #tpu.dot_dimension_numbers<[1], [0], [0], [1], [0, 0, 1, 1], [], []>} : vector<8x8xf32>, vector<8x32xf32>, vector<8x32xf32> -> vector<8x32xf32>
    %53 = arith.addf %35, %52 : vector<8x32xf32>
    %54 = vector.extract_strided_slice %10 {offsets = [0, 16], sizes = [8, 8], strides = [1, 1]} : vector<8x32xf32> to vector<8x8xf32>
    %55 = vector.extract_strided_slice %16 {offsets = [0, 16], sizes = [16, 8], strides = [1, 1]} : vector<16x32xf32> to vector<16x8xf32>
    %56 = vector.extract_strided_slice %17 {offsets = [0, 16], sizes = [16, 8], strides = [1, 1]} : vector<16x32xf32> to vector<16x8xf32>
    %cst_27 = arith.constant dense<0.000000e+00> : vector<8x16xf32>
    %57 = tpu.matmul %54, %55, %cst_27 {dimension_numbers = #tpu.dot_dimension_numbers<[1], [1], [0], [0], [0, 0, 1, 0], [], []>} : vector<8x8xf32>, vector<16x8xf32>, vector<8x16xf32> -> vector<8x16xf32>
    %cst_28 = arith.constant dense<0xFF800000> : vector<8xf32>
    %58 = vector.multi_reduction <maximumf>, %57, %cst_28 [1] : vector<8x16xf32> to vector<8xf32>
    %59 = vector.shape_cast %58 : vector<8xf32> to vector<8x1xf32>
    %60 = vector.broadcast %59 : vector<8x1xf32> to vector<8x16xf32>
    %61 = arith.subf %57, %60 : vector<8x16xf32>
    %62 = math.exp %61 : vector<8x16xf32>
    %cst_29 = arith.constant dense<0.000000e+00> : vector<8xf32>
    %63 = vector.multi_reduction <add>, %62, %cst_29 [1] : vector<8x16xf32> to vector<8xf32>
    %64 = vector.shape_cast %63 : vector<8xf32> to vector<8x1xf32>
    %65 = tpu.reciprocal %64 {approx = true} : vector<8x1xf32> -> vector<8x1xf32>
    %66 = vector.broadcast %65 : vector<8x1xf32> to vector<8x16xf32>
    %67 = arith.mulf %62, %66 : vector<8x16xf32>
    %cst_30 = arith.constant dense<0.000000e+00> : vector<8x8xf32>
    %68 = tpu.matmul %67, %56, %cst_30 {dimension_numbers = #tpu.dot_dimension_numbers<[1], [0], [0], [1], [0, 0, 1, 1], [], []>} : vector<8x16xf32>, vector<16x8xf32>, vector<8x8xf32> -> vector<8x8xf32>
    %69 = vector.extract_strided_slice %18 {offsets = [16, 0], sizes = [8, 32], strides = [1, 1]} : vector<32x32xf32> to vector<8x32xf32>
    %cst_31 = arith.constant dense<0.000000e+00> : vector<8x32xf32>
    %70 = tpu.matmul %68, %69, %cst_31 {dimension_numbers = #tpu.dot_dimension_numbers<[1], [0], [0], [1], [0, 0, 1, 1], [], []>} : vector<8x8xf32>, vector<8x32xf32>, vector<8x32xf32> -> vector<8x32xf32>
    %71 = arith.addf %53, %70 : vector<8x32xf32>
    %72 = vector.extract_strided_slice %10 {offsets = [0, 24], sizes = [8, 8], strides = [1, 1]} : vector<8x32xf32> to vector<8x8xf32>
    %73 = vector.extract_strided_slice %16 {offsets = [0, 24], sizes = [16, 8], strides = [1, 1]} : vector<16x32xf32> to vector<16x8xf32>
    %74 = vector.extract_strided_slice %17 {offsets = [0, 24], sizes = [16, 8], strides = [1, 1]} : vector<16x32xf32> to vector<16x8xf32>
    %cst_32 = arith.constant dense<0.000000e+00> : vector<8x16xf32>
    %75 = tpu.matmul %72, %73, %cst_32 {dimension_numbers = #tpu.dot_dimension_numbers<[1], [1], [0], [0], [0, 0, 1, 0], [], []>} : vector<8x8xf32>, vector<16x8xf32>, vector<8x16xf32> -> vector<8x16xf32>
    %cst_33 = arith.constant dense<0xFF800000> : vector<8xf32>
    %76 = vector.multi_reduction <maximumf>, %75, %cst_33 [1] : vector<8x16xf32> to vector<8xf32>
    %77 = vector.shape_cast %76 : vector<8xf32> to vector<8x1xf32>
    %78 = vector.broadcast %77 : vector<8x1xf32> to vector<8x16xf32>
    %79 = arith.subf %75, %78 : vector<8x16xf32>
    %80 = math.exp %79 : vector<8x16xf32>
    %cst_34 = arith.constant dense<0.000000e+00> : vector<8xf32>
    %81 = vector.multi_reduction <add>, %80, %cst_34 [1] : vector<8x16xf32> to vector<8xf32>
    %82 = vector.shape_cast %81 : vector<8xf32> to vector<8x1xf32>
    %83 = tpu.reciprocal %82 {approx = true} : vector<8x1xf32> -> vector<8x1xf32>
    %84 = vector.broadcast %83 : vector<8x1xf32> to vector<8x16xf32>
    %85 = arith.mulf %80, %84 : vector<8x16xf32>
    %cst_35 = arith.constant dense<0.000000e+00> : vector<8x8xf32>
    %86 = tpu.matmul %85, %74, %cst_35 {dimension_numbers = #tpu.dot_dimension_numbers<[1], [0], [0], [1], [0, 0, 1, 1], [], []>} : vector<8x16xf32>, vector<16x8xf32>, vector<8x8xf32> -> vector<8x8xf32>
    %87 = vector.extract_strided_slice %18 {offsets = [24, 0], sizes = [8, 32], strides = [1, 1]} : vector<32x32xf32> to vector<8x32xf32>
    %cst_36 = arith.constant dense<0.000000e+00> : vector<8x32xf32>
    %88 = tpu.matmul %86, %87, %cst_36 {dimension_numbers = #tpu.dot_dimension_numbers<[1], [0], [0], [1], [0, 0, 1, 1], [], []>} : vector<8x8xf32>, vector<8x32xf32>, vector<8x32xf32> -> vector<8x32xf32>
    %89 = arith.addf %71, %88 : vector<8x32xf32>
    %c0_37 = arith.constant 0 : index
    %c0_38 = arith.constant 0 : index
    %90 = vector.load %arg8[%c0_37, %c0_38] : memref<1x32xf32, #tpu.memory_space<vmem>>, vector<1x32xf32>
    %91 = vector.broadcast %90 : vector<1x32xf32> to vector<8x32xf32>
    %92 = arith.addf %89, %91 : vector<8x32xf32>
    %93 = arith.addf %1, %92 : vector<8x32xf32>
    %c0_39 = arith.constant 0 : index
    %c0_40 = arith.constant 0 : index
    %94 = vector.load %arg9[%c0_39, %c0_40] : memref<1x32xf32, #tpu.memory_space<vmem>>, vector<1x32xf32>
    %c0_41 = arith.constant 0 : index
    %c0_42 = arith.constant 0 : index
    %95 = vector.load %arg10[%c0_41, %c0_42] : memref<1x32xf32, #tpu.memory_space<vmem>>, vector<1x32xf32>
    %cst_43 = arith.constant dense<0.000000e+00> : vector<8xf32>
    %96 = vector.multi_reduction <add>, %93, %cst_43 [1] : vector<8x32xf32> to vector<8xf32>
    %97 = vector.shape_cast %96 : vector<8xf32> to vector<8x1xf32>
    %cst_44 = arith.constant 3.200000e+01 : f32
    %98 = vector.broadcast %cst_44 : f32 to vector<8x1xf32>
    %99 = arith.divf %97, %98 : vector<8x1xf32>
    %100 = vector.broadcast %99 : vector<8x1xf32> to vector<8x32xf32>
    %101 = arith.subf %93, %100 : vector<8x32xf32>
    %102 = arith.mulf %101, %101 : vector<8x32xf32>
    %cst_45 = arith.constant dense<0.000000e+00> : vector<8xf32>
    %103 = vector.multi_reduction <add>, %102, %cst_45 [1] : vector<8x32xf32> to vector<8xf32>
    %104 = vector.shape_cast %103 : vector<8xf32> to vector<8x1xf32>
    %cst_46 = arith.constant 3.200000e+01 : f32
    %105 = vector.broadcast %cst_46 : f32 to vector<8x1xf32>
    %106 = arith.divf %104, %105 : vector<8x1xf32>
    %107 = vector.broadcast %99 : vector<8x1xf32> to vector<8x32xf32>
    %108 = arith.subf %93, %107 : vector<8x32xf32>
    %cst_47 = arith.constant 9.99999974E-6 : f32
    %109 = vector.broadcast %cst_47 : f32 to vector<8x1xf32>
    %110 = arith.addf %106, %109 : vector<8x1xf32>
    %111 = math.rsqrt %110 : vector<8x1xf32>
    %112 = vector.broadcast %111 : vector<8x1xf32> to vector<8x32xf32>
    %113 = arith.mulf %108, %112 : vector<8x32xf32>
    %114 = vector.broadcast %94 : vector<1x32xf32> to vector<8x32xf32>
    %115 = arith.mulf %113, %114 : vector<8x32xf32>
    %116 = vector.broadcast %95 : vector<1x32xf32> to vector<8x32xf32>
    %117 = arith.addf %115, %116 : vector<8x32xf32>
    %c0_48 = arith.constant 0 : index
    %c0_49 = arith.constant 0 : index
    %c0_50 = arith.constant 0 : index
    %118 = vector.load %arg11[%c0_48, %c0_49, %c0_50] : memref<1x8x32xf32, #tpu.memory_space<vmem>>, vector<1x8x32xf32>
    %119 = vector.shape_cast %118 : vector<1x8x32xf32> to vector<8x32xf32>
    %120 = vector.shape_cast %117 : vector<8x32xf32> to vector<1x8x32xf32>
    tpu.vector_store %arg11[%c0_48, %c0_49, %c0_50], %120 {strides = array<i32>} : memref<1x8x32xf32, #tpu.memory_space<vmem>>, vector<1x8x32xf32>,
    return
  }
  func.func @transform_0(%arg0: i32) -> (i32, i32, i32) {
    %c0_i32 = arith.constant 0 : i32
    %c0_i32_0 = arith.constant 0 : i32
    %c0_i32_1 = arith.constant 0 : i32
    return %arg0, %c0_i32, %c0_i32_0 : i32, i32, i32
  }
  func.func @transform_1(%arg0: i32) -> (i32, i32, i32) {
    %c0_i32 = arith.constant 0 : i32
    %c0_i32_0 = arith.constant 0 : i32
    %c0_i32_1 = arith.constant 0 : i32
    return %arg0, %c0_i32, %c0_i32_0 : i32, i32, i32
  }
  func.func @transform_2(%arg0: i32) -> (i32, i32) {
    %c0_i32 = arith.constant 0 : i32
    %c0_i32_0 = arith.constant 0 : i32
    %c0_i32_1 = arith.constant 0 : i32
    return %c0_i32, %c0_i32_0 : i32, i32
  }
  func.func @transform_3(%arg0: i32) -> (i32, i32) {
    %c0_i32 = arith.constant 0 : i32
    %c0_i32_0 = arith.constant 0 : i32
    %c0_i32_1 = arith.constant 0 : i32
    return %c0_i32, %c0_i32_0 : i32, i32
  }
  func.func @transform_4(%arg0: i32) -> (i32, i32) {
    %c0_i32 = arith.constant 0 : i32
    %c0_i32_0 = arith.constant 0 : i32
    %c0_i32_1 = arith.constant 0 : i32
    return %c0_i32, %c0_i32_0 : i32, i32
  }
  func.func @transform_5(%arg0: i32) -> (i32, i32) {
    %c0_i32 = arith.constant 0 : i32
    %c0_i32_0 = arith.constant 0 : i32
    %c0_i32_1 = arith.constant 0 : i32
    return %c0_i32, %c0_i32_0 : i32, i32
  }
  func.func @transform_6(%arg0: i32) -> (i32, i32) {
    %c0_i32 = arith.constant 0 : i32
    %c0_i32_0 = arith.constant 0 : i32
    %c0_i32_1 = arith.constant 0 : i32
    return %c0_i32, %c0_i32_0 : i32, i32
  }
  func.func @transform_7(%arg0: i32) -> (i32, i32) {
    %c0_i32 = arith.constant 0 : i32
    %c0_i32_0 = arith.constant 0 : i32
    %c0_i32_1 = arith.constant 0 : i32
    return %c0_i32, %c0_i32_0 : i32, i32
  }
  func.func @transform_8(%arg0: i32) -> (i32, i32) {
    %c0_i32 = arith.constant 0 : i32
    %c0_i32_0 = arith.constant 0 : i32
    %c0_i32_1 = arith.constant 0 : i32
    return %c0_i32, %c0_i32_0 : i32, i32
  }
  func.func @transform_9(%arg0: i32) -> (i32, i32) {
    %c0_i32 = arith.constant 0 : i32
    %c0_i32_0 = arith.constant 0 : i32
    %c0_i32_1 = arith.constant 0 : i32
    return %c0_i32, %c0_i32_0 : i32, i32
  }
  func.func @transform_10(%arg0: i32) -> (i32, i32, i32) {
    %c0_i32 = arith.constant 0 : i32
    %c0_i32_0 = arith.constant 0 : i32
    %c0_i32_1 = arith.constant 0 : i32
    return %arg0, %c0_i32, %c0_i32_0 : i32, i32, i32
  }
}

module attributes {stable_mosaic.version = 11 : i64} {
  func.func @_ffn_block_kernel(%arg0: i32, %arg1: memref<16x32xf32, #tpu.memory_space<vmem>>, %arg2: memref<32x64xf32, #tpu.memory_space<vmem>>, %arg3: memref<1x64xf32, #tpu.memory_space<vmem>>, %arg4: memref<64x32xf32, #tpu.memory_space<vmem>>, %arg5: memref<1x32xf32, #tpu.memory_space<vmem>>, %arg6: memref<1x32xf32, #tpu.memory_space<vmem>>, %arg7: memref<1x32xf32, #tpu.memory_space<vmem>>, %arg8: memref<16x32xf32, #tpu.memory_space<vmem>>) attributes {dimension_semantics = [#tpu.dimension_semantics<parallel>], iteration_bounds = array<i64: 1>, scalar_prefetch = 0 : i64, scratch_operands = 0 : i64, tpu.core_type = #tpu.core_type<tc>, window_params = [{transform_indices = @transform_0, window_bounds = array<i64: 16, 32>}, {pipeline_mode = #tpu.pipeline_mode<synchronous>, transform_indices = @transform_1, window_bounds = array<i64: 32, 64>}, {pipeline_mode = #tpu.pipeline_mode<synchronous>, transform_indices = @transform_2, window_bounds = array<i64: 1, 64>}, {pipeline_mode = #tpu.pipeline_mode<synchronous>, transform_indices = @transform_3, window_bounds = array<i64: 64, 32>}, {pipeline_mode = #tpu.pipeline_mode<synchronous>, transform_indices = @transform_4, window_bounds = array<i64: 1, 32>}, {pipeline_mode = #tpu.pipeline_mode<synchronous>, transform_indices = @transform_5, window_bounds = array<i64: 1, 32>}, {pipeline_mode = #tpu.pipeline_mode<synchronous>, transform_indices = @transform_6, window_bounds = array<i64: 1, 32>}, {transform_indices = @transform_7, window_bounds = array<i64: 16, 32>}]} {
    %c0 = arith.constant 0 : index
    %c0_0 = arith.constant 0 : index
    %0 = vector.load %arg1[%c0, %c0_0] : memref<16x32xf32, #tpu.memory_space<vmem>>, vector<16x32xf32>
    %c0_1 = arith.constant 0 : index
    %c0_2 = arith.constant 0 : index
    %1 = vector.load %arg2[%c0_1, %c0_2] : memref<32x64xf32, #tpu.memory_space<vmem>>, vector<32x64xf32>
    %cst = arith.constant dense<0.000000e+00> : vector<16x64xf32>
    %2 = tpu.matmul %0, %1, %cst {dimension_numbers = #tpu.dot_dimension_numbers<[1], [0], [0], [1], [0, 0, 1, 1], [], []>} : vector<16x32xf32>, vector<32x64xf32>, vector<16x64xf32> -> vector<16x64xf32>
    %c0_3 = arith.constant 0 : index
    %c0_4 = arith.constant 0 : index
    %3 = vector.load %arg3[%c0_3, %c0_4] : memref<1x64xf32, #tpu.memory_space<vmem>>, vector<1x64xf32>
    %4 = vector.broadcast %3 : vector<1x64xf32> to vector<16x64xf32>
    %5 = arith.addf %2, %4 : vector<16x64xf32>
    %cst_5 = arith.constant 0.000000e+00 : f32
    %6 = vector.broadcast %cst_5 : f32 to vector<16x64xf32>
    %7 = arith.maximumf %5, %6 : vector<16x64xf32>
    %c0_6 = arith.constant 0 : index
    %c0_7 = arith.constant 0 : index
    %8 = vector.load %arg4[%c0_6, %c0_7] : memref<64x32xf32, #tpu.memory_space<vmem>>, vector<64x32xf32>
    %cst_8 = arith.constant dense<0.000000e+00> : vector<16x32xf32>
    %9 = tpu.matmul %7, %8, %cst_8 {dimension_numbers = #tpu.dot_dimension_numbers<[1], [0], [0], [1], [0, 0, 1, 1], [], []>} : vector<16x64xf32>, vector<64x32xf32>, vector<16x32xf32> -> vector<16x32xf32>
    %c0_9 = arith.constant 0 : index
    %c0_10 = arith.constant 0 : index
    %10 = vector.load %arg5[%c0_9, %c0_10] : memref<1x32xf32, #tpu.memory_space<vmem>>, vector<1x32xf32>
    %11 = vector.broadcast %10 : vector<1x32xf32> to vector<16x32xf32>
    %12 = arith.addf %9, %11 : vector<16x32xf32>
    %13 = arith.addf %0, %12 : vector<16x32xf32>
    %c0_11 = arith.constant 0 : index
    %c0_12 = arith.constant 0 : index
    %14 = vector.load %arg6[%c0_11, %c0_12] : memref<1x32xf32, #tpu.memory_space<vmem>>, vector<1x32xf32>
    %c0_13 = arith.constant 0 : index
    %c0_14 = arith.constant 0 : index
    %15 = vector.load %arg7[%c0_13, %c0_14] : memref<1x32xf32, #tpu.memory_space<vmem>>, vector<1x32xf32>
    %cst_15 = arith.constant dense<0.000000e+00> : vector<16xf32>
    %16 = vector.multi_reduction <add>, %13, %cst_15 [1] : vector<16x32xf32> to vector<16xf32>
    %17 = vector.shape_cast %16 : vector<16xf32> to vector<16x1xf32>
    %cst_16 = arith.constant 3.200000e+01 : f32
    %18 = vector.broadcast %cst_16 : f32 to vector<16x1xf32>
    %19 = arith.divf %17, %18 : vector<16x1xf32>
    %20 = vector.broadcast %19 : vector<16x1xf32> to vector<16x32xf32>
    %21 = arith.subf %13, %20 : vector<16x32xf32>
    %22 = arith.mulf %21, %21 : vector<16x32xf32>
    %cst_17 = arith.constant dense<0.000000e+00> : vector<16xf32>
    %23 = vector.multi_reduction <add>, %22, %cst_17 [1] : vector<16x32xf32> to vector<16xf32>
    %24 = vector.shape_cast %23 : vector<16xf32> to vector<16x1xf32>
    %cst_18 = arith.constant 3.200000e+01 : f32
    %25 = vector.broadcast %cst_18 : f32 to vector<16x1xf32>
    %26 = arith.divf %24, %25 : vector<16x1xf32>
    %27 = vector.broadcast %19 : vector<16x1xf32> to vector<16x32xf32>
    %28 = arith.subf %13, %27 : vector<16x32xf32>
    %cst_19 = arith.constant 9.99999974E-6 : f32
    %29 = vector.broadcast %cst_19 : f32 to vector<16x1xf32>
    %30 = arith.addf %26, %29 : vector<16x1xf32>
    %31 = math.rsqrt %30 : vector<16x1xf32>
    %32 = vector.broadcast %31 : vector<16x1xf32> to vector<16x32xf32>
    %33 = arith.mulf %28, %32 : vector<16x32xf32>
    %34 = vector.broadcast %14 : vector<1x32xf32> to vector<16x32xf32>
    %35 = arith.mulf %33, %34 : vector<16x32xf32>
    %36 = vector.broadcast %15 : vector<1x32xf32> to vector<16x32xf32>
    %37 = arith.addf %35, %36 : vector<16x32xf32>
    %c0_20 = arith.constant 0 : index
    %c0_21 = arith.constant 0 : index
    %38 = vector.load %arg8[%c0_20, %c0_21] : memref<16x32xf32, #tpu.memory_space<vmem>>, vector<16x32xf32>
    tpu.vector_store %arg8[%c0_20, %c0_21], %37 {strides = array<i32>} : memref<16x32xf32, #tpu.memory_space<vmem>>, vector<16x32xf32>,
    return
  }
  func.func @transform_0(%arg0: i32) -> (i32, i32) {
    %c0_i32 = arith.constant 0 : i32
    %c0_i32_0 = arith.constant 0 : i32
    return %arg0, %c0_i32 : i32, i32
  }
  func.func @transform_1(%arg0: i32) -> (i32, i32) {
    %c0_i32 = arith.constant 0 : i32
    %c0_i32_0 = arith.constant 0 : i32
    %c0_i32_1 = arith.constant 0 : i32
    return %c0_i32, %c0_i32_0 : i32, i32
  }
  func.func @transform_2(%arg0: i32) -> (i32, i32) {
    %c0_i32 = arith.constant 0 : i32
    %c0_i32_0 = arith.constant 0 : i32
    %c0_i32_1 = arith.constant 0 : i32
    return %c0_i32, %c0_i32_0 : i32, i32
  }
  func.func @transform_3(%arg0: i32) -> (i32, i32) {
    %c0_i32 = arith.constant 0 : i32
    %c0_i32_0 = arith.constant 0 : i32
    %c0_i32_1 = arith.constant 0 : i32
    return %c0_i32, %c0_i32_0 : i32, i32
  }
  func.func @transform_4(%arg0: i32) -> (i32, i32) {
    %c0_i32 = arith.constant 0 : i32
    %c0_i32_0 = arith.constant 0 : i32
    %c0_i32_1 = arith.constant 0 : i32
    return %c0_i32, %c0_i32_0 : i32, i32
  }
  func.func @transform_5(%arg0: i32) -> (i32, i32) {
    %c0_i32 = arith.constant 0 : i32
    %c0_i32_0 = arith.constant 0 : i32
    %c0_i32_1 = arith.constant 0 : i32
    return %c0_i32, %c0_i32_0 : i32, i32
  }
  func.func @transform_6(%arg0: i32) -> (i32, i32) {
    %c0_i32 = arith.constant 0 : i32
    %c0_i32_0 = arith.constant 0 : i32
    %c0_i32_1 = arith.constant 0 : i32
    return %c0_i32, %c0_i32_0 : i32, i32
  }
  func.func @transform_7(%arg0: i32) -> (i32, i32) {
    %c0_i32 = arith.constant 0 : i32
    %c0_i32_0 = arith.constant 0 : i32
    return %arg0, %c0_i32 : i32, i32
  }
}

module attributes {stable_mosaic.version = 11 : i64} {
  func.func @_self_attn_block_kernel(%arg0: i32, %arg1: memref<1x8x32xf32, #tpu.memory_space<vmem>>, %arg2: memref<32x96xf32, #tpu.memory_space<vmem>>, %arg3: memref<1x96xf32, #tpu.memory_space<vmem>>, %arg4: memref<32x32xf32, #tpu.memory_space<vmem>>, %arg5: memref<1x32xf32, #tpu.memory_space<vmem>>, %arg6: memref<1x32xf32, #tpu.memory_space<vmem>>, %arg7: memref<1x32xf32, #tpu.memory_space<vmem>>, %arg8: memref<1x8x32xf32, #tpu.memory_space<vmem>>) attributes {dimension_semantics = [#tpu.dimension_semantics<parallel>], iteration_bounds = array<i64: 2>, scalar_prefetch = 0 : i64, scratch_operands = 0 : i64, tpu.core_type = #tpu.core_type<tc>, window_params = [{transform_indices = @transform_0, window_bounds = array<i64: 1, 8, 32>}, {pipeline_mode = #tpu.pipeline_mode<synchronous>, transform_indices = @transform_1, window_bounds = array<i64: 32, 96>}, {pipeline_mode = #tpu.pipeline_mode<synchronous>, transform_indices = @transform_2, window_bounds = array<i64: 1, 96>}, {pipeline_mode = #tpu.pipeline_mode<synchronous>, transform_indices = @transform_3, window_bounds = array<i64: 32, 32>}, {pipeline_mode = #tpu.pipeline_mode<synchronous>, transform_indices = @transform_4, window_bounds = array<i64: 1, 32>}, {pipeline_mode = #tpu.pipeline_mode<synchronous>, transform_indices = @transform_5, window_bounds = array<i64: 1, 32>}, {pipeline_mode = #tpu.pipeline_mode<synchronous>, transform_indices = @transform_6, window_bounds = array<i64: 1, 32>}, {transform_indices = @transform_7, window_bounds = array<i64: 1, 8, 32>}]} {
    %c0 = arith.constant 0 : index
    %c0_0 = arith.constant 0 : index
    %c0_1 = arith.constant 0 : index
    %0 = vector.load %arg1[%c0, %c0_0, %c0_1] : memref<1x8x32xf32, #tpu.memory_space<vmem>>, vector<1x8x32xf32>
    %1 = vector.shape_cast %0 : vector<1x8x32xf32> to vector<8x32xf32>
    %c0_2 = arith.constant 0 : index
    %c0_3 = arith.constant 0 : index
    %2 = vector.load %arg2[%c0_2, %c0_3] : memref<32x96xf32, #tpu.memory_space<vmem>>, vector<32x96xf32>
    %cst = arith.constant dense<0.000000e+00> : vector<8x96xf32>
    %3 = tpu.matmul %1, %2, %cst {dimension_numbers = #tpu.dot_dimension_numbers<[1], [0], [0], [1], [0, 0, 1, 1], [], []>} : vector<8x32xf32>, vector<32x96xf32>, vector<8x96xf32> -> vector<8x96xf32>
    %c0_4 = arith.constant 0 : index
    %c0_5 = arith.constant 0 : index
    %4 = vector.load %arg3[%c0_4, %c0_5] : memref<1x96xf32, #tpu.memory_space<vmem>>, vector<1x96xf32>
    %5 = vector.broadcast %4 : vector<1x96xf32> to vector<8x96xf32>
    %6 = arith.addf %3, %5 : vector<8x96xf32>
    %7 = vector.extract_strided_slice %6 {offsets = [0, 0], sizes = [8, 32], strides = [1, 1]} : vector<8x96xf32> to vector<8x32xf32>
    %cst_6 = arith.constant 0.353553385 : f32
    %8 = vector.broadcast %cst_6 : f32 to vector<8x32xf32>
    %9 = arith.mulf %7, %8 : vector<8x32xf32>
    %10 = vector.extract_strided_slice %6 {offsets = [0, 32], sizes = [8, 32], strides = [1, 1]} : vector<8x96xf32> to vector<8x32xf32>
    %11 = vector.extract_strided_slice %6 {offsets = [0, 64], sizes = [8, 32], strides = [1, 1]} : vector<8x96xf32> to vector<8x32xf32>
    %c0_7 = arith.constant 0 : index
    %c0_8 = arith.constant 0 : index
    %12 = vector.load %arg4[%c0_7, %c0_8] : memref<32x32xf32, #tpu.memory_space<vmem>>, vector<32x32xf32>
    %13 = vector.extract_strided_slice %9 {offsets = [0, 0], sizes = [8, 8], strides = [1, 1]} : vector<8x32xf32> to vector<8x8xf32>
    %14 = vector.extract_strided_slice %10 {offsets = [0, 0], sizes = [8, 8], strides = [1, 1]} : vector<8x32xf32> to vector<8x8xf32>
    %15 = vector.extract_strided_slice %11 {offsets = [0, 0], sizes = [8, 8], strides = [1, 1]} : vector<8x32xf32> to vector<8x8xf32>
    %cst_9 = arith.constant dense<0.000000e+00> : vector<8x8xf32>
    %16 = tpu.matmul %13, %14, %cst_9 {dimension_numbers = #tpu.dot_dimension_numbers<[1], [1], [0], [0], [0, 0, 1, 0], [], []>} : vector<8x8xf32>, vector<8x8xf32>, vector<8x8xf32> -> vector<8x8xf32>
    %cst_10 = arith.constant dense<0xFF800000> : vector<8xf32>
    %17 = vector.multi_reduction <maximumf>, %16, %cst_10 [1] : vector<8x8xf32> to vector<8xf32>
    %18 = vector.shape_cast %17 : vector<8xf32> to vector<8x1xf32>
    %19 = vector.broadcast %18 : vector<8x1xf32> to vector<8x8xf32>
    %20 = arith.subf %16, %19 : vector<8x8xf32>
    %21 = math.exp %20 : vector<8x8xf32>
    %cst_11 = arith.constant dense<0.000000e+00> : vector<8xf32>
    %22 = vector.multi_reduction <add>, %21, %cst_11 [1] : vector<8x8xf32> to vector<8xf32>
    %23 = vector.shape_cast %22 : vector<8xf32> to vector<8x1xf32>
    %24 = tpu.reciprocal %23 {approx = true} : vector<8x1xf32> -> vector<8x1xf32>
    %25 = vector.broadcast %24 : vector<8x1xf32> to vector<8x8xf32>
    %26 = arith.mulf %21, %25 : vector<8x8xf32>
    %cst_12 = arith.constant dense<0.000000e+00> : vector<8x8xf32>
    %27 = tpu.matmul %26, %15, %cst_12 {dimension_numbers = #tpu.dot_dimension_numbers<[1], [0], [0], [1], [0, 0, 1, 1], [], []>} : vector<8x8xf32>, vector<8x8xf32>, vector<8x8xf32> -> vector<8x8xf32>
    %28 = vector.extract_strided_slice %12 {offsets = [0, 0], sizes = [8, 32], strides = [1, 1]} : vector<32x32xf32> to vector<8x32xf32>
    %cst_13 = arith.constant dense<0.000000e+00> : vector<8x32xf32>
    %29 = tpu.matmul %27, %28, %cst_13 {dimension_numbers = #tpu.dot_dimension_numbers<[1], [0], [0], [1], [0, 0, 1, 1], [], []>} : vector<8x8xf32>, vector<8x32xf32>, vector<8x32xf32> -> vector<8x32xf32>
    %30 = vector.extract_strided_slice %9 {offsets = [0, 8], sizes = [8, 8], strides = [1, 1]} : vector<8x32xf32> to vector<8x8xf32>
    %31 = vector.extract_strided_slice %10 {offsets = [0, 8], sizes = [8, 8], strides = [1, 1]} : vector<8x32xf32> to vector<8x8xf32>
    %32 = vector.extract_strided_slice %11 {offsets = [0, 8], sizes = [8, 8], strides = [1, 1]} : vector<8x32xf32> to vector<8x8xf32>
    %cst_14 = arith.constant dense<0.000000e+00> : vector<8x8xf32>
    %33 = tpu.matmul %30, %31, %cst_14 {dimension_numbers = #tpu.dot_dimension_numbers<[1], [1], [0], [0], [0, 0, 1, 0], [], []>} : vector<8x8xf32>, vector<8x8xf32>, vector<8x8xf32> -> vector<8x8xf32>
    %cst_15 = arith.constant dense<0xFF800000> : vector<8xf32>
    %34 = vector.multi_reduction <maximumf>, %33, %cst_15 [1] : vector<8x8xf32> to vector<8xf32>
    %35 = vector.shape_cast %34 : vector<8xf32> to vector<8x1xf32>
    %36 = vector.broadcast %35 : vector<8x1xf32> to vector<8x8xf32>
    %37 = arith.subf %33, %36 : vector<8x8xf32>
    %38 = math.exp %37 : vector<8x8xf32>
    %cst_16 = arith.constant dense<0.000000e+00> : vector<8xf32>
    %39 = vector.multi_reduction <add>, %38, %cst_16 [1] : vector<8x8xf32> to vector<8xf32>
    %40 = vector.shape_cast %39 : vector<8xf32> to vector<8x1xf32>
    %41 = tpu.reciprocal %40 {approx = true} : vector<8x1xf32> -> vector<8x1xf32>
    %42 = vector.broadcast %41 : vector<8x1xf32> to vector<8x8xf32>
    %43 = arith.mulf %38, %42 : vector<8x8xf32>
    %cst_17 = arith.constant dense<0.000000e+00> : vector<8x8xf32>
    %44 = tpu.matmul %43, %32, %cst_17 {dimension_numbers = #tpu.dot_dimension_numbers<[1], [0], [0], [1], [0, 0, 1, 1], [], []>} : vector<8x8xf32>, vector<8x8xf32>, vector<8x8xf32> -> vector<8x8xf32>
    %45 = vector.extract_strided_slice %12 {offsets = [8, 0], sizes = [8, 32], strides = [1, 1]} : vector<32x32xf32> to vector<8x32xf32>
    %cst_18 = arith.constant dense<0.000000e+00> : vector<8x32xf32>
    %46 = tpu.matmul %44, %45, %cst_18 {dimension_numbers = #tpu.dot_dimension_numbers<[1], [0], [0], [1], [0, 0, 1, 1], [], []>} : vector<8x8xf32>, vector<8x32xf32>, vector<8x32xf32> -> vector<8x32xf32>
    %47 = arith.addf %29, %46 : vector<8x32xf32>
    %48 = vector.extract_strided_slice %9 {offsets = [0, 16], sizes = [8, 8], strides = [1, 1]} : vector<8x32xf32> to vector<8x8xf32>
    %49 = vector.extract_strided_slice %10 {offsets = [0, 16], sizes = [8, 8], strides = [1, 1]} : vector<8x32xf32> to vector<8x8xf32>
    %50 = vector.extract_strided_slice %11 {offsets = [0, 16], sizes = [8, 8], strides = [1, 1]} : vector<8x32xf32> to vector<8x8xf32>
    %cst_19 = arith.constant dense<0.000000e+00> : vector<8x8xf32>
    %51 = tpu.matmul %48, %49, %cst_19 {dimension_numbers = #tpu.dot_dimension_numbers<[1], [1], [0], [0], [0, 0, 1, 0], [], []>} : vector<8x8xf32>, vector<8x8xf32>, vector<8x8xf32> -> vector<8x8xf32>
    %cst_20 = arith.constant dense<0xFF800000> : vector<8xf32>
    %52 = vector.multi_reduction <maximumf>, %51, %cst_20 [1] : vector<8x8xf32> to vector<8xf32>
    %53 = vector.shape_cast %52 : vector<8xf32> to vector<8x1xf32>
    %54 = vector.broadcast %53 : vector<8x1xf32> to vector<8x8xf32>
    %55 = arith.subf %51, %54 : vector<8x8xf32>
    %56 = math.exp %55 : vector<8x8xf32>
    %cst_21 = arith.constant dense<0.000000e+00> : vector<8xf32>
    %57 = vector.multi_reduction <add>, %56, %cst_21 [1] : vector<8x8xf32> to vector<8xf32>
    %58 = vector.shape_cast %57 : vector<8xf32> to vector<8x1xf32>
    %59 = tpu.reciprocal %58 {approx = true} : vector<8x1xf32> -> vector<8x1xf32>
    %60 = vector.broadcast %59 : vector<8x1xf32> to vector<8x8xf32>
    %61 = arith.mulf %56, %60 : vector<8x8xf32>
    %cst_22 = arith.constant dense<0.000000e+00> : vector<8x8xf32>
    %62 = tpu.matmul %61, %50, %cst_22 {dimension_numbers = #tpu.dot_dimension_numbers<[1], [0], [0], [1], [0, 0, 1, 1], [], []>} : vector<8x8xf32>, vector<8x8xf32>, vector<8x8xf32> -> vector<8x8xf32>
    %63 = vector.extract_strided_slice %12 {offsets = [16, 0], sizes = [8, 32], strides = [1, 1]} : vector<32x32xf32> to vector<8x32xf32>
    %cst_23 = arith.constant dense<0.000000e+00> : vector<8x32xf32>
    %64 = tpu.matmul %62, %63, %cst_23 {dimension_numbers = #tpu.dot_dimension_numbers<[1], [0], [0], [1], [0, 0, 1, 1], [], []>} : vector<8x8xf32>, vector<8x32xf32>, vector<8x32xf32> -> vector<8x32xf32>
    %65 = arith.addf %47, %64 : vector<8x32xf32>
    %66 = vector.extract_strided_slice %9 {offsets = [0, 24], sizes = [8, 8], strides = [1, 1]} : vector<8x32xf32> to vector<8x8xf32>
    %67 = vector.extract_strided_slice %10 {offsets = [0, 24], sizes = [8, 8], strides = [1, 1]} : vector<8x32xf32> to vector<8x8xf32>
    %68 = vector.extract_strided_slice %11 {offsets = [0, 24], sizes = [8, 8], strides = [1, 1]} : vector<8x32xf32> to vector<8x8xf32>
    %cst_24 = arith.constant dense<0.000000e+00> : vector<8x8xf32>
    %69 = tpu.matmul %66, %67, %cst_24 {dimension_numbers = #tpu.dot_dimension_numbers<[1], [1], [0], [0], [0, 0, 1, 0], [], []>} : vector<8x8xf32>, vector<8x8xf32>, vector<8x8xf32> -> vector<8x8xf32>
    %cst_25 = arith.constant dense<0xFF800000> : vector<8xf32>
    %70 = vector.multi_reduction <maximumf>, %69, %cst_25 [1] : vector<8x8xf32> to vector<8xf32>
    %71 = vector.shape_cast %70 : vector<8xf32> to vector<8x1xf32>
    %72 = vector.broadcast %71 : vector<8x1xf32> to vector<8x8xf32>
    %73 = arith.subf %69, %72 : vector<8x8xf32>
    %74 = math.exp %73 : vector<8x8xf32>
    %cst_26 = arith.constant dense<0.000000e+00> : vector<8xf32>
    %75 = vector.multi_reduction <add>, %74, %cst_26 [1] : vector<8x8xf32> to vector<8xf32>
    %76 = vector.shape_cast %75 : vector<8xf32> to vector<8x1xf32>
    %77 = tpu.reciprocal %76 {approx = true} : vector<8x1xf32> -> vector<8x1xf32>
    %78 = vector.broadcast %77 : vector<8x1xf32> to vector<8x8xf32>
    %79 = arith.mulf %74, %78 : vector<8x8xf32>
    %cst_27 = arith.constant dense<0.000000e+00> : vector<8x8xf32>
    %80 = tpu.matmul %79, %68, %cst_27 {dimension_numbers = #tpu.dot_dimension_numbers<[1], [0], [0], [1], [0, 0, 1, 1], [], []>} : vector<8x8xf32>, vector<8x8xf32>, vector<8x8xf32> -> vector<8x8xf32>
    %81 = vector.extract_strided_slice %12 {offsets = [24, 0], sizes = [8, 32], strides = [1, 1]} : vector<32x32xf32> to vector<8x32xf32>
    %cst_28 = arith.constant dense<0.000000e+00> : vector<8x32xf32>
    %82 = tpu.matmul %80, %81, %cst_28 {dimension_numbers = #tpu.dot_dimension_numbers<[1], [0], [0], [1], [0, 0, 1, 1], [], []>} : vector<8x8xf32>, vector<8x32xf32>, vector<8x32xf32> -> vector<8x32xf32>
    %83 = arith.addf %65, %82 : vector<8x32xf32>
    %c0_29 = arith.constant 0 : index
    %c0_30 = arith.constant 0 : index
    %84 = vector.load %arg5[%c0_29, %c0_30] : memref<1x32xf32, #tpu.memory_space<vmem>>, vector<1x32xf32>
    %85 = vector.broadcast %84 : vector<1x32xf32> to vector<8x32xf32>
    %86 = arith.addf %83, %85 : vector<8x32xf32>
    %87 = arith.addf %1, %86 : vector<8x32xf32>
    %c0_31 = arith.constant 0 : index
    %c0_32 = arith.constant 0 : index
    %88 = vector.load %arg6[%c0_31, %c0_32] : memref<1x32xf32, #tpu.memory_space<vmem>>, vector<1x32xf32>
    %c0_33 = arith.constant 0 : index
    %c0_34 = arith.constant 0 : index
    %89 = vector.load %arg7[%c0_33, %c0_34] : memref<1x32xf32, #tpu.memory_space<vmem>>, vector<1x32xf32>
    %cst_35 = arith.constant dense<0.000000e+00> : vector<8xf32>
    %90 = vector.multi_reduction <add>, %87, %cst_35 [1] : vector<8x32xf32> to vector<8xf32>
    %91 = vector.shape_cast %90 : vector<8xf32> to vector<8x1xf32>
    %cst_36 = arith.constant 3.200000e+01 : f32
    %92 = vector.broadcast %cst_36 : f32 to vector<8x1xf32>
    %93 = arith.divf %91, %92 : vector<8x1xf32>
    %94 = vector.broadcast %93 : vector<8x1xf32> to vector<8x32xf32>
    %95 = arith.subf %87, %94 : vector<8x32xf32>
    %96 = arith.mulf %95, %95 : vector<8x32xf32>
    %cst_37 = arith.constant dense<0.000000e+00> : vector<8xf32>
    %97 = vector.multi_reduction <add>, %96, %cst_37 [1] : vector<8x32xf32> to vector<8xf32>
    %98 = vector.shape_cast %97 : vector<8xf32> to vector<8x1xf32>
    %cst_38 = arith.constant 3.200000e+01 : f32
    %99 = vector.broadcast %cst_38 : f32 to vector<8x1xf32>
    %100 = arith.divf %98, %99 : vector<8x1xf32>
    %101 = vector.broadcast %93 : vector<8x1xf32> to vector<8x32xf32>
    %102 = arith.subf %87, %101 : vector<8x32xf32>
    %cst_39 = arith.constant 9.99999974E-6 : f32
    %103 = vector.broadcast %cst_39 : f32 to vector<8x1xf32>
    %104 = arith.addf %100, %103 : vector<8x1xf32>
    %105 = math.rsqrt %104 : vector<8x1xf32>
    %106 = vector.broadcast %105 : vector<8x1xf32> to vector<8x32xf32>
    %107 = arith.mulf %102, %106 : vector<8x32xf32>
    %108 = vector.broadcast %88 : vector<1x32xf32> to vector<8x32xf32>
    %109 = arith.mulf %107, %108 : vector<8x32xf32>
    %110 = vector.broadcast %89 : vector<1x32xf32> to vector<8x32xf32>
    %111 = arith.addf %109, %110 : vector<8x32xf32>
    %c0_40 = arith.constant 0 : index
    %c0_41 = arith.constant 0 : index
    %c0_42 = arith.constant 0 : index
    %112 = vector.load %arg8[%c0_40, %c0_41, %c0_42] : memref<1x8x32xf32, #tpu.memory_space<vmem>>, vector<1x8x32xf32>
    %113 = vector.shape_cast %112 : vector<1x8x32xf32> to vector<8x32xf32>
    %114 = vector.shape_cast %111 : vector<8x32xf32> to vector<1x8x32xf32>
    tpu.vector_store %arg8[%c0_40, %c0_41, %c0_42], %114 {strides = array<i32>} : memref<1x8x32xf32, #tpu.memory_space<vmem>>, vector<1x8x32xf32>,
    return
  }
  func.func @transform_0(%arg0: i32) -> (i32, i32, i32) {
    %c0_i32 = arith.constant 0 : i32
    %c0_i32_0 = arith.constant 0 : i32
    %c0_i32_1 = arith.constant 0 : i32
    return %arg0, %c0_i32, %c0_i32_0 : i32, i32, i32
  }
  func.func @transform_1(%arg0: i32) -> (i32, i32) {
    %c0_i32 = arith.constant 0 : i32
    %c0_i32_0 = arith.constant 0 : i32
    %c0_i32_1 = arith.constant 0 : i32
    return %c0_i32, %c0_i32_0 : i32, i32
  }
  func.func @transform_2(%arg0: i32) -> (i32, i32) {
    %c0_i32 = arith.constant 0 : i32
    %c0_i32_0 = arith.constant 0 : i32
    %c0_i32_1 = arith.constant 0 : i32
    return %c0_i32, %c0_i32_0 : i32, i32
  }
  func.func @transform_3(%arg0: i32) -> (i32, i32) {
    %c0_i32 = arith.constant 0 : i32
    %c0_i32_0 = arith.constant 0 : i32
    %c0_i32_1 = arith.constant 0 : i32
    return %c0_i32, %c0_i32_0 : i32, i32
  }
  func.func @transform_4(%arg0: i32) -> (i32, i32) {
    %c0_i32 = arith.constant 0 : i32
    %c0_i32_0 = arith.constant 0 : i32
    %c0_i32_1 = arith.constant 0 : i32
    return %c0_i32, %c0_i32_0 : i32, i32
  }
  func.func @transform_5(%arg0: i32) -> (i32, i32) {
    %c0_i32 = arith.constant 0 : i32
    %c0_i32_0 = arith.constant 0 : i32
    %c0_i32_1 = arith.constant 0 : i32
    return %c0_i32, %c0_i32_0 : i32, i32
  }
  func.func @transform_6(%arg0: i32) -> (i32, i32) {
    %c0_i32 = arith.constant 0 : i32
    %c0_i32_0 = arith.constant 0 : i32
    %c0_i32_1 = arith.constant 0 : i32
    return %c0_i32, %c0_i32_0 : i32, i32
  }
  func.func @transform_7(%arg0: i32) -> (i32, i32, i32) {
    %c0_i32 = arith.constant 0 : i32
    %c0_i32_0 = arith.constant 0 : i32
    %c0_i32_1 = arith.constant 0 : i32
    return %arg0, %c0_i32, %c0_i32_0 : i32, i32, i32
  }
}

module attributes {stable_mosaic.version = 11 : i64} {
  func.func @_cross_attn_block_kernel(%arg0: i32, %arg1: memref<1x8x32xf32, #tpu.memory_space<vmem>>, %arg2: memref<1x16x32xf32, #tpu.memory_space<vmem>>, %arg3: memref<32x32xf32, #tpu.memory_space<vmem>>, %arg4: memref<1x32xf32, #tpu.memory_space<vmem>>, %arg5: memref<32x64xf32, #tpu.memory_space<vmem>>, %arg6: memref<1x64xf32, #tpu.memory_space<vmem>>, %arg7: memref<32x32xf32, #tpu.memory_space<vmem>>, %arg8: memref<1x32xf32, #tpu.memory_space<vmem>>, %arg9: memref<1x32xf32, #tpu.memory_space<vmem>>, %arg10: memref<1x32xf32, #tpu.memory_space<vmem>>, %arg11: memref<1x8x32xf32, #tpu.memory_space<vmem>>) attributes {dimension_semantics = [#tpu.dimension_semantics<parallel>], iteration_bounds = array<i64: 2>, scalar_prefetch = 0 : i64, scratch_operands = 0 : i64, tpu.core_type = #tpu.core_type<tc>, window_params = [{transform_indices = @transform_0, window_bounds = array<i64: 1, 8, 32>}, {transform_indices = @transform_1, window_bounds = array<i64: 1, 16, 32>}, {pipeline_mode = #tpu.pipeline_mode<synchronous>, transform_indices = @transform_2, window_bounds = array<i64: 32, 32>}, {pipeline_mode = #tpu.pipeline_mode<synchronous>, transform_indices = @transform_3, window_bounds = array<i64: 1, 32>}, {pipeline_mode = #tpu.pipeline_mode<synchronous>, transform_indices = @transform_4, window_bounds = array<i64: 32, 64>}, {pipeline_mode = #tpu.pipeline_mode<synchronous>, transform_indices = @transform_5, window_bounds = array<i64: 1, 64>}, {pipeline_mode = #tpu.pipeline_mode<synchronous>, transform_indices = @transform_6, window_bounds = array<i64: 32, 32>}, {pipeline_mode = #tpu.pipeline_mode<synchronous>, transform_indices = @transform_7, window_bounds = array<i64: 1, 32>}, {pipeline_mode = #tpu.pipeline_mode<synchronous>, transform_indices = @transform_8, window_bounds = array<i64: 1, 32>}, {pipeline_mode = #tpu.pipeline_mode<synchronous>, transform_indices = @transform_9, window_bounds = array<i64: 1, 32>}, {transform_indices = @transform_10, window_bounds = array<i64: 1, 8, 32>}]} {
    %c0 = arith.constant 0 : index
    %c0_0 = arith.constant 0 : index
    %c0_1 = arith.constant 0 : index
    %0 = vector.load %arg1[%c0, %c0_0, %c0_1] : memref<1x8x32xf32, #tpu.memory_space<vmem>>, vector<1x8x32xf32>
    %1 = vector.shape_cast %0 : vector<1x8x32xf32> to vector<8x32xf32>
    %c0_2 = arith.constant 0 : index
    %c0_3 = arith.constant 0 : index
    %c0_4 = arith.constant 0 : index
    %2 = vector.load %arg2[%c0_2, %c0_3, %c0_4] : memref<1x16x32xf32, #tpu.memory_space<vmem>>, vector<1x16x32xf32>
    %3 = vector.shape_cast %2 : vector<1x16x32xf32> to vector<16x32xf32>
    %c0_5 = arith.constant 0 : index
    %c0_6 = arith.constant 0 : index
    %4 = vector.load %arg3[%c0_5, %c0_6] : memref<32x32xf32, #tpu.memory_space<vmem>>, vector<32x32xf32>
    %cst = arith.constant dense<0.000000e+00> : vector<8x32xf32>
    %5 = tpu.matmul %1, %4, %cst {dimension_numbers = #tpu.dot_dimension_numbers<[1], [0], [0], [1], [0, 0, 1, 1], [], []>} : vector<8x32xf32>, vector<32x32xf32>, vector<8x32xf32> -> vector<8x32xf32>
    %c0_7 = arith.constant 0 : index
    %c0_8 = arith.constant 0 : index
    %6 = vector.load %arg4[%c0_7, %c0_8] : memref<1x32xf32, #tpu.memory_space<vmem>>, vector<1x32xf32>
    %7 = vector.broadcast %6 : vector<1x32xf32> to vector<8x32xf32>
    %8 = arith.addf %5, %7 : vector<8x32xf32>
    %cst_9 = arith.constant 0.353553385 : f32
    %9 = vector.broadcast %cst_9 : f32 to vector<8x32xf32>
    %10 = arith.mulf %8, %9 : vector<8x32xf32>
    %c0_10 = arith.constant 0 : index
    %c0_11 = arith.constant 0 : index
    %11 = vector.load %arg5[%c0_10, %c0_11] : memref<32x64xf32, #tpu.memory_space<vmem>>, vector<32x64xf32>
    %cst_12 = arith.constant dense<0.000000e+00> : vector<16x64xf32>
    %12 = tpu.matmul %3, %11, %cst_12 {dimension_numbers = #tpu.dot_dimension_numbers<[1], [0], [0], [1], [0, 0, 1, 1], [], []>} : vector<16x32xf32>, vector<32x64xf32>, vector<16x64xf32> -> vector<16x64xf32>
    %c0_13 = arith.constant 0 : index
    %c0_14 = arith.constant 0 : index
    %13 = vector.load %arg6[%c0_13, %c0_14] : memref<1x64xf32, #tpu.memory_space<vmem>>, vector<1x64xf32>
    %14 = vector.broadcast %13 : vector<1x64xf32> to vector<16x64xf32>
    %15 = arith.addf %12, %14 : vector<16x64xf32>
    %16 = vector.extract_strided_slice %15 {offsets = [0, 0], sizes = [16, 32], strides = [1, 1]} : vector<16x64xf32> to vector<16x32xf32>
    %17 = vector.extract_strided_slice %15 {offsets = [0, 32], sizes = [16, 32], strides = [1, 1]} : vector<16x64xf32> to vector<16x32xf32>
    %c0_15 = arith.constant 0 : index
    %c0_16 = arith.constant 0 : index
    %18 = vector.load %arg7[%c0_15, %c0_16] : memref<32x32xf32, #tpu.memory_space<vmem>>, vector<32x32xf32>
    %19 = vector.extract_strided_slice %10 {offsets = [0, 0], sizes = [8, 8], strides = [1, 1]} : vector<8x32xf32> to vector<8x8xf32>
    %20 = vector.extract_strided_slice %16 {offsets = [0, 0], sizes = [16, 8], strides = [1, 1]} : vector<16x32xf32> to vector<16x8xf32>
    %21 = vector.extract_strided_slice %17 {offsets = [0, 0], sizes = [16, 8], strides = [1, 1]} : vector<16x32xf32> to vector<16x8xf32>
    %cst_17 = arith.constant dense<0.000000e+00> : vector<8x16xf32>
    %22 = tpu.matmul %19, %20, %cst_17 {dimension_numbers = #tpu.dot_dimension_numbers<[1], [1], [0], [0], [0, 0, 1, 0], [], []>} : vector<8x8xf32>, vector<16x8xf32>, vector<8x16xf32> -> vector<8x16xf32>
    %cst_18 = arith.constant dense<0xFF800000> : vector<8xf32>
    %23 = vector.multi_reduction <maximumf>, %22, %cst_18 [1] : vector<8x16xf32> to vector<8xf32>
    %24 = vector.shape_cast %23 : vector<8xf32> to vector<8x1xf32>
    %25 = vector.broadcast %24 : vector<8x1xf32> to vector<8x16xf32>
    %26 = arith.subf %22, %25 : vector<8x16xf32>
    %27 = math.exp %26 : vector<8x16xf32>
    %cst_19 = arith.constant dense<0.000000e+00> : vector<8xf32>
    %28 = vector.multi_reduction <add>, %27, %cst_19 [1] : vector<8x16xf32> to vector<8xf32>
    %29 = vector.shape_cast %28 : vector<8xf32> to vector<8x1xf32>
    %30 = tpu.reciprocal %29 {approx = true} : vector<8x1xf32> -> vector<8x1xf32>
    %31 = vector.broadcast %30 : vector<8x1xf32> to vector<8x16xf32>
    %32 = arith.mulf %27, %31 : vector<8x16xf32>
    %cst_20 = arith.constant dense<0.000000e+00> : vector<8x8xf32>
    %33 = tpu.matmul %32, %21, %cst_20 {dimension_numbers = #tpu.dot_dimension_numbers<[1], [0], [0], [1], [0, 0, 1, 1], [], []>} : vector<8x16xf32>, vector<16x8xf32>, vector<8x8xf32> -> vector<8x8xf32>
    %34 = vector.extract_strided_slice %18 {offsets = [0, 0], sizes = [8, 32], strides = [1, 1]} : vector<32x32xf32> to vector<8x32xf32>
    %cst_21 = arith.constant dense<0.000000e+00> : vector<8x32xf32>
    %35 = tpu.matmul %33, %34, %cst_21 {dimension_numbers = #tpu.dot_dimension_numbers<[1], [0], [0], [1], [0, 0, 1, 1], [], []>} : vector<8x8xf32>, vector<8x32xf32>, vector<8x32xf32> -> vector<8x32xf32>
    %36 = vector.extract_strided_slice %10 {offsets = [0, 8], sizes = [8, 8], strides = [1, 1]} : vector<8x32xf32> to vector<8x8xf32>
    %37 = vector.extract_strided_slice %16 {offsets = [0, 8], sizes = [16, 8], strides = [1, 1]} : vector<16x32xf32> to vector<16x8xf32>
    %38 = vector.extract_strided_slice %17 {offsets = [0, 8], sizes = [16, 8], strides = [1, 1]} : vector<16x32xf32> to vector<16x8xf32>
    %cst_22 = arith.constant dense<0.000000e+00> : vector<8x16xf32>
    %39 = tpu.matmul %36, %37, %cst_22 {dimension_numbers = #tpu.dot_dimension_numbers<[1], [1], [0], [0], [0, 0, 1, 0], [], []>} : vector<8x8xf32>, vector<16x8xf32>, vector<8x16xf32> -> vector<8x16xf32>
    %cst_23 = arith.constant dense<0xFF800000> : vector<8xf32>
    %40 = vector.multi_reduction <maximumf>, %39, %cst_23 [1] : vector<8x16xf32> to vector<8xf32>
    %41 = vector.shape_cast %40 : vector<8xf32> to vector<8x1xf32>
    %42 = vector.broadcast %41 : vector<8x1xf32> to vector<8x16xf32>
    %43 = arith.subf %39, %42 : vector<8x16xf32>
    %44 = math.exp %43 : vector<8x16xf32>
    %cst_24 = arith.constant dense<0.000000e+00> : vector<8xf32>
    %45 = vector.multi_reduction <add>, %44, %cst_24 [1] : vector<8x16xf32> to vector<8xf32>
    %46 = vector.shape_cast %45 : vector<8xf32> to vector<8x1xf32>
    %47 = tpu.reciprocal %46 {approx = true} : vector<8x1xf32> -> vector<8x1xf32>
    %48 = vector.broadcast %47 : vector<8x1xf32> to vector<8x16xf32>
    %49 = arith.mulf %44, %48 : vector<8x16xf32>
    %cst_25 = arith.constant dense<0.000000e+00> : vector<8x8xf32>
    %50 = tpu.matmul %49, %38, %cst_25 {dimension_numbers = #tpu.dot_dimension_numbers<[1], [0], [0], [1], [0, 0, 1, 1], [], []>} : vector<8x16xf32>, vector<16x8xf32>, vector<8x8xf32> -> vector<8x8xf32>
    %51 = vector.extract_strided_slice %18 {offsets = [8, 0], sizes = [8, 32], strides = [1, 1]} : vector<32x32xf32> to vector<8x32xf32>
    %cst_26 = arith.constant dense<0.000000e+00> : vector<8x32xf32>
    %52 = tpu.matmul %50, %51, %cst_26 {dimension_numbers = #tpu.dot_dimension_numbers<[1], [0], [0], [1], [0, 0, 1, 1], [], []>} : vector<8x8xf32>, vector<8x32xf32>, vector<8x32xf32> -> vector<8x32xf32>
    %53 = arith.addf %35, %52 : vector<8x32xf32>
    %54 = vector.extract_strided_slice %10 {offsets = [0, 16], sizes = [8, 8], strides = [1, 1]} : vector<8x32xf32> to vector<8x8xf32>
    %55 = vector.extract_strided_slice %16 {offsets = [0, 16], sizes = [16, 8], strides = [1, 1]} : vector<16x32xf32> to vector<16x8xf32>
    %56 = vector.extract_strided_slice %17 {offsets = [0, 16], sizes = [16, 8], strides = [1, 1]} : vector<16x32xf32> to vector<16x8xf32>
    %cst_27 = arith.constant dense<0.000000e+00> : vector<8x16xf32>
    %57 = tpu.matmul %54, %55, %cst_27 {dimension_numbers = #tpu.dot_dimension_numbers<[1], [1], [0], [0], [0, 0, 1, 0], [], []>} : vector<8x8xf32>, vector<16x8xf32>, vector<8x16xf32> -> vector<8x16xf32>
    %cst_28 = arith.constant dense<0xFF800000> : vector<8xf32>
    %58 = vector.multi_reduction <maximumf>, %57, %cst_28 [1] : vector<8x16xf32> to vector<8xf32>
    %59 = vector.shape_cast %58 : vector<8xf32> to vector<8x1xf32>
    %60 = vector.broadcast %59 : vector<8x1xf32> to vector<8x16xf32>
    %61 = arith.subf %57, %60 : vector<8x16xf32>
    %62 = math.exp %61 : vector<8x16xf32>
    %cst_29 = arith.constant dense<0.000000e+00> : vector<8xf32>
    %63 = vector.multi_reduction <add>, %62, %cst_29 [1] : vector<8x16xf32> to vector<8xf32>
    %64 = vector.shape_cast %63 : vector<8xf32> to vector<8x1xf32>
    %65 = tpu.reciprocal %64 {approx = true} : vector<8x1xf32> -> vector<8x1xf32>
    %66 = vector.broadcast %65 : vector<8x1xf32> to vector<8x16xf32>
    %67 = arith.mulf %62, %66 : vector<8x16xf32>
    %cst_30 = arith.constant dense<0.000000e+00> : vector<8x8xf32>
    %68 = tpu.matmul %67, %56, %cst_30 {dimension_numbers = #tpu.dot_dimension_numbers<[1], [0], [0], [1], [0, 0, 1, 1], [], []>} : vector<8x16xf32>, vector<16x8xf32>, vector<8x8xf32> -> vector<8x8xf32>
    %69 = vector.extract_strided_slice %18 {offsets = [16, 0], sizes = [8, 32], strides = [1, 1]} : vector<32x32xf32> to vector<8x32xf32>
    %cst_31 = arith.constant dense<0.000000e+00> : vector<8x32xf32>
    %70 = tpu.matmul %68, %69, %cst_31 {dimension_numbers = #tpu.dot_dimension_numbers<[1], [0], [0], [1], [0, 0, 1, 1], [], []>} : vector<8x8xf32>, vector<8x32xf32>, vector<8x32xf32> -> vector<8x32xf32>
    %71 = arith.addf %53, %70 : vector<8x32xf32>
    %72 = vector.extract_strided_slice %10 {offsets = [0, 24], sizes = [8, 8], strides = [1, 1]} : vector<8x32xf32> to vector<8x8xf32>
    %73 = vector.extract_strided_slice %16 {offsets = [0, 24], sizes = [16, 8], strides = [1, 1]} : vector<16x32xf32> to vector<16x8xf32>
    %74 = vector.extract_strided_slice %17 {offsets = [0, 24], sizes = [16, 8], strides = [1, 1]} : vector<16x32xf32> to vector<16x8xf32>
    %cst_32 = arith.constant dense<0.000000e+00> : vector<8x16xf32>
    %75 = tpu.matmul %72, %73, %cst_32 {dimension_numbers = #tpu.dot_dimension_numbers<[1], [1], [0], [0], [0, 0, 1, 0], [], []>} : vector<8x8xf32>, vector<16x8xf32>, vector<8x16xf32> -> vector<8x16xf32>
    %cst_33 = arith.constant dense<0xFF800000> : vector<8xf32>
    %76 = vector.multi_reduction <maximumf>, %75, %cst_33 [1] : vector<8x16xf32> to vector<8xf32>
    %77 = vector.shape_cast %76 : vector<8xf32> to vector<8x1xf32>
    %78 = vector.broadcast %77 : vector<8x1xf32> to vector<8x16xf32>
    %79 = arith.subf %75, %78 : vector<8x16xf32>
    %80 = math.exp %79 : vector<8x16xf32>
    %cst_34 = arith.constant dense<0.000000e+00> : vector<8xf32>
    %81 = vector.multi_reduction <add>, %80, %cst_34 [1] : vector<8x16xf32> to vector<8xf32>
    %82 = vector.shape_cast %81 : vector<8xf32> to vector<8x1xf32>
    %83 = tpu.reciprocal %82 {approx = true} : vector<8x1xf32> -> vector<8x1xf32>
    %84 = vector.broadcast %83 : vector<8x1xf32> to vector<8x16xf32>
    %85 = arith.mulf %80, %84 : vector<8x16xf32>
    %cst_35 = arith.constant dense<0.000000e+00> : vector<8x8xf32>
    %86 = tpu.matmul %85, %74, %cst_35 {dimension_numbers = #tpu.dot_dimension_numbers<[1], [0], [0], [1], [0, 0, 1, 1], [], []>} : vector<8x16xf32>, vector<16x8xf32>, vector<8x8xf32> -> vector<8x8xf32>
    %87 = vector.extract_strided_slice %18 {offsets = [24, 0], sizes = [8, 32], strides = [1, 1]} : vector<32x32xf32> to vector<8x32xf32>
    %cst_36 = arith.constant dense<0.000000e+00> : vector<8x32xf32>
    %88 = tpu.matmul %86, %87, %cst_36 {dimension_numbers = #tpu.dot_dimension_numbers<[1], [0], [0], [1], [0, 0, 1, 1], [], []>} : vector<8x8xf32>, vector<8x32xf32>, vector<8x32xf32> -> vector<8x32xf32>
    %89 = arith.addf %71, %88 : vector<8x32xf32>
    %c0_37 = arith.constant 0 : index
    %c0_38 = arith.constant 0 : index
    %90 = vector.load %arg8[%c0_37, %c0_38] : memref<1x32xf32, #tpu.memory_space<vmem>>, vector<1x32xf32>
    %91 = vector.broadcast %90 : vector<1x32xf32> to vector<8x32xf32>
    %92 = arith.addf %89, %91 : vector<8x32xf32>
    %93 = arith.addf %1, %92 : vector<8x32xf32>
    %c0_39 = arith.constant 0 : index
    %c0_40 = arith.constant 0 : index
    %94 = vector.load %arg9[%c0_39, %c0_40] : memref<1x32xf32, #tpu.memory_space<vmem>>, vector<1x32xf32>
    %c0_41 = arith.constant 0 : index
    %c0_42 = arith.constant 0 : index
    %95 = vector.load %arg10[%c0_41, %c0_42] : memref<1x32xf32, #tpu.memory_space<vmem>>, vector<1x32xf32>
    %cst_43 = arith.constant dense<0.000000e+00> : vector<8xf32>
    %96 = vector.multi_reduction <add>, %93, %cst_43 [1] : vector<8x32xf32> to vector<8xf32>
    %97 = vector.shape_cast %96 : vector<8xf32> to vector<8x1xf32>
    %cst_44 = arith.constant 3.200000e+01 : f32
    %98 = vector.broadcast %cst_44 : f32 to vector<8x1xf32>
    %99 = arith.divf %97, %98 : vector<8x1xf32>
    %100 = vector.broadcast %99 : vector<8x1xf32> to vector<8x32xf32>
    %101 = arith.subf %93, %100 : vector<8x32xf32>
    %102 = arith.mulf %101, %101 : vector<8x32xf32>
    %cst_45 = arith.constant dense<0.000000e+00> : vector<8xf32>
    %103 = vector.multi_reduction <add>, %102, %cst_45 [1] : vector<8x32xf32> to vector<8xf32>
    %104 = vector.shape_cast %103 : vector<8xf32> to vector<8x1xf32>
    %cst_46 = arith.constant 3.200000e+01 : f32
    %105 = vector.broadcast %cst_46 : f32 to vector<8x1xf32>
    %106 = arith.divf %104, %105 : vector<8x1xf32>
    %107 = vector.broadcast %99 : vector<8x1xf32> to vector<8x32xf32>
    %108 = arith.subf %93, %107 : vector<8x32xf32>
    %cst_47 = arith.constant 9.99999974E-6 : f32
    %109 = vector.broadcast %cst_47 : f32 to vector<8x1xf32>
    %110 = arith.addf %106, %109 : vector<8x1xf32>
    %111 = math.rsqrt %110 : vector<8x1xf32>
    %112 = vector.broadcast %111 : vector<8x1xf32> to vector<8x32xf32>
    %113 = arith.mulf %108, %112 : vector<8x32xf32>
    %114 = vector.broadcast %94 : vector<1x32xf32> to vector<8x32xf32>
    %115 = arith.mulf %113, %114 : vector<8x32xf32>
    %116 = vector.broadcast %95 : vector<1x32xf32> to vector<8x32xf32>
    %117 = arith.addf %115, %116 : vector<8x32xf32>
    %c0_48 = arith.constant 0 : index
    %c0_49 = arith.constant 0 : index
    %c0_50 = arith.constant 0 : index
    %118 = vector.load %arg11[%c0_48, %c0_49, %c0_50] : memref<1x8x32xf32, #tpu.memory_space<vmem>>, vector<1x8x32xf32>
    %119 = vector.shape_cast %118 : vector<1x8x32xf32> to vector<8x32xf32>
    %120 = vector.shape_cast %117 : vector<8x32xf32> to vector<1x8x32xf32>
    tpu.vector_store %arg11[%c0_48, %c0_49, %c0_50], %120 {strides = array<i32>} : memref<1x8x32xf32, #tpu.memory_space<vmem>>, vector<1x8x32xf32>,
    return
  }
  func.func @transform_0(%arg0: i32) -> (i32, i32, i32) {
    %c0_i32 = arith.constant 0 : i32
    %c0_i32_0 = arith.constant 0 : i32
    %c0_i32_1 = arith.constant 0 : i32
    return %arg0, %c0_i32, %c0_i32_0 : i32, i32, i32
  }
  func.func @transform_1(%arg0: i32) -> (i32, i32, i32) {
    %c0_i32 = arith.constant 0 : i32
    %c0_i32_0 = arith.constant 0 : i32
    %c0_i32_1 = arith.constant 0 : i32
    return %arg0, %c0_i32, %c0_i32_0 : i32, i32, i32
  }
  func.func @transform_2(%arg0: i32) -> (i32, i32) {
    %c0_i32 = arith.constant 0 : i32
    %c0_i32_0 = arith.constant 0 : i32
    %c0_i32_1 = arith.constant 0 : i32
    return %c0_i32, %c0_i32_0 : i32, i32
  }
  func.func @transform_3(%arg0: i32) -> (i32, i32) {
    %c0_i32 = arith.constant 0 : i32
    %c0_i32_0 = arith.constant 0 : i32
    %c0_i32_1 = arith.constant 0 : i32
    return %c0_i32, %c0_i32_0 : i32, i32
  }
  func.func @transform_4(%arg0: i32) -> (i32, i32) {
    %c0_i32 = arith.constant 0 : i32
    %c0_i32_0 = arith.constant 0 : i32
    %c0_i32_1 = arith.constant 0 : i32
    return %c0_i32, %c0_i32_0 : i32, i32
  }
  func.func @transform_5(%arg0: i32) -> (i32, i32) {
    %c0_i32 = arith.constant 0 : i32
    %c0_i32_0 = arith.constant 0 : i32
    %c0_i32_1 = arith.constant 0 : i32
    return %c0_i32, %c0_i32_0 : i32, i32
  }
  func.func @transform_6(%arg0: i32) -> (i32, i32) {
    %c0_i32 = arith.constant 0 : i32
    %c0_i32_0 = arith.constant 0 : i32
    %c0_i32_1 = arith.constant 0 : i32
    return %c0_i32, %c0_i32_0 : i32, i32
  }
  func.func @transform_7(%arg0: i32) -> (i32, i32) {
    %c0_i32 = arith.constant 0 : i32
    %c0_i32_0 = arith.constant 0 : i32
    %c0_i32_1 = arith.constant 0 : i32
    return %c0_i32, %c0_i32_0 : i32, i32
  }
  func.func @transform_8(%arg0: i32) -> (i32, i32) {
    %c0_i32 = arith.constant 0 : i32
    %c0_i32_0 = arith.constant 0 : i32
    %c0_i32_1 = arith.constant 0 : i32
    return %c0_i32, %c0_i32_0 : i32, i32
  }
  func.func @transform_9(%arg0: i32) -> (i32, i32) {
    %c0_i32 = arith.constant 0 : i32
    %c0_i32_0 = arith.constant 0 : i32
    %c0_i32_1 = arith.constant 0 : i32
    return %c0_i32, %c0_i32_0 : i32, i32
  }
  func.func @transform_10(%arg0: i32) -> (i32, i32, i32) {
    %c0_i32 = arith.constant 0 : i32
    %c0_i32_0 = arith.constant 0 : i32
    %c0_i32_1 = arith.constant 0 : i32
    return %arg0, %c0_i32, %c0_i32_0 : i32, i32, i32
  }
}

</mosaic_0001>

<llo_original>
// kernel: time_series_transformer.11
$region0: #{time_series_transformer.11}
  #allocation0 [shape = 'u32[]', space=smem, size = 0x4, offset = 0x4, fixed_abs, tag = 'smem constant byte address 0x4 - core index']
  #allocation1 [shape = 'u32[72,128]{1,0:T(1,128)}', space=vmem, size = 0x9000, scoped, tag = 'internal scratch']
  %s0 = inlined_call_operand.vmem [shape: f32[2,16,4], index: 0, kind: input, shape index: {}]
  %s1 = inlined_call_operand.vmem [shape: f32[4,32], index: 1, kind: input, shape index: {}]
  %s2 = inlined_call_operand.vmem [shape: f32[1,32], index: 2, kind: input, shape index: {}]
  %s3 = inlined_call_operand.vmem [shape: f32[16,32], index: 3, kind: input, shape index: {}]
  %s4 = inlined_call_operand.vmem [shape: f32[2,16,32], index: 4, kind: output, shape index: {}]
  %s5 = sld [smem:[#allocation0]]
  $region49: #{time_series_transformer.11} parent=0
    _
  %s7 = ssub.s32 1, %s5
  %s8 = scalar_select 0, %s7, %s5
  loop: start=0, step=1, limit=4
  $region2: #{time_series_transformer.11} parent=0 // loop_pre_header
    _
  $region3: #{time_series_transformer.11} parent=0 // loop_header
    %s10 = sphi 0, %s14
    %p11 = scmp.ge.s32.totalorder %s10, 4
    %s20 = sphi 0, %s22
    %s23 = sphi 0, %s20
    %s24 = sphi 0, %s23
    %s40 = sphi 0, %s24
    %s44 = sphi 0, %s44
    %s46 = sphi 0, %s44
    %s47 = sphi 0, %s46
    %s61 = sphi 0, %s47
    %s65 = sphi 0, %s65
    %s67 = sphi 0, %s65
    %s68 = sphi 0, %s67
    %s82 = sphi 0, %s68
    %s86 = sphi 0, %s86
    %s88 = sphi 0, %s86
    %s89 = sphi 0, %s88
    %s103 = sphi 0, %s89
    %s109 = sphi 0, %s111
    %s112 = sphi 0, %s109
    %s113 = sphi 0, %s112
    %s129 = sphi 0, %s113
  $region4: #{time_series_transformer.11} parent=0 // loop_header_branch
    %13 = sbr.rel (%p11) target = $region8
  $region5: #{time_series_transformer.11} parent=0 // loop_body
    %s15 = ssub.s32 %s10, 1
    %s16 = ssub.s32 %s10, 2
    %s17 = sadd.s32 %s10, 1
    %s18 = ssub.s32 %s10, %s17
    %p19 = scmp.eq.s32.totalorder %s18, 0
    %s21 = sadd.s32 %s20, 1
    %s22 = scalar_select %p19, %s20, %s21
    %p25 = pneg %p19
    %p26 = scmp.eq.s32.totalorder %s10, 1
    %p27 = por %p25, %p26
    %p28 = scmp.ne.s32.totalorder %s20, %s23
    %p29 = scmp.eq.s32.totalorder %s10, 0
    %p30 = por %p28, %p29
    %p31 = scmp.ne.s32.totalorder %s20, %s23
    %p32 = scmp.eq.s32.totalorder %s15, 1
    %p33 = por %p31, %p32
    %p34 = scmp.ne.s32.totalorder %s23, %s24
    %p35 = scmp.eq.s32.totalorder %s15, 0
    %p36 = por %p34, %p35
    %p37 = scmp.ne.s32.totalorder %s23, %s24
    %p38 = scmp.eq.s32.totalorder %s16, 1
    %p39 = por %p37, %p38
    %p41 = scmp.ne.s32.totalorder %s24, %s40
    %p42 = scmp.eq.s32.totalorder %s16, 0
    %p43 = por %p41, %p42
    %s45 = sadd.s32 %s44, 1
    %p48 = scmp.eq.s32.totalorder %s10, 1
    %p49 = scmp.ne.s32.totalorder %s44, %s46
    %p50 = scmp.eq.s32.totalorder %s10, 0
    %p51 = por %p49, %p50
    %p52 = scmp.ne.s32.totalorder %s44, %s46
    %p53 = scmp.eq.s32.totalorder %s15, 1
    %p54 = por %p52, %p53
    %p55 = scmp.ne.s32.totalorder %s46, %s47
    %p56 = scmp.eq.s32.totalorder %s15, 0
    %p57 = por %p55, %p56
    %p58 = scmp.ne.s32.totalorder %s46, %s47
    %p59 = scmp.eq.s32.totalorder %s16, 1
    %p60 = por %p58, %p59
    %p62 = scmp.ne.s32.totalorder %s47, %s61
    %p63 = scmp.eq.s32.totalorder %s16, 0
    %p64 = por %p62, %p63
    %s66 = sadd.s32 %s65, 1
    %p69 = scmp.eq.s32.totalorder %s10, 1
    %p70 = scmp.ne.s32.totalorder %s65, %s67
    %p71 = scmp.eq.s32.totalorder %s10, 0
    %p72 = por %p70, %p71
    %p73 = scmp.ne.s32.totalorder %s65, %s67
    %p74 = scmp.eq.s32.totalorder %s15, 1
    %p75 = por %p73, %p74
    %p76 = scmp.ne.s32.totalorder %s67, %s68
    %p77 = scmp.eq.s32.totalorder %s15, 0
    %p78 = por %p76, %p77
    %p79 = scmp.ne.s32.totalorder %s67, %s68
    %p80 = scmp.eq.s32.totalorder %s16, 1
    %p81 = por %p79, %p80
    %p83 = scmp.ne.s32.totalorder %s68, %s82
    %p84 = scmp.eq.s32.totalorder %s16, 0
    %p85 = por %p83, %p84
    %s87 = sadd.s32 %s86, 1
    %p90 = scmp.eq.s32.totalorder %s10, 1
    %p91 = scmp.ne.s32.totalorder %s86, %s88
    %p92 = scmp.eq.s32.totalorder %s10, 0
    %p93 = por %p91, %p92
    %p94 = scmp.ne.s32.totalorder %s86, %s88
    %p95 = scmp.eq.s32.totalorder %s15, 1
    %p96 = por %p94, %p95
    %p97 = scmp.ne.s32.totalorder %s88, %s89
    %p98 = scmp.eq.s32.totalorder %s15, 0
    %p99 = por %p97, %p98
    %p100 = scmp.ne.s32.totalorder %s88, %s89
    %p101 = scmp.eq.s32.totalorder %s16, 1
    %p102 = por %p100, %p101
    %p104 = scmp.ne.s32.totalorder %s89, %s103
    %p105 = scmp.eq.s32.totalorder %s16, 0
    %p106 = por %p104, %p105
    %s107 = ssub.s32 %s10, %s17
    %p108 = scmp.eq.s32.totalorder %s107, 0
    %s110 = sadd.s32 %s109, 1
    %s111 = scalar_select %p108, %s109, %s110
    %p114 = pneg %p108
    %p115 = scmp.eq.s32.totalorder %s10, 1
    %p116 = por %p114, %p115
    %p117 = scmp.ne.s32.totalorder %s109, %s112
    %p118 = scmp.eq.s32.totalorder %s10, 0
    %p119 = por %p117, %p118
    %p120 = scmp.ne.s32.totalorder %s109, %s112
    %p121 = scmp.eq.s32.totalorder %s15, 1
    %p122 = por %p120, %p121
    %p123 = scmp.ne.s32.totalorder %s112, %s113
    %p124 = scmp.eq.s32.totalorder %s15, 0
    %p125 = por %p123, %p124
    %p126 = scmp.ne.s32.totalorder %s112, %s113
    %p127 = scmp.eq.s32.totalorder %s16, 1
    %p128 = por %p126, %p127
    %p130 = scmp.ne.s32.totalorder %s113, %s129
    %p131 = scmp.eq.s32.totalorder %s16, 0
    %p132 = por %p130, %p131
    %p133 = scmp.le.s32.totalorder 1, %s10
    %p134 = scmp.lt.s32.totalorder %s10, 3
    %p135 = pnand %p133, %p134
    %p136 = pneg %p135
    // Predicated region
    $region9: #{time_series_transformer.11} parent=5 // pred_check
      _
    $region10: #{time_series_transformer.11} parent=5 // pred_check_branch
      %138 = sbr.rel (%p135) target = $region12
    $region11: #{time_series_transformer.11} parent=5 // pred_region
      %s139 = ssub.s32 %s10, 1
      // Predicated region
      $region13: #{time_series_transformer.11} parent=11 // pred_check
        %p140 = pneg %p57
      $region14: #{time_series_transformer.11} parent=11 // pred_check_branch
        %142 = sbr.rel (%p140) target = $region16
      $region15: #{time_series_transformer.11} parent=11 // pred_region
        _
      $region16: #{time_series_transformer.11} parent=11 // pred_fallthru
        _
      // Predicated region
      $region17: #{time_series_transformer.11} parent=11 // pred_check
        %p143 = pneg %p78
      $region18: #{time_series_transformer.11} parent=11 // pred_check_branch
        %145 = sbr.rel (%p143) target = $region20
      $region19: #{time_series_transformer.11} parent=11 // pred_region
        _
      $region20: #{time_series_transformer.11} parent=11 // pred_fallthru
        _
      // Predicated region
      $region21: #{time_series_transformer.11} parent=11 // pred_check
        %p146 = pneg %p99
      $region22: #{time_series_transformer.11} parent=11 // pred_check_branch
        %148 = sbr.rel (%p146) target = $region24
      $region23: #{time_series_transformer.11} parent=11 // pred_region
        _
      $region24: #{time_series_transformer.11} parent=11 // pred_fallthru
        _
    $region12: #{time_series_transformer.11} parent=5 // pred_fallthru
      _
    %p149 = scmp.lt.s32.totalorder %s10, 2
    // Predicated region
    $region25: #{time_series_transformer.11} parent=5 // pred_check
      %p150 = pneg %p149
    $region26: #{time_series_transformer.11} parent=5 // pred_check_branch
      %152 = sbr.rel (%p150) target = $region28
    $region27: #{time_series_transformer.11} parent=5 // pred_region
      // Predicated region
      $region29: #{time_series_transformer.11} parent=27 // pred_check
        %p153 = pneg %p30
      $region30: #{time_series_transformer.11} parent=27 // pred_check_branch
        %155 = sbr.rel (%p153) target = $region32
      $region31: #{time_series_transformer.11} parent=27 // pred_region
        %p156 = scmp.lt.s32.totalorder %s10, 1
        %s157 = scalar_select %p156, %s10, 1
        %s158 = smul.addr %s157, 2
        %s159 = smul.addr %s158, 8
        %s160 = scalar_lea.vmem %s0, %s159
      $region32: #{time_series_transformer.11} parent=27 // pred_fallthru
        _
    $region28: #{time_series_transformer.11} parent=5 // pred_fallthru
      _
    %p161 = scmp.le.s32.totalorder 1, %s10
    %p162 = scmp.lt.s32.totalorder %s10, 3
    %p163 = pnand %p161, %p162
    %p164 = pneg %p163
    // Predicated region
    $region33: #{time_series_transformer.11} parent=5 // pred_check
      _
    $region34: #{time_series_transformer.11} parent=5 // pred_check_branch
      %166 = sbr.rel (%p163) target = $region36
    $region35: #{time_series_transformer.11} parent=5 // pred_region
      %s167 = ssub.s32 %s10, 1
      %p168 = scmp.lt.s32.totalorder %s15, 1
      %s169 = scalar_select %p168, %s15, 1
      %s170 = smul.addr %s169, 2
      %s171 = smul.addr %s170, 8
      %s172 = scalar_lea.vmem %s0, %s171
      %p173 = pneg %p36
      %p174 = pneg %p33
      %p175 = pneg %p57
      %p176 = pneg %p54
      %p177 = pneg %p78
      %p178 = pneg %p75
      %p179 = pneg %p99
      %p180 = pneg %p96
      %p181 = pneg %p125
      %p182 = pneg %p122
      %p183 = scmp.lt.s32.totalorder %s15, 1
      %s184 = scalar_select %p183, %s15, 1
      %s185 = smul.addr %s184, 2
      %s186 = smul.addr %s185, 8
      %s187 = scalar_lea.vmem %s4, %s186
      %p188 = scmp.lt.s32.totalorder %s15, 1
      %s189 = scalar_select %p188, %s15, 1
      %s190 = smul.addr %s189, 2
      %s191 = smul.addr %s190, 8
      %s192 = scalar_lea.vmem %s0, %s191
      %p193 = scmp.lt.s32.totalorder %s15, 1
      %s194 = scalar_select %p193, %s15, 1
      %s195 = smul.addr %s194, 2
      %s196 = smul.addr %s195, 8
      %s197 = scalar_lea.vmem %s4, %s196
      %v198 = vld [vmem:[%s192] sm:$0xff]
      %v199 = vld [vmem:[%s192 + $0x8] sm:$0xff]
      %v200 = vld [vmem:[%s1] sm:$0xf]
      %v201 = vld [vmem:[%s2] sm:$0x1]
      %v203 = vperm.slane %v201, 0
      %vm205 = vcmask 31744
      %v207 = vsel %vm205, %v198, 0
      %v210 = vsel %vm205, %v199, 0
      %vm212 = vcmask 1043456
      %v214 = vsel %vm212, %v200, 0
      %216 = vmatpush.msra.mxu0 0.0
      %217 = vmatpush.msra.mxu0 0.0
      %218 = vmatpush.msra.mxu0 0.0
      %219 = vmatpush.msra.mxu0 0.0
      %220 = vmatpush.msra.mxu0 0.0
      %221 = vmatpush.msra.mxu0 0.0
      %222 = vmatpush.msra.mxu0 0.0
      %223 = vmatpush.msra.mxu0 0.0
      %224 = vmatpush.msra.mxu0 0.0
      %225 = vmatpush.msra.mxu0 0.0
      %226 = vmatpush.msra.mxu0 0.0
      %227 = vmatpush.msra.mxu0 0.0
      %228 = vmatpush.msra.mxu0 0.0
      %229 = vmatpush.msra.mxu0 0.0
      %230 = vmatpush.msra.mxu0 0.0
      %231 = vmatpush.msra.mxu0 %v214
      %232 = vmatmul.f32.gmra.mxu0 %v207
      %v233 = vpop.f32.mrf.mxu0
      %v234 = vadd.f32 %v203, %v233
      %235 = vmatmul.f32.gmra.mxu0 %v210
      %v236 = vpop.f32.mrf.mxu0
      %v237 = vadd.f32 %v203, %v236
      %238 = vdwg.mxu0
      %v239 = vld [vmem:[%s3] sm:$0xff]
      %v240 = vld [vmem:[%s3 + $0x8] sm:$0xff]
      %v241 = vadd.f32 %v234, %v239
      %v242 = vadd.f32 %v237, %v240
      %vm243 = vcmask 261120
      %244 = vst.msk [vmem:[%s197] sm:$0xff] %vm243, %v241
      %245 = vst.msk [vmem:[%s197 + $0x8] sm:$0xff] %vm243, %v242
      %p246 = scmp.lt.s32.totalorder %s15, 1
      %s247 = scalar_select %p246, %s15, 1
      %s248 = smul.addr %s247, 2
      %s249 = smul.addr %s248, 8
      %s250 = scalar_lea.vmem %s4, %s249
      // Predicated region
      $region37: #{time_series_transformer.11} parent=35 // pred_check
        %p251 = pneg %p122
      $region38: #{time_series_transformer.11} parent=35 // pred_check_branch
        %253 = sbr.rel (%p251) target = $region40
      $region39: #{time_series_transformer.11} parent=35 // pred_region
        _
      $region40: #{time_series_transformer.11} parent=35 // pred_fallthru
        _
    $region36: #{time_series_transformer.11} parent=5 // pred_fallthru
      _
    %p254 = scmp.le.s32.totalorder 2, %s10
    // Predicated region
    $region41: #{time_series_transformer.11} parent=5 // pred_check
      %p255 = pneg %p254
    $region42: #{time_series_transformer.11} parent=5 // pred_check_branch
      %257 = sbr.rel (%p255) target = $region44
    $region43: #{time_series_transformer.11} parent=5 // pred_region
      %s258 = ssub.s32 %s10, 2
      // Predicated region
      $region45: #{time_series_transformer.11} parent=43 // pred_check
        %p259 = pneg %p128
      $region46: #{time_series_transformer.11} parent=43 // pred_check_branch
        %261 = sbr.rel (%p259) target = $region48
      $region47: #{time_series_transformer.11} parent=43 // pred_region
        %p262 = scmp.lt.s32.totalorder %s16, 1
        %s263 = scalar_select %p262, %s16, 1
        %s264 = smul.addr %s263, 2
        %s265 = smul.addr %s264, 8
        %s266 = scalar_lea.vmem %s4, %s265
      $region48: #{time_series_transformer.11} parent=43 // pred_fallthru
        _
    $region44: #{time_series_transformer.11} parent=5 // pred_fallthru
      _
  $region6: #{time_series_transformer.11} parent=0 // loop_footer
    %s14 = sadd.s32 1, %s10
  $region7: #{time_series_transformer.11} parent=0 // loop_footer_branch
    %9 = sbr.rel target = $region3
  $region8: #{time_series_transformer.11} parent=0 // loop_exit
    _

// kernel: time_series_transformer.13
$region0: #{time_series_transformer.13}
  #allocation0 [shape = 'u32[]', space=smem, size = 0x4, offset = 0x4, fixed_abs, tag = 'smem constant byte address 0x4 - core index']
  #allocation1 [shape = 'u32[72,128]{1,0:T(1,128)}', space=vmem, size = 0x9000, scoped, tag = 'internal scratch']
  %s0 = inlined_call_operand.vmem [shape: f32[32,32], index: 0, kind: input, shape index: {}]
  %s1 = inlined_call_operand.vmem [shape: f32[32,64], index: 1, kind: input, shape index: {}]
  %s2 = inlined_call_operand.vmem [shape: f32[1,64], index: 2, kind: input, shape index: {}]
  %s3 = inlined_call_operand.vmem [shape: f32[64,32], index: 3, kind: input, shape index: {}]
  %s4 = inlined_call_operand.vmem [shape: f32[1,32], index: 4, kind: input, shape index: {}]
  %s5 = inlined_call_operand.vmem [shape: f32[1,32], index: 5, kind: input, shape index: {}]
  %s6 = inlined_call_operand.vmem [shape: f32[1,32], index: 6, kind: input, shape index: {}]
  %s7 = inlined_call_operand.vmem [shape: f32[32,32], index: 7, kind: output, shape index: {}]
  %s8 = sld [smem:[#allocation0]]
  $region38: #{time_series_transformer.13} parent=0
    _
  %s10 = ssub.s32 1, %s8
  %s11 = scalar_select 0, %s10, %s8
  // Predicated region
  $region2: #{time_series_transformer.13} parent=0 // pred_check
    _
  $region3: #{time_series_transformer.13} parent=0 // pred_check_branch
    %13 = sbr.rel (0) target = $region5
  $region4: #{time_series_transformer.13} parent=0 // pred_region
    _
  $region5: #{time_series_transformer.13} parent=0 // pred_fallthru
    _
  // Predicated region
  $region6: #{time_series_transformer.13} parent=0 // pred_check
    _
  $region7: #{time_series_transformer.13} parent=0 // pred_check_branch
    %15 = sbr.rel (0) target = $region9
  $region8: #{time_series_transformer.13} parent=0 // pred_region
    _
  $region9: #{time_series_transformer.13} parent=0 // pred_fallthru
    _
  // Predicated region
  $region10: #{time_series_transformer.13} parent=0 // pred_check
    _
  $region11: #{time_series_transformer.13} parent=0 // pred_check_branch
    %17 = sbr.rel (0) target = $region13
  $region12: #{time_series_transformer.13} parent=0 // pred_region
    _
  $region13: #{time_series_transformer.13} parent=0 // pred_fallthru
    _
  // Predicated region
  $region14: #{time_series_transformer.13} parent=0 // pred_check
    _
  $region15: #{time_series_transformer.13} parent=0 // pred_check_branch
    %19 = sbr.rel (0) target = $region17
  $region16: #{time_series_transformer.13} parent=0 // pred_region
    _
  $region17: #{time_series_transformer.13} parent=0 // pred_fallthru
    _
  // Predicated region
  $region18: #{time_series_transformer.13} parent=0 // pred_check
    _
  $region19: #{time_series_transformer.13} parent=0 // pred_check_branch
    %21 = sbr.rel (0) target = $region21
  $region20: #{time_series_transformer.13} parent=0 // pred_region
    _
  $region21: #{time_series_transformer.13} parent=0 // pred_fallthru
    _
  // Predicated region
  $region22: #{time_series_transformer.13} parent=0 // pred_check
    _
  $region23: #{time_series_transformer.13} parent=0 // pred_check_branch
    %23 = sbr.rel (0) target = $region25
  $region24: #{time_series_transformer.13} parent=0 // pred_region
    _
  $region25: #{time_series_transformer.13} parent=0 // pred_fallthru
    _
  // Predicated region
  $region26: #{time_series_transformer.13} parent=0 // pred_check
    _
  $region27: #{time_series_transformer.13} parent=0 // pred_check_branch
    %25 = sbr.rel (0) target = $region29
  $region28: #{time_series_transformer.13} parent=0 // pred_region
    _
  $region29: #{time_series_transformer.13} parent=0 // pred_fallthru
    _
  %v26 = vld [vmem:[%s0] sm:$0xff]
  %v27 = vld [vmem:[%s0 + $0x8] sm:$0xff]
  %v28 = vld [vmem:[%s0 + $0x10] sm:$0xff]
  %v29 = vld [vmem:[%s0 + $0x18] sm:$0xff]
  %v30 = vld [vmem:[%s1] sm:$0xff]
  %v31 = vld [vmem:[%s1 + $0x8] sm:$0xff]
  %v32 = vld [vmem:[%s1 + $0x10] sm:$0xff]
  %v33 = vld [vmem:[%s1 + $0x18] sm:$0xff]
  %v34 = vld [vmem:[%s2] sm:$0x1]
  %v36 = vperm.slane %v34, 0
  %vm38 = vcmask 261120
  %v40 = vsel %vm38, %v26, 0
  %v43 = vsel %vm38, %v27, 0
  %v46 = vsel %vm38, %v28, 0
  %v49 = vsel %vm38, %v29, 0
  %51 = vmatpush.msra.mxu0 0.0
  %52 = vmatpush.msra.mxu0 0.0
  %53 = vmatpush.msra.mxu0 0.0
  %54 = vmatpush.msra.mxu0 0.0
  %55 = vmatpush.msra.mxu0 0.0
  %56 = vmatpush.msra.mxu0 0.0
  %57 = vmatpush.msra.mxu0 0.0
  %58 = vmatpush.msra.mxu0 0.0
  %59 = vmatpush.msra.mxu0 0.0
  %60 = vmatpush.msra.mxu0 0.0
  %61 = vmatpush.msra.mxu0 0.0
  %62 = vmatpush.msra.mxu0 0.0
  %63 = vmatpush.msra.mxu0 %v33
  %64 = vmatpush.msra.mxu0 %v32
  %65 = vmatpush.msra.mxu0 %v31
  %66 = vmatpush.msra.mxu0 %v30
  %67 = vmatmul.f32.gmra.mxu0 %v40
  %v68 = vpop.f32.mrf.mxu0
  %v69 = vadd.f32 %v36, %v68
  %70 = vmatmul.f32.gmra.mxu0 %v43
  %v71 = vpop.f32.mrf.mxu0
  %v72 = vadd.f32 %v36, %v71
  %73 = vmatmul.f32.gmra.mxu0 %v46
  %v74 = vpop.f32.mrf.mxu0
  %v75 = vadd.f32 %v36, %v74
  %76 = vmatmul.f32.gmra.mxu0 %v49
  %v77 = vpop.f32.mrf.mxu0
  %v78 = vadd.f32 %v36, %v77
  %79 = vdwg.mxu0
  %v80 = vmax.f32 %v69, 0.0
  %v81 = vmax.f32 %v72, 0.0
  %v82 = vmax.f32 %v75, 0.0
  %v83 = vmax.f32 %v78, 0.0
  %v84 = vld [vmem:[%s3] sm:$0xff]
  %v85 = vld [vmem:[%s3 + $0x8] sm:$0xff]
  %v86 = vld [vmem:[%s3 + $0x10] sm:$0xff]
  %v87 = vld [vmem:[%s3 + $0x18] sm:$0xff]
  %v88 = vld [vmem:[%s3 + $0x20] sm:$0xff]
  %v89 = vld [vmem:[%s3 + $0x28] sm:$0xff]
  %v90 = vld [vmem:[%s3 + $0x30] sm:$0xff]
  %v91 = vld [vmem:[%s3 + $0x38] sm:$0xff]
  %v92 = vld [vmem:[%s4] sm:$0x1]
  %v94 = vperm.slane %v92, 0
  %vm96 = vcmask 523264
  %v98 = vsel %vm96, %v80, 0
  %v101 = vsel %vm96, %v81, 0
  %v104 = vsel %vm96, %v82, 0
  %v107 = vsel %vm96, %v83, 0
  %109 = vmatpush.msra.mxu0 0.0
  %110 = vmatpush.msra.mxu0 0.0
  %111 = vmatpush.msra.mxu0 0.0
  %112 = vmatpush.msra.mxu0 0.0
  %113 = vmatpush.msra.mxu0 0.0
  %114 = vmatpush.msra.mxu0 0.0
  %115 = vmatpush.msra.mxu0 0.0
  %116 = vmatpush.msra.mxu0 0.0
  %117 = vmatpush.msra.mxu0 %v91
  %118 = vmatpush.msra.mxu0 %v90
  %119 = vmatpush.msra.mxu0 %v89
  %120 = vmatpush.msra.mxu0 %v88
  %121 = vmatpush.msra.mxu0 %v87
  %122 = vmatpush.msra.mxu0 %v86
  %123 = vmatpush.msra.mxu0 %v85
  %124 = vmatpush.msra.mxu0 %v84
  %125 = vmatmul.f32.gmra.mxu0 %v98
  %v126 = vpop.f32.mrf.mxu0
  %v127 = vadd.f32 %v94, %v126
  %128 = vmatmul.f32.gmra.mxu0 %v101
  %v129 = vpop.f32.mrf.mxu0
  %v130 = vadd.f32 %v94, %v129
  %131 = vmatmul.f32.gmra.mxu0 %v104
  %v132 = vpop.f32.mrf.mxu0
  %v133 = vadd.f32 %v94, %v132
  %134 = vmatmul.f32.gmra.mxu0 %v107
  %v135 = vpop.f32.mrf.mxu0
  %v136 = vadd.f32 %v94, %v135
  %137 = vdwg.mxu0
  %v138 = vadd.f32 %v26, %v127
  %v139 = vadd.f32 %v27, %v130
  %v140 = vadd.f32 %v28, %v133
  %v141 = vadd.f32 %v29, %v136
  %v142 = vld [vmem:[%s5] sm:$0x1]
  %v143 = vld [vmem:[%s6] sm:$0x1]
  %v144 = vsel %vm38, %v138, 0.0
  %145 = vadd.xlane.f32.xlu0 %v144
  %v146 = vpop.xlane.xlu0 %145
  %v147 = vsel %vm38, %v139, 0.0
  %148 = vadd.xlane.f32.xlu0 %v147
  %v149 = vpop.xlane.xlu0 %148
  %v150 = vsel %vm38, %v140, 0.0
  %151 = vadd.xlane.f32.xlu0 %v150
  %v152 = vpop.xlane.xlu0 %151
  %v153 = vsel %vm38, %v141, 0.0
  %154 = vadd.xlane.f32.xlu0 %v153
  %v155 = vpop.xlane.xlu0 %154
  %v156 = vrcp.pop 32.0
  %v157 = vmul.f32 32.0, %v156
  %v158 = vsub.f32 1.0, %v157
  %v159 = vmul.f32 %v156, %v158
  %v160 = vadd.f32 %v156, %v159
  %vm161 = vweird.f32 %v156
  %v162 = vsel %vm161, %v156, %v160
  %v163 = vmul.f32 %v146, %v162
  %v164 = vmul.f32 %v149, %v162
  %v165 = vmul.f32 %v152, %v162
  %v166 = vmul.f32 %v155, %v162
  %v167 = vsub.f32 %v138, %v163
  %v168 = vsub.f32 %v139, %v164
  %v169 = vsub.f32 %v140, %v165
  %v170 = vsub.f32 %v141, %v166
  %v171 = vmul.f32 %v167, %v167
  %v172 = vmul.f32 %v168, %v168
  %v173 = vmul.f32 %v169, %v169
  %v174 = vmul.f32 %v170, %v170
  %v175 = vsel %vm38, %v171, 0.0
  %176 = vadd.xlane.f32.xlu0 %v175
  %v177 = vpop.xlane.xlu0 %176
  %v178 = vsel %vm38, %v172, 0.0
  %179 = vadd.xlane.f32.xlu0 %v178
  %v180 = vpop.xlane.xlu0 %179
  %v181 = vsel %vm38, %v173, 0.0
  %182 = vadd.xlane.f32.xlu0 %v181
  %v183 = vpop.xlane.xlu0 %182
  %v184 = vsel %vm38, %v174, 0.0
  %185 = vadd.xlane.f32.xlu0 %v184
  %v186 = vpop.xlane.xlu0 %185
  %v187 = vmul.f32 %v177, %v162
  %v188 = vmul.f32 %v180, %v162
  %v189 = vmul.f32 %v183, %v162
  %v190 = vmul.f32 %v186, %v162
  %v191 = vadd.f32 %v187, 1e-05
  %v192 = vadd.f32 %v188, 1e-05
  %v193 = vadd.f32 %v189, 1e-05
  %v194 = vadd.f32 %v190, 1e-05
  %v195 = vrsqrt.pop %v191
  %v196 = vmul.f32 %v195, %v191
  %v197 = vmul.f32 %v196, %v195
  %v198 = vmul.f32 0.5, %v197
  %v199 = vsub.f32 1.5, %v198
  %v200 = vmul.f32 %v195, %v199
  %vm201 = vweird.f32 %v191
  %vm202 = vweird.f32 %v195
  %vm203 = vmor %vm201, %vm202
  %v204 = vsel %vm203, %v195, %v200
  %v205 = vrsqrt.pop %v192
  %v206 = vmul.f32 %v205, %v192
  %v207 = vmul.f32 %v206, %v205
  %v208 = vmul.f32 0.5, %v207
  %v209 = vsub.f32 1.5, %v208
  %v210 = vmul.f32 %v205, %v209
  %vm211 = vweird.f32 %v192
  %vm212 = vweird.f32 %v205
  %vm213 = vmor %vm211, %vm212
  %v214 = vsel %vm213, %v205, %v210
  %v215 = vrsqrt.pop %v193
  %v216 = vmul.f32 %v215, %v193
  %v217 = vmul.f32 %v216, %v215
  %v218 = vmul.f32 0.5, %v217
  %v219 = vsub.f32 1.5, %v218
  %v220 = vmul.f32 %v215, %v219
  %vm221 = vweird.f32 %v193
  %vm222 = vweird.f32 %v215
  %vm223 = vmor %vm221, %vm222
  %v224 = vsel %vm223, %v215, %v220
  %v225 = vrsqrt.pop %v194
  %v226 = vmul.f32 %v225, %v194
  %v227 = vmul.f32 %v226, %v225
  %v228 = vmul.f32 0.5, %v227
  %v229 = vsub.f32 1.5, %v228
  %v230 = vmul.f32 %v225, %v229
  %vm231 = vweird.f32 %v194
  %vm232 = vweird.f32 %v225
  %vm233 = vmor %vm231, %vm232
  %v234 = vsel %vm233, %v225, %v230
  %v235 = vmul.f32 %v167, %v204
  %v236 = vmul.f32 %v168, %v214
  %v237 = vmul.f32 %v169, %v224
  %v238 = vmul.f32 %v170, %v234
  %v240 = vperm.slane %v142, 0
  %v242 = vmul.f32 %v235, %v240
  %v243 = vmul.f32 %v236, %v240
  %v244 = vmul.f32 %v237, %v240
  %v245 = vmul.f32 %v238, %v240
  %v247 = vperm.slane %v143, 0
  %v249 = vadd.f32 %v242, %v247
  %v250 = vadd.f32 %v243, %v247
  %v251 = vadd.f32 %v244, %v247
  %v252 = vadd.f32 %v245, %v247
  %253 = vst.msk [vmem:[%s7] sm:$0xff] %vm38, %v249
  %254 = vst.msk [vmem:[%s7 + $0x8] sm:$0xff] %vm38, %v250
  %255 = vst.msk [vmem:[%s7 + $0x10] sm:$0xff] %vm38, %v251
  %256 = vst.msk [vmem:[%s7 + $0x18] sm:$0xff] %vm38, %v252
  // Predicated region
  $region30: #{time_series_transformer.13} parent=0 // pred_check
    _
  $region31: #{time_series_transformer.13} parent=0 // pred_check_branch
    %258 = sbr.rel (0) target = $region33
  $region32: #{time_series_transformer.13} parent=0 // pred_region
    _
  $region33: #{time_series_transformer.13} parent=0 // pred_fallthru
    _
  // Predicated region
  $region34: #{time_series_transformer.13} parent=0 // pred_check
    _
  $region35: #{time_series_transformer.13} parent=0 // pred_check_branch
    %260 = sbr.rel (0) target = $region37
  $region36: #{time_series_transformer.13} parent=0 // pred_region
    _
  $region37: #{time_series_transformer.13} parent=0 // pred_fallthru
    _

// kernel: time_series_transformer.12
$region0: #{time_series_transformer.12}
  #allocation0 [shape = 'u32[]', space=smem, size = 0x4, offset = 0x4, fixed_abs, tag = 'smem constant byte address 0x4 - core index']
  #allocation1 [shape = 'u32[72,128]{1,0:T(1,128)}', space=vmem, size = 0x9000, scoped, tag = 'internal scratch']
  %s0 = inlined_call_operand.vmem [shape: f32[2,16,32], index: 0, kind: input, shape index: {}]
  %s1 = inlined_call_operand.vmem [shape: f32[32,96], index: 1, kind: input, shape index: {}]
  %s2 = inlined_call_operand.vmem [shape: f32[1,96], index: 2, kind: input, shape index: {}]
  %s3 = inlined_call_operand.vmem [shape: f32[32,32], index: 3, kind: input, shape index: {}]
  %s4 = inlined_call_operand.vmem [shape: f32[1,32], index: 4, kind: input, shape index: {}]
  %s5 = inlined_call_operand.vmem [shape: f32[1,32], index: 5, kind: input, shape index: {}]
  %s6 = inlined_call_operand.vmem [shape: f32[1,32], index: 6, kind: input, shape index: {}]
  %s7 = inlined_call_operand.vmem [shape: f32[2,16,32], index: 7, kind: output, shape index: {}]
  %s8 = sld [smem:[#allocation0]]
  $region61: #{time_series_transformer.12} parent=0
    _
  %s10 = ssub.s32 1, %s8
  %s11 = scalar_select 0, %s10, %s8
  loop: start=0, step=1, limit=4
  $region2: #{time_series_transformer.12} parent=0 // loop_pre_header
    _
  $region3: #{time_series_transformer.12} parent=0 // loop_header
    %s13 = sphi 0, %s17
    %p14 = scmp.ge.s32.totalorder %s13, 4
    %s23 = sphi 0, %s25
    %s26 = sphi 0, %s23
    %s27 = sphi 0, %s26
    %s43 = sphi 0, %s27
    %s47 = sphi 0, %s47
    %s49 = sphi 0, %s47
    %s50 = sphi 0, %s49
    %s64 = sphi 0, %s50
    %s68 = sphi 0, %s68
    %s70 = sphi 0, %s68
    %s71 = sphi 0, %s70
    %s85 = sphi 0, %s71
    %s89 = sphi 0, %s89
    %s91 = sphi 0, %s89
    %s92 = sphi 0, %s91
    %s106 = sphi 0, %s92
    %s110 = sphi 0, %s110
    %s112 = sphi 0, %s110
    %s113 = sphi 0, %s112
    %s127 = sphi 0, %s113
    %s131 = sphi 0, %s131
    %s133 = sphi 0, %s131
    %s134 = sphi 0, %s133
    %s148 = sphi 0, %s134
    %s152 = sphi 0, %s152
    %s154 = sphi 0, %s152
    %s155 = sphi 0, %s154
    %s169 = sphi 0, %s155
    %s175 = sphi 0, %s177
    %s178 = sphi 0, %s175
    %s179 = sphi 0, %s178
    %s195 = sphi 0, %s179
  $region4: #{time_series_transformer.12} parent=0 // loop_header_branch
    %16 = sbr.rel (%p14) target = $region8
  $region5: #{time_series_transformer.12} parent=0 // loop_body
    %s18 = ssub.s32 %s13, 1
    %s19 = ssub.s32 %s13, 2
    %s20 = sadd.s32 %s13, 1
    %s21 = ssub.s32 %s13, %s20
    %p22 = scmp.eq.s32.totalorder %s21, 0
    %s24 = sadd.s32 %s23, 1
    %s25 = scalar_select %p22, %s23, %s24
    %p28 = pneg %p22
    %p29 = scmp.eq.s32.totalorder %s13, 1
    %p30 = por %p28, %p29
    %p31 = scmp.ne.s32.totalorder %s23, %s26
    %p32 = scmp.eq.s32.totalorder %s13, 0
    %p33 = por %p31, %p32
    %p34 = scmp.ne.s32.totalorder %s23, %s26
    %p35 = scmp.eq.s32.totalorder %s18, 1
    %p36 = por %p34, %p35
    %p37 = scmp.ne.s32.totalorder %s26, %s27
    %p38 = scmp.eq.s32.totalorder %s18, 0
    %p39 = por %p37, %p38
    %p40 = scmp.ne.s32.totalorder %s26, %s27
    %p41 = scmp.eq.s32.totalorder %s19, 1
    %p42 = por %p40, %p41
    %p44 = scmp.ne.s32.totalorder %s27, %s43
    %p45 = scmp.eq.s32.totalorder %s19, 0
    %p46 = por %p44, %p45
    %s48 = sadd.s32 %s47, 1
    %p51 = scmp.eq.s32.totalorder %s13, 1
    %p52 = scmp.ne.s32.totalorder %s47, %s49
    %p53 = scmp.eq.s32.totalorder %s13, 0
    %p54 = por %p52, %p53
    %p55 = scmp.ne.s32.totalorder %s47, %s49
    %p56 = scmp.eq.s32.totalorder %s18, 1
    %p57 = por %p55, %p56
    %p58 = scmp.ne.s32.totalorder %s49, %s50
    %p59 = scmp.eq.s32.totalorder %s18, 0
    %p60 = por %p58, %p59
    %p61 = scmp.ne.s32.totalorder %s49, %s50
    %p62 = scmp.eq.s32.totalorder %s19, 1
    %p63 = por %p61, %p62
    %p65 = scmp.ne.s32.totalorder %s50, %s64
    %p66 = scmp.eq.s32.totalorder %s19, 0
    %p67 = por %p65, %p66
    %s69 = sadd.s32 %s68, 1
    %p72 = scmp.eq.s32.totalorder %s13, 1
    %p73 = scmp.ne.s32.totalorder %s68, %s70
    %p74 = scmp.eq.s32.totalorder %s13, 0
    %p75 = por %p73, %p74
    %p76 = scmp.ne.s32.totalorder %s68, %s70
    %p77 = scmp.eq.s32.totalorder %s18, 1
    %p78 = por %p76, %p77
    %p79 = scmp.ne.s32.totalorder %s70, %s71
    %p80 = scmp.eq.s32.totalorder %s18, 0
    %p81 = por %p79, %p80
    %p82 = scmp.ne.s32.totalorder %s70, %s71
    %p83 = scmp.eq.s32.totalorder %s19, 1
    %p84 = por %p82, %p83
    %p86 = scmp.ne.s32.totalorder %s71, %s85
    %p87 = scmp.eq.s32.totalorder %s19, 0
    %p88 = por %p86, %p87
    %s90 = sadd.s32 %s89, 1
    %p93 = scmp.eq.s32.totalorder %s13, 1
    %p94 = scmp.ne.s32.totalorder %s89, %s91
    %p95 = scmp.eq.s32.totalorder %s13, 0
    %p96 = por %p94, %p95
    %p97 = scmp.ne.s32.totalorder %s89, %s91
    %p98 = scmp.eq.s32.totalorder %s18, 1
    %p99 = por %p97, %p98
    %p100 = scmp.ne.s32.totalorder %s91, %s92
    %p101 = scmp.eq.s32.totalorder %s18, 0
    %p102 = por %p100, %p101
    %p103 = scmp.ne.s32.totalorder %s91, %s92
    %p104 = scmp.eq.s32.totalorder %s19, 1
    %p105 = por %p103, %p104
    %p107 = scmp.ne.s32.totalorder %s92, %s106
    %p108 = scmp.eq.s32.totalorder %s19, 0
    %p109 = por %p107, %p108
    %s111 = sadd.s32 %s110, 1
    %p114 = scmp.eq.s32.totalorder %s13, 1
    %p115 = scmp.ne.s32.totalorder %s110, %s112
    %p116 = scmp.eq.s32.totalorder %s13, 0
    %p117 = por %p115, %p116
    %p118 = scmp.ne.s32.totalorder %s110, %s112
    %p119 = scmp.eq.s32.totalorder %s18, 1
    %p120 = por %p118, %p119
    %p121 = scmp.ne.s32.totalorder %s112, %s113
    %p122 = scmp.eq.s32.totalorder %s18, 0
    %p123 = por %p121, %p122
    %p124 = scmp.ne.s32.totalorder %s112, %s113
    %p125 = scmp.eq.s32.totalorder %s19, 1
    %p126 = por %p124, %p125
    %p128 = scmp.ne.s32.totalorder %s113, %s127
    %p129 = scmp.eq.s32.totalorder %s19, 0
    %p130 = por %p128, %p129
    %s132 = sadd.s32 %s131, 1
    %p135 = scmp.eq.s32.totalorder %s13, 1
    %p136 = scmp.ne.s32.totalorder %s131, %s133
    %p137 = scmp.eq.s32.totalorder %s13, 0
    %p138 = por %p136, %p137
    %p139 = scmp.ne.s32.totalorder %s131, %s133
    %p140 = scmp.eq.s32.totalorder %s18, 1
    %p141 = por %p139, %p140
    %p142 = scmp.ne.s32.totalorder %s133, %s134
    %p143 = scmp.eq.s32.totalorder %s18, 0
    %p144 = por %p142, %p143
    %p145 = scmp.ne.s32.totalorder %s133, %s134
    %p146 = scmp.eq.s32.totalorder %s19, 1
    %p147 = por %p145, %p146
    %p149 = scmp.ne.s32.totalorder %s134, %s148
    %p150 = scmp.eq.s32.totalorder %s19, 0
    %p151 = por %p149, %p150
    %s153 = sadd.s32 %s152, 1
    %p156 = scmp.eq.s32.totalorder %s13, 1
    %p157 = scmp.ne.s32.totalorder %s152, %s154
    %p158 = scmp.eq.s32.totalorder %s13, 0
    %p159 = por %p157, %p158
    %p160 = scmp.ne.s32.totalorder %s152, %s154
    %p161 = scmp.eq.s32.totalorder %s18, 1
    %p162 = por %p160, %p161
    %p163 = scmp.ne.s32.totalorder %s154, %s155
    %p164 = scmp.eq.s32.totalorder %s18, 0
    %p165 = por %p163, %p164
    %p166 = scmp.ne.s32.totalorder %s154, %s155
    %p167 = scmp.eq.s32.totalorder %s19, 1
    %p168 = por %p166, %p167
    %p170 = scmp.ne.s32.totalorder %s155, %s169
    %p171 = scmp.eq.s32.totalorder %s19, 0
    %p172 = por %p170, %p171
    %s173 = ssub.s32 %s13, %s20
    %p174 = scmp.eq.s32.totalorder %s173, 0
    %s176 = sadd.s32 %s175, 1
    %s177 = scalar_select %p174, %s175, %s176
    %p180 = pneg %p174
    %p181 = scmp.eq.s32.totalorder %s13, 1
    %p182 = por %p180, %p181
    %p183 = scmp.ne.s32.totalorder %s175, %s178
    %p184 = scmp.eq.s32.totalorder %s13, 0
    %p185 = por %p183, %p184
    %p186 = scmp.ne.s32.totalorder %s175, %s178
    %p187 = scmp.eq.s32.totalorder %s18, 1
    %p188 = por %p186, %p187
    %p189 = scmp.ne.s32.totalorder %s178, %s179
    %p190 = scmp.eq.s32.totalorder %s18, 0
    %p191 = por %p189, %p190
    %p192 = scmp.ne.s32.totalorder %s178, %s179
    %p193 = scmp.eq.s32.totalorder %s19, 1
    %p194 = por %p192, %p193
    %p196 = scmp.ne.s32.totalorder %s179, %s195
    %p197 = scmp.eq.s32.totalorder %s19, 0
    %p198 = por %p196, %p197
    %p199 = scmp.le.s32.totalorder 1, %s13
    %p200 = scmp.lt.s32.totalorder %s13, 3
    %p201 = pnand %p199, %p200
    %p202 = pneg %p201
    // Predicated region
    $region9: #{time_series_transformer.12} parent=5 // pred_check
      _
    $region10: #{time_series_transformer.12} parent=5 // pred_check_branch
      %204 = sbr.rel (%p201) target = $region12
    $region11: #{time_series_transformer.12} parent=5 // pred_region
      %s205 = ssub.s32 %s13, 1
      // Predicated region
      $region13: #{time_series_transformer.12} parent=11 // pred_check
        %p206 = pneg %p60
      $region14: #{time_series_transformer.12} parent=11 // pred_check_branch
        %208 = sbr.rel (%p206) target = $region16
      $region15: #{time_series_transformer.12} parent=11 // pred_region
        _
      $region16: #{time_series_transformer.12} parent=11 // pred_fallthru
        _
      // Predicated region
      $region17: #{time_series_transformer.12} parent=11 // pred_check
        %p209 = pneg %p81
      $region18: #{time_series_transformer.12} parent=11 // pred_check_branch
        %211 = sbr.rel (%p209) target = $region20
      $region19: #{time_series_transformer.12} parent=11 // pred_region
        _
      $region20: #{time_series_transformer.12} parent=11 // pred_fallthru
        _
      // Predicated region
      $region21: #{time_series_transformer.12} parent=11 // pred_check
        %p212 = pneg %p102
      $region22: #{time_series_transformer.12} parent=11 // pred_check_branch
        %214 = sbr.rel (%p212) target = $region24
      $region23: #{time_series_transformer.12} parent=11 // pred_region
        _
      $region24: #{time_series_transformer.12} parent=11 // pred_fallthru
        _
      // Predicated region
      $region25: #{time_series_transformer.12} parent=11 // pred_check
        %p215 = pneg %p123
      $region26: #{time_series_transformer.12} parent=11 // pred_check_branch
        %217 = sbr.rel (%p215) target = $region28
      $region27: #{time_series_transformer.12} parent=11 // pred_region
        _
      $region28: #{time_series_transformer.12} parent=11 // pred_fallthru
        _
      // Predicated region
      $region29: #{time_series_transformer.12} parent=11 // pred_check
        %p218 = pneg %p144
      $region30: #{time_series_transformer.12} parent=11 // pred_check_branch
        %220 = sbr.rel (%p218) target = $region32
      $region31: #{time_series_transformer.12} parent=11 // pred_region
        _
      $region32: #{time_series_transformer.12} parent=11 // pred_fallthru
        _
      // Predicated region
      $region33: #{time_series_transformer.12} parent=11 // pred_check
        %p221 = pneg %p165
      $region34: #{time_series_transformer.12} parent=11 // pred_check_branch
        %223 = sbr.rel (%p221) target = $region36
      $region35: #{time_series_transformer.12} parent=11 // pred_region
        _
      $region36: #{time_series_transformer.12} parent=11 // pred_fallthru
        _
    $region12: #{time_series_transformer.12} parent=5 // pred_fallthru
      _
    %p224 = scmp.lt.s32.totalorder %s13, 2
    // Predicated region
    $region37: #{time_series_transformer.12} parent=5 // pred_check
      %p225 = pneg %p224
    $region38: #{time_series_transformer.12} parent=5 // pred_check_branch
      %227 = sbr.rel (%p225) target = $region40
    $region39: #{time_series_transformer.12} parent=5 // pred_region
      // Predicated region
      $region41: #{time_series_transformer.12} parent=39 // pred_check
        %p228 = pneg %p33
      $region42: #{time_series_transformer.12} parent=39 // pred_check_branch
        %230 = sbr.rel (%p228) target = $region44
      $region43: #{time_series_transformer.12} parent=39 // pred_region
        %p231 = scmp.lt.s32.totalorder %s13, 1
        %s232 = scalar_select %p231, %s13, 1
        %s233 = smul.addr %s232, 2
        %s234 = smul.addr %s233, 8
        %s235 = scalar_lea.vmem %s0, %s234
      $region44: #{time_series_transformer.12} parent=39 // pred_fallthru
        _
    $region40: #{time_series_transformer.12} parent=5 // pred_fallthru
      _
    %p236 = scmp.le.s32.totalorder 1, %s13
    %p237 = scmp.lt.s32.totalorder %s13, 3
    %p238 = pnand %p236, %p237
    %p239 = pneg %p238
    // Predicated region
    $region45: #{time_series_transformer.12} parent=5 // pred_check
      _
    $region46: #{time_series_transformer.12} parent=5 // pred_check_branch
      %241 = sbr.rel (%p238) target = $region48
    $region47: #{time_series_transformer.12} parent=5 // pred_region
      %s242 = ssub.s32 %s13, 1
      %p243 = scmp.lt.s32.totalorder %s18, 1
      %s244 = scalar_select %p243, %s18, 1
      %s245 = smul.addr %s244, 2
      %s246 = smul.addr %s245, 8
      %s247 = scalar_lea.vmem %s0, %s246
      %p248 = pneg %p39
      %p249 = pneg %p36
      %p250 = pneg %p60
      %p251 = pneg %p57
      %p252 = pneg %p81
      %p253 = pneg %p78
      %p254 = pneg %p102
      %p255 = pneg %p99
      %p256 = pneg %p123
      %p257 = pneg %p120
      %p258 = pneg %p144
      %p259 = pneg %p141
      %p260 = pneg %p165
      %p261 = pneg %p162
      %p262 = pneg %p191
      %p263 = pneg %p188
      %p264 = scmp.lt.s32.totalorder %s18, 1
      %s265 = scalar_select %p264, %s18, 1
      %s266 = smul.addr %s265, 2
      %s267 = smul.addr %s266, 8
      %s268 = scalar_lea.vmem %s7, %s267
      %p269 = scmp.lt.s32.totalorder %s18, 1
      %s270 = scalar_select %p269, %s18, 1
      %s271 = smul.addr %s270, 2
      %s272 = smul.addr %s271, 8
      %s273 = scalar_lea.vmem %s0, %s272
      %p274 = scmp.lt.s32.totalorder %s18, 1
      %s275 = scalar_select %p274, %s18, 1
      %s276 = smul.addr %s275, 2
      %s277 = smul.addr %s276, 8
      %s278 = scalar_lea.vmem %s7, %s277
      %v279 = vld [vmem:[%s273] sm:$0xff]
      %v280 = vld [vmem:[%s273 + $0x8] sm:$0xff]
      %v281 = vld [vmem:[%s1] sm:$0xff]
      %v282 = vld [vmem:[%s1 + $0x8] sm:$0xff]
      %v283 = vld [vmem:[%s1 + $0x10] sm:$0xff]
      %v284 = vld [vmem:[%s1 + $0x18] sm:$0xff]
      %v285 = vld [vmem:[%s2] sm:$0x1]
      %v287 = vperm.slane %v285, 0
      %vm289 = vcmask 261120
      %v291 = vsel %vm289, %v279, 0
      %v294 = vsel %vm289, %v280, 0
      %296 = vmatpush.msra.mxu0 0.0
      %297 = vmatpush.msra.mxu0 0.0
      %298 = vmatpush.msra.mxu0 0.0
      %299 = vmatpush.msra.mxu0 0.0
      %300 = vmatpush.msra.mxu0 0.0
      %301 = vmatpush.msra.mxu0 0.0
      %302 = vmatpush.msra.mxu0 0.0
      %303 = vmatpush.msra.mxu0 0.0
      %304 = vmatpush.msra.mxu0 0.0
      %305 = vmatpush.msra.mxu0 0.0
      %306 = vmatpush.msra.mxu0 0.0
      %307 = vmatpush.msra.mxu0 0.0
      %308 = vmatpush.msra.mxu0 %v284
      %309 = vmatpush.msra.mxu0 %v283
      %310 = vmatpush.msra.mxu0 %v282
      %311 = vmatpush.msra.mxu0 %v281
      %312 = vmatmul.f32.gmra.mxu0 %v291
      %v313 = vpop.f32.mrf.mxu0
      %v314 = vadd.f32 %v287, %v313
      %315 = vmatmul.f32.gmra.mxu0 %v294
      %v316 = vpop.f32.mrf.mxu0
      %v317 = vadd.f32 %v287, %v316
      %318 = vdwg.mxu0
      %v319 = vmul.f32 %v314, 0.35355338
      %v320 = vmul.f32 %v317, 0.35355338
      %v321 = vld [vmem:[%s3] sm:$0xff]
      %v322 = vld [vmem:[%s3 + $0x8] sm:$0xff]
      %v323 = vld [vmem:[%s3 + $0x10] sm:$0xff]
      %v324 = vld [vmem:[%s3 + $0x18] sm:$0xff]
      %327 = vrot.lane.b32.xlu0 %v314, 96
      %v328 = vpop.permute.xlu0 %327
      %329 = vrot.lane.b32.xlu0 %v317, 96
      %v330 = vpop.permute.xlu0 %329
      %vm331 = vcmask 64512
      %v333 = vsel %vm331, %v319, 0
      %v336 = vsel %vm331, %v320, 0
      %v338 = vsel %vm331, %v328, 0
      %v340 = vsel %vm331, %v330, 0
      %342 = vmatpush.xpose.msra.mxu0 0.0
      %343 = vmatpush.xpose.msra.mxu0 0.0
      %344 = vmatpush.xpose.msra.mxu0 0.0
      %345 = vmatpush.xpose.msra.mxu0 0.0
      %346 = vmatpush.xpose.msra.mxu0 0.0
      %347 = vmatpush.xpose.msra.mxu0 0.0
      %348 = vmatpush.xpose.msra.mxu0 0.0
      %349 = vmatpush.xpose.msra.mxu0 0.0
      %350 = vmatpush.xpose.msra.mxu0 0.0
      %351 = vmatpush.xpose.msra.mxu0 0.0
      %352 = vmatpush.xpose.msra.mxu0 0.0
      %353 = vmatpush.xpose.msra.mxu0 0.0
      %354 = vmatpush.xpose.msra.mxu0 0.0
      %355 = vmatpush.xpose.msra.mxu0 0.0
      %356 = vmatpush.xpose.msra.mxu0 %v340
      %357 = vmatpush.xpose.msra.mxu0 %v338
      %358 = vmatmul.f32.gmra.mxu0 %v333
      %v359 = vpop.f32.mrf.mxu0
      %v360 = vadd.f32 0.0, %v359
      %361 = vmatmul.f32.gmra.mxu0 %v336
      %v362 = vpop.f32.mrf.mxu0
      %v363 = vadd.f32 0.0, %v362
      %364 = vdwg.mxu0
      %vm365 = vcmask 130048
      %v366 = vsel %vm365, %v360, -inf
      %367 = vmax.xlane.f32.xlu0 %v366
      %v368 = vpop.xlane.xlu0 %367
      %v369 = vsel %vm365, %v363, -inf
      %370 = vmax.xlane.f32.xlu0 %v369
      %v371 = vpop.xlane.xlu0 %370
      %v372 = vsub.f32 %v360, %v368
      %v373 = vsub.f32 %v363, %v371
      %v374 = vmul.f32 %v372, 1.442695
      %v375 = vpow.pop %v374
      %v376 = vmul.f32 %v373, 1.442695
      %v377 = vpow.pop %v376
      %v378 = vsel %vm365, %v375, 0.0
      %379 = vadd.xlane.f32.xlu0 %v378
      %v380 = vpop.xlane.xlu0 %379
      %v381 = vsel %vm365, %v377, 0.0
      %382 = vadd.xlane.f32.xlu0 %v381
      %v383 = vpop.xlane.xlu0 %382
      %v384 = vrcp.pop %v380
      %v385 = vrcp.pop %v383
      %v386 = vmul.f32 %v375, %v384
      %v387 = vmul.f32 %v377, %v385
      %388 = vrot.lane.b32.xlu0 %v314, 64
      %v389 = vpop.permute.xlu0 %388
      %390 = vrot.lane.b32.xlu0 %v317, 64
      %v391 = vpop.permute.xlu0 %390
      %v395 = vsel %vm365, %v386, 0
      %v398 = vsel %vm365, %v387, 0
      %400 = vmatpush.msra.mxu0 0.0
      %401 = vmatpush.msra.mxu0 0.0
      %402 = vmatpush.msra.mxu0 0.0
      %403 = vmatpush.msra.mxu0 0.0
      %404 = vmatpush.msra.mxu0 0.0
      %405 = vmatpush.msra.mxu0 0.0
      %406 = vmatpush.msra.mxu0 0.0
      %407 = vmatpush.msra.mxu0 0.0
      %408 = vmatpush.msra.mxu0 0.0
      %409 = vmatpush.msra.mxu0 0.0
      %410 = vmatpush.msra.mxu0 0.0
      %411 = vmatpush.msra.mxu0 0.0
      %412 = vmatpush.msra.mxu0 0.0
      %413 = vmatpush.msra.mxu0 0.0
      %414 = vmatpush.msra.mxu0 %v391
      %415 = vmatpush.msra.mxu0 %v389
      %416 = vmatmul.f32.gmra.mxu0 %v395
      %v417 = vpop.f32.mrf.mxu0
      %v418 = vadd.f32 0.0, %v417
      %419 = vmatmul.f32.gmra.mxu0 %v398
      %v420 = vpop.f32.mrf.mxu0
      %v421 = vadd.f32 0.0, %v420
      %422 = vdwg.mxu0
      %423 = vrot.lane.b32.xlu0 %v319, 120
      %v424 = vpop.permute.xlu0 %423
      %425 = vrot.lane.b32.xlu0 %v320, 120
      %v426 = vpop.permute.xlu0 %425
      %427 = vrot.lane.b32.xlu0 %v314, 88
      %v428 = vpop.permute.xlu0 %427
      %429 = vrot.lane.b32.xlu0 %v317, 88
      %v430 = vpop.permute.xlu0 %429
      %v431 = vsel %vm331, %v424, 0
      %v433 = vsel %vm331, %v426, 0
      %v435 = vsel %vm331, %v428, 0
      %v437 = vsel %vm331, %v430, 0
      %439 = vmatpush.xpose.msra.mxu0 0.0
      %440 = vmatpush.xpose.msra.mxu0 0.0
      %441 = vmatpush.xpose.msra.mxu0 0.0
      %442 = vmatpush.xpose.msra.mxu0 0.0
      %443 = vmatpush.xpose.msra.mxu0 0.0
      %444 = vmatpush.xpose.msra.mxu0 0.0
      %445 = vmatpush.xpose.msra.mxu0 0.0
      %446 = vmatpush.xpose.msra.mxu0 0.0
      %447 = vmatpush.xpose.msra.mxu0 0.0
      %448 = vmatpush.xpose.msra.mxu0 0.0
      %449 = vmatpush.xpose.msra.mxu0 0.0
      %450 = vmatpush.xpose.msra.mxu0 0.0
      %451 = vmatpush.xpose.msra.mxu0 0.0
      %452 = vmatpush.xpose.msra.mxu0 0.0
      %453 = vmatpush.xpose.msra.mxu0 %v437
      %454 = vmatpush.xpose.msra.mxu0 %v435
      %455 = vmatmul.f32.gmra.mxu0 %v431
      %v456 = vpop.f32.mrf.mxu0
      %v457 = vadd.f32 0.0, %v456
      %458 = vmatmul.f32.gmra.mxu0 %v433
      %v459 = vpop.f32.mrf.mxu0
      %v460 = vadd.f32 0.0, %v459
      %461 = vdwg.mxu0
      %v462 = vsel %vm365, %v457, -inf
      %463 = vmax.xlane.f32.xlu0 %v462
      %v464 = vpop.xlane.xlu0 %463
      %v465 = vsel %vm365, %v460, -inf
      %466 = vmax.xlane.f32.xlu0 %v465
      %v467 = vpop.xlane.xlu0 %466
      %v468 = vsub.f32 %v457, %v464
      %v469 = vsub.f32 %v460, %v467
      %v470 = vmul.f32 %v468, 1.442695
      %v471 = vpow.pop %v470
      %v472 = vmul.f32 %v469, 1.442695
      %v473 = vpow.pop %v472
      %v474 = vsel %vm365, %v471, 0.0
      %475 = vadd.xlane.f32.xlu0 %v474
      %v476 = vpop.xlane.xlu0 %475
      %v477 = vsel %vm365, %v473, 0.0
      %478 = vadd.xlane.f32.xlu0 %v477
      %v479 = vpop.xlane.xlu0 %478
      %v480 = vrcp.pop %v476
      %v481 = vrcp.pop %v479
      %v482 = vmul.f32 %v471, %v480
      %v483 = vmul.f32 %v473, %v481
      %484 = vrot.lane.b32.xlu0 %v314, 56
      %v485 = vpop.permute.xlu0 %484
      %486 = vrot.lane.b32.xlu0 %v317, 56
      %v487 = vpop.permute.xlu0 %486
      %v491 = vsel %vm365, %v482, 0
      %v494 = vsel %vm365, %v483, 0
      %496 = vmatpush.msra.mxu0 0.0
      %497 = vmatpush.msra.mxu0 0.0
      %498 = vmatpush.msra.mxu0 0.0
      %499 = vmatpush.msra.mxu0 0.0
      %500 = vmatpush.msra.mxu0 0.0
      %501 = vmatpush.msra.mxu0 0.0
      %502 = vmatpush.msra.mxu0 0.0
      %503 = vmatpush.msra.mxu0 0.0
      %504 = vmatpush.msra.mxu0 0.0
      %505 = vmatpush.msra.mxu0 0.0
      %506 = vmatpush.msra.mxu0 0.0
      %507 = vmatpush.msra.mxu0 0.0
      %508 = vmatpush.msra.mxu0 0.0
      %509 = vmatpush.msra.mxu0 0.0
      %510 = vmatpush.msra.mxu0 %v487
      %511 = vmatpush.msra.mxu0 %v485
      %512 = vmatmul.f32.gmra.mxu0 %v491
      %v513 = vpop.f32.mrf.mxu0
      %v514 = vadd.f32 0.0, %v513
      %515 = vmatmul.f32.gmra.mxu0 %v494
      %v516 = vpop.f32.mrf.mxu0
      %v517 = vadd.f32 0.0, %v516
      %518 = vdwg.mxu0
      %v520 = vsel %vm331, %v514, 0
      %v523 = vsel %vm331, %v517, 0
      %525 = vmatpush.msra.mxu0 0.0
      %526 = vmatpush.msra.mxu0 0.0
      %527 = vmatpush.msra.mxu0 0.0
      %528 = vmatpush.msra.mxu0 0.0
      %529 = vmatpush.msra.mxu0 0.0
      %530 = vmatpush.msra.mxu0 0.0
      %531 = vmatpush.msra.mxu0 0.0
      %532 = vmatpush.msra.mxu0 0.0
      %533 = vmatpush.msra.mxu0 0.0
      %534 = vmatpush.msra.mxu0 0.0
      %535 = vmatpush.msra.mxu0 0.0
      %536 = vmatpush.msra.mxu0 0.0
      %537 = vmatpush.msra.mxu0 0.0
      %538 = vmatpush.msra.mxu0 0.0
      %539 = vmatpush.msra.mxu0 0.0
      %540 = vmatpush.msra.mxu0 %v322
      %541 = vmatmul.f32.gmra.mxu0 %v520
      %v542 = vpop.f32.mrf.mxu0
      %v543 = vadd.f32 0.0, %v542
      %544 = vmatmul.f32.gmra.mxu0 %v523
      %v545 = vpop.f32.mrf.mxu0
      %v546 = vadd.f32 0.0, %v545
      %547 = vdwg.mxu0
      %v549 = vsel %vm331, %v418, 0
      %v552 = vsel %vm331, %v421, 0
      %554 = vmatpush.msra.mxu0 0.0
      %555 = vmatpush.msra.mxu0 0.0
      %556 = vmatpush.msra.mxu0 0.0
      %557 = vmatpush.msra.mxu0 0.0
      %558 = vmatpush.msra.mxu0 0.0
      %559 = vmatpush.msra.mxu0 0.0
      %560 = vmatpush.msra.mxu0 0.0
      %561 = vmatpush.msra.mxu0 0.0
      %562 = vmatpush.msra.mxu0 0.0
      %563 = vmatpush.msra.mxu0 0.0
      %564 = vmatpush.msra.mxu0 0.0
      %565 = vmatpush.msra.mxu0 0.0
      %566 = vmatpush.msra.mxu0 0.0
      %567 = vmatpush.msra.mxu0 0.0
      %568 = vmatpush.msra.mxu0 0.0
      %569 = vmatpush.msra.mxu0 %v321
      %570 = vmatmul.f32.gmra.mxu0 %v549
      %v571 = vpop.f32.mrf.mxu0
      %v572 = vadd.f32 %v543, %v571
      %573 = vmatmul.f32.gmra.mxu0 %v552
      %v574 = vpop.f32.mrf.mxu0
      %v575 = vadd.f32 %v546, %v574
      %576 = vdwg.mxu0
      %577 = vrot.lane.b32.xlu0 %v319, 112
      %v578 = vpop.permute.xlu0 %577
      %579 = vrot.lane.b32.xlu0 %v320, 112
      %v580 = vpop.permute.xlu0 %579
      %581 = vrot.lane.b32.xlu0 %v314, 80
      %v582 = vpop.permute.xlu0 %581
      %583 = vrot.lane.b32.xlu0 %v317, 80
      %v584 = vpop.permute.xlu0 %583
      %v585 = vsel %vm331, %v578, 0
      %v587 = vsel %vm331, %v580, 0
      %v589 = vsel %vm331, %v582, 0
      %v591 = vsel %vm331, %v584, 0
      %593 = vmatpush.xpose.msra.mxu0 0.0
      %594 = vmatpush.xpose.msra.mxu0 0.0
      %595 = vmatpush.xpose.msra.mxu0 0.0
      %596 = vmatpush.xpose.msra.mxu0 0.0
      %597 = vmatpush.xpose.msra.mxu0 0.0
      %598 = vmatpush.xpose.msra.mxu0 0.0
      %599 = vmatpush.xpose.msra.mxu0 0.0
      %600 = vmatpush.xpose.msra.mxu0 0.0
      %601 = vmatpush.xpose.msra.mxu0 0.0
      %602 = vmatpush.xpose.msra.mxu0 0.0
      %603 = vmatpush.xpose.msra.mxu0 0.0
      %604 = vmatpush.xpose.msra.mxu0 0.0
      %605 = vmatpush.xpose.msra.mxu0 0.0
      %606 = vmatpush.xpose.msra.mxu0 0.0
      %607 = vmatpush.xpose.msra.mxu0 %v591
      %608 = vmatpush.xpose.msra.mxu0 %v589
      %609 = vmatmul.f32.gmra.mxu0 %v585
      %v610 = vpop.f32.mrf.mxu0
      %v611 = vadd.f32 0.0, %v610
      %612 = vmatmul.f32.gmra.mxu0 %v587
      %v613 = vpop.f32.mrf.mxu0
      %v614 = vadd.f32 0.0, %v613
      %615 = vdwg.mxu0
      %v616 = vsel %vm365, %v611, -inf
      %617 = vmax.xlane.f32.xlu0 %v616
      %v618 = vpop.xlane.xlu0 %617
      %v619 = vsel %vm365, %v614, -inf
      %620 = vmax.xlane.f32.xlu0 %v619
      %v621 = vpop.xlane.xlu0 %620
      %v622 = vsub.f32 %v611, %v618
      %v623 = vsub.f32 %v614, %v621
      %v624 = vmul.f32 %v622, 1.442695
      %v625 = vpow.pop %v624
      %v626 = vmul.f32 %v623, 1.442695
      %v627 = vpow.pop %v626
      %v628 = vsel %vm365, %v625, 0.0
      %629 = vadd.xlane.f32.xlu0 %v628
      %v630 = vpop.xlane.xlu0 %629
      %v631 = vsel %vm365, %v627, 0.0
      %632 = vadd.xlane.f32.xlu0 %v631
      %v633 = vpop.xlane.xlu0 %632
      %v634 = vrcp.pop %v630
      %v635 = vrcp.pop %v633
      %v636 = vmul.f32 %v625, %v634
      %v637 = vmul.f32 %v627, %v635
      %638 = vrot.lane.b32.xlu0 %v314, 48
      %v639 = vpop.permute.xlu0 %638
      %640 = vrot.lane.b32.xlu0 %v317, 48
      %v641 = vpop.permute.xlu0 %640
      %v645 = vsel %vm365, %v636, 0
      %v648 = vsel %vm365, %v637, 0
      %650 = vmatpush.msra.mxu0 0.0
      %651 = vmatpush.msra.mxu0 0.0
      %652 = vmatpush.msra.mxu0 0.0
      %653 = vmatpush.msra.mxu0 0.0
      %654 = vmatpush.msra.mxu0 0.0
      %655 = vmatpush.msra.mxu0 0.0
      %656 = vmatpush.msra.mxu0 0.0
      %657 = vmatpush.msra.mxu0 0.0
      %658 = vmatpush.msra.mxu0 0.0
      %659 = vmatpush.msra.mxu0 0.0
      %660 = vmatpush.msra.mxu0 0.0
      %661 = vmatpush.msra.mxu0 0.0
      %662 = vmatpush.msra.mxu0 0.0
      %663 = vmatpush.msra.mxu0 0.0
      %664 = vmatpush.msra.mxu0 %v641
      %665 = vmatpush.msra.mxu0 %v639
      %666 = vmatmul.f32.gmra.mxu0 %v645
      %v667 = vpop.f32.mrf.mxu0
      %v668 = vadd.f32 0.0, %v667
      %669 = vmatmul.f32.gmra.mxu0 %v648
      %v670 = vpop.f32.mrf.mxu0
      %v671 = vadd.f32 0.0, %v670
      %672 = vdwg.mxu0
      %v674 = vsel %vm331, %v668, 0
      %v677 = vsel %vm331, %v671, 0
      %679 = vmatpush.msra.mxu0 0.0
      %680 = vmatpush.msra.mxu0 0.0
      %681 = vmatpush.msra.mxu0 0.0
      %682 = vmatpush.msra.mxu0 0.0
      %683 = vmatpush.msra.mxu0 0.0
      %684 = vmatpush.msra.mxu0 0.0
      %685 = vmatpush.msra.mxu0 0.0
      %686 = vmatpush.msra.mxu0 0.0
      %687 = vmatpush.msra.mxu0 0.0
      %688 = vmatpush.msra.mxu0 0.0
      %689 = vmatpush.msra.mxu0 0.0
      %690 = vmatpush.msra.mxu0 0.0
      %691 = vmatpush.msra.mxu0 0.0
      %692 = vmatpush.msra.mxu0 0.0
      %693 = vmatpush.msra.mxu0 0.0
      %694 = vmatpush.msra.mxu0 %v323
      %695 = vmatmul.f32.gmra.mxu0 %v674
      %v696 = vpop.f32.mrf.mxu0
      %v697 = vadd.f32 0.0, %v696
      %698 = vmatmul.f32.gmra.mxu0 %v677
      %v699 = vpop.f32.mrf.mxu0
      %v700 = vadd.f32 0.0, %v699
      %701 = vdwg.mxu0
      %v702 = vadd.f32 %v572, %v697
      %v703 = vadd.f32 %v575, %v700
      %704 = vrot.lane.b32.xlu0 %v319, 104
      %v705 = vpop.permute.xlu0 %704
      %706 = vrot.lane.b32.xlu0 %v320, 104
      %v707 = vpop.permute.xlu0 %706
      %708 = vrot.lane.b32.xlu0 %v314, 72
      %v709 = vpop.permute.xlu0 %708
      %710 = vrot.lane.b32.xlu0 %v317, 72
      %v711 = vpop.permute.xlu0 %710
      %v712 = vsel %vm331, %v705, 0
      %v714 = vsel %vm331, %v707, 0
      %v716 = vsel %vm331, %v709, 0
      %v718 = vsel %vm331, %v711, 0
      %720 = vmatpush.xpose.msra.mxu0 0.0
      %721 = vmatpush.xpose.msra.mxu0 0.0
      %722 = vmatpush.xpose.msra.mxu0 0.0
      %723 = vmatpush.xpose.msra.mxu0 0.0
      %724 = vmatpush.xpose.msra.mxu0 0.0
      %725 = vmatpush.xpose.msra.mxu0 0.0
      %726 = vmatpush.xpose.msra.mxu0 0.0
      %727 = vmatpush.xpose.msra.mxu0 0.0
      %728 = vmatpush.xpose.msra.mxu0 0.0
      %729 = vmatpush.xpose.msra.mxu0 0.0
      %730 = vmatpush.xpose.msra.mxu0 0.0
      %731 = vmatpush.xpose.msra.mxu0 0.0
      %732 = vmatpush.xpose.msra.mxu0 0.0
      %733 = vmatpush.xpose.msra.mxu0 0.0
      %734 = vmatpush.xpose.msra.mxu0 %v718
      %735 = vmatpush.xpose.msra.mxu0 %v716
      %736 = vmatmul.f32.gmra.mxu0 %v712
      %v737 = vpop.f32.mrf.mxu0
      %v738 = vadd.f32 0.0, %v737
      %739 = vmatmul.f32.gmra.mxu0 %v714
      %v740 = vpop.f32.mrf.mxu0
      %v741 = vadd.f32 0.0, %v740
      %742 = vdwg.mxu0
      %v743 = vsel %vm365, %v738, -inf
      %744 = vmax.xlane.f32.xlu0 %v743
      %v745 = vpop.xlane.xlu0 %744
      %v746 = vsel %vm365, %v741, -inf
      %747 = vmax.xlane.f32.xlu0 %v746
      %v748 = vpop.xlane.xlu0 %747
      %v749 = vsub.f32 %v738, %v745
      %v750 = vsub.f32 %v741, %v748
      %v751 = vmul.f32 %v749, 1.442695
      %v752 = vpow.pop %v751
      %v753 = vmul.f32 %v750, 1.442695
      %v754 = vpow.pop %v753
      %v755 = vsel %vm365, %v752, 0.0
      %756 = vadd.xlane.f32.xlu0 %v755
      %v757 = vpop.xlane.xlu0 %756
      %v758 = vsel %vm365, %v754, 0.0
      %759 = vadd.xlane.f32.xlu0 %v758
      %v760 = vpop.xlane.xlu0 %759
      %v761 = vrcp.pop %v757
      %v762 = vrcp.pop %v760
      %v763 = vmul.f32 %v752, %v761
      %v764 = vmul.f32 %v754, %v762
      %765 = vrot.lane.b32.xlu0 %v314, 40
      %v766 = vpop.permute.xlu0 %765
      %767 = vrot.lane.b32.xlu0 %v317, 40
      %v768 = vpop.permute.xlu0 %767
      %v772 = vsel %vm365, %v763, 0
      %v775 = vsel %vm365, %v764, 0
      %777 = vmatpush.msra.mxu0 0.0
      %778 = vmatpush.msra.mxu0 0.0
      %779 = vmatpush.msra.mxu0 0.0
      %780 = vmatpush.msra.mxu0 0.0
      %781 = vmatpush.msra.mxu0 0.0
      %782 = vmatpush.msra.mxu0 0.0
      %783 = vmatpush.msra.mxu0 0.0
      %784 = vmatpush.msra.mxu0 0.0
      %785 = vmatpush.msra.mxu0 0.0
      %786 = vmatpush.msra.mxu0 0.0
      %787 = vmatpush.msra.mxu0 0.0
      %788 = vmatpush.msra.mxu0 0.0
      %789 = vmatpush.msra.mxu0 0.0
      %790 = vmatpush.msra.mxu0 0.0
      %791 = vmatpush.msra.mxu0 %v768
      %792 = vmatpush.msra.mxu0 %v766
      %793 = vmatmul.f32.gmra.mxu0 %v772
      %v794 = vpop.f32.mrf.mxu0
      %v795 = vadd.f32 0.0, %v794
      %796 = vmatmul.f32.gmra.mxu0 %v775
      %v797 = vpop.f32.mrf.mxu0
      %v798 = vadd.f32 0.0, %v797
      %799 = vdwg.mxu0
      %v801 = vsel %vm331, %v795, 0
      %v804 = vsel %vm331, %v798, 0
      %806 = vmatpush.msra.mxu0 0.0
      %807 = vmatpush.msra.mxu0 0.0
      %808 = vmatpush.msra.mxu0 0.0
      %809 = vmatpush.msra.mxu0 0.0
      %810 = vmatpush.msra.mxu0 0.0
      %811 = vmatpush.msra.mxu0 0.0
      %812 = vmatpush.msra.mxu0 0.0
      %813 = vmatpush.msra.mxu0 0.0
      %814 = vmatpush.msra.mxu0 0.0
      %815 = vmatpush.msra.mxu0 0.0
      %816 = vmatpush.msra.mxu0 0.0
      %817 = vmatpush.msra.mxu0 0.0
      %818 = vmatpush.msra.mxu0 0.0
      %819 = vmatpush.msra.mxu0 0.0
      %820 = vmatpush.msra.mxu0 0.0
      %821 = vmatpush.msra.mxu0 %v324
      %822 = vmatmul.f32.gmra.mxu0 %v801
      %v823 = vpop.f32.mrf.mxu0
      %v824 = vadd.f32 0.0, %v823
      %825 = vmatmul.f32.gmra.mxu0 %v804
      %v826 = vpop.f32.mrf.mxu0
      %v827 = vadd.f32 0.0, %v826
      %828 = vdwg.mxu0
      %v829 = vadd.f32 %v702, %v824
      %v830 = vadd.f32 %v703, %v827
      %v831 = vld [vmem:[%s4] sm:$0x1]
      %v833 = vperm.slane %v831, 0
      %v835 = vadd.f32 %v829, %v833
      %v836 = vadd.f32 %v830, %v833
      %v837 = vadd.f32 %v279, %v835
      %v838 = vadd.f32 %v280, %v836
      %v839 = vld [vmem:[%s5] sm:$0x1]
      %v840 = vld [vmem:[%s6] sm:$0x1]
      %v841 = vsel %vm289, %v837, 0.0
      %842 = vadd.xlane.f32.xlu0 %v841
      %v843 = vpop.xlane.xlu0 %842
      %v844 = vsel %vm289, %v838, 0.0
      %845 = vadd.xlane.f32.xlu0 %v844
      %v846 = vpop.xlane.xlu0 %845
      %v847 = vrcp.pop 32.0
      %v848 = vmul.f32 32.0, %v847
      %v849 = vsub.f32 1.0, %v848
      %v850 = vmul.f32 %v847, %v849
      %v851 = vadd.f32 %v847, %v850
      %vm852 = vweird.f32 %v847
      %v853 = vsel %vm852, %v847, %v851
      %v854 = vmul.f32 %v843, %v853
      %v855 = vmul.f32 %v846, %v853
      %v856 = vsub.f32 %v837, %v854
      %v857 = vsub.f32 %v838, %v855
      %v858 = vmul.f32 %v856, %v856
      %v859 = vmul.f32 %v857, %v857
      %v860 = vsel %vm289, %v858, 0.0
      %861 = vadd.xlane.f32.xlu0 %v860
      %v862 = vpop.xlane.xlu0 %861
      %v863 = vsel %vm289, %v859, 0.0
      %864 = vadd.xlane.f32.xlu0 %v863
      %v865 = vpop.xlane.xlu0 %864
      %v866 = vmul.f32 %v862, %v853
      %v867 = vmul.f32 %v865, %v853
      %v868 = vadd.f32 %v866, 1e-05
      %v869 = vadd.f32 %v867, 1e-05
      %v870 = vrsqrt.pop %v868
      %v871 = vmul.f32 %v870, %v868
      %v872 = vmul.f32 %v871, %v870
      %v873 = vmul.f32 0.5, %v872
      %v874 = vsub.f32 1.5, %v873
      %v875 = vmul.f32 %v870, %v874
      %vm876 = vweird.f32 %v868
      %vm877 = vweird.f32 %v870
      %vm878 = vmor %vm876, %vm877
      %v879 = vsel %vm878, %v870, %v875
      %v880 = vrsqrt.pop %v869
      %v881 = vmul.f32 %v880, %v869
      %v882 = vmul.f32 %v881, %v880
      %v883 = vmul.f32 0.5, %v882
      %v884 = vsub.f32 1.5, %v883
      %v885 = vmul.f32 %v880, %v884
      %vm886 = vweird.f32 %v869
      %vm887 = vweird.f32 %v880
      %vm888 = vmor %vm886, %vm887
      %v889 = vsel %vm888, %v880, %v885
      %v890 = vmul.f32 %v856, %v879
      %v891 = vmul.f32 %v857, %v889
      %v893 = vperm.slane %v839, 0
      %v895 = vmul.f32 %v890, %v893
      %v896 = vmul.f32 %v891, %v893
      %v898 = vperm.slane %v840, 0
      %v900 = vadd.f32 %v895, %v898
      %v901 = vadd.f32 %v896, %v898
      %902 = vst.msk [vmem:[%s278] sm:$0xff] %vm289, %v900
      %903 = vst.msk [vmem:[%s278 + $0x8] sm:$0xff] %vm289, %v901
      %p904 = scmp.lt.s32.totalorder %s18, 1
      %s905 = scalar_select %p904, %s18, 1
      %s906 = smul.addr %s905, 2
      %s907 = smul.addr %s906, 8
      %s908 = scalar_lea.vmem %s7, %s907
      // Predicated region
      $region49: #{time_series_transformer.12} parent=47 // pred_check
        %p909 = pneg %p188
      $region50: #{time_series_transformer.12} parent=47 // pred_check_branch
        %911 = sbr.rel (%p909) target = $region52
      $region51: #{time_series_transformer.12} parent=47 // pred_region
        _
      $region52: #{time_series_transformer.12} parent=47 // pred_fallthru
        _
    $region48: #{time_series_transformer.12} parent=5 // pred_fallthru
      _
    %p912 = scmp.le.s32.totalorder 2, %s13
    // Predicated region
    $region53: #{time_series_transformer.12} parent=5 // pred_check
      %p913 = pneg %p912
    $region54: #{time_series_transformer.12} parent=5 // pred_check_branch
      %915 = sbr.rel (%p913) target = $region56
    $region55: #{time_series_transformer.12} parent=5 // pred_region
      %s916 = ssub.s32 %s13, 2
      // Predicated region
      $region57: #{time_series_transformer.12} parent=55 // pred_check
        %p917 = pneg %p194
      $region58: #{time_series_transformer.12} parent=55 // pred_check_branch
        %919 = sbr.rel (%p917) target = $region60
      $region59: #{time_series_transformer.12} parent=55 // pred_region
        %p920 = scmp.lt.s32.totalorder %s19, 1
        %s921 = scalar_select %p920, %s19, 1
        %s922 = smul.addr %s921, 2
        %s923 = smul.addr %s922, 8
        %s924 = scalar_lea.vmem %s7, %s923
      $region60: #{time_series_transformer.12} parent=55 // pred_fallthru
        _
    $region56: #{time_series_transformer.12} parent=5 // pred_fallthru
      _
  $region6: #{time_series_transformer.12} parent=0 // loop_footer
    %s17 = sadd.s32 1, %s13
  $region7: #{time_series_transformer.12} parent=0 // loop_footer_branch
    %12 = sbr.rel target = $region3
  $region8: #{time_series_transformer.12} parent=0 // loop_exit
    _

// kernel: time_series_transformer.14
$region0: #{time_series_transformer.14}
  #allocation0 [shape = 'u32[]', space=smem, size = 0x4, offset = 0x4, fixed_abs, tag = 'smem constant byte address 0x4 - core index']
  #allocation1 [shape = 'u32[72,128]{1,0:T(1,128)}', space=vmem, size = 0x9000, scoped, tag = 'internal scratch']
  %s0 = inlined_call_operand.vmem [shape: f32[2,16,32], index: 0, kind: input, shape index: {}]
  %s1 = inlined_call_operand.vmem [shape: f32[32,96], index: 1, kind: input, shape index: {}]
  %s2 = inlined_call_operand.vmem [shape: f32[1,96], index: 2, kind: input, shape index: {}]
  %s3 = inlined_call_operand.hbm [shape: f32[32,32], index: 3, kind: input, shape index: {}]
  %s4 = inlined_call_operand.vmem [shape: f32[1,32], index: 4, kind: input, shape index: {}]
  %s5 = inlined_call_operand.vmem [shape: f32[1,32], index: 5, kind: input, shape index: {}]
  %s6 = inlined_call_operand.vmem [shape: f32[1,32], index: 6, kind: input, shape index: {}]
  %s7 = inlined_call_operand.vmem [shape: f32[2,16,32], index: 7, kind: output, shape index: {}]
  %s8 = sld [smem:[#allocation0]]
  $region65: #{time_series_transformer.14} parent=0
    _
  %s10 = ssub.s32 1, %s8
  %s11 = scalar_select 0, %s10, %s8
  $region1: #{time_series_transformer.14} parent=0
    #allocation2 [shape = 'u8[16384]{0}', space=vmem, size = 0x4000, scoped, tag = 'input window, operand 3, single buffered']
    #allocation3 [shape = 's32[2]{0}', space=sflag, size = 0x8, scoped, tag = 'scoped memory for time_series_transformer.14']
    %12 = vsyncpa [#allocation3], 0
    loop: start=0, step=1, limit=4
    $region2: #{time_series_transformer.14} parent=1 // loop_pre_header
      _
    $region3: #{time_series_transformer.14} parent=1 // loop_header
      %s14 = sphi 0, %s18
      %p15 = scmp.ge.s32.totalorder %s14, 4
      %s24 = sphi 0, %s26
      %s27 = sphi 0, %s24
      %s28 = sphi 0, %s27
      %s44 = sphi 0, %s28
      %s48 = sphi 0, %s48
      %s50 = sphi 0, %s48
      %s51 = sphi 0, %s50
      %s65 = sphi 0, %s51
      %s69 = sphi 0, %s69
      %s71 = sphi 0, %s69
      %s72 = sphi 0, %s71
      %s86 = sphi 0, %s72
      %s90 = sphi 0, %s90
      %s92 = sphi 0, %s90
      %s93 = sphi 0, %s92
      %s107 = sphi 0, %s93
      %s111 = sphi 0, %s111
      %s113 = sphi 0, %s111
      %s114 = sphi 0, %s113
      %s128 = sphi 0, %s114
      %s132 = sphi 0, %s132
      %s134 = sphi 0, %s132
      %s135 = sphi 0, %s134
      %s149 = sphi 0, %s135
      %s153 = sphi 0, %s153
      %s155 = sphi 0, %s153
      %s156 = sphi 0, %s155
      %s170 = sphi 0, %s156
      %s176 = sphi 0, %s178
      %s179 = sphi 0, %s176
      %s180 = sphi 0, %s179
      %s196 = sphi 0, %s180
    $region4: #{time_series_transformer.14} parent=1 // loop_header_branch
      %17 = sbr.rel (%p15) target = $region8
    $region5: #{time_series_transformer.14} parent=1 // loop_body
      %s19 = ssub.s32 %s14, 1
      %s20 = ssub.s32 %s14, 2
      %s21 = sadd.s32 %s14, 1
      %s22 = ssub.s32 %s14, %s21
      %p23 = scmp.eq.s32.totalorder %s22, 0
      %s25 = sadd.s32 %s24, 1
      %s26 = scalar_select %p23, %s24, %s25
      %p29 = pneg %p23
      %p30 = scmp.eq.s32.totalorder %s14, 1
      %p31 = por %p29, %p30
      %p32 = scmp.ne.s32.totalorder %s24, %s27
      %p33 = scmp.eq.s32.totalorder %s14, 0
      %p34 = por %p32, %p33
      %p35 = scmp.ne.s32.totalorder %s24, %s27
      %p36 = scmp.eq.s32.totalorder %s19, 1
      %p37 = por %p35, %p36
      %p38 = scmp.ne.s32.totalorder %s27, %s28
      %p39 = scmp.eq.s32.totalorder %s19, 0
      %p40 = por %p38, %p39
      %p41 = scmp.ne.s32.totalorder %s27, %s28
      %p42 = scmp.eq.s32.totalorder %s20, 1
      %p43 = por %p41, %p42
      %p45 = scmp.ne.s32.totalorder %s28, %s44
      %p46 = scmp.eq.s32.totalorder %s20, 0
      %p47 = por %p45, %p46
      %s49 = sadd.s32 %s48, 1
      %p52 = scmp.eq.s32.totalorder %s14, 1
      %p53 = scmp.ne.s32.totalorder %s48, %s50
      %p54 = scmp.eq.s32.totalorder %s14, 0
      %p55 = por %p53, %p54
      %p56 = scmp.ne.s32.totalorder %s48, %s50
      %p57 = scmp.eq.s32.totalorder %s19, 1
      %p58 = por %p56, %p57
      %p59 = scmp.ne.s32.totalorder %s50, %s51
      %p60 = scmp.eq.s32.totalorder %s19, 0
      %p61 = por %p59, %p60
      %p62 = scmp.ne.s32.totalorder %s50, %s51
      %p63 = scmp.eq.s32.totalorder %s20, 1
      %p64 = por %p62, %p63
      %p66 = scmp.ne.s32.totalorder %s51, %s65
      %p67 = scmp.eq.s32.totalorder %s20, 0
      %p68 = por %p66, %p67
      %s70 = sadd.s32 %s69, 1
      %p73 = scmp.eq.s32.totalorder %s14, 1
      %p74 = scmp.ne.s32.totalorder %s69, %s71
      %p75 = scmp.eq.s32.totalorder %s14, 0
      %p76 = por %p74, %p75
      %p77 = scmp.ne.s32.totalorder %s69, %s71
      %p78 = scmp.eq.s32.totalorder %s19, 1
      %p79 = por %p77, %p78
      %p80 = scmp.ne.s32.totalorder %s71, %s72
      %p81 = scmp.eq.s32.totalorder %s19, 0
      %p82 = por %p80, %p81
      %p83 = scmp.ne.s32.totalorder %s71, %s72
      %p84 = scmp.eq.s32.totalorder %s20, 1
      %p85 = por %p83, %p84
      %p87 = scmp.ne.s32.totalorder %s72, %s86
      %p88 = scmp.eq.s32.totalorder %s20, 0
      %p89 = por %p87, %p88
      %s91 = sadd.s32 %s90, 1
      %p94 = scmp.eq.s32.totalorder %s14, 1
      %p95 = scmp.ne.s32.totalorder %s90, %s92
      %p96 = scmp.eq.s32.totalorder %s14, 0
      %p97 = por %p95, %p96
      %p98 = scmp.ne.s32.totalorder %s90, %s92
      %p99 = scmp.eq.s32.totalorder %s19, 1
      %p100 = por %p98, %p99
      %p101 = scmp.ne.s32.totalorder %s92, %s93
      %p102 = scmp.eq.s32.totalorder %s19, 0
      %p103 = por %p101, %p102
      %p104 = scmp.ne.s32.totalorder %s92, %s93
      %p105 = scmp.eq.s32.totalorder %s20, 1
      %p106 = por %p104, %p105
      %p108 = scmp.ne.s32.totalorder %s93, %s107
      %p109 = scmp.eq.s32.totalorder %s20, 0
      %p110 = por %p108, %p109
      %s112 = sadd.s32 %s111, 1
      %p115 = scmp.eq.s32.totalorder %s14, 1
      %p116 = scmp.ne.s32.totalorder %s111, %s113
      %p117 = scmp.eq.s32.totalorder %s14, 0
      %p118 = por %p116, %p117
      %p119 = scmp.ne.s32.totalorder %s111, %s113
      %p120 = scmp.eq.s32.totalorder %s19, 1
      %p121 = por %p119, %p120
      %p122 = scmp.ne.s32.totalorder %s113, %s114
      %p123 = scmp.eq.s32.totalorder %s19, 0
      %p124 = por %p122, %p123
      %p125 = scmp.ne.s32.totalorder %s113, %s114
      %p126 = scmp.eq.s32.totalorder %s20, 1
      %p127 = por %p125, %p126
      %p129 = scmp.ne.s32.totalorder %s114, %s128
      %p130 = scmp.eq.s32.totalorder %s20, 0
      %p131 = por %p129, %p130
      %s133 = sadd.s32 %s132, 1
      %p136 = scmp.eq.s32.totalorder %s14, 1
      %p137 = scmp.ne.s32.totalorder %s132, %s134
      %p138 = scmp.eq.s32.totalorder %s14, 0
      %p139 = por %p137, %p138
      %p140 = scmp.ne.s32.totalorder %s132, %s134
      %p141 = scmp.eq.s32.totalorder %s19, 1
      %p142 = por %p140, %p141
      %p143 = scmp.ne.s32.totalorder %s134, %s135
      %p144 = scmp.eq.s32.totalorder %s19, 0
      %p145 = por %p143, %p144
      %p146 = scmp.ne.s32.totalorder %s134, %s135
      %p147 = scmp.eq.s32.totalorder %s20, 1
      %p148 = por %p146, %p147
      %p150 = scmp.ne.s32.totalorder %s135, %s149
      %p151 = scmp.eq.s32.totalorder %s20, 0
      %p152 = por %p150, %p151
      %s154 = sadd.s32 %s153, 1
      %p157 = scmp.eq.s32.totalorder %s14, 1
      %p158 = scmp.ne.s32.totalorder %s153, %s155
      %p159 = scmp.eq.s32.totalorder %s14, 0
      %p160 = por %p158, %p159
      %p161 = scmp.ne.s32.totalorder %s153, %s155
      %p162 = scmp.eq.s32.totalorder %s19, 1
      %p163 = por %p161, %p162
      %p164 = scmp.ne.s32.totalorder %s155, %s156
      %p165 = scmp.eq.s32.totalorder %s19, 0
      %p166 = por %p164, %p165
      %p167 = scmp.ne.s32.totalorder %s155, %s156
      %p168 = scmp.eq.s32.totalorder %s20, 1
      %p169 = por %p167, %p168
      %p171 = scmp.ne.s32.totalorder %s156, %s170
      %p172 = scmp.eq.s32.totalorder %s20, 0
      %p173 = por %p171, %p172
      %s174 = ssub.s32 %s14, %s21
      %p175 = scmp.eq.s32.totalorder %s174, 0
      %s177 = sadd.s32 %s176, 1
      %s178 = scalar_select %p175, %s176, %s177
      %p181 = pneg %p175
      %p182 = scmp.eq.s32.totalorder %s14, 1
      %p183 = por %p181, %p182
      %p184 = scmp.ne.s32.totalorder %s176, %s179
      %p185 = scmp.eq.s32.totalorder %s14, 0
      %p186 = por %p184, %p185
      %p187 = scmp.ne.s32.totalorder %s176, %s179
      %p188 = scmp.eq.s32.totalorder %s19, 1
      %p189 = por %p187, %p188
      %p190 = scmp.ne.s32.totalorder %s179, %s180
      %p191 = scmp.eq.s32.totalorder %s19, 0
      %p192 = por %p190, %p191
      %p193 = scmp.ne.s32.totalorder %s179, %s180
      %p194 = scmp.eq.s32.totalorder %s20, 1
      %p195 = por %p193, %p194
      %p197 = scmp.ne.s32.totalorder %s180, %s196
      %p198 = scmp.eq.s32.totalorder %s20, 0
      %p199 = por %p197, %p198
      %p200 = scmp.le.s32.totalorder 1, %s14
      %p201 = scmp.lt.s32.totalorder %s14, 3
      %p202 = pnand %p200, %p201
      %p203 = pneg %p202
      // Predicated region
      $region9: #{time_series_transformer.14} parent=5 // pred_check
        _
      $region10: #{time_series_transformer.14} parent=5 // pred_check_branch
        %205 = sbr.rel (%p202) target = $region12
      $region11: #{time_series_transformer.14} parent=5 // pred_region
        %s206 = ssub.s32 %s14, 1
        // Predicated region
        $region13: #{time_series_transformer.14} parent=11 // pred_check
          %p207 = pneg %p61
        $region14: #{time_series_transformer.14} parent=11 // pred_check_branch
          %209 = sbr.rel (%p207) target = $region16
        $region15: #{time_series_transformer.14} parent=11 // pred_region
          _
        $region16: #{time_series_transformer.14} parent=11 // pred_fallthru
          _
        // Predicated region
        $region17: #{time_series_transformer.14} parent=11 // pred_check
          %p210 = pneg %p82
        $region18: #{time_series_transformer.14} parent=11 // pred_check_branch
          %212 = sbr.rel (%p210) target = $region20
        $region19: #{time_series_transformer.14} parent=11 // pred_region
          _
        $region20: #{time_series_transformer.14} parent=11 // pred_fallthru
          _
        // Predicated region
        $region21: #{time_series_transformer.14} parent=11 // pred_check
          %p213 = pneg %p103
        $region22: #{time_series_transformer.14} parent=11 // pred_check_branch
          %215 = sbr.rel (%p213) target = $region24
        $region23: #{time_series_transformer.14} parent=11 // pred_region
          %217 = vsyncadd [#allocation3], 0
          %s218 = sshll.u32 %s3, 4
          %s219 = int_to_ptr.hbm [resolvable:$true] %s218
          %s220 = sshll.u32 [#allocation2], 4
          %s221 = int_to_ptr.vmem [resolvable:$true] %s220
          %226 = dma.hbm_to_vmem [thread:$0]  %s219, 512, %s221, [#allocation3], 128, 128, 8
        $region24: #{time_series_transformer.14} parent=11 // pred_fallthru
          _
        // Predicated region
        $region25: #{time_series_transformer.14} parent=11 // pred_check
          %p227 = pneg %p124
        $region26: #{time_series_transformer.14} parent=11 // pred_check_branch
          %229 = sbr.rel (%p227) target = $region28
        $region27: #{time_series_transformer.14} parent=11 // pred_region
          _
        $region28: #{time_series_transformer.14} parent=11 // pred_fallthru
          _
        // Predicated region
        $region29: #{time_series_transformer.14} parent=11 // pred_check
          %p230 = pneg %p145
        $region30: #{time_series_transformer.14} parent=11 // pred_check_branch
          %232 = sbr.rel (%p230) target = $region32
        $region31: #{time_series_transformer.14} parent=11 // pred_region
          _
        $region32: #{time_series_transformer.14} parent=11 // pred_fallthru
          _
        // Predicated region
        $region33: #{time_series_transformer.14} parent=11 // pred_check
          %p233 = pneg %p166
        $region34: #{time_series_transformer.14} parent=11 // pred_check_branch
          %235 = sbr.rel (%p233) target = $region36
        $region35: #{time_series_transformer.14} parent=11 // pred_region
          _
        $region36: #{time_series_transformer.14} parent=11 // pred_fallthru
          _
      $region12: #{time_series_transformer.14} parent=5 // pred_fallthru
        _
      %p236 = scmp.lt.s32.totalorder %s14, 2
      // Predicated region
      $region37: #{time_series_transformer.14} parent=5 // pred_check
        %p237 = pneg %p236
      $region38: #{time_series_transformer.14} parent=5 // pred_check_branch
        %239 = sbr.rel (%p237) target = $region40
      $region39: #{time_series_transformer.14} parent=5 // pred_region
        // Predicated region
        $region41: #{time_series_transformer.14} parent=39 // pred_check
          %p240 = pneg %p34
        $region42: #{time_series_transformer.14} parent=39 // pred_check_branch
          %242 = sbr.rel (%p240) target = $region44
        $region43: #{time_series_transformer.14} parent=39 // pred_region
          %p243 = scmp.lt.s32.totalorder %s14, 1
          %s244 = scalar_select %p243, %s14, 1
          %s245 = smul.addr %s244, 2
          %s246 = smul.addr %s245, 8
          %s247 = scalar_lea.vmem %s0, %s246
        $region44: #{time_series_transformer.14} parent=39 // pred_fallthru
          _
      $region40: #{time_series_transformer.14} parent=5 // pred_fallthru
        _
      %p248 = scmp.le.s32.totalorder 1, %s14
      %p249 = scmp.lt.s32.totalorder %s14, 3
      %p250 = pnand %p248, %p249
      %p251 = pneg %p250
      // Predicated region
      $region45: #{time_series_transformer.14} parent=5 // pred_check
        _
      $region46: #{time_series_transformer.14} parent=5 // pred_check_branch
        %253 = sbr.rel (%p250) target = $region48
      $region47: #{time_series_transformer.14} parent=5 // pred_region
        %s254 = ssub.s32 %s14, 1
        // Predicated region
        $region49: #{time_series_transformer.14} parent=47 // pred_check
          %p255 = pneg %p103
        $region50: #{time_series_transformer.14} parent=47 // pred_check_branch
          %257 = sbr.rel (%p255) target = $region52
        $region51: #{time_series_transformer.14} parent=47 // pred_region
          %259 = dma.done [#allocation3], 512
        $region52: #{time_series_transformer.14} parent=47 // pred_fallthru
          _
        %p260 = scmp.lt.s32.totalorder %s19, 1
        %s261 = scalar_select %p260, %s19, 1
        %s262 = smul.addr %s261, 2
        %s263 = smul.addr %s262, 8
        %s264 = scalar_lea.vmem %s0, %s263
        %p265 = pneg %p40
        %p266 = pneg %p37
        %p267 = pneg %p61
        %p268 = pneg %p58
        %p269 = pneg %p82
        %p270 = pneg %p79
        %p271 = pneg %p103
        %p272 = pneg %p100
        %p273 = pneg %p124
        %p274 = pneg %p121
        %p275 = pneg %p145
        %p276 = pneg %p142
        %p277 = pneg %p166
        %p278 = pneg %p163
        %p279 = pneg %p192
        %p280 = pneg %p189
        %p281 = scmp.lt.s32.totalorder %s19, 1
        %s282 = scalar_select %p281, %s19, 1
        %s283 = smul.addr %s282, 2
        %s284 = smul.addr %s283, 8
        %s285 = scalar_lea.vmem %s7, %s284
        %p286 = scmp.lt.s32.totalorder %s19, 1
        %s287 = scalar_select %p286, %s19, 1
        %s288 = smul.addr %s287, 2
        %s289 = smul.addr %s288, 8
        %s290 = scalar_lea.vmem %s0, %s289
        %p291 = scmp.lt.s32.totalorder %s19, 1
        %s292 = scalar_select %p291, %s19, 1
        %s293 = smul.addr %s292, 2
        %s294 = smul.addr %s293, 8
        %s295 = scalar_lea.vmem %s7, %s294
        %v296 = vld [vmem:[%s290] sm:$0xff]
        %v297 = vld [vmem:[%s290 + $0x8] sm:$0xff]
        %v298 = vld [vmem:[%s1] sm:$0xff]
        %v299 = vld [vmem:[%s1 + $0x8] sm:$0xff]
        %v300 = vld [vmem:[%s1 + $0x10] sm:$0xff]
        %v301 = vld [vmem:[%s1 + $0x18] sm:$0xff]
        %v302 = vld [vmem:[%s2] sm:$0x1]
        %v304 = vperm.slane %v302, 0
        %vm306 = vcmask 261120
        %v308 = vsel %vm306, %v296, 0
        %v311 = vsel %vm306, %v297, 0
        %313 = vmatpush.msra.mxu0 0.0
        %314 = vmatpush.msra.mxu0 0.0
        %315 = vmatpush.msra.mxu0 0.0
        %316 = vmatpush.msra.mxu0 0.0
        %317 = vmatpush.msra.mxu0 0.0
        %318 = vmatpush.msra.mxu0 0.0
        %319 = vmatpush.msra.mxu0 0.0
        %320 = vmatpush.msra.mxu0 0.0
        %321 = vmatpush.msra.mxu0 0.0
        %322 = vmatpush.msra.mxu0 0.0
        %323 = vmatpush.msra.mxu0 0.0
        %324 = vmatpush.msra.mxu0 0.0
        %325 = vmatpush.msra.mxu0 %v301
        %326 = vmatpush.msra.mxu0 %v300
        %327 = vmatpush.msra.mxu0 %v299
        %328 = vmatpush.msra.mxu0 %v298
        %329 = vmatmul.f32.gmra.mxu0 %v308
        %v330 = vpop.f32.mrf.mxu0
        %v331 = vadd.f32 %v304, %v330
        %332 = vmatmul.f32.gmra.mxu0 %v311
        %v333 = vpop.f32.mrf.mxu0
        %v334 = vadd.f32 %v304, %v333
        %335 = vdwg.mxu0
        %v336 = vmul.f32 %v331, 0.35355338
        %v337 = vmul.f32 %v334, 0.35355338
        %v338 = vld [vmem:[#allocation2] sm:$0xff]
        %v339 = vld [vmem:[#allocation2 + $0x8] sm:$0xff]
        %v340 = vld [vmem:[#allocation2 + $0x10] sm:$0xff]
        %v341 = vld [vmem:[#allocation2 + $0x18] sm:$0xff]
        %344 = vrot.lane.b32.xlu0 %v331, 96
        %v345 = vpop.permute.xlu0 %344
        %346 = vrot.lane.b32.xlu0 %v334, 96
        %v347 = vpop.permute.xlu0 %346
        %vm348 = vcmask 64512
        %v350 = vsel %vm348, %v336, 0
        %v353 = vsel %vm348, %v337, 0
        %v355 = vsel %vm348, %v345, 0
        %v357 = vsel %vm348, %v347, 0
        %359 = vmatpush.xpose.msra.mxu0 0.0
        %360 = vmatpush.xpose.msra.mxu0 0.0
        %361 = vmatpush.xpose.msra.mxu0 0.0
        %362 = vmatpush.xpose.msra.mxu0 0.0
        %363 = vmatpush.xpose.msra.mxu0 0.0
        %364 = vmatpush.xpose.msra.mxu0 0.0
        %365 = vmatpush.xpose.msra.mxu0 0.0
        %366 = vmatpush.xpose.msra.mxu0 0.0
        %367 = vmatpush.xpose.msra.mxu0 0.0
        %368 = vmatpush.xpose.msra.mxu0 0.0
        %369 = vmatpush.xpose.msra.mxu0 0.0
        %370 = vmatpush.xpose.msra.mxu0 0.0
        %371 = vmatpush.xpose.msra.mxu0 0.0
        %372 = vmatpush.xpose.msra.mxu0 0.0
        %373 = vmatpush.xpose.msra.mxu0 %v357
        %374 = vmatpush.xpose.msra.mxu0 %v355
        %375 = vmatmul.f32.gmra.mxu0 %v350
        %v376 = vpop.f32.mrf.mxu0
        %v377 = vadd.f32 0.0, %v376
        %378 = vmatmul.f32.gmra.mxu0 %v353
        %v379 = vpop.f32.mrf.mxu0
        %v380 = vadd.f32 0.0, %v379
        %381 = vdwg.mxu0
        %vm382 = vcmask 130048
        %v383 = vsel %vm382, %v377, -inf
        %384 = vmax.xlane.f32.xlu0 %v383
        %v385 = vpop.xlane.xlu0 %384
        %v386 = vsel %vm382, %v380, -inf
        %387 = vmax.xlane.f32.xlu0 %v386
        %v388 = vpop.xlane.xlu0 %387
        %v389 = vsub.f32 %v377, %v385
        %v390 = vsub.f32 %v380, %v388
        %v391 = vmul.f32 %v389, 1.442695
        %v392 = vpow.pop %v391
        %v393 = vmul.f32 %v390, 1.442695
        %v394 = vpow.pop %v393
        %v395 = vsel %vm382, %v392, 0.0
        %396 = vadd.xlane.f32.xlu0 %v395
        %v397 = vpop.xlane.xlu0 %396
        %v398 = vsel %vm382, %v394, 0.0
        %399 = vadd.xlane.f32.xlu0 %v398
        %v400 = vpop.xlane.xlu0 %399
        %v401 = vrcp.pop %v397
        %v402 = vrcp.pop %v400
        %v403 = vmul.f32 %v392, %v401
        %v404 = vmul.f32 %v394, %v402
        %405 = vrot.lane.b32.xlu0 %v331, 64
        %v406 = vpop.permute.xlu0 %405
        %407 = vrot.lane.b32.xlu0 %v334, 64
        %v408 = vpop.permute.xlu0 %407
        %v412 = vsel %vm382, %v403, 0
        %v415 = vsel %vm382, %v404, 0
        %417 = vmatpush.msra.mxu0 0.0
        %418 = vmatpush.msra.mxu0 0.0
        %419 = vmatpush.msra.mxu0 0.0
        %420 = vmatpush.msra.mxu0 0.0
        %421 = vmatpush.msra.mxu0 0.0
        %422 = vmatpush.msra.mxu0 0.0
        %423 = vmatpush.msra.mxu0 0.0
        %424 = vmatpush.msra.mxu0 0.0
        %425 = vmatpush.msra.mxu0 0.0
        %426 = vmatpush.msra.mxu0 0.0
        %427 = vmatpush.msra.mxu0 0.0
        %428 = vmatpush.msra.mxu0 0.0
        %429 = vmatpush.msra.mxu0 0.0
        %430 = vmatpush.msra.mxu0 0.0
        %431 = vmatpush.msra.mxu0 %v408
        %432 = vmatpush.msra.mxu0 %v406
        %433 = vmatmul.f32.gmra.mxu0 %v412
        %v434 = vpop.f32.mrf.mxu0
        %v435 = vadd.f32 0.0, %v434
        %436 = vmatmul.f32.gmra.mxu0 %v415
        %v437 = vpop.f32.mrf.mxu0
        %v438 = vadd.f32 0.0, %v437
        %439 = vdwg.mxu0
        %440 = vrot.lane.b32.xlu0 %v336, 120
        %v441 = vpop.permute.xlu0 %440
        %442 = vrot.lane.b32.xlu0 %v337, 120
        %v443 = vpop.permute.xlu0 %442
        %444 = vrot.lane.b32.xlu0 %v331, 88
        %v445 = vpop.permute.xlu0 %444
        %446 = vrot.lane.b32.xlu0 %v334, 88
        %v447 = vpop.permute.xlu0 %446
        %v448 = vsel %vm348, %v441, 0
        %v450 = vsel %vm348, %v443, 0
        %v452 = vsel %vm348, %v445, 0
        %v454 = vsel %vm348, %v447, 0
        %456 = vmatpush.xpose.msra.mxu0 0.0
        %457 = vmatpush.xpose.msra.mxu0 0.0
        %458 = vmatpush.xpose.msra.mxu0 0.0
        %459 = vmatpush.xpose.msra.mxu0 0.0
        %460 = vmatpush.xpose.msra.mxu0 0.0
        %461 = vmatpush.xpose.msra.mxu0 0.0
        %462 = vmatpush.xpose.msra.mxu0 0.0
        %463 = vmatpush.xpose.msra.mxu0 0.0
        %464 = vmatpush.xpose.msra.mxu0 0.0
        %465 = vmatpush.xpose.msra.mxu0 0.0
        %466 = vmatpush.xpose.msra.mxu0 0.0
        %467 = vmatpush.xpose.msra.mxu0 0.0
        %468 = vmatpush.xpose.msra.mxu0 0.0
        %469 = vmatpush.xpose.msra.mxu0 0.0
        %470 = vmatpush.xpose.msra.mxu0 %v454
        %471 = vmatpush.xpose.msra.mxu0 %v452
        %472 = vmatmul.f32.gmra.mxu0 %v448
        %v473 = vpop.f32.mrf.mxu0
        %v474 = vadd.f32 0.0, %v473
        %475 = vmatmul.f32.gmra.mxu0 %v450
        %v476 = vpop.f32.mrf.mxu0
        %v477 = vadd.f32 0.0, %v476
        %478 = vdwg.mxu0
        %v479 = vsel %vm382, %v474, -inf
        %480 = vmax.xlane.f32.xlu0 %v479
        %v481 = vpop.xlane.xlu0 %480
        %v482 = vsel %vm382, %v477, -inf
        %483 = vmax.xlane.f32.xlu0 %v482
        %v484 = vpop.xlane.xlu0 %483
        %v485 = vsub.f32 %v474, %v481
        %v486 = vsub.f32 %v477, %v484
        %v487 = vmul.f32 %v485, 1.442695
        %v488 = vpow.pop %v487
        %v489 = vmul.f32 %v486, 1.442695
        %v490 = vpow.pop %v489
        %v491 = vsel %vm382, %v488, 0.0
        %492 = vadd.xlane.f32.xlu0 %v491
        %v493 = vpop.xlane.xlu0 %492
        %v494 = vsel %vm382, %v490, 0.0
        %495 = vadd.xlane.f32.xlu0 %v494
        %v496 = vpop.xlane.xlu0 %495
        %v497 = vrcp.pop %v493
        %v498 = vrcp.pop %v496
        %v499 = vmul.f32 %v488, %v497
        %v500 = vmul.f32 %v490, %v498
        %501 = vrot.lane.b32.xlu0 %v331, 56
        %v502 = vpop.permute.xlu0 %501
        %503 = vrot.lane.b32.xlu0 %v334, 56
        %v504 = vpop.permute.xlu0 %503
        %v508 = vsel %vm382, %v499, 0
        %v511 = vsel %vm382, %v500, 0
        %513 = vmatpush.msra.mxu0 0.0
        %514 = vmatpush.msra.mxu0 0.0
        %515 = vmatpush.msra.mxu0 0.0
        %516 = vmatpush.msra.mxu0 0.0
        %517 = vmatpush.msra.mxu0 0.0
        %518 = vmatpush.msra.mxu0 0.0
        %519 = vmatpush.msra.mxu0 0.0
        %520 = vmatpush.msra.mxu0 0.0
        %521 = vmatpush.msra.mxu0 0.0
        %522 = vmatpush.msra.mxu0 0.0
        %523 = vmatpush.msra.mxu0 0.0
        %524 = vmatpush.msra.mxu0 0.0
        %525 = vmatpush.msra.mxu0 0.0
        %526 = vmatpush.msra.mxu0 0.0
        %527 = vmatpush.msra.mxu0 %v504
        %528 = vmatpush.msra.mxu0 %v502
        %529 = vmatmul.f32.gmra.mxu0 %v508
        %v530 = vpop.f32.mrf.mxu0
        %v531 = vadd.f32 0.0, %v530
        %532 = vmatmul.f32.gmra.mxu0 %v511
        %v533 = vpop.f32.mrf.mxu0
        %v534 = vadd.f32 0.0, %v533
        %535 = vdwg.mxu0
        %v537 = vsel %vm348, %v531, 0
        %v540 = vsel %vm348, %v534, 0
        %542 = vmatpush.msra.mxu0 0.0
        %543 = vmatpush.msra.mxu0 0.0
        %544 = vmatpush.msra.mxu0 0.0
        %545 = vmatpush.msra.mxu0 0.0
        %546 = vmatpush.msra.mxu0 0.0
        %547 = vmatpush.msra.mxu0 0.0
        %548 = vmatpush.msra.mxu0 0.0
        %549 = vmatpush.msra.mxu0 0.0
        %550 = vmatpush.msra.mxu0 0.0
        %551 = vmatpush.msra.mxu0 0.0
        %552 = vmatpush.msra.mxu0 0.0
        %553 = vmatpush.msra.mxu0 0.0
        %554 = vmatpush.msra.mxu0 0.0
        %555 = vmatpush.msra.mxu0 0.0
        %556 = vmatpush.msra.mxu0 0.0
        %557 = vmatpush.msra.mxu0 %v339
        %558 = vmatmul.f32.gmra.mxu0 %v537
        %v559 = vpop.f32.mrf.mxu0
        %v560 = vadd.f32 0.0, %v559
        %561 = vmatmul.f32.gmra.mxu0 %v540
        %v562 = vpop.f32.mrf.mxu0
        %v563 = vadd.f32 0.0, %v562
        %564 = vdwg.mxu0
        %v566 = vsel %vm348, %v435, 0
        %v569 = vsel %vm348, %v438, 0
        %571 = vmatpush.msra.mxu0 0.0
        %572 = vmatpush.msra.mxu0 0.0
        %573 = vmatpush.msra.mxu0 0.0
        %574 = vmatpush.msra.mxu0 0.0
        %575 = vmatpush.msra.mxu0 0.0
        %576 = vmatpush.msra.mxu0 0.0
        %577 = vmatpush.msra.mxu0 0.0
        %578 = vmatpush.msra.mxu0 0.0
        %579 = vmatpush.msra.mxu0 0.0
        %580 = vmatpush.msra.mxu0 0.0
        %581 = vmatpush.msra.mxu0 0.0
        %582 = vmatpush.msra.mxu0 0.0
        %583 = vmatpush.msra.mxu0 0.0
        %584 = vmatpush.msra.mxu0 0.0
        %585 = vmatpush.msra.mxu0 0.0
        %586 = vmatpush.msra.mxu0 %v338
        %587 = vmatmul.f32.gmra.mxu0 %v566
        %v588 = vpop.f32.mrf.mxu0
        %v589 = vadd.f32 %v560, %v588
        %590 = vmatmul.f32.gmra.mxu0 %v569
        %v591 = vpop.f32.mrf.mxu0
        %v592 = vadd.f32 %v563, %v591
        %593 = vdwg.mxu0
        %594 = vrot.lane.b32.xlu0 %v336, 112
        %v595 = vpop.permute.xlu0 %594
        %596 = vrot.lane.b32.xlu0 %v337, 112
        %v597 = vpop.permute.xlu0 %596
        %598 = vrot.lane.b32.xlu0 %v331, 80
        %v599 = vpop.permute.xlu0 %598
        %600 = vrot.lane.b32.xlu0 %v334, 80
        %v601 = vpop.permute.xlu0 %600
        %v602 = vsel %vm348, %v595, 0
        %v604 = vsel %vm348, %v597, 0
        %v606 = vsel %vm348, %v599, 0
        %v608 = vsel %vm348, %v601, 0
        %610 = vmatpush.xpose.msra.mxu0 0.0
        %611 = vmatpush.xpose.msra.mxu0 0.0
        %612 = vmatpush.xpose.msra.mxu0 0.0
        %613 = vmatpush.xpose.msra.mxu0 0.0
        %614 = vmatpush.xpose.msra.mxu0 0.0
        %615 = vmatpush.xpose.msra.mxu0 0.0
        %616 = vmatpush.xpose.msra.mxu0 0.0
        %617 = vmatpush.xpose.msra.mxu0 0.0
        %618 = vmatpush.xpose.msra.mxu0 0.0
        %619 = vmatpush.xpose.msra.mxu0 0.0
        %620 = vmatpush.xpose.msra.mxu0 0.0
        %621 = vmatpush.xpose.msra.mxu0 0.0
        %622 = vmatpush.xpose.msra.mxu0 0.0
        %623 = vmatpush.xpose.msra.mxu0 0.0
        %624 = vmatpush.xpose.msra.mxu0 %v608
        %625 = vmatpush.xpose.msra.mxu0 %v606
        %626 = vmatmul.f32.gmra.mxu0 %v602
        %v627 = vpop.f32.mrf.mxu0
        %v628 = vadd.f32 0.0, %v627
        %629 = vmatmul.f32.gmra.mxu0 %v604
        %v630 = vpop.f32.mrf.mxu0
        %v631 = vadd.f32 0.0, %v630
        %632 = vdwg.mxu0
        %v633 = vsel %vm382, %v628, -inf
        %634 = vmax.xlane.f32.xlu0 %v633
        %v635 = vpop.xlane.xlu0 %634
        %v636 = vsel %vm382, %v631, -inf
        %637 = vmax.xlane.f32.xlu0 %v636
        %v638 = vpop.xlane.xlu0 %637
        %v639 = vsub.f32 %v628, %v635
        %v640 = vsub.f32 %v631, %v638
        %v641 = vmul.f32 %v639, 1.442695
        %v642 = vpow.pop %v641
        %v643 = vmul.f32 %v640, 1.442695
        %v644 = vpow.pop %v643
        %v645 = vsel %vm382, %v642, 0.0
        %646 = vadd.xlane.f32.xlu0 %v645
        %v647 = vpop.xlane.xlu0 %646
        %v648 = vsel %vm382, %v644, 0.0
        %649 = vadd.xlane.f32.xlu0 %v648
        %v650 = vpop.xlane.xlu0 %649
        %v651 = vrcp.pop %v647
        %v652 = vrcp.pop %v650
        %v653 = vmul.f32 %v642, %v651
        %v654 = vmul.f32 %v644, %v652
        %655 = vrot.lane.b32.xlu0 %v331, 48
        %v656 = vpop.permute.xlu0 %655
        %657 = vrot.lane.b32.xlu0 %v334, 48
        %v658 = vpop.permute.xlu0 %657
        %v662 = vsel %vm382, %v653, 0
        %v665 = vsel %vm382, %v654, 0
        %667 = vmatpush.msra.mxu0 0.0
        %668 = vmatpush.msra.mxu0 0.0
        %669 = vmatpush.msra.mxu0 0.0
        %670 = vmatpush.msra.mxu0 0.0
        %671 = vmatpush.msra.mxu0 0.0
        %672 = vmatpush.msra.mxu0 0.0
        %673 = vmatpush.msra.mxu0 0.0
        %674 = vmatpush.msra.mxu0 0.0
        %675 = vmatpush.msra.mxu0 0.0
        %676 = vmatpush.msra.mxu0 0.0
        %677 = vmatpush.msra.mxu0 0.0
        %678 = vmatpush.msra.mxu0 0.0
        %679 = vmatpush.msra.mxu0 0.0
        %680 = vmatpush.msra.mxu0 0.0
        %681 = vmatpush.msra.mxu0 %v658
        %682 = vmatpush.msra.mxu0 %v656
        %683 = vmatmul.f32.gmra.mxu0 %v662
        %v684 = vpop.f32.mrf.mxu0
        %v685 = vadd.f32 0.0, %v684
        %686 = vmatmul.f32.gmra.mxu0 %v665
        %v687 = vpop.f32.mrf.mxu0
        %v688 = vadd.f32 0.0, %v687
        %689 = vdwg.mxu0
        %v691 = vsel %vm348, %v685, 0
        %v694 = vsel %vm348, %v688, 0
        %696 = vmatpush.msra.mxu0 0.0
        %697 = vmatpush.msra.mxu0 0.0
        %698 = vmatpush.msra.mxu0 0.0
        %699 = vmatpush.msra.mxu0 0.0
        %700 = vmatpush.msra.mxu0 0.0
        %701 = vmatpush.msra.mxu0 0.0
        %702 = vmatpush.msra.mxu0 0.0
        %703 = vmatpush.msra.mxu0 0.0
        %704 = vmatpush.msra.mxu0 0.0
        %705 = vmatpush.msra.mxu0 0.0
        %706 = vmatpush.msra.mxu0 0.0
        %707 = vmatpush.msra.mxu0 0.0
        %708 = vmatpush.msra.mxu0 0.0
        %709 = vmatpush.msra.mxu0 0.0
        %710 = vmatpush.msra.mxu0 0.0
        %711 = vmatpush.msra.mxu0 %v340
        %712 = vmatmul.f32.gmra.mxu0 %v691
        %v713 = vpop.f32.mrf.mxu0
        %v714 = vadd.f32 0.0, %v713
        %715 = vmatmul.f32.gmra.mxu0 %v694
        %v716 = vpop.f32.mrf.mxu0
        %v717 = vadd.f32 0.0, %v716
        %718 = vdwg.mxu0
        %v719 = vadd.f32 %v589, %v714
        %v720 = vadd.f32 %v592, %v717
        %721 = vrot.lane.b32.xlu0 %v336, 104
        %v722 = vpop.permute.xlu0 %721
        %723 = vrot.lane.b32.xlu0 %v337, 104
        %v724 = vpop.permute.xlu0 %723
        %725 = vrot.lane.b32.xlu0 %v331, 72
        %v726 = vpop.permute.xlu0 %725
        %727 = vrot.lane.b32.xlu0 %v334, 72
        %v728 = vpop.permute.xlu0 %727
        %v729 = vsel %vm348, %v722, 0
        %v731 = vsel %vm348, %v724, 0
        %v733 = vsel %vm348, %v726, 0
        %v735 = vsel %vm348, %v728, 0
        %737 = vmatpush.xpose.msra.mxu0 0.0
        %738 = vmatpush.xpose.msra.mxu0 0.0
        %739 = vmatpush.xpose.msra.mxu0 0.0
        %740 = vmatpush.xpose.msra.mxu0 0.0
        %741 = vmatpush.xpose.msra.mxu0 0.0
        %742 = vmatpush.xpose.msra.mxu0 0.0
        %743 = vmatpush.xpose.msra.mxu0 0.0
        %744 = vmatpush.xpose.msra.mxu0 0.0
        %745 = vmatpush.xpose.msra.mxu0 0.0
        %746 = vmatpush.xpose.msra.mxu0 0.0
        %747 = vmatpush.xpose.msra.mxu0 0.0
        %748 = vmatpush.xpose.msra.mxu0 0.0
        %749 = vmatpush.xpose.msra.mxu0 0.0
        %750 = vmatpush.xpose.msra.mxu0 0.0
        %751 = vmatpush.xpose.msra.mxu0 %v735
        %752 = vmatpush.xpose.msra.mxu0 %v733
        %753 = vmatmul.f32.gmra.mxu0 %v729
        %v754 = vpop.f32.mrf.mxu0
        %v755 = vadd.f32 0.0, %v754
        %756 = vmatmul.f32.gmra.mxu0 %v731
        %v757 = vpop.f32.mrf.mxu0
        %v758 = vadd.f32 0.0, %v757
        %759 = vdwg.mxu0
        %v760 = vsel %vm382, %v755, -inf
        %761 = vmax.xlane.f32.xlu0 %v760
        %v762 = vpop.xlane.xlu0 %761
        %v763 = vsel %vm382, %v758, -inf
        %764 = vmax.xlane.f32.xlu0 %v763
        %v765 = vpop.xlane.xlu0 %764
        %v766 = vsub.f32 %v755, %v762
        %v767 = vsub.f32 %v758, %v765
        %v768 = vmul.f32 %v766, 1.442695
        %v769 = vpow.pop %v768
        %v770 = vmul.f32 %v767, 1.442695
        %v771 = vpow.pop %v770
        %v772 = vsel %vm382, %v769, 0.0
        %773 = vadd.xlane.f32.xlu0 %v772
        %v774 = vpop.xlane.xlu0 %773
        %v775 = vsel %vm382, %v771, 0.0
        %776 = vadd.xlane.f32.xlu0 %v775
        %v777 = vpop.xlane.xlu0 %776
        %v778 = vrcp.pop %v774
        %v779 = vrcp.pop %v777
        %v780 = vmul.f32 %v769, %v778
        %v781 = vmul.f32 %v771, %v779
        %782 = vrot.lane.b32.xlu0 %v331, 40
        %v783 = vpop.permute.xlu0 %782
        %784 = vrot.lane.b32.xlu0 %v334, 40
        %v785 = vpop.permute.xlu0 %784
        %v789 = vsel %vm382, %v780, 0
        %v792 = vsel %vm382, %v781, 0
        %794 = vmatpush.msra.mxu0 0.0
        %795 = vmatpush.msra.mxu0 0.0
        %796 = vmatpush.msra.mxu0 0.0
        %797 = vmatpush.msra.mxu0 0.0
        %798 = vmatpush.msra.mxu0 0.0
        %799 = vmatpush.msra.mxu0 0.0
        %800 = vmatpush.msra.mxu0 0.0
        %801 = vmatpush.msra.mxu0 0.0
        %802 = vmatpush.msra.mxu0 0.0
        %803 = vmatpush.msra.mxu0 0.0
        %804 = vmatpush.msra.mxu0 0.0
        %805 = vmatpush.msra.mxu0 0.0
        %806 = vmatpush.msra.mxu0 0.0
        %807 = vmatpush.msra.mxu0 0.0
        %808 = vmatpush.msra.mxu0 %v785
        %809 = vmatpush.msra.mxu0 %v783
        %810 = vmatmul.f32.gmra.mxu0 %v789
        %v811 = vpop.f32.mrf.mxu0
        %v812 = vadd.f32 0.0, %v811
        %813 = vmatmul.f32.gmra.mxu0 %v792
        %v814 = vpop.f32.mrf.mxu0
        %v815 = vadd.f32 0.0, %v814
        %816 = vdwg.mxu0
        %v818 = vsel %vm348, %v812, 0
        %v821 = vsel %vm348, %v815, 0
        %823 = vmatpush.msra.mxu0 0.0
        %824 = vmatpush.msra.mxu0 0.0
        %825 = vmatpush.msra.mxu0 0.0
        %826 = vmatpush.msra.mxu0 0.0
        %827 = vmatpush.msra.mxu0 0.0
        %828 = vmatpush.msra.mxu0 0.0
        %829 = vmatpush.msra.mxu0 0.0
        %830 = vmatpush.msra.mxu0 0.0
        %831 = vmatpush.msra.mxu0 0.0
        %832 = vmatpush.msra.mxu0 0.0
        %833 = vmatpush.msra.mxu0 0.0
        %834 = vmatpush.msra.mxu0 0.0
        %835 = vmatpush.msra.mxu0 0.0
        %836 = vmatpush.msra.mxu0 0.0
        %837 = vmatpush.msra.mxu0 0.0
        %838 = vmatpush.msra.mxu0 %v341
        %839 = vmatmul.f32.gmra.mxu0 %v818
        %v840 = vpop.f32.mrf.mxu0
        %v841 = vadd.f32 0.0, %v840
        %842 = vmatmul.f32.gmra.mxu0 %v821
        %v843 = vpop.f32.mrf.mxu0
        %v844 = vadd.f32 0.0, %v843
        %845 = vdwg.mxu0
        %v846 = vadd.f32 %v719, %v841
        %v847 = vadd.f32 %v720, %v844
        %v848 = vld [vmem:[%s4] sm:$0x1]
        %v850 = vperm.slane %v848, 0
        %v852 = vadd.f32 %v846, %v850
        %v853 = vadd.f32 %v847, %v850
        %v854 = vadd.f32 %v296, %v852
        %v855 = vadd.f32 %v297, %v853
        %v856 = vld [vmem:[%s5] sm:$0x1]
        %v857 = vld [vmem:[%s6] sm:$0x1]
        %v858 = vsel %vm306, %v854, 0.0
        %859 = vadd.xlane.f32.xlu0 %v858
        %v860 = vpop.xlane.xlu0 %859
        %v861 = vsel %vm306, %v855, 0.0
        %862 = vadd.xlane.f32.xlu0 %v861
        %v863 = vpop.xlane.xlu0 %862
        %v864 = vrcp.pop 32.0
        %v865 = vmul.f32 32.0, %v864
        %v866 = vsub.f32 1.0, %v865
        %v867 = vmul.f32 %v864, %v866
        %v868 = vadd.f32 %v864, %v867
        %vm869 = vweird.f32 %v864
        %v870 = vsel %vm869, %v864, %v868
        %v871 = vmul.f32 %v860, %v870
        %v872 = vmul.f32 %v863, %v870
        %v873 = vsub.f32 %v854, %v871
        %v874 = vsub.f32 %v855, %v872
        %v875 = vmul.f32 %v873, %v873
        %v876 = vmul.f32 %v874, %v874
        %v877 = vsel %vm306, %v875, 0.0
        %878 = vadd.xlane.f32.xlu0 %v877
        %v879 = vpop.xlane.xlu0 %878
        %v880 = vsel %vm306, %v876, 0.0
        %881 = vadd.xlane.f32.xlu0 %v880
        %v882 = vpop.xlane.xlu0 %881
        %v883 = vmul.f32 %v879, %v870
        %v884 = vmul.f32 %v882, %v870
        %v885 = vadd.f32 %v883, 1e-05
        %v886 = vadd.f32 %v884, 1e-05
        %v887 = vrsqrt.pop %v885
        %v888 = vmul.f32 %v887, %v885
        %v889 = vmul.f32 %v888, %v887
        %v890 = vmul.f32 0.5, %v889
        %v891 = vsub.f32 1.5, %v890
        %v892 = vmul.f32 %v887, %v891
        %vm893 = vweird.f32 %v885
        %vm894 = vweird.f32 %v887
        %vm895 = vmor %vm893, %vm894
        %v896 = vsel %vm895, %v887, %v892
        %v897 = vrsqrt.pop %v886
        %v898 = vmul.f32 %v897, %v886
        %v899 = vmul.f32 %v898, %v897
        %v900 = vmul.f32 0.5, %v899
        %v901 = vsub.f32 1.5, %v900
        %v902 = vmul.f32 %v897, %v901
        %vm903 = vweird.f32 %v886
        %vm904 = vweird.f32 %v897
        %vm905 = vmor %vm903, %vm904
        %v906 = vsel %vm905, %v897, %v902
        %v907 = vmul.f32 %v873, %v896
        %v908 = vmul.f32 %v874, %v906
        %v910 = vperm.slane %v856, 0
        %v912 = vmul.f32 %v907, %v910
        %v913 = vmul.f32 %v908, %v910
        %v915 = vperm.slane %v857, 0
        %v917 = vadd.f32 %v912, %v915
        %v918 = vadd.f32 %v913, %v915
        %919 = vst.msk [vmem:[%s295] sm:$0xff] %vm306, %v917
        %920 = vst.msk [vmem:[%s295 + $0x8] sm:$0xff] %vm306, %v918
        %p921 = scmp.lt.s32.totalorder %s19, 1
        %s922 = scalar_select %p921, %s19, 1
        %s923 = smul.addr %s922, 2
        %s924 = smul.addr %s923, 8
        %s925 = scalar_lea.vmem %s7, %s924
        // Predicated region
        $region53: #{time_series_transformer.14} parent=47 // pred_check
          %p926 = pneg %p189
        $region54: #{time_series_transformer.14} parent=47 // pred_check_branch
          %928 = sbr.rel (%p926) target = $region56
        $region55: #{time_series_transformer.14} parent=47 // pred_region
          _
        $region56: #{time_series_transformer.14} parent=47 // pred_fallthru
          _
      $region48: #{time_series_transformer.14} parent=5 // pred_fallthru
        _
      %p929 = scmp.le.s32.totalorder 2, %s14
      // Predicated region
      $region57: #{time_series_transformer.14} parent=5 // pred_check
        %p930 = pneg %p929
      $region58: #{time_series_transformer.14} parent=5 // pred_check_branch
        %932 = sbr.rel (%p930) target = $region60
      $region59: #{time_series_transformer.14} parent=5 // pred_region
        %s933 = ssub.s32 %s14, 2
        // Predicated region
        $region61: #{time_series_transformer.14} parent=59 // pred_check
          %p934 = pneg %p195
        $region62: #{time_series_transformer.14} parent=59 // pred_check_branch
          %936 = sbr.rel (%p934) target = $region64
        $region63: #{time_series_transformer.14} parent=59 // pred_region
          %p937 = scmp.lt.s32.totalorder %s20, 1
          %s938 = scalar_select %p937, %s20, 1
          %s939 = smul.addr %s938, 2
          %s940 = smul.addr %s939, 8
          %s941 = scalar_lea.vmem %s7, %s940
        $region64: #{time_series_transformer.14} parent=59 // pred_fallthru
          _
      $region60: #{time_series_transformer.14} parent=5 // pred_fallthru
        _
    $region6: #{time_series_transformer.14} parent=1 // loop_footer
      %s18 = sadd.s32 1, %s14
    $region7: #{time_series_transformer.14} parent=1 // loop_footer_branch
      %13 = sbr.rel target = $region3
    $region8: #{time_series_transformer.14} parent=1 // loop_exit
      _
    %942 = vsyncpa [#allocation3], 1
    %s943 = scalar_lea.sflag [#allocation3], 1
    %944 = vsyncpa %s943, 1

// kernel: time_series_transformer.16
$region0: #{time_series_transformer.16}
  #allocation0 [shape = 'u32[]', space=smem, size = 0x4, offset = 0x4, fixed_abs, tag = 'smem constant byte address 0x4 - core index']
  #allocation1 [shape = 'u32[72,128]{1,0:T(1,128)}', space=vmem, size = 0x9000, scoped, tag = 'internal scratch']
  %s0 = inlined_call_operand.vmem [shape: f32[2,8,32], index: 0, kind: input, shape index: {}]
  %s1 = inlined_call_operand.vmem [shape: f32[32,96], index: 1, kind: input, shape index: {}]
  %s2 = inlined_call_operand.vmem [shape: f32[1,96], index: 2, kind: input, shape index: {}]
  %s3 = inlined_call_operand.vmem [shape: f32[32,32], index: 3, kind: input, shape index: {}]
  %s4 = inlined_call_operand.vmem [shape: f32[1,32], index: 4, kind: input, shape index: {}]
  %s5 = inlined_call_operand.hbm [shape: f32[1,32], index: 5, kind: input, shape index: {}]
  %s6 = inlined_call_operand.hbm [shape: f32[1,32], index: 6, kind: input, shape index: {}]
  %s7 = inlined_call_operand.vmem [shape: f32[2,8,32], index: 7, kind: output, shape index: {}]
  %s8 = sld [smem:[#allocation0]]
  $region69: #{time_series_transformer.16} parent=0
    _
  %s10 = ssub.s32 1, %s8
  %s11 = scalar_select 0, %s10, %s8
  $region1: #{time_series_transformer.16} parent=0
    #allocation2 [shape = 'u8[512]{0}', space=vmem, size = 0x400, scoped, tag = 'input window, operand 5, single buffered']
    #allocation3 [shape = 's32[2]{0}', space=sflag, size = 0x8, scoped, tag = 'scoped memory for time_series_transformer.16']
    #allocation4 [shape = 'u8[512]{0}', space=vmem, size = 0x400, scoped, tag = 'input window, operand 6, single buffered']
    #allocation5 [shape = 's32[1]{0}', space=sflag, size = 0x4, scoped, tag = 'scoped memory for time_series_transformer.16']
    %12 = vsyncpa [#allocation3], 0
    %13 = vsyncpa [#allocation5], 0
    loop: start=0, step=1, limit=4
    $region2: #{time_series_transformer.16} parent=1 // loop_pre_header
      _
    $region3: #{time_series_transformer.16} parent=1 // loop_header
      %s15 = sphi 0, %s19
      %p16 = scmp.ge.s32.totalorder %s15, 4
      %s25 = sphi 0, %s27
      %s28 = sphi 0, %s25
      %s29 = sphi 0, %s28
      %s45 = sphi 0, %s29
      %s49 = sphi 0, %s49
      %s51 = sphi 0, %s49
      %s52 = sphi 0, %s51
      %s66 = sphi 0, %s52
      %s70 = sphi 0, %s70
      %s72 = sphi 0, %s70
      %s73 = sphi 0, %s72
      %s87 = sphi 0, %s73
      %s91 = sphi 0, %s91
      %s93 = sphi 0, %s91
      %s94 = sphi 0, %s93
      %s108 = sphi 0, %s94
      %s112 = sphi 0, %s112
      %s114 = sphi 0, %s112
      %s115 = sphi 0, %s114
      %s129 = sphi 0, %s115
      %s133 = sphi 0, %s133
      %s135 = sphi 0, %s133
      %s136 = sphi 0, %s135
      %s150 = sphi 0, %s136
      %s154 = sphi 0, %s154
      %s156 = sphi 0, %s154
      %s157 = sphi 0, %s156
      %s171 = sphi 0, %s157
      %s177 = sphi 0, %s179
      %s180 = sphi 0, %s177
      %s181 = sphi 0, %s180
      %s197 = sphi 0, %s181
    $region4: #{time_series_transformer.16} parent=1 // loop_header_branch
      %18 = sbr.rel (%p16) target = $region8
    $region5: #{time_series_transformer.16} parent=1 // loop_body
      %s20 = ssub.s32 %s15, 1
      %s21 = ssub.s32 %s15, 2
      %s22 = sadd.s32 %s15, 1
      %s23 = ssub.s32 %s15, %s22
      %p24 = scmp.eq.s32.totalorder %s23, 0
      %s26 = sadd.s32 %s25, 1
      %s27 = scalar_select %p24, %s25, %s26
      %p30 = pneg %p24
      %p31 = scmp.eq.s32.totalorder %s15, 1
      %p32 = por %p30, %p31
      %p33 = scmp.ne.s32.totalorder %s25, %s28
      %p34 = scmp.eq.s32.totalorder %s15, 0
      %p35 = por %p33, %p34
      %p36 = scmp.ne.s32.totalorder %s25, %s28
      %p37 = scmp.eq.s32.totalorder %s20, 1
      %p38 = por %p36, %p37
      %p39 = scmp.ne.s32.totalorder %s28, %s29
      %p40 = scmp.eq.s32.totalorder %s20, 0
      %p41 = por %p39, %p40
      %p42 = scmp.ne.s32.totalorder %s28, %s29
      %p43 = scmp.eq.s32.totalorder %s21, 1
      %p44 = por %p42, %p43
      %p46 = scmp.ne.s32.totalorder %s29, %s45
      %p47 = scmp.eq.s32.totalorder %s21, 0
      %p48 = por %p46, %p47
      %s50 = sadd.s32 %s49, 1
      %p53 = scmp.eq.s32.totalorder %s15, 1
      %p54 = scmp.ne.s32.totalorder %s49, %s51
      %p55 = scmp.eq.s32.totalorder %s15, 0
      %p56 = por %p54, %p55
      %p57 = scmp.ne.s32.totalorder %s49, %s51
      %p58 = scmp.eq.s32.totalorder %s20, 1
      %p59 = por %p57, %p58
      %p60 = scmp.ne.s32.totalorder %s51, %s52
      %p61 = scmp.eq.s32.totalorder %s20, 0
      %p62 = por %p60, %p61
      %p63 = scmp.ne.s32.totalorder %s51, %s52
      %p64 = scmp.eq.s32.totalorder %s21, 1
      %p65 = por %p63, %p64
      %p67 = scmp.ne.s32.totalorder %s52, %s66
      %p68 = scmp.eq.s32.totalorder %s21, 0
      %p69 = por %p67, %p68
      %s71 = sadd.s32 %s70, 1
      %p74 = scmp.eq.s32.totalorder %s15, 1
      %p75 = scmp.ne.s32.totalorder %s70, %s72
      %p76 = scmp.eq.s32.totalorder %s15, 0
      %p77 = por %p75, %p76
      %p78 = scmp.ne.s32.totalorder %s70, %s72
      %p79 = scmp.eq.s32.totalorder %s20, 1
      %p80 = por %p78, %p79
      %p81 = scmp.ne.s32.totalorder %s72, %s73
      %p82 = scmp.eq.s32.totalorder %s20, 0
      %p83 = por %p81, %p82
      %p84 = scmp.ne.s32.totalorder %s72, %s73
      %p85 = scmp.eq.s32.totalorder %s21, 1
      %p86 = por %p84, %p85
      %p88 = scmp.ne.s32.totalorder %s73, %s87
      %p89 = scmp.eq.s32.totalorder %s21, 0
      %p90 = por %p88, %p89
      %s92 = sadd.s32 %s91, 1
      %p95 = scmp.eq.s32.totalorder %s15, 1
      %p96 = scmp.ne.s32.totalorder %s91, %s93
      %p97 = scmp.eq.s32.totalorder %s15, 0
      %p98 = por %p96, %p97
      %p99 = scmp.ne.s32.totalorder %s91, %s93
      %p100 = scmp.eq.s32.totalorder %s20, 1
      %p101 = por %p99, %p100
      %p102 = scmp.ne.s32.totalorder %s93, %s94
      %p103 = scmp.eq.s32.totalorder %s20, 0
      %p104 = por %p102, %p103
      %p105 = scmp.ne.s32.totalorder %s93, %s94
      %p106 = scmp.eq.s32.totalorder %s21, 1
      %p107 = por %p105, %p106
      %p109 = scmp.ne.s32.totalorder %s94, %s108
      %p110 = scmp.eq.s32.totalorder %s21, 0
      %p111 = por %p109, %p110
      %s113 = sadd.s32 %s112, 1
      %p116 = scmp.eq.s32.totalorder %s15, 1
      %p117 = scmp.ne.s32.totalorder %s112, %s114
      %p118 = scmp.eq.s32.totalorder %s15, 0
      %p119 = por %p117, %p118
      %p120 = scmp.ne.s32.totalorder %s112, %s114
      %p121 = scmp.eq.s32.totalorder %s20, 1
      %p122 = por %p120, %p121
      %p123 = scmp.ne.s32.totalorder %s114, %s115
      %p124 = scmp.eq.s32.totalorder %s20, 0
      %p125 = por %p123, %p124
      %p126 = scmp.ne.s32.totalorder %s114, %s115
      %p127 = scmp.eq.s32.totalorder %s21, 1
      %p128 = por %p126, %p127
      %p130 = scmp.ne.s32.totalorder %s115, %s129
      %p131 = scmp.eq.s32.totalorder %s21, 0
      %p132 = por %p130, %p131
      %s134 = sadd.s32 %s133, 1
      %p137 = scmp.eq.s32.totalorder %s15, 1
      %p138 = scmp.ne.s32.totalorder %s133, %s135
      %p139 = scmp.eq.s32.totalorder %s15, 0
      %p140 = por %p138, %p139
      %p141 = scmp.ne.s32.totalorder %s133, %s135
      %p142 = scmp.eq.s32.totalorder %s20, 1
      %p143 = por %p141, %p142
      %p144 = scmp.ne.s32.totalorder %s135, %s136
      %p145 = scmp.eq.s32.totalorder %s20, 0
      %p146 = por %p144, %p145
      %p147 = scmp.ne.s32.totalorder %s135, %s136
      %p148 = scmp.eq.s32.totalorder %s21, 1
      %p149 = por %p147, %p148
      %p151 = scmp.ne.s32.totalorder %s136, %s150
      %p152 = scmp.eq.s32.totalorder %s21, 0
      %p153 = por %p151, %p152
      %s155 = sadd.s32 %s154, 1
      %p158 = scmp.eq.s32.totalorder %s15, 1
      %p159 = scmp.ne.s32.totalorder %s154, %s156
      %p160 = scmp.eq.s32.totalorder %s15, 0
      %p161 = por %p159, %p160
      %p162 = scmp.ne.s32.totalorder %s154, %s156
      %p163 = scmp.eq.s32.totalorder %s20, 1
      %p164 = por %p162, %p163
      %p165 = scmp.ne.s32.totalorder %s156, %s157
      %p166 = scmp.eq.s32.totalorder %s20, 0
      %p167 = por %p165, %p166
      %p168 = scmp.ne.s32.totalorder %s156, %s157
      %p169 = scmp.eq.s32.totalorder %s21, 1
      %p170 = por %p168, %p169
      %p172 = scmp.ne.s32.totalorder %s157, %s171
      %p173 = scmp.eq.s32.totalorder %s21, 0
      %p174 = por %p172, %p173
      %s175 = ssub.s32 %s15, %s22
      %p176 = scmp.eq.s32.totalorder %s175, 0
      %s178 = sadd.s32 %s177, 1
      %s179 = scalar_select %p176, %s177, %s178
      %p182 = pneg %p176
      %p183 = scmp.eq.s32.totalorder %s15, 1
      %p184 = por %p182, %p183
      %p185 = scmp.ne.s32.totalorder %s177, %s180
      %p186 = scmp.eq.s32.totalorder %s15, 0
      %p187 = por %p185, %p186
      %p188 = scmp.ne.s32.totalorder %s177, %s180
      %p189 = scmp.eq.s32.totalorder %s20, 1
      %p190 = por %p188, %p189
      %p191 = scmp.ne.s32.totalorder %s180, %s181
      %p192 = scmp.eq.s32.totalorder %s20, 0
      %p193 = por %p191, %p192
      %p194 = scmp.ne.s32.totalorder %s180, %s181
      %p195 = scmp.eq.s32.totalorder %s21, 1
      %p196 = por %p194, %p195
      %p198 = scmp.ne.s32.totalorder %s181, %s197
      %p199 = scmp.eq.s32.totalorder %s21, 0
      %p200 = por %p198, %p199
      %p201 = scmp.le.s32.totalorder 1, %s15
      %p202 = scmp.lt.s32.totalorder %s15, 3
      %p203 = pnand %p201, %p202
      %p204 = pneg %p203
      // Predicated region
      $region9: #{time_series_transformer.16} parent=5 // pred_check
        _
      $region10: #{time_series_transformer.16} parent=5 // pred_check_branch
        %206 = sbr.rel (%p203) target = $region12
      $region11: #{time_series_transformer.16} parent=5 // pred_region
        %s207 = ssub.s32 %s15, 1
        // Predicated region
        $region13: #{time_series_transformer.16} parent=11 // pred_check
          %p208 = pneg %p62
        $region14: #{time_series_transformer.16} parent=11 // pred_check_branch
          %210 = sbr.rel (%p208) target = $region16
        $region15: #{time_series_transformer.16} parent=11 // pred_region
          _
        $region16: #{time_series_transformer.16} parent=11 // pred_fallthru
          _
        // Predicated region
        $region17: #{time_series_transformer.16} parent=11 // pred_check
          %p211 = pneg %p83
        $region18: #{time_series_transformer.16} parent=11 // pred_check_branch
          %213 = sbr.rel (%p211) target = $region20
        $region19: #{time_series_transformer.16} parent=11 // pred_region
          _
        $region20: #{time_series_transformer.16} parent=11 // pred_fallthru
          _
        // Predicated region
        $region21: #{time_series_transformer.16} parent=11 // pred_check
          %p214 = pneg %p104
        $region22: #{time_series_transformer.16} parent=11 // pred_check_branch
          %216 = sbr.rel (%p214) target = $region24
        $region23: #{time_series_transformer.16} parent=11 // pred_region
          _
        $region24: #{time_series_transformer.16} parent=11 // pred_fallthru
          _
        // Predicated region
        $region25: #{time_series_transformer.16} parent=11 // pred_check
          %p217 = pneg %p125
        $region26: #{time_series_transformer.16} parent=11 // pred_check_branch
          %219 = sbr.rel (%p217) target = $region28
        $region27: #{time_series_transformer.16} parent=11 // pred_region
          _
        $region28: #{time_series_transformer.16} parent=11 // pred_fallthru
          _
        // Predicated region
        $region29: #{time_series_transformer.16} parent=11 // pred_check
          %p220 = pneg %p146
        $region30: #{time_series_transformer.16} parent=11 // pred_check_branch
          %222 = sbr.rel (%p220) target = $region32
        $region31: #{time_series_transformer.16} parent=11 // pred_region
          %224 = vsyncadd [#allocation3], 0
          %s226 = sshll.u32 %s5, 4
          %s227 = int_to_ptr.hbm [resolvable:$true] %s226
          %s228 = sshll.u32 [#allocation2], 4
          %s229 = int_to_ptr.vmem [resolvable:$true] %s228
          %231 = dma.hbm_to_vmem [thread:$0]  %s227, 16, %s229, [#allocation3]
        $region32: #{time_series_transformer.16} parent=11 // pred_fallthru
          _
        // Predicated region
        $region33: #{time_series_transformer.16} parent=11 // pred_check
          %p232 = pneg %p167
        $region34: #{time_series_transformer.16} parent=11 // pred_check_branch
          %234 = sbr.rel (%p232) target = $region36
        $region35: #{time_series_transformer.16} parent=11 // pred_region
          %236 = vsyncadd [#allocation5], 0
          %s238 = sshll.u32 %s6, 4
          %s239 = int_to_ptr.hbm [resolvable:$true] %s238
          %s240 = sshll.u32 [#allocation4], 4
          %s241 = int_to_ptr.vmem [resolvable:$true] %s240
          %243 = dma.hbm_to_vmem [thread:$0]  %s239, 16, %s241, [#allocation5]
        $region36: #{time_series_transformer.16} parent=11 // pred_fallthru
          _
      $region12: #{time_series_transformer.16} parent=5 // pred_fallthru
        _
      %p244 = scmp.lt.s32.totalorder %s15, 2
      // Predicated region
      $region37: #{time_series_transformer.16} parent=5 // pred_check
        %p245 = pneg %p244
      $region38: #{time_series_transformer.16} parent=5 // pred_check_branch
        %247 = sbr.rel (%p245) target = $region40
      $region39: #{time_series_transformer.16} parent=5 // pred_region
        // Predicated region
        $region41: #{time_series_transformer.16} parent=39 // pred_check
          %p248 = pneg %p35
        $region42: #{time_series_transformer.16} parent=39 // pred_check_branch
          %250 = sbr.rel (%p248) target = $region44
        $region43: #{time_series_transformer.16} parent=39 // pred_region
          %p251 = scmp.lt.s32.totalorder %s15, 1
          %s252 = scalar_select %p251, %s15, 1
          %s253 = smul.addr %s252, 8
          %s254 = scalar_lea.vmem %s0, %s253
        $region44: #{time_series_transformer.16} parent=39 // pred_fallthru
          _
      $region40: #{time_series_transformer.16} parent=5 // pred_fallthru
        _
      %p255 = scmp.le.s32.totalorder 1, %s15
      %p256 = scmp.lt.s32.totalorder %s15, 3
      %p257 = pnand %p255, %p256
      %p258 = pneg %p257
      // Predicated region
      $region45: #{time_series_transformer.16} parent=5 // pred_check
        _
      $region46: #{time_series_transformer.16} parent=5 // pred_check_branch
        %260 = sbr.rel (%p257) target = $region48
      $region47: #{time_series_transformer.16} parent=5 // pred_region
        %s261 = ssub.s32 %s15, 1
        // Predicated region
        $region49: #{time_series_transformer.16} parent=47 // pred_check
          %p262 = pneg %p146
        $region50: #{time_series_transformer.16} parent=47 // pred_check_branch
          %264 = sbr.rel (%p262) target = $region52
        $region51: #{time_series_transformer.16} parent=47 // pred_region
          %266 = dma.done [#allocation3], 16
        $region52: #{time_series_transformer.16} parent=47 // pred_fallthru
          _
        // Predicated region
        $region53: #{time_series_transformer.16} parent=47 // pred_check
          %p267 = pneg %p167
        $region54: #{time_series_transformer.16} parent=47 // pred_check_branch
          %269 = sbr.rel (%p267) target = $region56
        $region55: #{time_series_transformer.16} parent=47 // pred_region
          %271 = dma.done [#allocation5], 16
        $region56: #{time_series_transformer.16} parent=47 // pred_fallthru
          _
        %p272 = scmp.lt.s32.totalorder %s20, 1
        %s273 = scalar_select %p272, %s20, 1
        %s274 = smul.addr %s273, 8
        %s275 = scalar_lea.vmem %s0, %s274
        %p276 = pneg %p41
        %p277 = pneg %p38
        %p278 = pneg %p62
        %p279 = pneg %p59
        %p280 = pneg %p83
        %p281 = pneg %p80
        %p282 = pneg %p104
        %p283 = pneg %p101
        %p284 = pneg %p125
        %p285 = pneg %p122
        %p286 = pneg %p146
        %p287 = pneg %p143
        %p288 = pneg %p167
        %p289 = pneg %p164
        %p290 = pneg %p193
        %p291 = pneg %p190
        %p292 = scmp.lt.s32.totalorder %s20, 1
        %s293 = scalar_select %p292, %s20, 1
        %s294 = smul.addr %s293, 8
        %s295 = scalar_lea.vmem %s7, %s294
        %p296 = scmp.lt.s32.totalorder %s20, 1
        %s297 = scalar_select %p296, %s20, 1
        %s298 = smul.addr %s297, 8
        %s299 = scalar_lea.vmem %s0, %s298
        %p300 = scmp.lt.s32.totalorder %s20, 1
        %s301 = scalar_select %p300, %s20, 1
        %s302 = smul.addr %s301, 8
        %s303 = scalar_lea.vmem %s7, %s302
        %v304 = vld [vmem:[%s299] sm:$0xff]
        %v305 = vld [vmem:[%s1] sm:$0xff]
        %v306 = vld [vmem:[%s1 + $0x8] sm:$0xff]
        %v307 = vld [vmem:[%s1 + $0x10] sm:$0xff]
        %v308 = vld [vmem:[%s1 + $0x18] sm:$0xff]
        %v309 = vld [vmem:[%s2] sm:$0x1]
        %v311 = vperm.slane %v309, 0
        %vm313 = vcmask 261120
        %v315 = vsel %vm313, %v304, 0
        %317 = vmatpush.msra.mxu0 0.0
        %318 = vmatpush.msra.mxu0 0.0
        %319 = vmatpush.msra.mxu0 0.0
        %320 = vmatpush.msra.mxu0 0.0
        %321 = vmatpush.msra.mxu0 0.0
        %322 = vmatpush.msra.mxu0 0.0
        %323 = vmatpush.msra.mxu0 0.0
        %324 = vmatpush.msra.mxu0 0.0
        %325 = vmatpush.msra.mxu0 0.0
        %326 = vmatpush.msra.mxu0 0.0
        %327 = vmatpush.msra.mxu0 0.0
        %328 = vmatpush.msra.mxu0 0.0
        %329 = vmatpush.msra.mxu0 %v308
        %330 = vmatpush.msra.mxu0 %v307
        %331 = vmatpush.msra.mxu0 %v306
        %332 = vmatpush.msra.mxu0 %v305
        %333 = vmatmul.f32.gmra.mxu0 %v315
        %v334 = vpop.f32.mrf.mxu0
        %v335 = vadd.f32 %v311, %v334
        %336 = vdwg.mxu0
        %v337 = vmul.f32 %v335, 0.35355338
        %v338 = vld [vmem:[%s3] sm:$0xff]
        %v339 = vld [vmem:[%s3 + $0x8] sm:$0xff]
        %v340 = vld [vmem:[%s3 + $0x10] sm:$0xff]
        %v341 = vld [vmem:[%s3 + $0x18] sm:$0xff]
        %343 = vrot.lane.b32.xlu0 %v335, 96
        %v344 = vpop.permute.xlu0 %343
        %vm345 = vcmask 64512
        %v347 = vsel %vm345, %v337, 0
        %v349 = vsel %vm345, %v344, 0
        %351 = vmatpush.xpose.msra.mxu0 0.0
        %352 = vmatpush.xpose.msra.mxu0 0.0
        %353 = vmatpush.xpose.msra.mxu0 0.0
        %354 = vmatpush.xpose.msra.mxu0 0.0
        %355 = vmatpush.xpose.msra.mxu0 0.0
        %356 = vmatpush.xpose.msra.mxu0 0.0
        %357 = vmatpush.xpose.msra.mxu0 0.0
        %358 = vmatpush.xpose.msra.mxu0 0.0
        %359 = vmatpush.xpose.msra.mxu0 0.0
        %360 = vmatpush.xpose.msra.mxu0 0.0
        %361 = vmatpush.xpose.msra.mxu0 0.0
        %362 = vmatpush.xpose.msra.mxu0 0.0
        %363 = vmatpush.xpose.msra.mxu0 0.0
        %364 = vmatpush.xpose.msra.mxu0 0.0
        %365 = vmatpush.xpose.msra.mxu0 0.0
        %366 = vmatpush.xpose.msra.mxu0 %v349
        %367 = vmatmul.f32.gmra.mxu0 %v347
        %v368 = vpop.f32.mrf.mxu0
        %v369 = vadd.f32 0.0, %v368
        %370 = vdwg.mxu0
        %v371 = vsel %vm345, %v369, -inf
        %372 = vmax.xlane.f32.xlu0 %v371
        %v373 = vpop.xlane.xlu0 %372
        %v374 = vsub.f32 %v369, %v373
        %v375 = vmul.f32 %v374, 1.442695
        %v376 = vpow.pop %v375
        %v377 = vsel %vm345, %v376, 0.0
        %378 = vadd.xlane.f32.xlu0 %v377
        %v379 = vpop.xlane.xlu0 %378
        %v380 = vrcp.pop %v379
        %v381 = vmul.f32 %v376, %v380
        %382 = vrot.lane.b32.xlu0 %v335, 64
        %v383 = vpop.permute.xlu0 %382
        %v386 = vsel %vm345, %v381, 0
        %388 = vmatpush.msra.mxu0 0.0
        %389 = vmatpush.msra.mxu0 0.0
        %390 = vmatpush.msra.mxu0 0.0
        %391 = vmatpush.msra.mxu0 0.0
        %392 = vmatpush.msra.mxu0 0.0
        %393 = vmatpush.msra.mxu0 0.0
        %394 = vmatpush.msra.mxu0 0.0
        %395 = vmatpush.msra.mxu0 0.0
        %396 = vmatpush.msra.mxu0 0.0
        %397 = vmatpush.msra.mxu0 0.0
        %398 = vmatpush.msra.mxu0 0.0
        %399 = vmatpush.msra.mxu0 0.0
        %400 = vmatpush.msra.mxu0 0.0
        %401 = vmatpush.msra.mxu0 0.0
        %402 = vmatpush.msra.mxu0 0.0
        %403 = vmatpush.msra.mxu0 %v383
        %404 = vmatmul.f32.gmra.mxu0 %v386
        %v405 = vpop.f32.mrf.mxu0
        %v406 = vadd.f32 0.0, %v405
        %407 = vdwg.mxu0
        %408 = vrot.lane.b32.xlu0 %v337, 120
        %v409 = vpop.permute.xlu0 %408
        %410 = vrot.lane.b32.xlu0 %v335, 88
        %v411 = vpop.permute.xlu0 %410
        %v412 = vsel %vm345, %v409, 0
        %v414 = vsel %vm345, %v411, 0
        %416 = vmatpush.xpose.msra.mxu0 0.0
        %417 = vmatpush.xpose.msra.mxu0 0.0
        %418 = vmatpush.xpose.msra.mxu0 0.0
        %419 = vmatpush.xpose.msra.mxu0 0.0
        %420 = vmatpush.xpose.msra.mxu0 0.0
        %421 = vmatpush.xpose.msra.mxu0 0.0
        %422 = vmatpush.xpose.msra.mxu0 0.0
        %423 = vmatpush.xpose.msra.mxu0 0.0
        %424 = vmatpush.xpose.msra.mxu0 0.0
        %425 = vmatpush.xpose.msra.mxu0 0.0
        %426 = vmatpush.xpose.msra.mxu0 0.0
        %427 = vmatpush.xpose.msra.mxu0 0.0
        %428 = vmatpush.xpose.msra.mxu0 0.0
        %429 = vmatpush.xpose.msra.mxu0 0.0
        %430 = vmatpush.xpose.msra.mxu0 0.0
        %431 = vmatpush.xpose.msra.mxu0 %v414
        %432 = vmatmul.f32.gmra.mxu0 %v412
        %v433 = vpop.f32.mrf.mxu0
        %v434 = vadd.f32 0.0, %v433
        %435 = vdwg.mxu0
        %v436 = vsel %vm345, %v434, -inf
        %437 = vmax.xlane.f32.xlu0 %v436
        %v438 = vpop.xlane.xlu0 %437
        %v439 = vsub.f32 %v434, %v438
        %v440 = vmul.f32 %v439, 1.442695
        %v441 = vpow.pop %v440
        %v442 = vsel %vm345, %v441, 0.0
        %443 = vadd.xlane.f32.xlu0 %v442
        %v444 = vpop.xlane.xlu0 %443
        %v445 = vrcp.pop %v444
        %v446 = vmul.f32 %v441, %v445
        %447 = vrot.lane.b32.xlu0 %v335, 56
        %v448 = vpop.permute.xlu0 %447
        %v451 = vsel %vm345, %v446, 0
        %453 = vmatpush.msra.mxu0 0.0
        %454 = vmatpush.msra.mxu0 0.0
        %455 = vmatpush.msra.mxu0 0.0
        %456 = vmatpush.msra.mxu0 0.0
        %457 = vmatpush.msra.mxu0 0.0
        %458 = vmatpush.msra.mxu0 0.0
        %459 = vmatpush.msra.mxu0 0.0
        %460 = vmatpush.msra.mxu0 0.0
        %461 = vmatpush.msra.mxu0 0.0
        %462 = vmatpush.msra.mxu0 0.0
        %463 = vmatpush.msra.mxu0 0.0
        %464 = vmatpush.msra.mxu0 0.0
        %465 = vmatpush.msra.mxu0 0.0
        %466 = vmatpush.msra.mxu0 0.0
        %467 = vmatpush.msra.mxu0 0.0
        %468 = vmatpush.msra.mxu0 %v448
        %469 = vmatmul.f32.gmra.mxu0 %v451
        %v470 = vpop.f32.mrf.mxu0
        %v471 = vadd.f32 0.0, %v470
        %472 = vdwg.mxu0
        %v474 = vsel %vm345, %v471, 0
        %476 = vmatpush.msra.mxu0 0.0
        %477 = vmatpush.msra.mxu0 0.0
        %478 = vmatpush.msra.mxu0 0.0
        %479 = vmatpush.msra.mxu0 0.0
        %480 = vmatpush.msra.mxu0 0.0
        %481 = vmatpush.msra.mxu0 0.0
        %482 = vmatpush.msra.mxu0 0.0
        %483 = vmatpush.msra.mxu0 0.0
        %484 = vmatpush.msra.mxu0 0.0
        %485 = vmatpush.msra.mxu0 0.0
        %486 = vmatpush.msra.mxu0 0.0
        %487 = vmatpush.msra.mxu0 0.0
        %488 = vmatpush.msra.mxu0 0.0
        %489 = vmatpush.msra.mxu0 0.0
        %490 = vmatpush.msra.mxu0 0.0
        %491 = vmatpush.msra.mxu0 %v339
        %492 = vmatmul.f32.gmra.mxu0 %v474
        %v493 = vpop.f32.mrf.mxu0
        %v494 = vadd.f32 0.0, %v493
        %495 = vdwg.mxu0
        %v497 = vsel %vm345, %v406, 0
        %499 = vmatpush.msra.mxu0 0.0
        %500 = vmatpush.msra.mxu0 0.0
        %501 = vmatpush.msra.mxu0 0.0
        %502 = vmatpush.msra.mxu0 0.0
        %503 = vmatpush.msra.mxu0 0.0
        %504 = vmatpush.msra.mxu0 0.0
        %505 = vmatpush.msra.mxu0 0.0
        %506 = vmatpush.msra.mxu0 0.0
        %507 = vmatpush.msra.mxu0 0.0
        %508 = vmatpush.msra.mxu0 0.0
        %509 = vmatpush.msra.mxu0 0.0
        %510 = vmatpush.msra.mxu0 0.0
        %511 = vmatpush.msra.mxu0 0.0
        %512 = vmatpush.msra.mxu0 0.0
        %513 = vmatpush.msra.mxu0 0.0
        %514 = vmatpush.msra.mxu0 %v338
        %515 = vmatmul.f32.gmra.mxu0 %v497
        %v516 = vpop.f32.mrf.mxu0
        %v517 = vadd.f32 %v494, %v516
        %518 = vdwg.mxu0
        %519 = vrot.lane.b32.xlu0 %v337, 112
        %v520 = vpop.permute.xlu0 %519
        %521 = vrot.lane.b32.xlu0 %v335, 80
        %v522 = vpop.permute.xlu0 %521
        %v523 = vsel %vm345, %v520, 0
        %v525 = vsel %vm345, %v522, 0
        %527 = vmatpush.xpose.msra.mxu0 0.0
        %528 = vmatpush.xpose.msra.mxu0 0.0
        %529 = vmatpush.xpose.msra.mxu0 0.0
        %530 = vmatpush.xpose.msra.mxu0 0.0
        %531 = vmatpush.xpose.msra.mxu0 0.0
        %532 = vmatpush.xpose.msra.mxu0 0.0
        %533 = vmatpush.xpose.msra.mxu0 0.0
        %534 = vmatpush.xpose.msra.mxu0 0.0
        %535 = vmatpush.xpose.msra.mxu0 0.0
        %536 = vmatpush.xpose.msra.mxu0 0.0
        %537 = vmatpush.xpose.msra.mxu0 0.0
        %538 = vmatpush.xpose.msra.mxu0 0.0
        %539 = vmatpush.xpose.msra.mxu0 0.0
        %540 = vmatpush.xpose.msra.mxu0 0.0
        %541 = vmatpush.xpose.msra.mxu0 0.0
        %542 = vmatpush.xpose.msra.mxu0 %v525
        %543 = vmatmul.f32.gmra.mxu0 %v523
        %v544 = vpop.f32.mrf.mxu0
        %v545 = vadd.f32 0.0, %v544
        %546 = vdwg.mxu0
        %v547 = vsel %vm345, %v545, -inf
        %548 = vmax.xlane.f32.xlu0 %v547
        %v549 = vpop.xlane.xlu0 %548
        %v550 = vsub.f32 %v545, %v549
        %v551 = vmul.f32 %v550, 1.442695
        %v552 = vpow.pop %v551
        %v553 = vsel %vm345, %v552, 0.0
        %554 = vadd.xlane.f32.xlu0 %v553
        %v555 = vpop.xlane.xlu0 %554
        %v556 = vrcp.pop %v555
        %v557 = vmul.f32 %v552, %v556
        %558 = vrot.lane.b32.xlu0 %v335, 48
        %v559 = vpop.permute.xlu0 %558
        %v562 = vsel %vm345, %v557, 0
        %564 = vmatpush.msra.mxu0 0.0
        %565 = vmatpush.msra.mxu0 0.0
        %566 = vmatpush.msra.mxu0 0.0
        %567 = vmatpush.msra.mxu0 0.0
        %568 = vmatpush.msra.mxu0 0.0
        %569 = vmatpush.msra.mxu0 0.0
        %570 = vmatpush.msra.mxu0 0.0
        %571 = vmatpush.msra.mxu0 0.0
        %572 = vmatpush.msra.mxu0 0.0
        %573 = vmatpush.msra.mxu0 0.0
        %574 = vmatpush.msra.mxu0 0.0
        %575 = vmatpush.msra.mxu0 0.0
        %576 = vmatpush.msra.mxu0 0.0
        %577 = vmatpush.msra.mxu0 0.0
        %578 = vmatpush.msra.mxu0 0.0
        %579 = vmatpush.msra.mxu0 %v559
        %580 = vmatmul.f32.gmra.mxu0 %v562
        %v581 = vpop.f32.mrf.mxu0
        %v582 = vadd.f32 0.0, %v581
        %583 = vdwg.mxu0
        %v585 = vsel %vm345, %v582, 0
        %587 = vmatpush.msra.mxu0 0.0
        %588 = vmatpush.msra.mxu0 0.0
        %589 = vmatpush.msra.mxu0 0.0
        %590 = vmatpush.msra.mxu0 0.0
        %591 = vmatpush.msra.mxu0 0.0
        %592 = vmatpush.msra.mxu0 0.0
        %593 = vmatpush.msra.mxu0 0.0
        %594 = vmatpush.msra.mxu0 0.0
        %595 = vmatpush.msra.mxu0 0.0
        %596 = vmatpush.msra.mxu0 0.0
        %597 = vmatpush.msra.mxu0 0.0
        %598 = vmatpush.msra.mxu0 0.0
        %599 = vmatpush.msra.mxu0 0.0
        %600 = vmatpush.msra.mxu0 0.0
        %601 = vmatpush.msra.mxu0 0.0
        %602 = vmatpush.msra.mxu0 %v340
        %603 = vmatmul.f32.gmra.mxu0 %v585
        %v604 = vpop.f32.mrf.mxu0
        %v605 = vadd.f32 0.0, %v604
        %606 = vdwg.mxu0
        %v607 = vadd.f32 %v517, %v605
        %608 = vrot.lane.b32.xlu0 %v337, 104
        %v609 = vpop.permute.xlu0 %608
        %610 = vrot.lane.b32.xlu0 %v335, 72
        %v611 = vpop.permute.xlu0 %610
        %v612 = vsel %vm345, %v609, 0
        %v614 = vsel %vm345, %v611, 0
        %616 = vmatpush.xpose.msra.mxu0 0.0
        %617 = vmatpush.xpose.msra.mxu0 0.0
        %618 = vmatpush.xpose.msra.mxu0 0.0
        %619 = vmatpush.xpose.msra.mxu0 0.0
        %620 = vmatpush.xpose.msra.mxu0 0.0
        %621 = vmatpush.xpose.msra.mxu0 0.0
        %622 = vmatpush.xpose.msra.mxu0 0.0
        %623 = vmatpush.xpose.msra.mxu0 0.0
        %624 = vmatpush.xpose.msra.mxu0 0.0
        %625 = vmatpush.xpose.msra.mxu0 0.0
        %626 = vmatpush.xpose.msra.mxu0 0.0
        %627 = vmatpush.xpose.msra.mxu0 0.0
        %628 = vmatpush.xpose.msra.mxu0 0.0
        %629 = vmatpush.xpose.msra.mxu0 0.0
        %630 = vmatpush.xpose.msra.mxu0 0.0
        %631 = vmatpush.xpose.msra.mxu0 %v614
        %632 = vmatmul.f32.gmra.mxu0 %v612
        %v633 = vpop.f32.mrf.mxu0
        %v634 = vadd.f32 0.0, %v633
        %635 = vdwg.mxu0
        %v636 = vsel %vm345, %v634, -inf
        %637 = vmax.xlane.f32.xlu0 %v636
        %v638 = vpop.xlane.xlu0 %637
        %v639 = vsub.f32 %v634, %v638
        %v640 = vmul.f32 %v639, 1.442695
        %v641 = vpow.pop %v640
        %v642 = vsel %vm345, %v641, 0.0
        %643 = vadd.xlane.f32.xlu0 %v642
        %v644 = vpop.xlane.xlu0 %643
        %v645 = vrcp.pop %v644
        %v646 = vmul.f32 %v641, %v645
        %647 = vrot.lane.b32.xlu0 %v335, 40
        %v648 = vpop.permute.xlu0 %647
        %v651 = vsel %vm345, %v646, 0
        %653 = vmatpush.msra.mxu0 0.0
        %654 = vmatpush.msra.mxu0 0.0
        %655 = vmatpush.msra.mxu0 0.0
        %656 = vmatpush.msra.mxu0 0.0
        %657 = vmatpush.msra.mxu0 0.0
        %658 = vmatpush.msra.mxu0 0.0
        %659 = vmatpush.msra.mxu0 0.0
        %660 = vmatpush.msra.mxu0 0.0
        %661 = vmatpush.msra.mxu0 0.0
        %662 = vmatpush.msra.mxu0 0.0
        %663 = vmatpush.msra.mxu0 0.0
        %664 = vmatpush.msra.mxu0 0.0
        %665 = vmatpush.msra.mxu0 0.0
        %666 = vmatpush.msra.mxu0 0.0
        %667 = vmatpush.msra.mxu0 0.0
        %668 = vmatpush.msra.mxu0 %v648
        %669 = vmatmul.f32.gmra.mxu0 %v651
        %v670 = vpop.f32.mrf.mxu0
        %v671 = vadd.f32 0.0, %v670
        %672 = vdwg.mxu0
        %v674 = vsel %vm345, %v671, 0
        %676 = vmatpush.msra.mxu0 0.0
        %677 = vmatpush.msra.mxu0 0.0
        %678 = vmatpush.msra.mxu0 0.0
        %679 = vmatpush.msra.mxu0 0.0
        %680 = vmatpush.msra.mxu0 0.0
        %681 = vmatpush.msra.mxu0 0.0
        %682 = vmatpush.msra.mxu0 0.0
        %683 = vmatpush.msra.mxu0 0.0
        %684 = vmatpush.msra.mxu0 0.0
        %685 = vmatpush.msra.mxu0 0.0
        %686 = vmatpush.msra.mxu0 0.0
        %687 = vmatpush.msra.mxu0 0.0
        %688 = vmatpush.msra.mxu0 0.0
        %689 = vmatpush.msra.mxu0 0.0
        %690 = vmatpush.msra.mxu0 0.0
        %691 = vmatpush.msra.mxu0 %v341
        %692 = vmatmul.f32.gmra.mxu0 %v674
        %v693 = vpop.f32.mrf.mxu0
        %v694 = vadd.f32 0.0, %v693
        %695 = vdwg.mxu0
        %v696 = vadd.f32 %v607, %v694
        %v697 = vld [vmem:[%s4] sm:$0x1]
        %v699 = vperm.slane %v697, 0
        %v701 = vadd.f32 %v696, %v699
        %v702 = vadd.f32 %v304, %v701
        %v703 = vld [vmem:[#allocation2] sm:$0x1]
        %v704 = vld [vmem:[#allocation4] sm:$0x1]
        %v705 = vsel %vm313, %v702, 0.0
        %706 = vadd.xlane.f32.xlu0 %v705
        %v707 = vpop.xlane.xlu0 %706
        %v708 = vrcp.pop 32.0
        %v709 = vmul.f32 32.0, %v708
        %v710 = vsub.f32 1.0, %v709
        %v711 = vmul.f32 %v708, %v710
        %v712 = vadd.f32 %v708, %v711
        %vm713 = vweird.f32 %v708
        %v714 = vsel %vm713, %v708, %v712
        %v715 = vmul.f32 %v707, %v714
        %v716 = vsub.f32 %v702, %v715
        %v717 = vmul.f32 %v716, %v716
        %v718 = vsel %vm313, %v717, 0.0
        %719 = vadd.xlane.f32.xlu0 %v718
        %v720 = vpop.xlane.xlu0 %719
        %v721 = vmul.f32 %v720, %v714
        %v722 = vadd.f32 %v721, 1e-05
        %v723 = vrsqrt.pop %v722
        %v724 = vmul.f32 %v723, %v722
        %v725 = vmul.f32 %v724, %v723
        %v726 = vmul.f32 0.5, %v725
        %v727 = vsub.f32 1.5, %v726
        %v728 = vmul.f32 %v723, %v727
        %vm729 = vweird.f32 %v722
        %vm730 = vweird.f32 %v723
        %vm731 = vmor %vm729, %vm730
        %v732 = vsel %vm731, %v723, %v728
        %v733 = vmul.f32 %v716, %v732
        %v735 = vperm.slane %v703, 0
        %v737 = vmul.f32 %v733, %v735
        %v739 = vperm.slane %v704, 0
        %v741 = vadd.f32 %v737, %v739
        %742 = vst.msk [vmem:[%s303] sm:$0xff] %vm313, %v741
        %p743 = scmp.lt.s32.totalorder %s20, 1
        %s744 = scalar_select %p743, %s20, 1
        %s745 = smul.addr %s744, 8
        %s746 = scalar_lea.vmem %s7, %s745
        // Predicated region
        $region57: #{time_series_transformer.16} parent=47 // pred_check
          %p747 = pneg %p190
        $region58: #{time_series_transformer.16} parent=47 // pred_check_branch
          %749 = sbr.rel (%p747) target = $region60
        $region59: #{time_series_transformer.16} parent=47 // pred_region
          _
        $region60: #{time_series_transformer.16} parent=47 // pred_fallthru
          _
      $region48: #{time_series_transformer.16} parent=5 // pred_fallthru
        _
      %p750 = scmp.le.s32.totalorder 2, %s15
      // Predicated region
      $region61: #{time_series_transformer.16} parent=5 // pred_check
        %p751 = pneg %p750
      $region62: #{time_series_transformer.16} parent=5 // pred_check_branch
        %753 = sbr.rel (%p751) target = $region64
      $region63: #{time_series_transformer.16} parent=5 // pred_region
        %s754 = ssub.s32 %s15, 2
        // Predicated region
        $region65: #{time_series_transformer.16} parent=63 // pred_check
          %p755 = pneg %p196
        $region66: #{time_series_transformer.16} parent=63 // pred_check_branch
          %757 = sbr.rel (%p755) target = $region68
        $region67: #{time_series_transformer.16} parent=63 // pred_region
          %p758 = scmp.lt.s32.totalorder %s21, 1
          %s759 = scalar_select %p758, %s21, 1
          %s760 = smul.addr %s759, 8
          %s761 = scalar_lea.vmem %s7, %s760
        $region68: #{time_series_transformer.16} parent=63 // pred_fallthru
          _
      $region64: #{time_series_transformer.16} parent=5 // pred_fallthru
        _
    $region6: #{time_series_transformer.16} parent=1 // loop_footer
      %s19 = sadd.s32 1, %s15
    $region7: #{time_series_transformer.16} parent=1 // loop_footer_branch
      %14 = sbr.rel target = $region3
    $region8: #{time_series_transformer.16} parent=1 // loop_exit
      _
    %762 = vsyncpa [#allocation3], 1
    %s763 = scalar_lea.sflag [#allocation3], 1
    %764 = vsyncpa %s763, 1
    %765 = vsyncpa [#allocation5], 1

// kernel: time_series_transformer.18
$region0: #{time_series_transformer.18}
  #allocation0 [shape = 'u32[]', space=smem, size = 0x4, offset = 0x4, fixed_abs, tag = 'smem constant byte address 0x4 - core index']
  #allocation1 [shape = 'u32[72,128]{1,0:T(1,128)}', space=vmem, size = 0x9000, scoped, tag = 'internal scratch']
  %s0 = inlined_call_operand.vmem [shape: f32[16,32], index: 0, kind: input, shape index: {}]
  %s1 = inlined_call_operand.vmem [shape: f32[32,64], index: 1, kind: input, shape index: {}]
  %s2 = inlined_call_operand.vmem [shape: f32[1,64], index: 2, kind: input, shape index: {}]
  %s3 = inlined_call_operand.vmem [shape: f32[64,32], index: 3, kind: input, shape index: {}]
  %s4 = inlined_call_operand.vmem [shape: f32[1,32], index: 4, kind: input, shape index: {}]
  %s5 = inlined_call_operand.vmem [shape: f32[1,32], index: 5, kind: input, shape index: {}]
  %s6 = inlined_call_operand.vmem [shape: f32[1,32], index: 6, kind: input, shape index: {}]
  %s7 = inlined_call_operand.vmem [shape: f32[16,32], index: 7, kind: output, shape index: {}]
  %s8 = sld [smem:[#allocation0]]
  $region38: #{time_series_transformer.18} parent=0
    _
  %s10 = ssub.s32 1, %s8
  %s11 = scalar_select 0, %s10, %s8
  // Predicated region
  $region2: #{time_series_transformer.18} parent=0 // pred_check
    _
  $region3: #{time_series_transformer.18} parent=0 // pred_check_branch
    %13 = sbr.rel (0) target = $region5
  $region4: #{time_series_transformer.18} parent=0 // pred_region
    _
  $region5: #{time_series_transformer.18} parent=0 // pred_fallthru
    _
  // Predicated region
  $region6: #{time_series_transformer.18} parent=0 // pred_check
    _
  $region7: #{time_series_transformer.18} parent=0 // pred_check_branch
    %15 = sbr.rel (0) target = $region9
  $region8: #{time_series_transformer.18} parent=0 // pred_region
    _
  $region9: #{time_series_transformer.18} parent=0 // pred_fallthru
    _
  // Predicated region
  $region10: #{time_series_transformer.18} parent=0 // pred_check
    _
  $region11: #{time_series_transformer.18} parent=0 // pred_check_branch
    %17 = sbr.rel (0) target = $region13
  $region12: #{time_series_transformer.18} parent=0 // pred_region
    _
  $region13: #{time_series_transformer.18} parent=0 // pred_fallthru
    _
  // Predicated region
  $region14: #{time_series_transformer.18} parent=0 // pred_check
    _
  $region15: #{time_series_transformer.18} parent=0 // pred_check_branch
    %19 = sbr.rel (0) target = $region17
  $region16: #{time_series_transformer.18} parent=0 // pred_region
    _
  $region17: #{time_series_transformer.18} parent=0 // pred_fallthru
    _
  // Predicated region
  $region18: #{time_series_transformer.18} parent=0 // pred_check
    _
  $region19: #{time_series_transformer.18} parent=0 // pred_check_branch
    %21 = sbr.rel (0) target = $region21
  $region20: #{time_series_transformer.18} parent=0 // pred_region
    _
  $region21: #{time_series_transformer.18} parent=0 // pred_fallthru
    _
  // Predicated region
  $region22: #{time_series_transformer.18} parent=0 // pred_check
    _
  $region23: #{time_series_transformer.18} parent=0 // pred_check_branch
    %23 = sbr.rel (0) target = $region25
  $region24: #{time_series_transformer.18} parent=0 // pred_region
    _
  $region25: #{time_series_transformer.18} parent=0 // pred_fallthru
    _
  // Predicated region
  $region26: #{time_series_transformer.18} parent=0 // pred_check
    _
  $region27: #{time_series_transformer.18} parent=0 // pred_check_branch
    %25 = sbr.rel (0) target = $region29
  $region28: #{time_series_transformer.18} parent=0 // pred_region
    _
  $region29: #{time_series_transformer.18} parent=0 // pred_fallthru
    _
  %v26 = vld [vmem:[%s0] sm:$0xff]
  %v27 = vld [vmem:[%s0 + $0x8] sm:$0xff]
  %v28 = vld [vmem:[%s1] sm:$0xff]
  %v29 = vld [vmem:[%s1 + $0x8] sm:$0xff]
  %v30 = vld [vmem:[%s1 + $0x10] sm:$0xff]
  %v31 = vld [vmem:[%s1 + $0x18] sm:$0xff]
  %v32 = vld [vmem:[%s2] sm:$0x1]
  %v34 = vperm.slane %v32, 0
  %vm36 = vcmask 261120
  %v38 = vsel %vm36, %v26, 0
  %v41 = vsel %vm36, %v27, 0
  %43 = vmatpush.msra.mxu0 0.0
  %44 = vmatpush.msra.mxu0 0.0
  %45 = vmatpush.msra.mxu0 0.0
  %46 = vmatpush.msra.mxu0 0.0
  %47 = vmatpush.msra.mxu0 0.0
  %48 = vmatpush.msra.mxu0 0.0
  %49 = vmatpush.msra.mxu0 0.0
  %50 = vmatpush.msra.mxu0 0.0
  %51 = vmatpush.msra.mxu0 0.0
  %52 = vmatpush.msra.mxu0 0.0
  %53 = vmatpush.msra.mxu0 0.0
  %54 = vmatpush.msra.mxu0 0.0
  %55 = vmatpush.msra.mxu0 %v31
  %56 = vmatpush.msra.mxu0 %v30
  %57 = vmatpush.msra.mxu0 %v29
  %58 = vmatpush.msra.mxu0 %v28
  %59 = vmatmul.f32.gmra.mxu0 %v38
  %v60 = vpop.f32.mrf.mxu0
  %v61 = vadd.f32 %v34, %v60
  %62 = vmatmul.f32.gmra.mxu0 %v41
  %v63 = vpop.f32.mrf.mxu0
  %v64 = vadd.f32 %v34, %v63
  %65 = vdwg.mxu0
  %v66 = vmax.f32 %v61, 0.0
  %v67 = vmax.f32 %v64, 0.0
  %v68 = vld [vmem:[%s3] sm:$0xff]
  %v69 = vld [vmem:[%s3 + $0x8] sm:$0xff]
  %v70 = vld [vmem:[%s3 + $0x10] sm:$0xff]
  %v71 = vld [vmem:[%s3 + $0x18] sm:$0xff]
  %v72 = vld [vmem:[%s3 + $0x20] sm:$0xff]
  %v73 = vld [vmem:[%s3 + $0x28] sm:$0xff]
  %v74 = vld [vmem:[%s3 + $0x30] sm:$0xff]
  %v75 = vld [vmem:[%s3 + $0x38] sm:$0xff]
  %v76 = vld [vmem:[%s4] sm:$0x1]
  %v78 = vperm.slane %v76, 0
  %vm80 = vcmask 523264
  %v82 = vsel %vm80, %v66, 0
  %v85 = vsel %vm80, %v67, 0
  %87 = vmatpush.msra.mxu0 0.0
  %88 = vmatpush.msra.mxu0 0.0
  %89 = vmatpush.msra.mxu0 0.0
  %90 = vmatpush.msra.mxu0 0.0
  %91 = vmatpush.msra.mxu0 0.0
  %92 = vmatpush.msra.mxu0 0.0
  %93 = vmatpush.msra.mxu0 0.0
  %94 = vmatpush.msra.mxu0 0.0
  %95 = vmatpush.msra.mxu0 %v75
  %96 = vmatpush.msra.mxu0 %v74
  %97 = vmatpush.msra.mxu0 %v73
  %98 = vmatpush.msra.mxu0 %v72
  %99 = vmatpush.msra.mxu0 %v71
  %100 = vmatpush.msra.mxu0 %v70
  %101 = vmatpush.msra.mxu0 %v69
  %102 = vmatpush.msra.mxu0 %v68
  %103 = vmatmul.f32.gmra.mxu0 %v82
  %v104 = vpop.f32.mrf.mxu0
  %v105 = vadd.f32 %v78, %v104
  %106 = vmatmul.f32.gmra.mxu0 %v85
  %v107 = vpop.f32.mrf.mxu0
  %v108 = vadd.f32 %v78, %v107
  %109 = vdwg.mxu0
  %v110 = vadd.f32 %v26, %v105
  %v111 = vadd.f32 %v27, %v108
  %v112 = vld [vmem:[%s5] sm:$0x1]
  %v113 = vld [vmem:[%s6] sm:$0x1]
  %v114 = vsel %vm36, %v110, 0.0
  %115 = vadd.xlane.f32.xlu0 %v114
  %v116 = vpop.xlane.xlu0 %115
  %v117 = vsel %vm36, %v111, 0.0
  %118 = vadd.xlane.f32.xlu0 %v117
  %v119 = vpop.xlane.xlu0 %118
  %v120 = vrcp.pop 32.0
  %v121 = vmul.f32 32.0, %v120
  %v122 = vsub.f32 1.0, %v121
  %v123 = vmul.f32 %v120, %v122
  %v124 = vadd.f32 %v120, %v123
  %vm125 = vweird.f32 %v120
  %v126 = vsel %vm125, %v120, %v124
  %v127 = vmul.f32 %v116, %v126
  %v128 = vmul.f32 %v119, %v126
  %v129 = vsub.f32 %v110, %v127
  %v130 = vsub.f32 %v111, %v128
  %v131 = vmul.f32 %v129, %v129
  %v132 = vmul.f32 %v130, %v130
  %v133 = vsel %vm36, %v131, 0.0
  %134 = vadd.xlane.f32.xlu0 %v133
  %v135 = vpop.xlane.xlu0 %134
  %v136 = vsel %vm36, %v132, 0.0
  %137 = vadd.xlane.f32.xlu0 %v136
  %v138 = vpop.xlane.xlu0 %137
  %v139 = vmul.f32 %v135, %v126
  %v140 = vmul.f32 %v138, %v126
  %v141 = vadd.f32 %v139, 1e-05
  %v142 = vadd.f32 %v140, 1e-05
  %v143 = vrsqrt.pop %v141
  %v144 = vmul.f32 %v143, %v141
  %v145 = vmul.f32 %v144, %v143
  %v146 = vmul.f32 0.5, %v145
  %v147 = vsub.f32 1.5, %v146
  %v148 = vmul.f32 %v143, %v147
  %vm149 = vweird.f32 %v141
  %vm150 = vweird.f32 %v143
  %vm151 = vmor %vm149, %vm150
  %v152 = vsel %vm151, %v143, %v148
  %v153 = vrsqrt.pop %v142
  %v154 = vmul.f32 %v153, %v142
  %v155 = vmul.f32 %v154, %v153
  %v156 = vmul.f32 0.5, %v155
  %v157 = vsub.f32 1.5, %v156
  %v158 = vmul.f32 %v153, %v157
  %vm159 = vweird.f32 %v142
  %vm160 = vweird.f32 %v153
  %vm161 = vmor %vm159, %vm160
  %v162 = vsel %vm161, %v153, %v158
  %v163 = vmul.f32 %v129, %v152
  %v164 = vmul.f32 %v130, %v162
  %v166 = vperm.slane %v112, 0
  %v168 = vmul.f32 %v163, %v166
  %v169 = vmul.f32 %v164, %v166
  %v171 = vperm.slane %v113, 0
  %v173 = vadd.f32 %v168, %v171
  %v174 = vadd.f32 %v169, %v171
  %175 = vst.msk [vmem:[%s7] sm:$0xff] %vm36, %v173
  %176 = vst.msk [vmem:[%s7 + $0x8] sm:$0xff] %vm36, %v174
  // Predicated region
  $region30: #{time_series_transformer.18} parent=0 // pred_check
    _
  $region31: #{time_series_transformer.18} parent=0 // pred_check_branch
    %178 = sbr.rel (0) target = $region33
  $region32: #{time_series_transformer.18} parent=0 // pred_region
    _
  $region33: #{time_series_transformer.18} parent=0 // pred_fallthru
    _
  // Predicated region
  $region34: #{time_series_transformer.18} parent=0 // pred_check
    _
  $region35: #{time_series_transformer.18} parent=0 // pred_check_branch
    %180 = sbr.rel (0) target = $region37
  $region36: #{time_series_transformer.18} parent=0 // pred_region
    _
  $region37: #{time_series_transformer.18} parent=0 // pred_fallthru
    _

// kernel: time_series_transformer.17
$region0: #{time_series_transformer.17}
  #allocation0 [shape = 'u32[]', space=smem, size = 0x4, offset = 0x4, fixed_abs, tag = 'smem constant byte address 0x4 - core index']
  #allocation1 [shape = 'u32[72,128]{1,0:T(1,128)}', space=vmem, size = 0x9000, scoped, tag = 'internal scratch']
  %s0 = inlined_call_operand.vmem [shape: f32[2,8,32], index: 0, kind: input, shape index: {}]
  %s1 = inlined_call_operand.vmem [shape: f32[2,16,32], index: 1, kind: input, shape index: {}]
  %s2 = inlined_call_operand.hbm [shape: f32[32,32], index: 2, kind: input, shape index: {}]
  %s3 = inlined_call_operand.hbm [shape: f32[1,32], index: 3, kind: input, shape index: {}]
  %s4 = inlined_call_operand.hbm [shape: f32[32,64], index: 4, kind: input, shape index: {}]
  %s5 = inlined_call_operand.hbm [shape: f32[1,64], index: 5, kind: input, shape index: {}]
  %s6 = inlined_call_operand.hbm [shape: f32[32,32], index: 6, kind: input, shape index: {}]
  %s7 = inlined_call_operand.hbm [shape: f32[1,32], index: 7, kind: input, shape index: {}]
  %s8 = inlined_call_operand.hbm [shape: f32[1,32], index: 8, kind: input, shape index: {}]
  %s9 = inlined_call_operand.hbm [shape: f32[1,32], index: 9, kind: input, shape index: {}]
  %s10 = inlined_call_operand.vmem [shape: f32[2,8,32], index: 10, kind: output, shape index: {}]
  %s11 = sld [smem:[#allocation0]]
  $region105: #{time_series_transformer.17} parent=0
    _
  %s13 = ssub.s32 1, %s11
  %s14 = scalar_select 0, %s13, %s11
  $region1: #{time_series_transformer.17} parent=0
    #allocation2 [shape = 'u8[16384]{0}', space=vmem, size = 0x4000, scoped, tag = 'input window, operand 2, single buffered']
    #allocation3 [shape = 's32[2]{0}', space=sflag, size = 0x8, scoped, tag = 'scoped memory for time_series_transformer.17']
    #allocation4 [shape = 'u8[512]{0}', space=vmem, size = 0x400, scoped, tag = 'input window, operand 3, single buffered']
    #allocation5 [shape = 's32[1]{0}', space=sflag, size = 0x4, scoped, tag = 'scoped memory for time_series_transformer.17']
    #allocation6 [shape = 'u8[16384]{0}', space=vmem, size = 0x4000, scoped, tag = 'input window, operand 4, single buffered']
    #allocation7 [shape = 'u8[512]{0}', space=vmem, size = 0x400, scoped, tag = 'input window, operand 5, single buffered']
    #allocation8 [shape = 's32[1]{0}', space=sflag, size = 0x4, scoped, tag = 'scoped memory for time_series_transformer.17']
    #allocation9 [shape = 'u8[16384]{0}', space=vmem, size = 0x4000, scoped, tag = 'input window, operand 6, single buffered']
    #allocation10 [shape = 'u8[512]{0}', space=vmem, size = 0x400, scoped, tag = 'input window, operand 7, single buffered']
    #allocation11 [shape = 's32[1]{0}', space=sflag, size = 0x4, scoped, tag = 'scoped memory for time_series_transformer.17']
    #allocation12 [shape = 'u8[512]{0}', space=vmem, size = 0x400, scoped, tag = 'input window, operand 8, single buffered']
    #allocation13 [shape = 'u8[512]{0}', space=vmem, size = 0x400, scoped, tag = 'input window, operand 9, single buffered']
    #allocation14 [shape = 's32[1]{0}', space=sflag, size = 0x4, scoped, tag = 'scoped memory for time_series_transformer.17']
    %15 = vsyncpa [#allocation3], 0
    %16 = vsyncpa [#allocation5], 0
    %17 = vsyncpa [#allocation8], 0
    %18 = vsyncpa [#allocation11], 0
    %19 = vsyncpa [#allocation14], 0
    loop: start=0, step=1, limit=4
    $region2: #{time_series_transformer.17} parent=1 // loop_pre_header
      _
    $region3: #{time_series_transformer.17} parent=1 // loop_header
      %s21 = sphi 0, %s25
      %p22 = scmp.ge.s32.totalorder %s21, 4
      %s31 = sphi 0, %s33
      %s34 = sphi 0, %s31
      %s35 = sphi 0, %s34
      %s51 = sphi 0, %s35
      %s57 = sphi 0, %s59
      %s60 = sphi 0, %s57
      %s61 = sphi 0, %s60
      %s77 = sphi 0, %s61
      %s81 = sphi 0, %s81
      %s83 = sphi 0, %s81
      %s84 = sphi 0, %s83
      %s98 = sphi 0, %s84
      %s102 = sphi 0, %s102
      %s104 = sphi 0, %s102
      %s105 = sphi 0, %s104
      %s119 = sphi 0, %s105
      %s123 = sphi 0, %s123
      %s125 = sphi 0, %s123
      %s126 = sphi 0, %s125
      %s140 = sphi 0, %s126
      %s144 = sphi 0, %s144
      %s146 = sphi 0, %s144
      %s147 = sphi 0, %s146
      %s161 = sphi 0, %s147
      %s165 = sphi 0, %s165
      %s167 = sphi 0, %s165
      %s168 = sphi 0, %s167
      %s182 = sphi 0, %s168
      %s186 = sphi 0, %s186
      %s188 = sphi 0, %s186
      %s189 = sphi 0, %s188
      %s203 = sphi 0, %s189
      %s207 = sphi 0, %s207
      %s209 = sphi 0, %s207
      %s210 = sphi 0, %s209
      %s224 = sphi 0, %s210
      %s228 = sphi 0, %s228
      %s230 = sphi 0, %s228
      %s231 = sphi 0, %s230
      %s245 = sphi 0, %s231
      %s251 = sphi 0, %s253
      %s254 = sphi 0, %s251
      %s255 = sphi 0, %s254
      %s271 = sphi 0, %s255
    $region4: #{time_series_transformer.17} parent=1 // loop_header_branch
      %24 = sbr.rel (%p22) target = $region8
    $region5: #{time_series_transformer.17} parent=1 // loop_body
      %s26 = ssub.s32 %s21, 1
      %s27 = ssub.s32 %s21, 2
      %s28 = sadd.s32 %s21, 1
      %s29 = ssub.s32 %s21, %s28
      %p30 = scmp.eq.s32.totalorder %s29, 0
      %s32 = sadd.s32 %s31, 1
      %s33 = scalar_select %p30, %s31, %s32
      %p36 = pneg %p30
      %p37 = scmp.eq.s32.totalorder %s21, 1
      %p38 = por %p36, %p37
      %p39 = scmp.ne.s32.totalorder %s31, %s34
      %p40 = scmp.eq.s32.totalorder %s21, 0
      %p41 = por %p39, %p40
      %p42 = scmp.ne.s32.totalorder %s31, %s34
      %p43 = scmp.eq.s32.totalorder %s26, 1
      %p44 = por %p42, %p43
      %p45 = scmp.ne.s32.totalorder %s34, %s35
      %p46 = scmp.eq.s32.totalorder %s26, 0
      %p47 = por %p45, %p46
      %p48 = scmp.ne.s32.totalorder %s34, %s35
      %p49 = scmp.eq.s32.totalorder %s27, 1
      %p50 = por %p48, %p49
      %p52 = scmp.ne.s32.totalorder %s35, %s51
      %p53 = scmp.eq.s32.totalorder %s27, 0
      %p54 = por %p52, %p53
      %s55 = ssub.s32 %s21, %s28
      %p56 = scmp.eq.s32.totalorder %s55, 0
      %s58 = sadd.s32 %s57, 1
      %s59 = scalar_select %p56, %s57, %s58
      %p62 = pneg %p56
      %p63 = scmp.eq.s32.totalorder %s21, 1
      %p64 = por %p62, %p63
      %p65 = scmp.ne.s32.totalorder %s57, %s60
      %p66 = scmp.eq.s32.totalorder %s21, 0
      %p67 = por %p65, %p66
      %p68 = scmp.ne.s32.totalorder %s57, %s60
      %p69 = scmp.eq.s32.totalorder %s26, 1
      %p70 = por %p68, %p69
      %p71 = scmp.ne.s32.totalorder %s60, %s61
      %p72 = scmp.eq.s32.totalorder %s26, 0
      %p73 = por %p71, %p72
      %p74 = scmp.ne.s32.totalorder %s60, %s61
      %p75 = scmp.eq.s32.totalorder %s27, 1
      %p76 = por %p74, %p75
      %p78 = scmp.ne.s32.totalorder %s61, %s77
      %p79 = scmp.eq.s32.totalorder %s27, 0
      %p80 = por %p78, %p79
      %s82 = sadd.s32 %s81, 1
      %p85 = scmp.eq.s32.totalorder %s21, 1
      %p86 = scmp.ne.s32.totalorder %s81, %s83
      %p87 = scmp.eq.s32.totalorder %s21, 0
      %p88 = por %p86, %p87
      %p89 = scmp.ne.s32.totalorder %s81, %s83
      %p90 = scmp.eq.s32.totalorder %s26, 1
      %p91 = por %p89, %p90
      %p92 = scmp.ne.s32.totalorder %s83, %s84
      %p93 = scmp.eq.s32.totalorder %s26, 0
      %p94 = por %p92, %p93
      %p95 = scmp.ne.s32.totalorder %s83, %s84
      %p96 = scmp.eq.s32.totalorder %s27, 1
      %p97 = por %p95, %p96
      %p99 = scmp.ne.s32.totalorder %s84, %s98
      %p100 = scmp.eq.s32.totalorder %s27, 0
      %p101 = por %p99, %p100
      %s103 = sadd.s32 %s102, 1
      %p106 = scmp.eq.s32.totalorder %s21, 1
      %p107 = scmp.ne.s32.totalorder %s102, %s104
      %p108 = scmp.eq.s32.totalorder %s21, 0
      %p109 = por %p107, %p108
      %p110 = scmp.ne.s32.totalorder %s102, %s104
      %p111 = scmp.eq.s32.totalorder %s26, 1
      %p112 = por %p110, %p111
      %p113 = scmp.ne.s32.totalorder %s104, %s105
      %p114 = scmp.eq.s32.totalorder %s26, 0
      %p115 = por %p113, %p114
      %p116 = scmp.ne.s32.totalorder %s104, %s105
      %p117 = scmp.eq.s32.totalorder %s27, 1
      %p118 = por %p116, %p117
      %p120 = scmp.ne.s32.totalorder %s105, %s119
      %p121 = scmp.eq.s32.totalorder %s27, 0
      %p122 = por %p120, %p121
      %s124 = sadd.s32 %s123, 1
      %p127 = scmp.eq.s32.totalorder %s21, 1
      %p128 = scmp.ne.s32.totalorder %s123, %s125
      %p129 = scmp.eq.s32.totalorder %s21, 0
      %p130 = por %p128, %p129
      %p131 = scmp.ne.s32.totalorder %s123, %s125
      %p132 = scmp.eq.s32.totalorder %s26, 1
      %p133 = por %p131, %p132
      %p134 = scmp.ne.s32.totalorder %s125, %s126
      %p135 = scmp.eq.s32.totalorder %s26, 0
      %p136 = por %p134, %p135
      %p137 = scmp.ne.s32.totalorder %s125, %s126
      %p138 = scmp.eq.s32.totalorder %s27, 1
      %p139 = por %p137, %p138
      %p141 = scmp.ne.s32.totalorder %s126, %s140
      %p142 = scmp.eq.s32.totalorder %s27, 0
      %p143 = por %p141, %p142
      %s145 = sadd.s32 %s144, 1
      %p148 = scmp.eq.s32.totalorder %s21, 1
      %p149 = scmp.ne.s32.totalorder %s144, %s146
      %p150 = scmp.eq.s32.totalorder %s21, 0
      %p151 = por %p149, %p150
      %p152 = scmp.ne.s32.totalorder %s144, %s146
      %p153 = scmp.eq.s32.totalorder %s26, 1
      %p154 = por %p152, %p153
      %p155 = scmp.ne.s32.totalorder %s146, %s147
      %p156 = scmp.eq.s32.totalorder %s26, 0
      %p157 = por %p155, %p156
      %p158 = scmp.ne.s32.totalorder %s146, %s147
      %p159 = scmp.eq.s32.totalorder %s27, 1
      %p160 = por %p158, %p159
      %p162 = scmp.ne.s32.totalorder %s147, %s161
      %p163 = scmp.eq.s32.totalorder %s27, 0
      %p164 = por %p162, %p163
      %s166 = sadd.s32 %s165, 1
      %p169 = scmp.eq.s32.totalorder %s21, 1
      %p170 = scmp.ne.s32.totalorder %s165, %s167
      %p171 = scmp.eq.s32.totalorder %s21, 0
      %p172 = por %p170, %p171
      %p173 = scmp.ne.s32.totalorder %s165, %s167
      %p174 = scmp.eq.s32.totalorder %s26, 1
      %p175 = por %p173, %p174
      %p176 = scmp.ne.s32.totalorder %s167, %s168
      %p177 = scmp.eq.s32.totalorder %s26, 0
      %p178 = por %p176, %p177
      %p179 = scmp.ne.s32.totalorder %s167, %s168
      %p180 = scmp.eq.s32.totalorder %s27, 1
      %p181 = por %p179, %p180
      %p183 = scmp.ne.s32.totalorder %s168, %s182
      %p184 = scmp.eq.s32.totalorder %s27, 0
      %p185 = por %p183, %p184
      %s187 = sadd.s32 %s186, 1
      %p190 = scmp.eq.s32.totalorder %s21, 1
      %p191 = scmp.ne.s32.totalorder %s186, %s188
      %p192 = scmp.eq.s32.totalorder %s21, 0
      %p193 = por %p191, %p192
      %p194 = scmp.ne.s32.totalorder %s186, %s188
      %p195 = scmp.eq.s32.totalorder %s26, 1
      %p196 = por %p194, %p195
      %p197 = scmp.ne.s32.totalorder %s188, %s189
      %p198 = scmp.eq.s32.totalorder %s26, 0
      %p199 = por %p197, %p198
      %p200 = scmp.ne.s32.totalorder %s188, %s189
      %p201 = scmp.eq.s32.totalorder %s27, 1
      %p202 = por %p200, %p201
      %p204 = scmp.ne.s32.totalorder %s189, %s203
      %p205 = scmp.eq.s32.totalorder %s27, 0
      %p206 = por %p204, %p205
      %s208 = sadd.s32 %s207, 1
      %p211 = scmp.eq.s32.totalorder %s21, 1
      %p212 = scmp.ne.s32.totalorder %s207, %s209
      %p213 = scmp.eq.s32.totalorder %s21, 0
      %p214 = por %p212, %p213
      %p215 = scmp.ne.s32.totalorder %s207, %s209
      %p216 = scmp.eq.s32.totalorder %s26, 1
      %p217 = por %p215, %p216
      %p218 = scmp.ne.s32.totalorder %s209, %s210
      %p219 = scmp.eq.s32.totalorder %s26, 0
      %p220 = por %p218, %p219
      %p221 = scmp.ne.s32.totalorder %s209, %s210
      %p222 = scmp.eq.s32.totalorder %s27, 1
      %p223 = por %p221, %p222
      %p225 = scmp.ne.s32.totalorder %s210, %s224
      %p226 = scmp.eq.s32.totalorder %s27, 0
      %p227 = por %p225, %p226
      %s229 = sadd.s32 %s228, 1
      %p232 = scmp.eq.s32.totalorder %s21, 1
      %p233 = scmp.ne.s32.totalorder %s228, %s230
      %p234 = scmp.eq.s32.totalorder %s21, 0
      %p235 = por %p233, %p234
      %p236 = scmp.ne.s32.totalorder %s228, %s230
      %p237 = scmp.eq.s32.totalorder %s26, 1
      %p238 = por %p236, %p237
      %p239 = scmp.ne.s32.totalorder %s230, %s231
      %p240 = scmp.eq.s32.totalorder %s26, 0
      %p241 = por %p239, %p240
      %p242 = scmp.ne.s32.totalorder %s230, %s231
      %p243 = scmp.eq.s32.totalorder %s27, 1
      %p244 = por %p242, %p243
      %p246 = scmp.ne.s32.totalorder %s231, %s245
      %p247 = scmp.eq.s32.totalorder %s27, 0
      %p248 = por %p246, %p247
      %s249 = ssub.s32 %s21, %s28
      %p250 = scmp.eq.s32.totalorder %s249, 0
      %s252 = sadd.s32 %s251, 1
      %s253 = scalar_select %p250, %s251, %s252
      %p256 = pneg %p250
      %p257 = scmp.eq.s32.totalorder %s21, 1
      %p258 = por %p256, %p257
      %p259 = scmp.ne.s32.totalorder %s251, %s254
      %p260 = scmp.eq.s32.totalorder %s21, 0
      %p261 = por %p259, %p260
      %p262 = scmp.ne.s32.totalorder %s251, %s254
      %p263 = scmp.eq.s32.totalorder %s26, 1
      %p264 = por %p262, %p263
      %p265 = scmp.ne.s32.totalorder %s254, %s255
      %p266 = scmp.eq.s32.totalorder %s26, 0
      %p267 = por %p265, %p266
      %p268 = scmp.ne.s32.totalorder %s254, %s255
      %p269 = scmp.eq.s32.totalorder %s27, 1
      %p270 = por %p268, %p269
      %p272 = scmp.ne.s32.totalorder %s255, %s271
      %p273 = scmp.eq.s32.totalorder %s27, 0
      %p274 = por %p272, %p273
      %p275 = scmp.le.s32.totalorder 1, %s21
      %p276 = scmp.lt.s32.totalorder %s21, 3
      %p277 = pnand %p275, %p276
      %p278 = pneg %p277
      // Predicated region
      $region9: #{time_series_transformer.17} parent=5 // pred_check
        _
      $region10: #{time_series_transformer.17} parent=5 // pred_check_branch
        %280 = sbr.rel (%p277) target = $region12
      $region11: #{time_series_transformer.17} parent=5 // pred_region
        %s281 = ssub.s32 %s21, 1
        // Predicated region
        $region13: #{time_series_transformer.17} parent=11 // pred_check
          %p282 = pneg %p94
        $region14: #{time_series_transformer.17} parent=11 // pred_check_branch
          %284 = sbr.rel (%p282) target = $region16
        $region15: #{time_series_transformer.17} parent=11 // pred_region
          %286 = vsyncadd [#allocation3], 0
          %s287 = sshll.u32 %s2, 4
          %s288 = int_to_ptr.hbm [resolvable:$true] %s287
          %s289 = sshll.u32 [#allocation2], 4
          %s290 = int_to_ptr.vmem [resolvable:$true] %s289
          %295 = dma.hbm_to_vmem [thread:$0]  %s288, 512, %s290, [#allocation3], 128, 128, 8
        $region16: #{time_series_transformer.17} parent=11 // pred_fallthru
          _
        // Predicated region
        $region17: #{time_series_transformer.17} parent=11 // pred_check
          %p296 = pneg %p115
        $region18: #{time_series_transformer.17} parent=11 // pred_check_branch
          %298 = sbr.rel (%p296) target = $region20
        $region19: #{time_series_transformer.17} parent=11 // pred_region
          %300 = vsyncadd [#allocation5], 0
          %s302 = sshll.u32 %s3, 4
          %s303 = int_to_ptr.hbm [resolvable:$true] %s302
          %s304 = sshll.u32 [#allocation4], 4
          %s305 = int_to_ptr.vmem [resolvable:$true] %s304
          %307 = dma.hbm_to_vmem [thread:$0]  %s303, 16, %s305, [#allocation5]
        $region20: #{time_series_transformer.17} parent=11 // pred_fallthru
          _
        // Predicated region
        $region21: #{time_series_transformer.17} parent=11 // pred_check
          %p308 = pneg %p136
        $region22: #{time_series_transformer.17} parent=11 // pred_check_branch
          %310 = sbr.rel (%p308) target = $region24
        $region23: #{time_series_transformer.17} parent=11 // pred_region
          %312 = vsyncadd [#allocation5], 0
          %s313 = sshll.u32 %s4, 4
          %s314 = int_to_ptr.hbm [resolvable:$true] %s313
          %s315 = sshll.u32 [#allocation6], 4
          %s316 = int_to_ptr.vmem [resolvable:$true] %s315
          %321 = dma.hbm_to_vmem [thread:$0]  %s314, 512, %s316, [#allocation5], 128, 128, 8
        $region24: #{time_series_transformer.17} parent=11 // pred_fallthru
          _
        // Predicated region
        $region25: #{time_series_transformer.17} parent=11 // pred_check
          %p322 = pneg %p157
        $region26: #{time_series_transformer.17} parent=11 // pred_check_branch
          %324 = sbr.rel (%p322) target = $region28
        $region27: #{time_series_transformer.17} parent=11 // pred_region
          %326 = vsyncadd [#allocation8], 0
          %s328 = sshll.u32 %s5, 4
          %s329 = int_to_ptr.hbm [resolvable:$true] %s328
          %s330 = sshll.u32 [#allocation7], 4
          %s331 = int_to_ptr.vmem [resolvable:$true] %s330
          %333 = dma.hbm_to_vmem [thread:$0]  %s329, 16, %s331, [#allocation8]
        $region28: #{time_series_transformer.17} parent=11 // pred_fallthru
          _
        // Predicated region
        $region29: #{time_series_transformer.17} parent=11 // pred_check
          %p334 = pneg %p178
        $region30: #{time_series_transformer.17} parent=11 // pred_check_branch
          %336 = sbr.rel (%p334) target = $region32
        $region31: #{time_series_transformer.17} parent=11 // pred_region
          %338 = vsyncadd [#allocation8], 0
          %s339 = sshll.u32 %s6, 4
          %s340 = int_to_ptr.hbm [resolvable:$true] %s339
          %s341 = sshll.u32 [#allocation9], 4
          %s342 = int_to_ptr.vmem [resolvable:$true] %s341
          %347 = dma.hbm_to_vmem [thread:$0]  %s340, 512, %s342, [#allocation8], 128, 128, 8
        $region32: #{time_series_transformer.17} parent=11 // pred_fallthru
          _
        // Predicated region
        $region33: #{time_series_transformer.17} parent=11 // pred_check
          %p348 = pneg %p199
        $region34: #{time_series_transformer.17} parent=11 // pred_check_branch
          %350 = sbr.rel (%p348) target = $region36
        $region35: #{time_series_transformer.17} parent=11 // pred_region
          %352 = vsyncadd [#allocation11], 0
          %s354 = sshll.u32 %s7, 4
          %s355 = int_to_ptr.hbm [resolvable:$true] %s354
          %s356 = sshll.u32 [#allocation10], 4
          %s357 = int_to_ptr.vmem [resolvable:$true] %s356
          %359 = dma.hbm_to_vmem [thread:$0]  %s355, 16, %s357, [#allocation11]
        $region36: #{time_series_transformer.17} parent=11 // pred_fallthru
          _
        // Predicated region
        $region37: #{time_series_transformer.17} parent=11 // pred_check
          %p360 = pneg %p220
        $region38: #{time_series_transformer.17} parent=11 // pred_check_branch
          %362 = sbr.rel (%p360) target = $region40
        $region39: #{time_series_transformer.17} parent=11 // pred_region
          %364 = vsyncadd [#allocation11], 0
          %s366 = sshll.u32 %s8, 4
          %s367 = int_to_ptr.hbm [resolvable:$true] %s366
          %s368 = sshll.u32 [#allocation12], 4
          %s369 = int_to_ptr.vmem [resolvable:$true] %s368
          %371 = dma.hbm_to_vmem [thread:$0]  %s367, 16, %s369, [#allocation11]
        $region40: #{time_series_transformer.17} parent=11 // pred_fallthru
          _
        // Predicated region
        $region41: #{time_series_transformer.17} parent=11 // pred_check
          %p372 = pneg %p241
        $region42: #{time_series_transformer.17} parent=11 // pred_check_branch
          %374 = sbr.rel (%p372) target = $region44
        $region43: #{time_series_transformer.17} parent=11 // pred_region
          %376 = vsyncadd [#allocation14], 0
          %s378 = sshll.u32 %s9, 4
          %s379 = int_to_ptr.hbm [resolvable:$true] %s378
          %s380 = sshll.u32 [#allocation13], 4
          %s381 = int_to_ptr.vmem [resolvable:$true] %s380
          %383 = dma.hbm_to_vmem [thread:$0]  %s379, 16, %s381, [#allocation14]
        $region44: #{time_series_transformer.17} parent=11 // pred_fallthru
          _
      $region12: #{time_series_transformer.17} parent=5 // pred_fallthru
        _
      %p384 = scmp.lt.s32.totalorder %s21, 2
      // Predicated region
      $region45: #{time_series_transformer.17} parent=5 // pred_check
        %p385 = pneg %p384
      $region46: #{time_series_transformer.17} parent=5 // pred_check_branch
        %387 = sbr.rel (%p385) target = $region48
      $region47: #{time_series_transformer.17} parent=5 // pred_region
        // Predicated region
        $region49: #{time_series_transformer.17} parent=47 // pred_check
          %p388 = pneg %p41
        $region50: #{time_series_transformer.17} parent=47 // pred_check_branch
          %390 = sbr.rel (%p388) target = $region52
        $region51: #{time_series_transformer.17} parent=47 // pred_region
          %p391 = scmp.lt.s32.totalorder %s21, 1
          %s392 = scalar_select %p391, %s21, 1
          %s393 = smul.addr %s392, 8
          %s394 = scalar_lea.vmem %s0, %s393
        $region52: #{time_series_transformer.17} parent=47 // pred_fallthru
          _
        // Predicated region
        $region53: #{time_series_transformer.17} parent=47 // pred_check
          %p395 = pneg %p67
        $region54: #{time_series_transformer.17} parent=47 // pred_check_branch
          %397 = sbr.rel (%p395) target = $region56
        $region55: #{time_series_transformer.17} parent=47 // pred_region
          %p398 = scmp.lt.s32.totalorder %s21, 1
          %s399 = scalar_select %p398, %s21, 1
          %s400 = smul.addr %s399, 2
          %s401 = smul.addr %s400, 8
          %s402 = scalar_lea.vmem %s1, %s401
        $region56: #{time_series_transformer.17} parent=47 // pred_fallthru
          _
      $region48: #{time_series_transformer.17} parent=5 // pred_fallthru
        _
      %p403 = scmp.le.s32.totalorder 1, %s21
      %p404 = scmp.lt.s32.totalorder %s21, 3
      %p405 = pnand %p403, %p404
      %p406 = pneg %p405
      // Predicated region
      $region57: #{time_series_transformer.17} parent=5 // pred_check
        _
      $region58: #{time_series_transformer.17} parent=5 // pred_check_branch
        %408 = sbr.rel (%p405) target = $region60
      $region59: #{time_series_transformer.17} parent=5 // pred_region
        %s409 = ssub.s32 %s21, 1
        // Predicated region
        $region61: #{time_series_transformer.17} parent=59 // pred_check
          %p410 = pneg %p94
        $region62: #{time_series_transformer.17} parent=59 // pred_check_branch
          %412 = sbr.rel (%p410) target = $region64
        $region63: #{time_series_transformer.17} parent=59 // pred_region
          %414 = dma.done [#allocation3], 512
        $region64: #{time_series_transformer.17} parent=59 // pred_fallthru
          _
        // Predicated region
        $region65: #{time_series_transformer.17} parent=59 // pred_check
          %p415 = pneg %p115
        $region66: #{time_series_transformer.17} parent=59 // pred_check_branch
          %417 = sbr.rel (%p415) target = $region68
        $region67: #{time_series_transformer.17} parent=59 // pred_region
          %419 = dma.done [#allocation5], 16
        $region68: #{time_series_transformer.17} parent=59 // pred_fallthru
          _
        // Predicated region
        $region69: #{time_series_transformer.17} parent=59 // pred_check
          %p420 = pneg %p136
        $region70: #{time_series_transformer.17} parent=59 // pred_check_branch
          %422 = sbr.rel (%p420) target = $region72
        $region71: #{time_series_transformer.17} parent=59 // pred_region
          %424 = dma.done [#allocation5], 512
        $region72: #{time_series_transformer.17} parent=59 // pred_fallthru
          _
        // Predicated region
        $region73: #{time_series_transformer.17} parent=59 // pred_check
          %p425 = pneg %p157
        $region74: #{time_series_transformer.17} parent=59 // pred_check_branch
          %427 = sbr.rel (%p425) target = $region76
        $region75: #{time_series_transformer.17} parent=59 // pred_region
          %429 = dma.done [#allocation8], 16
        $region76: #{time_series_transformer.17} parent=59 // pred_fallthru
          _
        // Predicated region
        $region77: #{time_series_transformer.17} parent=59 // pred_check
          %p430 = pneg %p178
        $region78: #{time_series_transformer.17} parent=59 // pred_check_branch
          %432 = sbr.rel (%p430) target = $region80
        $region79: #{time_series_transformer.17} parent=59 // pred_region
          %434 = dma.done [#allocation8], 512
        $region80: #{time_series_transformer.17} parent=59 // pred_fallthru
          _
        // Predicated region
        $region81: #{time_series_transformer.17} parent=59 // pred_check
          %p435 = pneg %p199
        $region82: #{time_series_transformer.17} parent=59 // pred_check_branch
          %437 = sbr.rel (%p435) target = $region84
        $region83: #{time_series_transformer.17} parent=59 // pred_region
          %439 = dma.done [#allocation11], 16
        $region84: #{time_series_transformer.17} parent=59 // pred_fallthru
          _
        // Predicated region
        $region85: #{time_series_transformer.17} parent=59 // pred_check
          %p440 = pneg %p220
        $region86: #{time_series_transformer.17} parent=59 // pred_check_branch
          %442 = sbr.rel (%p440) target = $region88
        $region87: #{time_series_transformer.17} parent=59 // pred_region
          %444 = dma.done [#allocation11], 16
        $region88: #{time_series_transformer.17} parent=59 // pred_fallthru
          _
        // Predicated region
        $region89: #{time_series_transformer.17} parent=59 // pred_check
          %p445 = pneg %p241
        $region90: #{time_series_transformer.17} parent=59 // pred_check_branch
          %447 = sbr.rel (%p445) target = $region92
        $region91: #{time_series_transformer.17} parent=59 // pred_region
          %449 = dma.done [#allocation14], 16
        $region92: #{time_series_transformer.17} parent=59 // pred_fallthru
          _
        %p450 = scmp.lt.s32.totalorder %s26, 1
        %s451 = scalar_select %p450, %s26, 1
        %s452 = smul.addr %s451, 8
        %s453 = scalar_lea.vmem %s0, %s452
        %p454 = pneg %p47
        %p455 = pneg %p44
        %p456 = scmp.lt.s32.totalorder %s26, 1
        %s457 = scalar_select %p456, %s26, 1
        %s458 = smul.addr %s457, 2
        %s459 = smul.addr %s458, 8
        %s460 = scalar_lea.vmem %s1, %s459
        %p461 = pneg %p73
        %p462 = pneg %p70
        %p463 = pneg %p94
        %p464 = pneg %p91
        %p465 = pneg %p115
        %p466 = pneg %p112
        %p467 = pneg %p136
        %p468 = pneg %p133
        %p469 = pneg %p157
        %p470 = pneg %p154
        %p471 = pneg %p178
        %p472 = pneg %p175
        %p473 = pneg %p199
        %p474 = pneg %p196
        %p475 = pneg %p220
        %p476 = pneg %p217
        %p477 = pneg %p241
        %p478 = pneg %p238
        %p479 = pneg %p267
        %p480 = pneg %p264
        %p481 = scmp.lt.s32.totalorder %s26, 1
        %s482 = scalar_select %p481, %s26, 1
        %s483 = smul.addr %s482, 8
        %s484 = scalar_lea.vmem %s10, %s483
        %p485 = scmp.lt.s32.totalorder %s26, 1
        %s486 = scalar_select %p485, %s26, 1
        %s487 = smul.addr %s486, 8
        %s488 = scalar_lea.vmem %s0, %s487
        %p489 = scmp.lt.s32.totalorder %s26, 1
        %s490 = scalar_select %p489, %s26, 1
        %s491 = smul.addr %s490, 2
        %s492 = smul.addr %s491, 8
        %s493 = scalar_lea.vmem %s1, %s492
        %p494 = scmp.lt.s32.totalorder %s26, 1
        %s495 = scalar_select %p494, %s26, 1
        %s496 = smul.addr %s495, 8
        %s497 = scalar_lea.vmem %s10, %s496
        %v498 = vld [vmem:[%s488] sm:$0xff]
        %v499 = vld [vmem:[%s493] sm:$0xff]
        %v500 = vld [vmem:[%s493 + $0x8] sm:$0xff]
        %v501 = vld [vmem:[#allocation2] sm:$0xff]
        %v502 = vld [vmem:[#allocation2 + $0x8] sm:$0xff]
        %v503 = vld [vmem:[#allocation2 + $0x10] sm:$0xff]
        %v504 = vld [vmem:[#allocation2 + $0x18] sm:$0xff]
        %v505 = vld [vmem:[#allocation4] sm:$0x1]
        %v507 = vperm.slane %v505, 0
        %vm509 = vcmask 261120
        %v511 = vsel %vm509, %v498, 0
        %513 = vmatpush.msra.mxu0 0.0
        %514 = vmatpush.msra.mxu0 0.0
        %515 = vmatpush.msra.mxu0 0.0
        %516 = vmatpush.msra.mxu0 0.0
        %517 = vmatpush.msra.mxu0 0.0
        %518 = vmatpush.msra.mxu0 0.0
        %519 = vmatpush.msra.mxu0 0.0
        %520 = vmatpush.msra.mxu0 0.0
        %521 = vmatpush.msra.mxu0 0.0
        %522 = vmatpush.msra.mxu0 0.0
        %523 = vmatpush.msra.mxu0 0.0
        %524 = vmatpush.msra.mxu0 0.0
        %525 = vmatpush.msra.mxu0 %v504
        %526 = vmatpush.msra.mxu0 %v503
        %527 = vmatpush.msra.mxu0 %v502
        %528 = vmatpush.msra.mxu0 %v501
        %529 = vmatmul.f32.gmra.mxu0 %v511
        %v530 = vpop.f32.mrf.mxu0
        %v531 = vadd.f32 %v507, %v530
        %532 = vdwg.mxu0
        %v533 = vmul.f32 %v531, 0.35355338
        %v534 = vld [vmem:[#allocation6] sm:$0xff]
        %v535 = vld [vmem:[#allocation6 + $0x8] sm:$0xff]
        %v536 = vld [vmem:[#allocation6 + $0x10] sm:$0xff]
        %v537 = vld [vmem:[#allocation6 + $0x18] sm:$0xff]
        %v538 = vld [vmem:[#allocation7] sm:$0x1]
        %v540 = vperm.slane %v538, 0
        %v543 = vsel %vm509, %v499, 0
        %v546 = vsel %vm509, %v500, 0
        %548 = vmatpush.msra.mxu0 0.0
        %549 = vmatpush.msra.mxu0 0.0
        %550 = vmatpush.msra.mxu0 0.0
        %551 = vmatpush.msra.mxu0 0.0
        %552 = vmatpush.msra.mxu0 0.0
        %553 = vmatpush.msra.mxu0 0.0
        %554 = vmatpush.msra.mxu0 0.0
        %555 = vmatpush.msra.mxu0 0.0
        %556 = vmatpush.msra.mxu0 0.0
        %557 = vmatpush.msra.mxu0 0.0
        %558 = vmatpush.msra.mxu0 0.0
        %559 = vmatpush.msra.mxu0 0.0
        %560 = vmatpush.msra.mxu0 %v537
        %561 = vmatpush.msra.mxu0 %v536
        %562 = vmatpush.msra.mxu0 %v535
        %563 = vmatpush.msra.mxu0 %v534
        %564 = vmatmul.f32.gmra.mxu0 %v543
        %v565 = vpop.f32.mrf.mxu0
        %v566 = vadd.f32 %v540, %v565
        %567 = vmatmul.f32.gmra.mxu0 %v546
        %v568 = vpop.f32.mrf.mxu0
        %v569 = vadd.f32 %v540, %v568
        %570 = vdwg.mxu0
        %v571 = vld [vmem:[#allocation9] sm:$0xff]
        %v572 = vld [vmem:[#allocation9 + $0x8] sm:$0xff]
        %v573 = vld [vmem:[#allocation9 + $0x10] sm:$0xff]
        %v574 = vld [vmem:[#allocation9 + $0x18] sm:$0xff]
        %vm575 = vcmask 64512
        %v577 = vsel %vm575, %v533, 0
        %v580 = vsel %vm575, %v566, 0
        %v583 = vsel %vm575, %v569, 0
        %585 = vmatpush.xpose.msra.mxu0 0.0
        %586 = vmatpush.xpose.msra.mxu0 0.0
        %587 = vmatpush.xpose.msra.mxu0 0.0
        %588 = vmatpush.xpose.msra.mxu0 0.0
        %589 = vmatpush.xpose.msra.mxu0 0.0
        %590 = vmatpush.xpose.msra.mxu0 0.0
        %591 = vmatpush.xpose.msra.mxu0 0.0
        %592 = vmatpush.xpose.msra.mxu0 0.0
        %593 = vmatpush.xpose.msra.mxu0 0.0
        %594 = vmatpush.xpose.msra.mxu0 0.0
        %595 = vmatpush.xpose.msra.mxu0 0.0
        %596 = vmatpush.xpose.msra.mxu0 0.0
        %597 = vmatpush.xpose.msra.mxu0 0.0
        %598 = vmatpush.xpose.msra.mxu0 0.0
        %599 = vmatpush.xpose.msra.mxu0 %v583
        %600 = vmatpush.xpose.msra.mxu0 %v580
        %601 = vmatmul.f32.gmra.mxu0 %v577
        %v602 = vpop.f32.mrf.mxu0
        %v603 = vadd.f32 0.0, %v602
        %604 = vdwg.mxu0
        %vm605 = vcmask 130048
        %v606 = vsel %vm605, %v603, -inf
        %607 = vmax.xlane.f32.xlu0 %v606
        %v608 = vpop.xlane.xlu0 %607
        %v609 = vsub.f32 %v603, %v608
        %v610 = vmul.f32 %v609, 1.442695
        %v611 = vpow.pop %v610
        %v612 = vsel %vm605, %v611, 0.0
        %613 = vadd.xlane.f32.xlu0 %v612
        %v614 = vpop.xlane.xlu0 %613
        %v615 = vrcp.pop %v614
        %v616 = vmul.f32 %v611, %v615
        %617 = vrot.lane.b32.xlu0 %v566, 96
        %v618 = vpop.permute.xlu0 %617
        %619 = vrot.lane.b32.xlu0 %v569, 96
        %v620 = vpop.permute.xlu0 %619
        %v624 = vsel %vm605, %v616, 0
        %626 = vmatpush.msra.mxu0 0.0
        %627 = vmatpush.msra.mxu0 0.0
        %628 = vmatpush.msra.mxu0 0.0
        %629 = vmatpush.msra.mxu0 0.0
        %630 = vmatpush.msra.mxu0 0.0
        %631 = vmatpush.msra.mxu0 0.0
        %632 = vmatpush.msra.mxu0 0.0
        %633 = vmatpush.msra.mxu0 0.0
        %634 = vmatpush.msra.mxu0 0.0
        %635 = vmatpush.msra.mxu0 0.0
        %636 = vmatpush.msra.mxu0 0.0
        %637 = vmatpush.msra.mxu0 0.0
        %638 = vmatpush.msra.mxu0 0.0
        %639 = vmatpush.msra.mxu0 0.0
        %640 = vmatpush.msra.mxu0 %v620
        %641 = vmatpush.msra.mxu0 %v618
        %642 = vmatmul.f32.gmra.mxu0 %v624
        %v643 = vpop.f32.mrf.mxu0
        %v644 = vadd.f32 0.0, %v643
        %645 = vdwg.mxu0
        %646 = vrot.lane.b32.xlu0 %v533, 120
        %v647 = vpop.permute.xlu0 %646
        %648 = vrot.lane.b32.xlu0 %v566, 120
        %v649 = vpop.permute.xlu0 %648
        %650 = vrot.lane.b32.xlu0 %v569, 120
        %v651 = vpop.permute.xlu0 %650
        %v652 = vsel %vm575, %v647, 0
        %v654 = vsel %vm575, %v649, 0
        %v656 = vsel %vm575, %v651, 0
        %658 = vmatpush.xpose.msra.mxu0 0.0
        %659 = vmatpush.xpose.msra.mxu0 0.0
        %660 = vmatpush.xpose.msra.mxu0 0.0
        %661 = vmatpush.xpose.msra.mxu0 0.0
        %662 = vmatpush.xpose.msra.mxu0 0.0
        %663 = vmatpush.xpose.msra.mxu0 0.0
        %664 = vmatpush.xpose.msra.mxu0 0.0
        %665 = vmatpush.xpose.msra.mxu0 0.0
        %666 = vmatpush.xpose.msra.mxu0 0.0
        %667 = vmatpush.xpose.msra.mxu0 0.0
        %668 = vmatpush.xpose.msra.mxu0 0.0
        %669 = vmatpush.xpose.msra.mxu0 0.0
        %670 = vmatpush.xpose.msra.mxu0 0.0
        %671 = vmatpush.xpose.msra.mxu0 0.0
        %672 = vmatpush.xpose.msra.mxu0 %v656
        %673 = vmatpush.xpose.msra.mxu0 %v654
        %674 = vmatmul.f32.gmra.mxu0 %v652
        %v675 = vpop.f32.mrf.mxu0
        %v676 = vadd.f32 0.0, %v675
        %677 = vdwg.mxu0
        %v678 = vsel %vm605, %v676, -inf
        %679 = vmax.xlane.f32.xlu0 %v678
        %v680 = vpop.xlane.xlu0 %679
        %v681 = vsub.f32 %v676, %v680
        %v682 = vmul.f32 %v681, 1.442695
        %v683 = vpow.pop %v682
        %v684 = vsel %vm605, %v683, 0.0
        %685 = vadd.xlane.f32.xlu0 %v684
        %v686 = vpop.xlane.xlu0 %685
        %v687 = vrcp.pop %v686
        %v688 = vmul.f32 %v683, %v687
        %689 = vrot.lane.b32.xlu0 %v566, 88
        %v690 = vpop.permute.xlu0 %689
        %691 = vrot.lane.b32.xlu0 %v569, 88
        %v692 = vpop.permute.xlu0 %691
        %v696 = vsel %vm605, %v688, 0
        %698 = vmatpush.msra.mxu0 0.0
        %699 = vmatpush.msra.mxu0 0.0
        %700 = vmatpush.msra.mxu0 0.0
        %701 = vmatpush.msra.mxu0 0.0
        %702 = vmatpush.msra.mxu0 0.0
        %703 = vmatpush.msra.mxu0 0.0
        %704 = vmatpush.msra.mxu0 0.0
        %705 = vmatpush.msra.mxu0 0.0
        %706 = vmatpush.msra.mxu0 0.0
        %707 = vmatpush.msra.mxu0 0.0
        %708 = vmatpush.msra.mxu0 0.0
        %709 = vmatpush.msra.mxu0 0.0
        %710 = vmatpush.msra.mxu0 0.0
        %711 = vmatpush.msra.mxu0 0.0
        %712 = vmatpush.msra.mxu0 %v692
        %713 = vmatpush.msra.mxu0 %v690
        %714 = vmatmul.f32.gmra.mxu0 %v696
        %v715 = vpop.f32.mrf.mxu0
        %v716 = vadd.f32 0.0, %v715
        %717 = vdwg.mxu0
        %v719 = vsel %vm575, %v716, 0
        %721 = vmatpush.msra.mxu0 0.0
        %722 = vmatpush.msra.mxu0 0.0
        %723 = vmatpush.msra.mxu0 0.0
        %724 = vmatpush.msra.mxu0 0.0
        %725 = vmatpush.msra.mxu0 0.0
        %726 = vmatpush.msra.mxu0 0.0
        %727 = vmatpush.msra.mxu0 0.0
        %728 = vmatpush.msra.mxu0 0.0
        %729 = vmatpush.msra.mxu0 0.0
        %730 = vmatpush.msra.mxu0 0.0
        %731 = vmatpush.msra.mxu0 0.0
        %732 = vmatpush.msra.mxu0 0.0
        %733 = vmatpush.msra.mxu0 0.0
        %734 = vmatpush.msra.mxu0 0.0
        %735 = vmatpush.msra.mxu0 0.0
        %736 = vmatpush.msra.mxu0 %v572
        %737 = vmatmul.f32.gmra.mxu0 %v719
        %v738 = vpop.f32.mrf.mxu0
        %v739 = vadd.f32 0.0, %v738
        %740 = vdwg.mxu0
        %v742 = vsel %vm575, %v644, 0
        %744 = vmatpush.msra.mxu0 0.0
        %745 = vmatpush.msra.mxu0 0.0
        %746 = vmatpush.msra.mxu0 0.0
        %747 = vmatpush.msra.mxu0 0.0
        %748 = vmatpush.msra.mxu0 0.0
        %749 = vmatpush.msra.mxu0 0.0
        %750 = vmatpush.msra.mxu0 0.0
        %751 = vmatpush.msra.mxu0 0.0
        %752 = vmatpush.msra.mxu0 0.0
        %753 = vmatpush.msra.mxu0 0.0
        %754 = vmatpush.msra.mxu0 0.0
        %755 = vmatpush.msra.mxu0 0.0
        %756 = vmatpush.msra.mxu0 0.0
        %757 = vmatpush.msra.mxu0 0.0
        %758 = vmatpush.msra.mxu0 0.0
        %759 = vmatpush.msra.mxu0 %v571
        %760 = vmatmul.f32.gmra.mxu0 %v742
        %v761 = vpop.f32.mrf.mxu0
        %v762 = vadd.f32 %v739, %v761
        %763 = vdwg.mxu0
        %764 = vrot.lane.b32.xlu0 %v533, 112
        %v765 = vpop.permute.xlu0 %764
        %766 = vrot.lane.b32.xlu0 %v566, 112
        %v767 = vpop.permute.xlu0 %766
        %768 = vrot.lane.b32.xlu0 %v569, 112
        %v769 = vpop.permute.xlu0 %768
        %v770 = vsel %vm575, %v765, 0
        %v772 = vsel %vm575, %v767, 0
        %v774 = vsel %vm575, %v769, 0
        %776 = vmatpush.xpose.msra.mxu0 0.0
        %777 = vmatpush.xpose.msra.mxu0 0.0
        %778 = vmatpush.xpose.msra.mxu0 0.0
        %779 = vmatpush.xpose.msra.mxu0 0.0
        %780 = vmatpush.xpose.msra.mxu0 0.0
        %781 = vmatpush.xpose.msra.mxu0 0.0
        %782 = vmatpush.xpose.msra.mxu0 0.0
        %783 = vmatpush.xpose.msra.mxu0 0.0
        %784 = vmatpush.xpose.msra.mxu0 0.0
        %785 = vmatpush.xpose.msra.mxu0 0.0
        %786 = vmatpush.xpose.msra.mxu0 0.0
        %787 = vmatpush.xpose.msra.mxu0 0.0
        %788 = vmatpush.xpose.msra.mxu0 0.0
        %789 = vmatpush.xpose.msra.mxu0 0.0
        %790 = vmatpush.xpose.msra.mxu0 %v774
        %791 = vmatpush.xpose.msra.mxu0 %v772
        %792 = vmatmul.f32.gmra.mxu0 %v770
        %v793 = vpop.f32.mrf.mxu0
        %v794 = vadd.f32 0.0, %v793
        %795 = vdwg.mxu0
        %v796 = vsel %vm605, %v794, -inf
        %797 = vmax.xlane.f32.xlu0 %v796
        %v798 = vpop.xlane.xlu0 %797
        %v799 = vsub.f32 %v794, %v798
        %v800 = vmul.f32 %v799, 1.442695
        %v801 = vpow.pop %v800
        %v802 = vsel %vm605, %v801, 0.0
        %803 = vadd.xlane.f32.xlu0 %v802
        %v804 = vpop.xlane.xlu0 %803
        %v805 = vrcp.pop %v804
        %v806 = vmul.f32 %v801, %v805
        %807 = vrot.lane.b32.xlu0 %v566, 80
        %v808 = vpop.permute.xlu0 %807
        %809 = vrot.lane.b32.xlu0 %v569, 80
        %v810 = vpop.permute.xlu0 %809
        %v814 = vsel %vm605, %v806, 0
        %816 = vmatpush.msra.mxu0 0.0
        %817 = vmatpush.msra.mxu0 0.0
        %818 = vmatpush.msra.mxu0 0.0
        %819 = vmatpush.msra.mxu0 0.0
        %820 = vmatpush.msra.mxu0 0.0
        %821 = vmatpush.msra.mxu0 0.0
        %822 = vmatpush.msra.mxu0 0.0
        %823 = vmatpush.msra.mxu0 0.0
        %824 = vmatpush.msra.mxu0 0.0
        %825 = vmatpush.msra.mxu0 0.0
        %826 = vmatpush.msra.mxu0 0.0
        %827 = vmatpush.msra.mxu0 0.0
        %828 = vmatpush.msra.mxu0 0.0
        %829 = vmatpush.msra.mxu0 0.0
        %830 = vmatpush.msra.mxu0 %v810
        %831 = vmatpush.msra.mxu0 %v808
        %832 = vmatmul.f32.gmra.mxu0 %v814
        %v833 = vpop.f32.mrf.mxu0
        %v834 = vadd.f32 0.0, %v833
        %835 = vdwg.mxu0
        %v837 = vsel %vm575, %v834, 0
        %839 = vmatpush.msra.mxu0 0.0
        %840 = vmatpush.msra.mxu0 0.0
        %841 = vmatpush.msra.mxu0 0.0
        %842 = vmatpush.msra.mxu0 0.0
        %843 = vmatpush.msra.mxu0 0.0
        %844 = vmatpush.msra.mxu0 0.0
        %845 = vmatpush.msra.mxu0 0.0
        %846 = vmatpush.msra.mxu0 0.0
        %847 = vmatpush.msra.mxu0 0.0
        %848 = vmatpush.msra.mxu0 0.0
        %849 = vmatpush.msra.mxu0 0.0
        %850 = vmatpush.msra.mxu0 0.0
        %851 = vmatpush.msra.mxu0 0.0
        %852 = vmatpush.msra.mxu0 0.0
        %853 = vmatpush.msra.mxu0 0.0
        %854 = vmatpush.msra.mxu0 %v573
        %855 = vmatmul.f32.gmra.mxu0 %v837
        %v856 = vpop.f32.mrf.mxu0
        %v857 = vadd.f32 0.0, %v856
        %858 = vdwg.mxu0
        %v859 = vadd.f32 %v762, %v857
        %860 = vrot.lane.b32.xlu0 %v533, 104
        %v861 = vpop.permute.xlu0 %860
        %862 = vrot.lane.b32.xlu0 %v566, 104
        %v863 = vpop.permute.xlu0 %862
        %864 = vrot.lane.b32.xlu0 %v569, 104
        %v865 = vpop.permute.xlu0 %864
        %v866 = vsel %vm575, %v861, 0
        %v868 = vsel %vm575, %v863, 0
        %v870 = vsel %vm575, %v865, 0
        %872 = vmatpush.xpose.msra.mxu0 0.0
        %873 = vmatpush.xpose.msra.mxu0 0.0
        %874 = vmatpush.xpose.msra.mxu0 0.0
        %875 = vmatpush.xpose.msra.mxu0 0.0
        %876 = vmatpush.xpose.msra.mxu0 0.0
        %877 = vmatpush.xpose.msra.mxu0 0.0
        %878 = vmatpush.xpose.msra.mxu0 0.0
        %879 = vmatpush.xpose.msra.mxu0 0.0
        %880 = vmatpush.xpose.msra.mxu0 0.0
        %881 = vmatpush.xpose.msra.mxu0 0.0
        %882 = vmatpush.xpose.msra.mxu0 0.0
        %883 = vmatpush.xpose.msra.mxu0 0.0
        %884 = vmatpush.xpose.msra.mxu0 0.0
        %885 = vmatpush.xpose.msra.mxu0 0.0
        %886 = vmatpush.xpose.msra.mxu0 %v870
        %887 = vmatpush.xpose.msra.mxu0 %v868
        %888 = vmatmul.f32.gmra.mxu0 %v866
        %v889 = vpop.f32.mrf.mxu0
        %v890 = vadd.f32 0.0, %v889
        %891 = vdwg.mxu0
        %v892 = vsel %vm605, %v890, -inf
        %893 = vmax.xlane.f32.xlu0 %v892
        %v894 = vpop.xlane.xlu0 %893
        %v895 = vsub.f32 %v890, %v894
        %v896 = vmul.f32 %v895, 1.442695
        %v897 = vpow.pop %v896
        %v898 = vsel %vm605, %v897, 0.0
        %899 = vadd.xlane.f32.xlu0 %v898
        %v900 = vpop.xlane.xlu0 %899
        %v901 = vrcp.pop %v900
        %v902 = vmul.f32 %v897, %v901
        %903 = vrot.lane.b32.xlu0 %v566, 72
        %v904 = vpop.permute.xlu0 %903
        %905 = vrot.lane.b32.xlu0 %v569, 72
        %v906 = vpop.permute.xlu0 %905
        %v910 = vsel %vm605, %v902, 0
        %912 = vmatpush.msra.mxu0 0.0
        %913 = vmatpush.msra.mxu0 0.0
        %914 = vmatpush.msra.mxu0 0.0
        %915 = vmatpush.msra.mxu0 0.0
        %916 = vmatpush.msra.mxu0 0.0
        %917 = vmatpush.msra.mxu0 0.0
        %918 = vmatpush.msra.mxu0 0.0
        %919 = vmatpush.msra.mxu0 0.0
        %920 = vmatpush.msra.mxu0 0.0
        %921 = vmatpush.msra.mxu0 0.0
        %922 = vmatpush.msra.mxu0 0.0
        %923 = vmatpush.msra.mxu0 0.0
        %924 = vmatpush.msra.mxu0 0.0
        %925 = vmatpush.msra.mxu0 0.0
        %926 = vmatpush.msra.mxu0 %v906
        %927 = vmatpush.msra.mxu0 %v904
        %928 = vmatmul.f32.gmra.mxu0 %v910
        %v929 = vpop.f32.mrf.mxu0
        %v930 = vadd.f32 0.0, %v929
        %931 = vdwg.mxu0
        %v933 = vsel %vm575, %v930, 0
        %935 = vmatpush.msra.mxu0 0.0
        %936 = vmatpush.msra.mxu0 0.0
        %937 = vmatpush.msra.mxu0 0.0
        %938 = vmatpush.msra.mxu0 0.0
        %939 = vmatpush.msra.mxu0 0.0
        %940 = vmatpush.msra.mxu0 0.0
        %941 = vmatpush.msra.mxu0 0.0
        %942 = vmatpush.msra.mxu0 0.0
        %943 = vmatpush.msra.mxu0 0.0
        %944 = vmatpush.msra.mxu0 0.0
        %945 = vmatpush.msra.mxu0 0.0
        %946 = vmatpush.msra.mxu0 0.0
        %947 = vmatpush.msra.mxu0 0.0
        %948 = vmatpush.msra.mxu0 0.0
        %949 = vmatpush.msra.mxu0 0.0
        %950 = vmatpush.msra.mxu0 %v574
        %951 = vmatmul.f32.gmra.mxu0 %v933
        %v952 = vpop.f32.mrf.mxu0
        %v953 = vadd.f32 0.0, %v952
        %954 = vdwg.mxu0
        %v955 = vadd.f32 %v859, %v953
        %v956 = vld [vmem:[#allocation10] sm:$0x1]
        %v958 = vperm.slane %v956, 0
        %v960 = vadd.f32 %v955, %v958
        %v961 = vadd.f32 %v498, %v960
        %v962 = vld [vmem:[#allocation12] sm:$0x1]
        %v963 = vld [vmem:[#allocation13] sm:$0x1]
        %v964 = vsel %vm509, %v961, 0.0
        %965 = vadd.xlane.f32.xlu0 %v964
        %v966 = vpop.xlane.xlu0 %965
        %v967 = vrcp.pop 32.0
        %v968 = vmul.f32 32.0, %v967
        %v969 = vsub.f32 1.0, %v968
        %v970 = vmul.f32 %v967, %v969
        %v971 = vadd.f32 %v967, %v970
        %vm972 = vweird.f32 %v967
        %v973 = vsel %vm972, %v967, %v971
        %v974 = vmul.f32 %v966, %v973
        %v975 = vsub.f32 %v961, %v974
        %v976 = vmul.f32 %v975, %v975
        %v977 = vsel %vm509, %v976, 0.0
        %978 = vadd.xlane.f32.xlu0 %v977
        %v979 = vpop.xlane.xlu0 %978
        %v980 = vmul.f32 %v979, %v973
        %v981 = vadd.f32 %v980, 1e-05
        %v982 = vrsqrt.pop %v981
        %v983 = vmul.f32 %v982, %v981
        %v984 = vmul.f32 %v983, %v982
        %v985 = vmul.f32 0.5, %v984
        %v986 = vsub.f32 1.5, %v985
        %v987 = vmul.f32 %v982, %v986
        %vm988 = vweird.f32 %v981
        %vm989 = vweird.f32 %v982
        %vm990 = vmor %vm988, %vm989
        %v991 = vsel %vm990, %v982, %v987
        %v992 = vmul.f32 %v975, %v991
        %v994 = vperm.slane %v962, 0
        %v996 = vmul.f32 %v992, %v994
        %v998 = vperm.slane %v963, 0
        %v1000 = vadd.f32 %v996, %v998
        %1001 = vst.msk [vmem:[%s497] sm:$0xff] %vm509, %v1000
        %p1002 = scmp.lt.s32.totalorder %s26, 1
        %s1003 = scalar_select %p1002, %s26, 1
        %s1004 = smul.addr %s1003, 8
        %s1005 = scalar_lea.vmem %s10, %s1004
        // Predicated region
        $region93: #{time_series_transformer.17} parent=59 // pred_check
          %p1006 = pneg %p264
        $region94: #{time_series_transformer.17} parent=59 // pred_check_branch
          %1008 = sbr.rel (%p1006) target = $region96
        $region95: #{time_series_transformer.17} parent=59 // pred_region
          _
        $region96: #{time_series_transformer.17} parent=59 // pred_fallthru
          _
      $region60: #{time_series_transformer.17} parent=5 // pred_fallthru
        _
      %p1009 = scmp.le.s32.totalorder 2, %s21
      // Predicated region
      $region97: #{time_series_transformer.17} parent=5 // pred_check
        %p1010 = pneg %p1009
      $region98: #{time_series_transformer.17} parent=5 // pred_check_branch
        %1012 = sbr.rel (%p1010) target = $region100
      $region99: #{time_series_transformer.17} parent=5 // pred_region
        %s1013 = ssub.s32 %s21, 2
        // Predicated region
        $region101: #{time_series_transformer.17} parent=99 // pred_check
          %p1014 = pneg %p270
        $region102: #{time_series_transformer.17} parent=99 // pred_check_branch
          %1016 = sbr.rel (%p1014) target = $region104
        $region103: #{time_series_transformer.17} parent=99 // pred_region
          %p1017 = scmp.lt.s32.totalorder %s27, 1
          %s1018 = scalar_select %p1017, %s27, 1
          %s1019 = smul.addr %s1018, 8
          %s1020 = scalar_lea.vmem %s10, %s1019
        $region104: #{time_series_transformer.17} parent=99 // pred_fallthru
          _
      $region100: #{time_series_transformer.17} parent=5 // pred_fallthru
        _
    $region6: #{time_series_transformer.17} parent=1 // loop_footer
      %s25 = sadd.s32 1, %s21
    $region7: #{time_series_transformer.17} parent=1 // loop_footer_branch
      %20 = sbr.rel target = $region3
    $region8: #{time_series_transformer.17} parent=1 // loop_exit
      _
    %1021 = vsyncpa [#allocation3], 1
    %s1022 = scalar_lea.sflag [#allocation3], 1
    %1023 = vsyncpa %s1022, 1
    %1024 = vsyncpa [#allocation5], 1
    %1025 = vsyncpa [#allocation8], 1
    %1026 = vsyncpa [#allocation11], 1
    %1027 = vsyncpa [#allocation14], 1

// kernel: time_series_transformer.19
$region0: #{time_series_transformer.19}
  #allocation0 [shape = 'u32[]', space=smem, size = 0x4, offset = 0x4, fixed_abs, tag = 'smem constant byte address 0x4 - core index']
  #allocation1 [shape = 'u32[72,128]{1,0:T(1,128)}', space=vmem, size = 0x9000, scoped, tag = 'internal scratch']
  %s0 = inlined_call_operand.vmem [shape: f32[2,8,32], index: 0, kind: input, shape index: {}]
  %s1 = inlined_call_operand.vmem [shape: f32[32,96], index: 1, kind: input, shape index: {}]
  %s2 = inlined_call_operand.vmem [shape: f32[1,96], index: 2, kind: input, shape index: {}]
  %s3 = inlined_call_operand.hbm [shape: f32[32,32], index: 3, kind: input, shape index: {}]
  %s4 = inlined_call_operand.vmem [shape: f32[1,32], index: 4, kind: input, shape index: {}]
  %s5 = inlined_call_operand.vmem [shape: f32[1,32], index: 5, kind: input, shape index: {}]
  %s6 = inlined_call_operand.vmem [shape: f32[1,32], index: 6, kind: input, shape index: {}]
  %s7 = inlined_call_operand.vmem [shape: f32[2,8,32], index: 7, kind: output, shape index: {}]
  %s8 = sld [smem:[#allocation0]]
  $region65: #{time_series_transformer.19} parent=0
    _
  %s10 = ssub.s32 1, %s8
  %s11 = scalar_select 0, %s10, %s8
  $region1: #{time_series_transformer.19} parent=0
    #allocation2 [shape = 'u8[16384]{0}', space=vmem, size = 0x4000, scoped, tag = 'input window, operand 3, single buffered']
    #allocation3 [shape = 's32[2]{0}', space=sflag, size = 0x8, scoped, tag = 'scoped memory for time_series_transformer.19']
    %12 = vsyncpa [#allocation3], 0
    loop: start=0, step=1, limit=4
    $region2: #{time_series_transformer.19} parent=1 // loop_pre_header
      _
    $region3: #{time_series_transformer.19} parent=1 // loop_header
      %s14 = sphi 0, %s18
      %p15 = scmp.ge.s32.totalorder %s14, 4
      %s24 = sphi 0, %s26
      %s27 = sphi 0, %s24
      %s28 = sphi 0, %s27
      %s44 = sphi 0, %s28
      %s48 = sphi 0, %s48
      %s50 = sphi 0, %s48
      %s51 = sphi 0, %s50
      %s65 = sphi 0, %s51
      %s69 = sphi 0, %s69
      %s71 = sphi 0, %s69
      %s72 = sphi 0, %s71
      %s86 = sphi 0, %s72
      %s90 = sphi 0, %s90
      %s92 = sphi 0, %s90
      %s93 = sphi 0, %s92
      %s107 = sphi 0, %s93
      %s111 = sphi 0, %s111
      %s113 = sphi 0, %s111
      %s114 = sphi 0, %s113
      %s128 = sphi 0, %s114
      %s132 = sphi 0, %s132
      %s134 = sphi 0, %s132
      %s135 = sphi 0, %s134
      %s149 = sphi 0, %s135
      %s153 = sphi 0, %s153
      %s155 = sphi 0, %s153
      %s156 = sphi 0, %s155
      %s170 = sphi 0, %s156
      %s176 = sphi 0, %s178
      %s179 = sphi 0, %s176
      %s180 = sphi 0, %s179
      %s196 = sphi 0, %s180
    $region4: #{time_series_transformer.19} parent=1 // loop_header_branch
      %17 = sbr.rel (%p15) target = $region8
    $region5: #{time_series_transformer.19} parent=1 // loop_body
      %s19 = ssub.s32 %s14, 1
      %s20 = ssub.s32 %s14, 2
      %s21 = sadd.s32 %s14, 1
      %s22 = ssub.s32 %s14, %s21
      %p23 = scmp.eq.s32.totalorder %s22, 0
      %s25 = sadd.s32 %s24, 1
      %s26 = scalar_select %p23, %s24, %s25
      %p29 = pneg %p23
      %p30 = scmp.eq.s32.totalorder %s14, 1
      %p31 = por %p29, %p30
      %p32 = scmp.ne.s32.totalorder %s24, %s27
      %p33 = scmp.eq.s32.totalorder %s14, 0
      %p34 = por %p32, %p33
      %p35 = scmp.ne.s32.totalorder %s24, %s27
      %p36 = scmp.eq.s32.totalorder %s19, 1
      %p37 = por %p35, %p36
      %p38 = scmp.ne.s32.totalorder %s27, %s28
      %p39 = scmp.eq.s32.totalorder %s19, 0
      %p40 = por %p38, %p39
      %p41 = scmp.ne.s32.totalorder %s27, %s28
      %p42 = scmp.eq.s32.totalorder %s20, 1
      %p43 = por %p41, %p42
      %p45 = scmp.ne.s32.totalorder %s28, %s44
      %p46 = scmp.eq.s32.totalorder %s20, 0
      %p47 = por %p45, %p46
      %s49 = sadd.s32 %s48, 1
      %p52 = scmp.eq.s32.totalorder %s14, 1
      %p53 = scmp.ne.s32.totalorder %s48, %s50
      %p54 = scmp.eq.s32.totalorder %s14, 0
      %p55 = por %p53, %p54
      %p56 = scmp.ne.s32.totalorder %s48, %s50
      %p57 = scmp.eq.s32.totalorder %s19, 1
      %p58 = por %p56, %p57
      %p59 = scmp.ne.s32.totalorder %s50, %s51
      %p60 = scmp.eq.s32.totalorder %s19, 0
      %p61 = por %p59, %p60
      %p62 = scmp.ne.s32.totalorder %s50, %s51
      %p63 = scmp.eq.s32.totalorder %s20, 1
      %p64 = por %p62, %p63
      %p66 = scmp.ne.s32.totalorder %s51, %s65
      %p67 = scmp.eq.s32.totalorder %s20, 0
      %p68 = por %p66, %p67
      %s70 = sadd.s32 %s69, 1
      %p73 = scmp.eq.s32.totalorder %s14, 1
      %p74 = scmp.ne.s32.totalorder %s69, %s71
      %p75 = scmp.eq.s32.totalorder %s14, 0
      %p76 = por %p74, %p75
      %p77 = scmp.ne.s32.totalorder %s69, %s71
      %p78 = scmp.eq.s32.totalorder %s19, 1
      %p79 = por %p77, %p78
      %p80 = scmp.ne.s32.totalorder %s71, %s72
      %p81 = scmp.eq.s32.totalorder %s19, 0
      %p82 = por %p80, %p81
      %p83 = scmp.ne.s32.totalorder %s71, %s72
      %p84 = scmp.eq.s32.totalorder %s20, 1
      %p85 = por %p83, %p84
      %p87 = scmp.ne.s32.totalorder %s72, %s86
      %p88 = scmp.eq.s32.totalorder %s20, 0
      %p89 = por %p87, %p88
      %s91 = sadd.s32 %s90, 1
      %p94 = scmp.eq.s32.totalorder %s14, 1
      %p95 = scmp.ne.s32.totalorder %s90, %s92
      %p96 = scmp.eq.s32.totalorder %s14, 0
      %p97 = por %p95, %p96
      %p98 = scmp.ne.s32.totalorder %s90, %s92
      %p99 = scmp.eq.s32.totalorder %s19, 1
      %p100 = por %p98, %p99
      %p101 = scmp.ne.s32.totalorder %s92, %s93
      %p102 = scmp.eq.s32.totalorder %s19, 0
      %p103 = por %p101, %p102
      %p104 = scmp.ne.s32.totalorder %s92, %s93
      %p105 = scmp.eq.s32.totalorder %s20, 1
      %p106 = por %p104, %p105
      %p108 = scmp.ne.s32.totalorder %s93, %s107
      %p109 = scmp.eq.s32.totalorder %s20, 0
      %p110 = por %p108, %p109
      %s112 = sadd.s32 %s111, 1
      %p115 = scmp.eq.s32.totalorder %s14, 1
      %p116 = scmp.ne.s32.totalorder %s111, %s113
      %p117 = scmp.eq.s32.totalorder %s14, 0
      %p118 = por %p116, %p117
      %p119 = scmp.ne.s32.totalorder %s111, %s113
      %p120 = scmp.eq.s32.totalorder %s19, 1
      %p121 = por %p119, %p120
      %p122 = scmp.ne.s32.totalorder %s113, %s114
      %p123 = scmp.eq.s32.totalorder %s19, 0
      %p124 = por %p122, %p123
      %p125 = scmp.ne.s32.totalorder %s113, %s114
      %p126 = scmp.eq.s32.totalorder %s20, 1
      %p127 = por %p125, %p126
      %p129 = scmp.ne.s32.totalorder %s114, %s128
      %p130 = scmp.eq.s32.totalorder %s20, 0
      %p131 = por %p129, %p130
      %s133 = sadd.s32 %s132, 1
      %p136 = scmp.eq.s32.totalorder %s14, 1
      %p137 = scmp.ne.s32.totalorder %s132, %s134
      %p138 = scmp.eq.s32.totalorder %s14, 0
      %p139 = por %p137, %p138
      %p140 = scmp.ne.s32.totalorder %s132, %s134
      %p141 = scmp.eq.s32.totalorder %s19, 1
      %p142 = por %p140, %p141
      %p143 = scmp.ne.s32.totalorder %s134, %s135
      %p144 = scmp.eq.s32.totalorder %s19, 0
      %p145 = por %p143, %p144
      %p146 = scmp.ne.s32.totalorder %s134, %s135
      %p147 = scmp.eq.s32.totalorder %s20, 1
      %p148 = por %p146, %p147
      %p150 = scmp.ne.s32.totalorder %s135, %s149
      %p151 = scmp.eq.s32.totalorder %s20, 0
      %p152 = por %p150, %p151
      %s154 = sadd.s32 %s153, 1
      %p157 = scmp.eq.s32.totalorder %s14, 1
      %p158 = scmp.ne.s32.totalorder %s153, %s155
      %p159 = scmp.eq.s32.totalorder %s14, 0
      %p160 = por %p158, %p159
      %p161 = scmp.ne.s32.totalorder %s153, %s155
      %p162 = scmp.eq.s32.totalorder %s19, 1
      %p163 = por %p161, %p162
      %p164 = scmp.ne.s32.totalorder %s155, %s156
      %p165 = scmp.eq.s32.totalorder %s19, 0
      %p166 = por %p164, %p165
      %p167 = scmp.ne.s32.totalorder %s155, %s156
      %p168 = scmp.eq.s32.totalorder %s20, 1
      %p169 = por %p167, %p168
      %p171 = scmp.ne.s32.totalorder %s156, %s170
      %p172 = scmp.eq.s32.totalorder %s20, 0
      %p173 = por %p171, %p172
      %s174 = ssub.s32 %s14, %s21
      %p175 = scmp.eq.s32.totalorder %s174, 0
      %s177 = sadd.s32 %s176, 1
      %s178 = scalar_select %p175, %s176, %s177
      %p181 = pneg %p175
      %p182 = scmp.eq.s32.totalorder %s14, 1
      %p183 = por %p181, %p182
      %p184 = scmp.ne.s32.totalorder %s176, %s179
      %p185 = scmp.eq.s32.totalorder %s14, 0
      %p186 = por %p184, %p185
      %p187 = scmp.ne.s32.totalorder %s176, %s179
      %p188 = scmp.eq.s32.totalorder %s19, 1
      %p189 = por %p187, %p188
      %p190 = scmp.ne.s32.totalorder %s179, %s180
      %p191 = scmp.eq.s32.totalorder %s19, 0
      %p192 = por %p190, %p191
      %p193 = scmp.ne.s32.totalorder %s179, %s180
      %p194 = scmp.eq.s32.totalorder %s20, 1
      %p195 = por %p193, %p194
      %p197 = scmp.ne.s32.totalorder %s180, %s196
      %p198 = scmp.eq.s32.totalorder %s20, 0
      %p199 = por %p197, %p198
      %p200 = scmp.le.s32.totalorder 1, %s14
      %p201 = scmp.lt.s32.totalorder %s14, 3
      %p202 = pnand %p200, %p201
      %p203 = pneg %p202
      // Predicated region
      $region9: #{time_series_transformer.19} parent=5 // pred_check
        _
      $region10: #{time_series_transformer.19} parent=5 // pred_check_branch
        %205 = sbr.rel (%p202) target = $region12
      $region11: #{time_series_transformer.19} parent=5 // pred_region
        %s206 = ssub.s32 %s14, 1
        // Predicated region
        $region13: #{time_series_transformer.19} parent=11 // pred_check
          %p207 = pneg %p61
        $region14: #{time_series_transformer.19} parent=11 // pred_check_branch
          %209 = sbr.rel (%p207) target = $region16
        $region15: #{time_series_transformer.19} parent=11 // pred_region
          _
        $region16: #{time_series_transformer.19} parent=11 // pred_fallthru
          _
        // Predicated region
        $region17: #{time_series_transformer.19} parent=11 // pred_check
          %p210 = pneg %p82
        $region18: #{time_series_transformer.19} parent=11 // pred_check_branch
          %212 = sbr.rel (%p210) target = $region20
        $region19: #{time_series_transformer.19} parent=11 // pred_region
          _
        $region20: #{time_series_transformer.19} parent=11 // pred_fallthru
          _
        // Predicated region
        $region21: #{time_series_transformer.19} parent=11 // pred_check
          %p213 = pneg %p103
        $region22: #{time_series_transformer.19} parent=11 // pred_check_branch
          %215 = sbr.rel (%p213) target = $region24
        $region23: #{time_series_transformer.19} parent=11 // pred_region
          %217 = vsyncadd [#allocation3], 0
          %s218 = sshll.u32 %s3, 4
          %s219 = int_to_ptr.hbm [resolvable:$true] %s218
          %s220 = sshll.u32 [#allocation2], 4
          %s221 = int_to_ptr.vmem [resolvable:$true] %s220
          %226 = dma.hbm_to_vmem [thread:$0]  %s219, 512, %s221, [#allocation3], 128, 128, 8
        $region24: #{time_series_transformer.19} parent=11 // pred_fallthru
          _
        // Predicated region
        $region25: #{time_series_transformer.19} parent=11 // pred_check
          %p227 = pneg %p124
        $region26: #{time_series_transformer.19} parent=11 // pred_check_branch
          %229 = sbr.rel (%p227) target = $region28
        $region27: #{time_series_transformer.19} parent=11 // pred_region
          _
        $region28: #{time_series_transformer.19} parent=11 // pred_fallthru
          _
        // Predicated region
        $region29: #{time_series_transformer.19} parent=11 // pred_check
          %p230 = pneg %p145
        $region30: #{time_series_transformer.19} parent=11 // pred_check_branch
          %232 = sbr.rel (%p230) target = $region32
        $region31: #{time_series_transformer.19} parent=11 // pred_region
          _
        $region32: #{time_series_transformer.19} parent=11 // pred_fallthru
          _
        // Predicated region
        $region33: #{time_series_transformer.19} parent=11 // pred_check
          %p233 = pneg %p166
        $region34: #{time_series_transformer.19} parent=11 // pred_check_branch
          %235 = sbr.rel (%p233) target = $region36
        $region35: #{time_series_transformer.19} parent=11 // pred_region
          _
        $region36: #{time_series_transformer.19} parent=11 // pred_fallthru
          _
      $region12: #{time_series_transformer.19} parent=5 // pred_fallthru
        _
      %p236 = scmp.lt.s32.totalorder %s14, 2
      // Predicated region
      $region37: #{time_series_transformer.19} parent=5 // pred_check
        %p237 = pneg %p236
      $region38: #{time_series_transformer.19} parent=5 // pred_check_branch
        %239 = sbr.rel (%p237) target = $region40
      $region39: #{time_series_transformer.19} parent=5 // pred_region
        // Predicated region
        $region41: #{time_series_transformer.19} parent=39 // pred_check
          %p240 = pneg %p34
        $region42: #{time_series_transformer.19} parent=39 // pred_check_branch
          %242 = sbr.rel (%p240) target = $region44
        $region43: #{time_series_transformer.19} parent=39 // pred_region
          %p243 = scmp.lt.s32.totalorder %s14, 1
          %s244 = scalar_select %p243, %s14, 1
          %s245 = smul.addr %s244, 8
          %s246 = scalar_lea.vmem %s0, %s245
        $region44: #{time_series_transformer.19} parent=39 // pred_fallthru
          _
      $region40: #{time_series_transformer.19} parent=5 // pred_fallthru
        _
      %p247 = scmp.le.s32.totalorder 1, %s14
      %p248 = scmp.lt.s32.totalorder %s14, 3
      %p249 = pnand %p247, %p248
      %p250 = pneg %p249
      // Predicated region
      $region45: #{time_series_transformer.19} parent=5 // pred_check
        _
      $region46: #{time_series_transformer.19} parent=5 // pred_check_branch
        %252 = sbr.rel (%p249) target = $region48
      $region47: #{time_series_transformer.19} parent=5 // pred_region
        %s253 = ssub.s32 %s14, 1
        // Predicated region
        $region49: #{time_series_transformer.19} parent=47 // pred_check
          %p254 = pneg %p103
        $region50: #{time_series_transformer.19} parent=47 // pred_check_branch
          %256 = sbr.rel (%p254) target = $region52
        $region51: #{time_series_transformer.19} parent=47 // pred_region
          %258 = dma.done [#allocation3], 512
        $region52: #{time_series_transformer.19} parent=47 // pred_fallthru
          _
        %p259 = scmp.lt.s32.totalorder %s19, 1
        %s260 = scalar_select %p259, %s19, 1
        %s261 = smul.addr %s260, 8
        %s262 = scalar_lea.vmem %s0, %s261
        %p263 = pneg %p40
        %p264 = pneg %p37
        %p265 = pneg %p61
        %p266 = pneg %p58
        %p267 = pneg %p82
        %p268 = pneg %p79
        %p269 = pneg %p103
        %p270 = pneg %p100
        %p271 = pneg %p124
        %p272 = pneg %p121
        %p273 = pneg %p145
        %p274 = pneg %p142
        %p275 = pneg %p166
        %p276 = pneg %p163
        %p277 = pneg %p192
        %p278 = pneg %p189
        %p279 = scmp.lt.s32.totalorder %s19, 1
        %s280 = scalar_select %p279, %s19, 1
        %s281 = smul.addr %s280, 8
        %s282 = scalar_lea.vmem %s7, %s281
        %p283 = scmp.lt.s32.totalorder %s19, 1
        %s284 = scalar_select %p283, %s19, 1
        %s285 = smul.addr %s284, 8
        %s286 = scalar_lea.vmem %s0, %s285
        %p287 = scmp.lt.s32.totalorder %s19, 1
        %s288 = scalar_select %p287, %s19, 1
        %s289 = smul.addr %s288, 8
        %s290 = scalar_lea.vmem %s7, %s289
        %v291 = vld [vmem:[%s286] sm:$0xff]
        %v292 = vld [vmem:[%s1] sm:$0xff]
        %v293 = vld [vmem:[%s1 + $0x8] sm:$0xff]
        %v294 = vld [vmem:[%s1 + $0x10] sm:$0xff]
        %v295 = vld [vmem:[%s1 + $0x18] sm:$0xff]
        %v296 = vld [vmem:[%s2] sm:$0x1]
        %v298 = vperm.slane %v296, 0
        %vm300 = vcmask 261120
        %v302 = vsel %vm300, %v291, 0
        %304 = vmatpush.msra.mxu0 0.0
        %305 = vmatpush.msra.mxu0 0.0
        %306 = vmatpush.msra.mxu0 0.0
        %307 = vmatpush.msra.mxu0 0.0
        %308 = vmatpush.msra.mxu0 0.0
        %309 = vmatpush.msra.mxu0 0.0
        %310 = vmatpush.msra.mxu0 0.0
        %311 = vmatpush.msra.mxu0 0.0
        %312 = vmatpush.msra.mxu0 0.0
        %313 = vmatpush.msra.mxu0 0.0
        %314 = vmatpush.msra.mxu0 0.0
        %315 = vmatpush.msra.mxu0 0.0
        %316 = vmatpush.msra.mxu0 %v295
        %317 = vmatpush.msra.mxu0 %v294
        %318 = vmatpush.msra.mxu0 %v293
        %319 = vmatpush.msra.mxu0 %v292
        %320 = vmatmul.f32.gmra.mxu0 %v302
        %v321 = vpop.f32.mrf.mxu0
        %v322 = vadd.f32 %v298, %v321
        %323 = vdwg.mxu0
        %v324 = vmul.f32 %v322, 0.35355338
        %v325 = vld [vmem:[#allocation2] sm:$0xff]
        %v326 = vld [vmem:[#allocation2 + $0x8] sm:$0xff]
        %v327 = vld [vmem:[#allocation2 + $0x10] sm:$0xff]
        %v328 = vld [vmem:[#allocation2 + $0x18] sm:$0xff]
        %330 = vrot.lane.b32.xlu0 %v322, 96
        %v331 = vpop.permute.xlu0 %330
        %vm332 = vcmask 64512
        %v334 = vsel %vm332, %v324, 0
        %v336 = vsel %vm332, %v331, 0
        %338 = vmatpush.xpose.msra.mxu0 0.0
        %339 = vmatpush.xpose.msra.mxu0 0.0
        %340 = vmatpush.xpose.msra.mxu0 0.0
        %341 = vmatpush.xpose.msra.mxu0 0.0
        %342 = vmatpush.xpose.msra.mxu0 0.0
        %343 = vmatpush.xpose.msra.mxu0 0.0
        %344 = vmatpush.xpose.msra.mxu0 0.0
        %345 = vmatpush.xpose.msra.mxu0 0.0
        %346 = vmatpush.xpose.msra.mxu0 0.0
        %347 = vmatpush.xpose.msra.mxu0 0.0
        %348 = vmatpush.xpose.msra.mxu0 0.0
        %349 = vmatpush.xpose.msra.mxu0 0.0
        %350 = vmatpush.xpose.msra.mxu0 0.0
        %351 = vmatpush.xpose.msra.mxu0 0.0
        %352 = vmatpush.xpose.msra.mxu0 0.0
        %353 = vmatpush.xpose.msra.mxu0 %v336
        %354 = vmatmul.f32.gmra.mxu0 %v334
        %v355 = vpop.f32.mrf.mxu0
        %v356 = vadd.f32 0.0, %v355
        %357 = vdwg.mxu0
        %v358 = vsel %vm332, %v356, -inf
        %359 = vmax.xlane.f32.xlu0 %v358
        %v360 = vpop.xlane.xlu0 %359
        %v361 = vsub.f32 %v356, %v360
        %v362 = vmul.f32 %v361, 1.442695
        %v363 = vpow.pop %v362
        %v364 = vsel %vm332, %v363, 0.0
        %365 = vadd.xlane.f32.xlu0 %v364
        %v366 = vpop.xlane.xlu0 %365
        %v367 = vrcp.pop %v366
        %v368 = vmul.f32 %v363, %v367
        %369 = vrot.lane.b32.xlu0 %v322, 64
        %v370 = vpop.permute.xlu0 %369
        %v373 = vsel %vm332, %v368, 0
        %375 = vmatpush.msra.mxu0 0.0
        %376 = vmatpush.msra.mxu0 0.0
        %377 = vmatpush.msra.mxu0 0.0
        %378 = vmatpush.msra.mxu0 0.0
        %379 = vmatpush.msra.mxu0 0.0
        %380 = vmatpush.msra.mxu0 0.0
        %381 = vmatpush.msra.mxu0 0.0
        %382 = vmatpush.msra.mxu0 0.0
        %383 = vmatpush.msra.mxu0 0.0
        %384 = vmatpush.msra.mxu0 0.0
        %385 = vmatpush.msra.mxu0 0.0
        %386 = vmatpush.msra.mxu0 0.0
        %387 = vmatpush.msra.mxu0 0.0
        %388 = vmatpush.msra.mxu0 0.0
        %389 = vmatpush.msra.mxu0 0.0
        %390 = vmatpush.msra.mxu0 %v370
        %391 = vmatmul.f32.gmra.mxu0 %v373
        %v392 = vpop.f32.mrf.mxu0
        %v393 = vadd.f32 0.0, %v392
        %394 = vdwg.mxu0
        %395 = vrot.lane.b32.xlu0 %v324, 120
        %v396 = vpop.permute.xlu0 %395
        %397 = vrot.lane.b32.xlu0 %v322, 88
        %v398 = vpop.permute.xlu0 %397
        %v399 = vsel %vm332, %v396, 0
        %v401 = vsel %vm332, %v398, 0
        %403 = vmatpush.xpose.msra.mxu0 0.0
        %404 = vmatpush.xpose.msra.mxu0 0.0
        %405 = vmatpush.xpose.msra.mxu0 0.0
        %406 = vmatpush.xpose.msra.mxu0 0.0
        %407 = vmatpush.xpose.msra.mxu0 0.0
        %408 = vmatpush.xpose.msra.mxu0 0.0
        %409 = vmatpush.xpose.msra.mxu0 0.0
        %410 = vmatpush.xpose.msra.mxu0 0.0
        %411 = vmatpush.xpose.msra.mxu0 0.0
        %412 = vmatpush.xpose.msra.mxu0 0.0
        %413 = vmatpush.xpose.msra.mxu0 0.0
        %414 = vmatpush.xpose.msra.mxu0 0.0
        %415 = vmatpush.xpose.msra.mxu0 0.0
        %416 = vmatpush.xpose.msra.mxu0 0.0
        %417 = vmatpush.xpose.msra.mxu0 0.0
        %418 = vmatpush.xpose.msra.mxu0 %v401
        %419 = vmatmul.f32.gmra.mxu0 %v399
        %v420 = vpop.f32.mrf.mxu0
        %v421 = vadd.f32 0.0, %v420
        %422 = vdwg.mxu0
        %v423 = vsel %vm332, %v421, -inf
        %424 = vmax.xlane.f32.xlu0 %v423
        %v425 = vpop.xlane.xlu0 %424
        %v426 = vsub.f32 %v421, %v425
        %v427 = vmul.f32 %v426, 1.442695
        %v428 = vpow.pop %v427
        %v429 = vsel %vm332, %v428, 0.0
        %430 = vadd.xlane.f32.xlu0 %v429
        %v431 = vpop.xlane.xlu0 %430
        %v432 = vrcp.pop %v431
        %v433 = vmul.f32 %v428, %v432
        %434 = vrot.lane.b32.xlu0 %v322, 56
        %v435 = vpop.permute.xlu0 %434
        %v438 = vsel %vm332, %v433, 0
        %440 = vmatpush.msra.mxu0 0.0
        %441 = vmatpush.msra.mxu0 0.0
        %442 = vmatpush.msra.mxu0 0.0
        %443 = vmatpush.msra.mxu0 0.0
        %444 = vmatpush.msra.mxu0 0.0
        %445 = vmatpush.msra.mxu0 0.0
        %446 = vmatpush.msra.mxu0 0.0
        %447 = vmatpush.msra.mxu0 0.0
        %448 = vmatpush.msra.mxu0 0.0
        %449 = vmatpush.msra.mxu0 0.0
        %450 = vmatpush.msra.mxu0 0.0
        %451 = vmatpush.msra.mxu0 0.0
        %452 = vmatpush.msra.mxu0 0.0
        %453 = vmatpush.msra.mxu0 0.0
        %454 = vmatpush.msra.mxu0 0.0
        %455 = vmatpush.msra.mxu0 %v435
        %456 = vmatmul.f32.gmra.mxu0 %v438
        %v457 = vpop.f32.mrf.mxu0
        %v458 = vadd.f32 0.0, %v457
        %459 = vdwg.mxu0
        %v461 = vsel %vm332, %v458, 0
        %463 = vmatpush.msra.mxu0 0.0
        %464 = vmatpush.msra.mxu0 0.0
        %465 = vmatpush.msra.mxu0 0.0
        %466 = vmatpush.msra.mxu0 0.0
        %467 = vmatpush.msra.mxu0 0.0
        %468 = vmatpush.msra.mxu0 0.0
        %469 = vmatpush.msra.mxu0 0.0
        %470 = vmatpush.msra.mxu0 0.0
        %471 = vmatpush.msra.mxu0 0.0
        %472 = vmatpush.msra.mxu0 0.0
        %473 = vmatpush.msra.mxu0 0.0
        %474 = vmatpush.msra.mxu0 0.0
        %475 = vmatpush.msra.mxu0 0.0
        %476 = vmatpush.msra.mxu0 0.0
        %477 = vmatpush.msra.mxu0 0.0
        %478 = vmatpush.msra.mxu0 %v326
        %479 = vmatmul.f32.gmra.mxu0 %v461
        %v480 = vpop.f32.mrf.mxu0
        %v481 = vadd.f32 0.0, %v480
        %482 = vdwg.mxu0
        %v484 = vsel %vm332, %v393, 0
        %486 = vmatpush.msra.mxu0 0.0
        %487 = vmatpush.msra.mxu0 0.0
        %488 = vmatpush.msra.mxu0 0.0
        %489 = vmatpush.msra.mxu0 0.0
        %490 = vmatpush.msra.mxu0 0.0
        %491 = vmatpush.msra.mxu0 0.0
        %492 = vmatpush.msra.mxu0 0.0
        %493 = vmatpush.msra.mxu0 0.0
        %494 = vmatpush.msra.mxu0 0.0
        %495 = vmatpush.msra.mxu0 0.0
        %496 = vmatpush.msra.mxu0 0.0
        %497 = vmatpush.msra.mxu0 0.0
        %498 = vmatpush.msra.mxu0 0.0
        %499 = vmatpush.msra.mxu0 0.0
        %500 = vmatpush.msra.mxu0 0.0
        %501 = vmatpush.msra.mxu0 %v325
        %502 = vmatmul.f32.gmra.mxu0 %v484
        %v503 = vpop.f32.mrf.mxu0
        %v504 = vadd.f32 %v481, %v503
        %505 = vdwg.mxu0
        %506 = vrot.lane.b32.xlu0 %v324, 112
        %v507 = vpop.permute.xlu0 %506
        %508 = vrot.lane.b32.xlu0 %v322, 80
        %v509 = vpop.permute.xlu0 %508
        %v510 = vsel %vm332, %v507, 0
        %v512 = vsel %vm332, %v509, 0
        %514 = vmatpush.xpose.msra.mxu0 0.0
        %515 = vmatpush.xpose.msra.mxu0 0.0
        %516 = vmatpush.xpose.msra.mxu0 0.0
        %517 = vmatpush.xpose.msra.mxu0 0.0
        %518 = vmatpush.xpose.msra.mxu0 0.0
        %519 = vmatpush.xpose.msra.mxu0 0.0
        %520 = vmatpush.xpose.msra.mxu0 0.0
        %521 = vmatpush.xpose.msra.mxu0 0.0
        %522 = vmatpush.xpose.msra.mxu0 0.0
        %523 = vmatpush.xpose.msra.mxu0 0.0
        %524 = vmatpush.xpose.msra.mxu0 0.0
        %525 = vmatpush.xpose.msra.mxu0 0.0
        %526 = vmatpush.xpose.msra.mxu0 0.0
        %527 = vmatpush.xpose.msra.mxu0 0.0
        %528 = vmatpush.xpose.msra.mxu0 0.0
        %529 = vmatpush.xpose.msra.mxu0 %v512
        %530 = vmatmul.f32.gmra.mxu0 %v510
        %v531 = vpop.f32.mrf.mxu0
        %v532 = vadd.f32 0.0, %v531
        %533 = vdwg.mxu0
        %v534 = vsel %vm332, %v532, -inf
        %535 = vmax.xlane.f32.xlu0 %v534
        %v536 = vpop.xlane.xlu0 %535
        %v537 = vsub.f32 %v532, %v536
        %v538 = vmul.f32 %v537, 1.442695
        %v539 = vpow.pop %v538
        %v540 = vsel %vm332, %v539, 0.0
        %541 = vadd.xlane.f32.xlu0 %v540
        %v542 = vpop.xlane.xlu0 %541
        %v543 = vrcp.pop %v542
        %v544 = vmul.f32 %v539, %v543
        %545 = vrot.lane.b32.xlu0 %v322, 48
        %v546 = vpop.permute.xlu0 %545
        %v549 = vsel %vm332, %v544, 0
        %551 = vmatpush.msra.mxu0 0.0
        %552 = vmatpush.msra.mxu0 0.0
        %553 = vmatpush.msra.mxu0 0.0
        %554 = vmatpush.msra.mxu0 0.0
        %555 = vmatpush.msra.mxu0 0.0
        %556 = vmatpush.msra.mxu0 0.0
        %557 = vmatpush.msra.mxu0 0.0
        %558 = vmatpush.msra.mxu0 0.0
        %559 = vmatpush.msra.mxu0 0.0
        %560 = vmatpush.msra.mxu0 0.0
        %561 = vmatpush.msra.mxu0 0.0
        %562 = vmatpush.msra.mxu0 0.0
        %563 = vmatpush.msra.mxu0 0.0
        %564 = vmatpush.msra.mxu0 0.0
        %565 = vmatpush.msra.mxu0 0.0
        %566 = vmatpush.msra.mxu0 %v546
        %567 = vmatmul.f32.gmra.mxu0 %v549
        %v568 = vpop.f32.mrf.mxu0
        %v569 = vadd.f32 0.0, %v568
        %570 = vdwg.mxu0
        %v572 = vsel %vm332, %v569, 0
        %574 = vmatpush.msra.mxu0 0.0
        %575 = vmatpush.msra.mxu0 0.0
        %576 = vmatpush.msra.mxu0 0.0
        %577 = vmatpush.msra.mxu0 0.0
        %578 = vmatpush.msra.mxu0 0.0
        %579 = vmatpush.msra.mxu0 0.0
        %580 = vmatpush.msra.mxu0 0.0
        %581 = vmatpush.msra.mxu0 0.0
        %582 = vmatpush.msra.mxu0 0.0
        %583 = vmatpush.msra.mxu0 0.0
        %584 = vmatpush.msra.mxu0 0.0
        %585 = vmatpush.msra.mxu0 0.0
        %586 = vmatpush.msra.mxu0 0.0
        %587 = vmatpush.msra.mxu0 0.0
        %588 = vmatpush.msra.mxu0 0.0
        %589 = vmatpush.msra.mxu0 %v327
        %590 = vmatmul.f32.gmra.mxu0 %v572
        %v591 = vpop.f32.mrf.mxu0
        %v592 = vadd.f32 0.0, %v591
        %593 = vdwg.mxu0
        %v594 = vadd.f32 %v504, %v592
        %595 = vrot.lane.b32.xlu0 %v324, 104
        %v596 = vpop.permute.xlu0 %595
        %597 = vrot.lane.b32.xlu0 %v322, 72
        %v598 = vpop.permute.xlu0 %597
        %v599 = vsel %vm332, %v596, 0
        %v601 = vsel %vm332, %v598, 0
        %603 = vmatpush.xpose.msra.mxu0 0.0
        %604 = vmatpush.xpose.msra.mxu0 0.0
        %605 = vmatpush.xpose.msra.mxu0 0.0
        %606 = vmatpush.xpose.msra.mxu0 0.0
        %607 = vmatpush.xpose.msra.mxu0 0.0
        %608 = vmatpush.xpose.msra.mxu0 0.0
        %609 = vmatpush.xpose.msra.mxu0 0.0
        %610 = vmatpush.xpose.msra.mxu0 0.0
        %611 = vmatpush.xpose.msra.mxu0 0.0
        %612 = vmatpush.xpose.msra.mxu0 0.0
        %613 = vmatpush.xpose.msra.mxu0 0.0
        %614 = vmatpush.xpose.msra.mxu0 0.0
        %615 = vmatpush.xpose.msra.mxu0 0.0
        %616 = vmatpush.xpose.msra.mxu0 0.0
        %617 = vmatpush.xpose.msra.mxu0 0.0
        %618 = vmatpush.xpose.msra.mxu0 %v601
        %619 = vmatmul.f32.gmra.mxu0 %v599
        %v620 = vpop.f32.mrf.mxu0
        %v621 = vadd.f32 0.0, %v620
        %622 = vdwg.mxu0
        %v623 = vsel %vm332, %v621, -inf
        %624 = vmax.xlane.f32.xlu0 %v623
        %v625 = vpop.xlane.xlu0 %624
        %v626 = vsub.f32 %v621, %v625
        %v627 = vmul.f32 %v626, 1.442695
        %v628 = vpow.pop %v627
        %v629 = vsel %vm332, %v628, 0.0
        %630 = vadd.xlane.f32.xlu0 %v629
        %v631 = vpop.xlane.xlu0 %630
        %v632 = vrcp.pop %v631
        %v633 = vmul.f32 %v628, %v632
        %634 = vrot.lane.b32.xlu0 %v322, 40
        %v635 = vpop.permute.xlu0 %634
        %v638 = vsel %vm332, %v633, 0
        %640 = vmatpush.msra.mxu0 0.0
        %641 = vmatpush.msra.mxu0 0.0
        %642 = vmatpush.msra.mxu0 0.0
        %643 = vmatpush.msra.mxu0 0.0
        %644 = vmatpush.msra.mxu0 0.0
        %645 = vmatpush.msra.mxu0 0.0
        %646 = vmatpush.msra.mxu0 0.0
        %647 = vmatpush.msra.mxu0 0.0
        %648 = vmatpush.msra.mxu0 0.0
        %649 = vmatpush.msra.mxu0 0.0
        %650 = vmatpush.msra.mxu0 0.0
        %651 = vmatpush.msra.mxu0 0.0
        %652 = vmatpush.msra.mxu0 0.0
        %653 = vmatpush.msra.mxu0 0.0
        %654 = vmatpush.msra.mxu0 0.0
        %655 = vmatpush.msra.mxu0 %v635
        %656 = vmatmul.f32.gmra.mxu0 %v638
        %v657 = vpop.f32.mrf.mxu0
        %v658 = vadd.f32 0.0, %v657
        %659 = vdwg.mxu0
        %v661 = vsel %vm332, %v658, 0
        %663 = vmatpush.msra.mxu0 0.0
        %664 = vmatpush.msra.mxu0 0.0
        %665 = vmatpush.msra.mxu0 0.0
        %666 = vmatpush.msra.mxu0 0.0
        %667 = vmatpush.msra.mxu0 0.0
        %668 = vmatpush.msra.mxu0 0.0
        %669 = vmatpush.msra.mxu0 0.0
        %670 = vmatpush.msra.mxu0 0.0
        %671 = vmatpush.msra.mxu0 0.0
        %672 = vmatpush.msra.mxu0 0.0
        %673 = vmatpush.msra.mxu0 0.0
        %674 = vmatpush.msra.mxu0 0.0
        %675 = vmatpush.msra.mxu0 0.0
        %676 = vmatpush.msra.mxu0 0.0
        %677 = vmatpush.msra.mxu0 0.0
        %678 = vmatpush.msra.mxu0 %v328
        %679 = vmatmul.f32.gmra.mxu0 %v661
        %v680 = vpop.f32.mrf.mxu0
        %v681 = vadd.f32 0.0, %v680
        %682 = vdwg.mxu0
        %v683 = vadd.f32 %v594, %v681
        %v684 = vld [vmem:[%s4] sm:$0x1]
        %v686 = vperm.slane %v684, 0
        %v688 = vadd.f32 %v683, %v686
        %v689 = vadd.f32 %v291, %v688
        %v690 = vld [vmem:[%s5] sm:$0x1]
        %v691 = vld [vmem:[%s6] sm:$0x1]
        %v692 = vsel %vm300, %v689, 0.0
        %693 = vadd.xlane.f32.xlu0 %v692
        %v694 = vpop.xlane.xlu0 %693
        %v695 = vrcp.pop 32.0
        %v696 = vmul.f32 32.0, %v695
        %v697 = vsub.f32 1.0, %v696
        %v698 = vmul.f32 %v695, %v697
        %v699 = vadd.f32 %v695, %v698
        %vm700 = vweird.f32 %v695
        %v701 = vsel %vm700, %v695, %v699
        %v702 = vmul.f32 %v694, %v701
        %v703 = vsub.f32 %v689, %v702
        %v704 = vmul.f32 %v703, %v703
        %v705 = vsel %vm300, %v704, 0.0
        %706 = vadd.xlane.f32.xlu0 %v705
        %v707 = vpop.xlane.xlu0 %706
        %v708 = vmul.f32 %v707, %v701
        %v709 = vadd.f32 %v708, 1e-05
        %v710 = vrsqrt.pop %v709
        %v711 = vmul.f32 %v710, %v709
        %v712 = vmul.f32 %v711, %v710
        %v713 = vmul.f32 0.5, %v712
        %v714 = vsub.f32 1.5, %v713
        %v715 = vmul.f32 %v710, %v714
        %vm716 = vweird.f32 %v709
        %vm717 = vweird.f32 %v710
        %vm718 = vmor %vm716, %vm717
        %v719 = vsel %vm718, %v710, %v715
        %v720 = vmul.f32 %v703, %v719
        %v722 = vperm.slane %v690, 0
        %v724 = vmul.f32 %v720, %v722
        %v726 = vperm.slane %v691, 0
        %v728 = vadd.f32 %v724, %v726
        %729 = vst.msk [vmem:[%s290] sm:$0xff] %vm300, %v728
        %p730 = scmp.lt.s32.totalorder %s19, 1
        %s731 = scalar_select %p730, %s19, 1
        %s732 = smul.addr %s731, 8
        %s733 = scalar_lea.vmem %s7, %s732
        // Predicated region
        $region53: #{time_series_transformer.19} parent=47 // pred_check
          %p734 = pneg %p189
        $region54: #{time_series_transformer.19} parent=47 // pred_check_branch
          %736 = sbr.rel (%p734) target = $region56
        $region55: #{time_series_transformer.19} parent=47 // pred_region
          _
        $region56: #{time_series_transformer.19} parent=47 // pred_fallthru
          _
      $region48: #{time_series_transformer.19} parent=5 // pred_fallthru
        _
      %p737 = scmp.le.s32.totalorder 2, %s14
      // Predicated region
      $region57: #{time_series_transformer.19} parent=5 // pred_check
        %p738 = pneg %p737
      $region58: #{time_series_transformer.19} parent=5 // pred_check_branch
        %740 = sbr.rel (%p738) target = $region60
      $region59: #{time_series_transformer.19} parent=5 // pred_region
        %s741 = ssub.s32 %s14, 2
        // Predicated region
        $region61: #{time_series_transformer.19} parent=59 // pred_check
          %p742 = pneg %p195
        $region62: #{time_series_transformer.19} parent=59 // pred_check_branch
          %744 = sbr.rel (%p742) target = $region64
        $region63: #{time_series_transformer.19} parent=59 // pred_region
          %p745 = scmp.lt.s32.totalorder %s20, 1
          %s746 = scalar_select %p745, %s20, 1
          %s747 = smul.addr %s746, 8
          %s748 = scalar_lea.vmem %s7, %s747
        $region64: #{time_series_transformer.19} parent=59 // pred_fallthru
          _
      $region60: #{time_series_transformer.19} parent=5 // pred_fallthru
        _
    $region6: #{time_series_transformer.19} parent=1 // loop_footer
      %s18 = sadd.s32 1, %s14
    $region7: #{time_series_transformer.19} parent=1 // loop_footer_branch
      %13 = sbr.rel target = $region3
    $region8: #{time_series_transformer.19} parent=1 // loop_exit
      _
    %749 = vsyncpa [#allocation3], 1
    %s750 = scalar_lea.sflag [#allocation3], 1
    %751 = vsyncpa %s750, 1

// kernel: time_series_transformer.20
$region0: #{time_series_transformer.20}
  #allocation0 [shape = 'u32[]', space=smem, size = 0x4, offset = 0x4, fixed_abs, tag = 'smem constant byte address 0x4 - core index']
  #allocation1 [shape = 'u32[72,128]{1,0:T(1,128)}', space=vmem, size = 0x9000, scoped, tag = 'internal scratch']
  %s0 = inlined_call_operand.vmem [shape: f32[2,8,32], index: 0, kind: input, shape index: {}]
  %s1 = inlined_call_operand.vmem [shape: f32[2,16,32], index: 1, kind: input, shape index: {}]
  %s2 = inlined_call_operand.hbm [shape: f32[32,32], index: 2, kind: input, shape index: {}]
  %s3 = inlined_call_operand.vmem [shape: f32[1,32], index: 3, kind: input, shape index: {}]
  %s4 = inlined_call_operand.hbm [shape: f32[32,64], index: 4, kind: input, shape index: {}]
  %s5 = inlined_call_operand.vmem [shape: f32[1,64], index: 5, kind: input, shape index: {}]
  %s6 = inlined_call_operand.hbm [shape: f32[32,32], index: 6, kind: input, shape index: {}]
  %s7 = inlined_call_operand.vmem [shape: f32[1,32], index: 7, kind: input, shape index: {}]
  %s8 = inlined_call_operand.vmem [shape: f32[1,32], index: 8, kind: input, shape index: {}]
  %s9 = inlined_call_operand.vmem [shape: f32[1,32], index: 9, kind: input, shape index: {}]
  %s10 = inlined_call_operand.vmem [shape: f32[2,8,32], index: 10, kind: output, shape index: {}]
  %s11 = sld [smem:[#allocation0]]
  $region85: #{time_series_transformer.20} parent=0
    _
  %s13 = ssub.s32 1, %s11
  %s14 = scalar_select 0, %s13, %s11
  $region1: #{time_series_transformer.20} parent=0
    #allocation2 [shape = 'u8[16384]{0}', space=vmem, size = 0x4000, scoped, tag = 'input window, operand 2, single buffered']
    #allocation3 [shape = 's32[2]{0}', space=sflag, size = 0x8, scoped, tag = 'scoped memory for time_series_transformer.20']
    #allocation4 [shape = 'u8[16384]{0}', space=vmem, size = 0x4000, scoped, tag = 'input window, operand 4, single buffered']
    #allocation5 [shape = 's32[1]{0}', space=sflag, size = 0x4, scoped, tag = 'scoped memory for time_series_transformer.20']
    #allocation6 [shape = 'u8[16384]{0}', space=vmem, size = 0x4000, scoped, tag = 'input window, operand 6, single buffered']
    %15 = vsyncpa [#allocation3], 0
    %16 = vsyncpa [#allocation5], 0
    loop: start=0, step=1, limit=4
    $region2: #{time_series_transformer.20} parent=1 // loop_pre_header
      _
    $region3: #{time_series_transformer.20} parent=1 // loop_header
      %s18 = sphi 0, %s22
      %p19 = scmp.ge.s32.totalorder %s18, 4
      %s28 = sphi 0, %s30
      %s31 = sphi 0, %s28
      %s32 = sphi 0, %s31
      %s48 = sphi 0, %s32
      %s54 = sphi 0, %s56
      %s57 = sphi 0, %s54
      %s58 = sphi 0, %s57
      %s74 = sphi 0, %s58
      %s78 = sphi 0, %s78
      %s80 = sphi 0, %s78
      %s81 = sphi 0, %s80
      %s95 = sphi 0, %s81
      %s99 = sphi 0, %s99
      %s101 = sphi 0, %s99
      %s102 = sphi 0, %s101
      %s116 = sphi 0, %s102
      %s120 = sphi 0, %s120
      %s122 = sphi 0, %s120
      %s123 = sphi 0, %s122
      %s137 = sphi 0, %s123
      %s141 = sphi 0, %s141
      %s143 = sphi 0, %s141
      %s144 = sphi 0, %s143
      %s158 = sphi 0, %s144
      %s162 = sphi 0, %s162
      %s164 = sphi 0, %s162
      %s165 = sphi 0, %s164
      %s179 = sphi 0, %s165
      %s183 = sphi 0, %s183
      %s185 = sphi 0, %s183
      %s186 = sphi 0, %s185
      %s200 = sphi 0, %s186
      %s204 = sphi 0, %s204
      %s206 = sphi 0, %s204
      %s207 = sphi 0, %s206
      %s221 = sphi 0, %s207
      %s225 = sphi 0, %s225
      %s227 = sphi 0, %s225
      %s228 = sphi 0, %s227
      %s242 = sphi 0, %s228
      %s248 = sphi 0, %s250
      %s251 = sphi 0, %s248
      %s252 = sphi 0, %s251
      %s268 = sphi 0, %s252
    $region4: #{time_series_transformer.20} parent=1 // loop_header_branch
      %21 = sbr.rel (%p19) target = $region8
    $region5: #{time_series_transformer.20} parent=1 // loop_body
      %s23 = ssub.s32 %s18, 1
      %s24 = ssub.s32 %s18, 2
      %s25 = sadd.s32 %s18, 1
      %s26 = ssub.s32 %s18, %s25
      %p27 = scmp.eq.s32.totalorder %s26, 0
      %s29 = sadd.s32 %s28, 1
      %s30 = scalar_select %p27, %s28, %s29
      %p33 = pneg %p27
      %p34 = scmp.eq.s32.totalorder %s18, 1
      %p35 = por %p33, %p34
      %p36 = scmp.ne.s32.totalorder %s28, %s31
      %p37 = scmp.eq.s32.totalorder %s18, 0
      %p38 = por %p36, %p37
      %p39 = scmp.ne.s32.totalorder %s28, %s31
      %p40 = scmp.eq.s32.totalorder %s23, 1
      %p41 = por %p39, %p40
      %p42 = scmp.ne.s32.totalorder %s31, %s32
      %p43 = scmp.eq.s32.totalorder %s23, 0
      %p44 = por %p42, %p43
      %p45 = scmp.ne.s32.totalorder %s31, %s32
      %p46 = scmp.eq.s32.totalorder %s24, 1
      %p47 = por %p45, %p46
      %p49 = scmp.ne.s32.totalorder %s32, %s48
      %p50 = scmp.eq.s32.totalorder %s24, 0
      %p51 = por %p49, %p50
      %s52 = ssub.s32 %s18, %s25
      %p53 = scmp.eq.s32.totalorder %s52, 0
      %s55 = sadd.s32 %s54, 1
      %s56 = scalar_select %p53, %s54, %s55
      %p59 = pneg %p53
      %p60 = scmp.eq.s32.totalorder %s18, 1
      %p61 = por %p59, %p60
      %p62 = scmp.ne.s32.totalorder %s54, %s57
      %p63 = scmp.eq.s32.totalorder %s18, 0
      %p64 = por %p62, %p63
      %p65 = scmp.ne.s32.totalorder %s54, %s57
      %p66 = scmp.eq.s32.totalorder %s23, 1
      %p67 = por %p65, %p66
      %p68 = scmp.ne.s32.totalorder %s57, %s58
      %p69 = scmp.eq.s32.totalorder %s23, 0
      %p70 = por %p68, %p69
      %p71 = scmp.ne.s32.totalorder %s57, %s58
      %p72 = scmp.eq.s32.totalorder %s24, 1
      %p73 = por %p71, %p72
      %p75 = scmp.ne.s32.totalorder %s58, %s74
      %p76 = scmp.eq.s32.totalorder %s24, 0
      %p77 = por %p75, %p76
      %s79 = sadd.s32 %s78, 1
      %p82 = scmp.eq.s32.totalorder %s18, 1
      %p83 = scmp.ne.s32.totalorder %s78, %s80
      %p84 = scmp.eq.s32.totalorder %s18, 0
      %p85 = por %p83, %p84
      %p86 = scmp.ne.s32.totalorder %s78, %s80
      %p87 = scmp.eq.s32.totalorder %s23, 1
      %p88 = por %p86, %p87
      %p89 = scmp.ne.s32.totalorder %s80, %s81
      %p90 = scmp.eq.s32.totalorder %s23, 0
      %p91 = por %p89, %p90
      %p92 = scmp.ne.s32.totalorder %s80, %s81
      %p93 = scmp.eq.s32.totalorder %s24, 1
      %p94 = por %p92, %p93
      %p96 = scmp.ne.s32.totalorder %s81, %s95
      %p97 = scmp.eq.s32.totalorder %s24, 0
      %p98 = por %p96, %p97
      %s100 = sadd.s32 %s99, 1
      %p103 = scmp.eq.s32.totalorder %s18, 1
      %p104 = scmp.ne.s32.totalorder %s99, %s101
      %p105 = scmp.eq.s32.totalorder %s18, 0
      %p106 = por %p104, %p105
      %p107 = scmp.ne.s32.totalorder %s99, %s101
      %p108 = scmp.eq.s32.totalorder %s23, 1
      %p109 = por %p107, %p108
      %p110 = scmp.ne.s32.totalorder %s101, %s102
      %p111 = scmp.eq.s32.totalorder %s23, 0
      %p112 = por %p110, %p111
      %p113 = scmp.ne.s32.totalorder %s101, %s102
      %p114 = scmp.eq.s32.totalorder %s24, 1
      %p115 = por %p113, %p114
      %p117 = scmp.ne.s32.totalorder %s102, %s116
      %p118 = scmp.eq.s32.totalorder %s24, 0
      %p119 = por %p117, %p118
      %s121 = sadd.s32 %s120, 1
      %p124 = scmp.eq.s32.totalorder %s18, 1
      %p125 = scmp.ne.s32.totalorder %s120, %s122
      %p126 = scmp.eq.s32.totalorder %s18, 0
      %p127 = por %p125, %p126
      %p128 = scmp.ne.s32.totalorder %s120, %s122
      %p129 = scmp.eq.s32.totalorder %s23, 1
      %p130 = por %p128, %p129
      %p131 = scmp.ne.s32.totalorder %s122, %s123
      %p132 = scmp.eq.s32.totalorder %s23, 0
      %p133 = por %p131, %p132
      %p134 = scmp.ne.s32.totalorder %s122, %s123
      %p135 = scmp.eq.s32.totalorder %s24, 1
      %p136 = por %p134, %p135
      %p138 = scmp.ne.s32.totalorder %s123, %s137
      %p139 = scmp.eq.s32.totalorder %s24, 0
      %p140 = por %p138, %p139
      %s142 = sadd.s32 %s141, 1
      %p145 = scmp.eq.s32.totalorder %s18, 1
      %p146 = scmp.ne.s32.totalorder %s141, %s143
      %p147 = scmp.eq.s32.totalorder %s18, 0
      %p148 = por %p146, %p147
      %p149 = scmp.ne.s32.totalorder %s141, %s143
      %p150 = scmp.eq.s32.totalorder %s23, 1
      %p151 = por %p149, %p150
      %p152 = scmp.ne.s32.totalorder %s143, %s144
      %p153 = scmp.eq.s32.totalorder %s23, 0
      %p154 = por %p152, %p153
      %p155 = scmp.ne.s32.totalorder %s143, %s144
      %p156 = scmp.eq.s32.totalorder %s24, 1
      %p157 = por %p155, %p156
      %p159 = scmp.ne.s32.totalorder %s144, %s158
      %p160 = scmp.eq.s32.totalorder %s24, 0
      %p161 = por %p159, %p160
      %s163 = sadd.s32 %s162, 1
      %p166 = scmp.eq.s32.totalorder %s18, 1
      %p167 = scmp.ne.s32.totalorder %s162, %s164
      %p168 = scmp.eq.s32.totalorder %s18, 0
      %p169 = por %p167, %p168
      %p170 = scmp.ne.s32.totalorder %s162, %s164
      %p171 = scmp.eq.s32.totalorder %s23, 1
      %p172 = por %p170, %p171
      %p173 = scmp.ne.s32.totalorder %s164, %s165
      %p174 = scmp.eq.s32.totalorder %s23, 0
      %p175 = por %p173, %p174
      %p176 = scmp.ne.s32.totalorder %s164, %s165
      %p177 = scmp.eq.s32.totalorder %s24, 1
      %p178 = por %p176, %p177
      %p180 = scmp.ne.s32.totalorder %s165, %s179
      %p181 = scmp.eq.s32.totalorder %s24, 0
      %p182 = por %p180, %p181
      %s184 = sadd.s32 %s183, 1
      %p187 = scmp.eq.s32.totalorder %s18, 1
      %p188 = scmp.ne.s32.totalorder %s183, %s185
      %p189 = scmp.eq.s32.totalorder %s18, 0
      %p190 = por %p188, %p189
      %p191 = scmp.ne.s32.totalorder %s183, %s185
      %p192 = scmp.eq.s32.totalorder %s23, 1
      %p193 = por %p191, %p192
      %p194 = scmp.ne.s32.totalorder %s185, %s186
      %p195 = scmp.eq.s32.totalorder %s23, 0
      %p196 = por %p194, %p195
      %p197 = scmp.ne.s32.totalorder %s185, %s186
      %p198 = scmp.eq.s32.totalorder %s24, 1
      %p199 = por %p197, %p198
      %p201 = scmp.ne.s32.totalorder %s186, %s200
      %p202 = scmp.eq.s32.totalorder %s24, 0
      %p203 = por %p201, %p202
      %s205 = sadd.s32 %s204, 1
      %p208 = scmp.eq.s32.totalorder %s18, 1
      %p209 = scmp.ne.s32.totalorder %s204, %s206
      %p210 = scmp.eq.s32.totalorder %s18, 0
      %p211 = por %p209, %p210
      %p212 = scmp.ne.s32.totalorder %s204, %s206
      %p213 = scmp.eq.s32.totalorder %s23, 1
      %p214 = por %p212, %p213
      %p215 = scmp.ne.s32.totalorder %s206, %s207
      %p216 = scmp.eq.s32.totalorder %s23, 0
      %p217 = por %p215, %p216
      %p218 = scmp.ne.s32.totalorder %s206, %s207
      %p219 = scmp.eq.s32.totalorder %s24, 1
      %p220 = por %p218, %p219
      %p222 = scmp.ne.s32.totalorder %s207, %s221
      %p223 = scmp.eq.s32.totalorder %s24, 0
      %p224 = por %p222, %p223
      %s226 = sadd.s32 %s225, 1
      %p229 = scmp.eq.s32.totalorder %s18, 1
      %p230 = scmp.ne.s32.totalorder %s225, %s227
      %p231 = scmp.eq.s32.totalorder %s18, 0
      %p232 = por %p230, %p231
      %p233 = scmp.ne.s32.totalorder %s225, %s227
      %p234 = scmp.eq.s32.totalorder %s23, 1
      %p235 = por %p233, %p234
      %p236 = scmp.ne.s32.totalorder %s227, %s228
      %p237 = scmp.eq.s32.totalorder %s23, 0
      %p238 = por %p236, %p237
      %p239 = scmp.ne.s32.totalorder %s227, %s228
      %p240 = scmp.eq.s32.totalorder %s24, 1
      %p241 = por %p239, %p240
      %p243 = scmp.ne.s32.totalorder %s228, %s242
      %p244 = scmp.eq.s32.totalorder %s24, 0
      %p245 = por %p243, %p244
      %s246 = ssub.s32 %s18, %s25
      %p247 = scmp.eq.s32.totalorder %s246, 0
      %s249 = sadd.s32 %s248, 1
      %s250 = scalar_select %p247, %s248, %s249
      %p253 = pneg %p247
      %p254 = scmp.eq.s32.totalorder %s18, 1
      %p255 = por %p253, %p254
      %p256 = scmp.ne.s32.totalorder %s248, %s251
      %p257 = scmp.eq.s32.totalorder %s18, 0
      %p258 = por %p256, %p257
      %p259 = scmp.ne.s32.totalorder %s248, %s251
      %p260 = scmp.eq.s32.totalorder %s23, 1
      %p261 = por %p259, %p260
      %p262 = scmp.ne.s32.totalorder %s251, %s252
      %p263 = scmp.eq.s32.totalorder %s23, 0
      %p264 = por %p262, %p263
      %p265 = scmp.ne.s32.totalorder %s251, %s252
      %p266 = scmp.eq.s32.totalorder %s24, 1
      %p267 = por %p265, %p266
      %p269 = scmp.ne.s32.totalorder %s252, %s268
      %p270 = scmp.eq.s32.totalorder %s24, 0
      %p271 = por %p269, %p270
      %p272 = scmp.le.s32.totalorder 1, %s18
      %p273 = scmp.lt.s32.totalorder %s18, 3
      %p274 = pnand %p272, %p273
      %p275 = pneg %p274
      // Predicated region
      $region9: #{time_series_transformer.20} parent=5 // pred_check
        _
      $region10: #{time_series_transformer.20} parent=5 // pred_check_branch
        %277 = sbr.rel (%p274) target = $region12
      $region11: #{time_series_transformer.20} parent=5 // pred_region
        %s278 = ssub.s32 %s18, 1
        // Predicated region
        $region13: #{time_series_transformer.20} parent=11 // pred_check
          %p279 = pneg %p91
        $region14: #{time_series_transformer.20} parent=11 // pred_check_branch
          %281 = sbr.rel (%p279) target = $region16
        $region15: #{time_series_transformer.20} parent=11 // pred_region
          %283 = vsyncadd [#allocation3], 0
          %s284 = sshll.u32 %s2, 4
          %s285 = int_to_ptr.hbm [resolvable:$true] %s284
          %s286 = sshll.u32 [#allocation2], 4
          %s287 = int_to_ptr.vmem [resolvable:$true] %s286
          %292 = dma.hbm_to_vmem [thread:$0]  %s285, 512, %s287, [#allocation3], 128, 128, 8
        $region16: #{time_series_transformer.20} parent=11 // pred_fallthru
          _
        // Predicated region
        $region17: #{time_series_transformer.20} parent=11 // pred_check
          %p293 = pneg %p112
        $region18: #{time_series_transformer.20} parent=11 // pred_check_branch
          %295 = sbr.rel (%p293) target = $region20
        $region19: #{time_series_transformer.20} parent=11 // pred_region
          _
        $region20: #{time_series_transformer.20} parent=11 // pred_fallthru
          _
        // Predicated region
        $region21: #{time_series_transformer.20} parent=11 // pred_check
          %p296 = pneg %p133
        $region22: #{time_series_transformer.20} parent=11 // pred_check_branch
          %298 = sbr.rel (%p296) target = $region24
        $region23: #{time_series_transformer.20} parent=11 // pred_region
          %300 = vsyncadd [#allocation5], 0
          %s301 = sshll.u32 %s4, 4
          %s302 = int_to_ptr.hbm [resolvable:$true] %s301
          %s303 = sshll.u32 [#allocation4], 4
          %s304 = int_to_ptr.vmem [resolvable:$true] %s303
          %309 = dma.hbm_to_vmem [thread:$0]  %s302, 512, %s304, [#allocation5], 128, 128, 8
        $region24: #{time_series_transformer.20} parent=11 // pred_fallthru
          _
        // Predicated region
        $region25: #{time_series_transformer.20} parent=11 // pred_check
          %p310 = pneg %p154
        $region26: #{time_series_transformer.20} parent=11 // pred_check_branch
          %312 = sbr.rel (%p310) target = $region28
        $region27: #{time_series_transformer.20} parent=11 // pred_region
          _
        $region28: #{time_series_transformer.20} parent=11 // pred_fallthru
          _
        // Predicated region
        $region29: #{time_series_transformer.20} parent=11 // pred_check
          %p313 = pneg %p175
        $region30: #{time_series_transformer.20} parent=11 // pred_check_branch
          %315 = sbr.rel (%p313) target = $region32
        $region31: #{time_series_transformer.20} parent=11 // pred_region
          %317 = vsyncadd [#allocation5], 0
          %s318 = sshll.u32 %s6, 4
          %s319 = int_to_ptr.hbm [resolvable:$true] %s318
          %s320 = sshll.u32 [#allocation6], 4
          %s321 = int_to_ptr.vmem [resolvable:$true] %s320
          %326 = dma.hbm_to_vmem [thread:$0]  %s319, 512, %s321, [#allocation5], 128, 128, 8
        $region32: #{time_series_transformer.20} parent=11 // pred_fallthru
          _
        // Predicated region
        $region33: #{time_series_transformer.20} parent=11 // pred_check
          %p327 = pneg %p196
        $region34: #{time_series_transformer.20} parent=11 // pred_check_branch
          %329 = sbr.rel (%p327) target = $region36
        $region35: #{time_series_transformer.20} parent=11 // pred_region
          _
        $region36: #{time_series_transformer.20} parent=11 // pred_fallthru
          _
        // Predicated region
        $region37: #{time_series_transformer.20} parent=11 // pred_check
          %p330 = pneg %p217
        $region38: #{time_series_transformer.20} parent=11 // pred_check_branch
          %332 = sbr.rel (%p330) target = $region40
        $region39: #{time_series_transformer.20} parent=11 // pred_region
          _
        $region40: #{time_series_transformer.20} parent=11 // pred_fallthru
          _
        // Predicated region
        $region41: #{time_series_transformer.20} parent=11 // pred_check
          %p333 = pneg %p238
        $region42: #{time_series_transformer.20} parent=11 // pred_check_branch
          %335 = sbr.rel (%p333) target = $region44
        $region43: #{time_series_transformer.20} parent=11 // pred_region
          _
        $region44: #{time_series_transformer.20} parent=11 // pred_fallthru
          _
      $region12: #{time_series_transformer.20} parent=5 // pred_fallthru
        _
      %p336 = scmp.lt.s32.totalorder %s18, 2
      // Predicated region
      $region45: #{time_series_transformer.20} parent=5 // pred_check
        %p337 = pneg %p336
      $region46: #{time_series_transformer.20} parent=5 // pred_check_branch
        %339 = sbr.rel (%p337) target = $region48
      $region47: #{time_series_transformer.20} parent=5 // pred_region
        // Predicated region
        $region49: #{time_series_transformer.20} parent=47 // pred_check
          %p340 = pneg %p38
        $region50: #{time_series_transformer.20} parent=47 // pred_check_branch
          %342 = sbr.rel (%p340) target = $region52
        $region51: #{time_series_transformer.20} parent=47 // pred_region
          %p343 = scmp.lt.s32.totalorder %s18, 1
          %s344 = scalar_select %p343, %s18, 1
          %s345 = smul.addr %s344, 8
          %s346 = scalar_lea.vmem %s0, %s345
        $region52: #{time_series_transformer.20} parent=47 // pred_fallthru
          _
        // Predicated region
        $region53: #{time_series_transformer.20} parent=47 // pred_check
          %p347 = pneg %p64
        $region54: #{time_series_transformer.20} parent=47 // pred_check_branch
          %349 = sbr.rel (%p347) target = $region56
        $region55: #{time_series_transformer.20} parent=47 // pred_region
          %p350 = scmp.lt.s32.totalorder %s18, 1
          %s351 = scalar_select %p350, %s18, 1
          %s352 = smul.addr %s351, 2
          %s353 = smul.addr %s352, 8
          %s354 = scalar_lea.vmem %s1, %s353
        $region56: #{time_series_transformer.20} parent=47 // pred_fallthru
          _
      $region48: #{time_series_transformer.20} parent=5 // pred_fallthru
        _
      %p355 = scmp.le.s32.totalorder 1, %s18
      %p356 = scmp.lt.s32.totalorder %s18, 3
      %p357 = pnand %p355, %p356
      %p358 = pneg %p357
      // Predicated region
      $region57: #{time_series_transformer.20} parent=5 // pred_check
        _
      $region58: #{time_series_transformer.20} parent=5 // pred_check_branch
        %360 = sbr.rel (%p357) target = $region60
      $region59: #{time_series_transformer.20} parent=5 // pred_region
        %s361 = ssub.s32 %s18, 1
        // Predicated region
        $region61: #{time_series_transformer.20} parent=59 // pred_check
          %p362 = pneg %p91
        $region62: #{time_series_transformer.20} parent=59 // pred_check_branch
          %364 = sbr.rel (%p362) target = $region64
        $region63: #{time_series_transformer.20} parent=59 // pred_region
          %366 = dma.done [#allocation3], 512
        $region64: #{time_series_transformer.20} parent=59 // pred_fallthru
          _
        // Predicated region
        $region65: #{time_series_transformer.20} parent=59 // pred_check
          %p367 = pneg %p133
        $region66: #{time_series_transformer.20} parent=59 // pred_check_branch
          %369 = sbr.rel (%p367) target = $region68
        $region67: #{time_series_transformer.20} parent=59 // pred_region
          %371 = dma.done [#allocation5], 512
        $region68: #{time_series_transformer.20} parent=59 // pred_fallthru
          _
        // Predicated region
        $region69: #{time_series_transformer.20} parent=59 // pred_check
          %p372 = pneg %p175
        $region70: #{time_series_transformer.20} parent=59 // pred_check_branch
          %374 = sbr.rel (%p372) target = $region72
        $region71: #{time_series_transformer.20} parent=59 // pred_region
          %376 = dma.done [#allocation5], 512
        $region72: #{time_series_transformer.20} parent=59 // pred_fallthru
          _
        %p377 = scmp.lt.s32.totalorder %s23, 1
        %s378 = scalar_select %p377, %s23, 1
        %s379 = smul.addr %s378, 8
        %s380 = scalar_lea.vmem %s0, %s379
        %p381 = pneg %p44
        %p382 = pneg %p41
        %p383 = scmp.lt.s32.totalorder %s23, 1
        %s384 = scalar_select %p383, %s23, 1
        %s385 = smul.addr %s384, 2
        %s386 = smul.addr %s385, 8
        %s387 = scalar_lea.vmem %s1, %s386
        %p388 = pneg %p70
        %p389 = pneg %p67
        %p390 = pneg %p91
        %p391 = pneg %p88
        %p392 = pneg %p112
        %p393 = pneg %p109
        %p394 = pneg %p133
        %p395 = pneg %p130
        %p396 = pneg %p154
        %p397 = pneg %p151
        %p398 = pneg %p175
        %p399 = pneg %p172
        %p400 = pneg %p196
        %p401 = pneg %p193
        %p402 = pneg %p217
        %p403 = pneg %p214
        %p404 = pneg %p238
        %p405 = pneg %p235
        %p406 = pneg %p264
        %p407 = pneg %p261
        %p408 = scmp.lt.s32.totalorder %s23, 1
        %s409 = scalar_select %p408, %s23, 1
        %s410 = smul.addr %s409, 8
        %s411 = scalar_lea.vmem %s10, %s410
        %p412 = scmp.lt.s32.totalorder %s23, 1
        %s413 = scalar_select %p412, %s23, 1
        %s414 = smul.addr %s413, 8
        %s415 = scalar_lea.vmem %s0, %s414
        %p416 = scmp.lt.s32.totalorder %s23, 1
        %s417 = scalar_select %p416, %s23, 1
        %s418 = smul.addr %s417, 2
        %s419 = smul.addr %s418, 8
        %s420 = scalar_lea.vmem %s1, %s419
        %p421 = scmp.lt.s32.totalorder %s23, 1
        %s422 = scalar_select %p421, %s23, 1
        %s423 = smul.addr %s422, 8
        %s424 = scalar_lea.vmem %s10, %s423
        %v425 = vld [vmem:[%s415] sm:$0xff]
        %v426 = vld [vmem:[%s420] sm:$0xff]
        %v427 = vld [vmem:[%s420 + $0x8] sm:$0xff]
        %v428 = vld [vmem:[#allocation2] sm:$0xff]
        %v429 = vld [vmem:[#allocation2 + $0x8] sm:$0xff]
        %v430 = vld [vmem:[#allocation2 + $0x10] sm:$0xff]
        %v431 = vld [vmem:[#allocation2 + $0x18] sm:$0xff]
        %v432 = vld [vmem:[%s3] sm:$0x1]
        %v434 = vperm.slane %v432, 0
        %vm436 = vcmask 261120
        %v438 = vsel %vm436, %v425, 0
        %440 = vmatpush.msra.mxu0 0.0
        %441 = vmatpush.msra.mxu0 0.0
        %442 = vmatpush.msra.mxu0 0.0
        %443 = vmatpush.msra.mxu0 0.0
        %444 = vmatpush.msra.mxu0 0.0
        %445 = vmatpush.msra.mxu0 0.0
        %446 = vmatpush.msra.mxu0 0.0
        %447 = vmatpush.msra.mxu0 0.0
        %448 = vmatpush.msra.mxu0 0.0
        %449 = vmatpush.msra.mxu0 0.0
        %450 = vmatpush.msra.mxu0 0.0
        %451 = vmatpush.msra.mxu0 0.0
        %452 = vmatpush.msra.mxu0 %v431
        %453 = vmatpush.msra.mxu0 %v430
        %454 = vmatpush.msra.mxu0 %v429
        %455 = vmatpush.msra.mxu0 %v428
        %456 = vmatmul.f32.gmra.mxu0 %v438
        %v457 = vpop.f32.mrf.mxu0
        %v458 = vadd.f32 %v434, %v457
        %459 = vdwg.mxu0
        %v460 = vmul.f32 %v458, 0.35355338
        %v461 = vld [vmem:[#allocation4] sm:$0xff]
        %v462 = vld [vmem:[#allocation4 + $0x8] sm:$0xff]
        %v463 = vld [vmem:[#allocation4 + $0x10] sm:$0xff]
        %v464 = vld [vmem:[#allocation4 + $0x18] sm:$0xff]
        %v465 = vld [vmem:[%s5] sm:$0x1]
        %v467 = vperm.slane %v465, 0
        %v470 = vsel %vm436, %v426, 0
        %v473 = vsel %vm436, %v427, 0
        %475 = vmatpush.msra.mxu0 0.0
        %476 = vmatpush.msra.mxu0 0.0
        %477 = vmatpush.msra.mxu0 0.0
        %478 = vmatpush.msra.mxu0 0.0
        %479 = vmatpush.msra.mxu0 0.0
        %480 = vmatpush.msra.mxu0 0.0
        %481 = vmatpush.msra.mxu0 0.0
        %482 = vmatpush.msra.mxu0 0.0
        %483 = vmatpush.msra.mxu0 0.0
        %484 = vmatpush.msra.mxu0 0.0
        %485 = vmatpush.msra.mxu0 0.0
        %486 = vmatpush.msra.mxu0 0.0
        %487 = vmatpush.msra.mxu0 %v464
        %488 = vmatpush.msra.mxu0 %v463
        %489 = vmatpush.msra.mxu0 %v462
        %490 = vmatpush.msra.mxu0 %v461
        %491 = vmatmul.f32.gmra.mxu0 %v470
        %v492 = vpop.f32.mrf.mxu0
        %v493 = vadd.f32 %v467, %v492
        %494 = vmatmul.f32.gmra.mxu0 %v473
        %v495 = vpop.f32.mrf.mxu0
        %v496 = vadd.f32 %v467, %v495
        %497 = vdwg.mxu0
        %v498 = vld [vmem:[#allocation6] sm:$0xff]
        %v499 = vld [vmem:[#allocation6 + $0x8] sm:$0xff]
        %v500 = vld [vmem:[#allocation6 + $0x10] sm:$0xff]
        %v501 = vld [vmem:[#allocation6 + $0x18] sm:$0xff]
        %vm502 = vcmask 64512
        %v504 = vsel %vm502, %v460, 0
        %v507 = vsel %vm502, %v493, 0
        %v510 = vsel %vm502, %v496, 0
        %512 = vmatpush.xpose.msra.mxu0 0.0
        %513 = vmatpush.xpose.msra.mxu0 0.0
        %514 = vmatpush.xpose.msra.mxu0 0.0
        %515 = vmatpush.xpose.msra.mxu0 0.0
        %516 = vmatpush.xpose.msra.mxu0 0.0
        %517 = vmatpush.xpose.msra.mxu0 0.0
        %518 = vmatpush.xpose.msra.mxu0 0.0
        %519 = vmatpush.xpose.msra.mxu0 0.0
        %520 = vmatpush.xpose.msra.mxu0 0.0
        %521 = vmatpush.xpose.msra.mxu0 0.0
        %522 = vmatpush.xpose.msra.mxu0 0.0
        %523 = vmatpush.xpose.msra.mxu0 0.0
        %524 = vmatpush.xpose.msra.mxu0 0.0
        %525 = vmatpush.xpose.msra.mxu0 0.0
        %526 = vmatpush.xpose.msra.mxu0 %v510
        %527 = vmatpush.xpose.msra.mxu0 %v507
        %528 = vmatmul.f32.gmra.mxu0 %v504
        %v529 = vpop.f32.mrf.mxu0
        %v530 = vadd.f32 0.0, %v529
        %531 = vdwg.mxu0
        %vm532 = vcmask 130048
        %v533 = vsel %vm532, %v530, -inf
        %534 = vmax.xlane.f32.xlu0 %v533
        %v535 = vpop.xlane.xlu0 %534
        %v536 = vsub.f32 %v530, %v535
        %v537 = vmul.f32 %v536, 1.442695
        %v538 = vpow.pop %v537
        %v539 = vsel %vm532, %v538, 0.0
        %540 = vadd.xlane.f32.xlu0 %v539
        %v541 = vpop.xlane.xlu0 %540
        %v542 = vrcp.pop %v541
        %v543 = vmul.f32 %v538, %v542
        %544 = vrot.lane.b32.xlu0 %v493, 96
        %v545 = vpop.permute.xlu0 %544
        %546 = vrot.lane.b32.xlu0 %v496, 96
        %v547 = vpop.permute.xlu0 %546
        %v551 = vsel %vm532, %v543, 0
        %553 = vmatpush.msra.mxu0 0.0
        %554 = vmatpush.msra.mxu0 0.0
        %555 = vmatpush.msra.mxu0 0.0
        %556 = vmatpush.msra.mxu0 0.0
        %557 = vmatpush.msra.mxu0 0.0
        %558 = vmatpush.msra.mxu0 0.0
        %559 = vmatpush.msra.mxu0 0.0
        %560 = vmatpush.msra.mxu0 0.0
        %561 = vmatpush.msra.mxu0 0.0
        %562 = vmatpush.msra.mxu0 0.0
        %563 = vmatpush.msra.mxu0 0.0
        %564 = vmatpush.msra.mxu0 0.0
        %565 = vmatpush.msra.mxu0 0.0
        %566 = vmatpush.msra.mxu0 0.0
        %567 = vmatpush.msra.mxu0 %v547
        %568 = vmatpush.msra.mxu0 %v545
        %569 = vmatmul.f32.gmra.mxu0 %v551
        %v570 = vpop.f32.mrf.mxu0
        %v571 = vadd.f32 0.0, %v570
        %572 = vdwg.mxu0
        %573 = vrot.lane.b32.xlu0 %v460, 120
        %v574 = vpop.permute.xlu0 %573
        %575 = vrot.lane.b32.xlu0 %v493, 120
        %v576 = vpop.permute.xlu0 %575
        %577 = vrot.lane.b32.xlu0 %v496, 120
        %v578 = vpop.permute.xlu0 %577
        %v579 = vsel %vm502, %v574, 0
        %v581 = vsel %vm502, %v576, 0
        %v583 = vsel %vm502, %v578, 0
        %585 = vmatpush.xpose.msra.mxu0 0.0
        %586 = vmatpush.xpose.msra.mxu0 0.0
        %587 = vmatpush.xpose.msra.mxu0 0.0
        %588 = vmatpush.xpose.msra.mxu0 0.0
        %589 = vmatpush.xpose.msra.mxu0 0.0
        %590 = vmatpush.xpose.msra.mxu0 0.0
        %591 = vmatpush.xpose.msra.mxu0 0.0
        %592 = vmatpush.xpose.msra.mxu0 0.0
        %593 = vmatpush.xpose.msra.mxu0 0.0
        %594 = vmatpush.xpose.msra.mxu0 0.0
        %595 = vmatpush.xpose.msra.mxu0 0.0
        %596 = vmatpush.xpose.msra.mxu0 0.0
        %597 = vmatpush.xpose.msra.mxu0 0.0
        %598 = vmatpush.xpose.msra.mxu0 0.0
        %599 = vmatpush.xpose.msra.mxu0 %v583
        %600 = vmatpush.xpose.msra.mxu0 %v581
        %601 = vmatmul.f32.gmra.mxu0 %v579
        %v602 = vpop.f32.mrf.mxu0
        %v603 = vadd.f32 0.0, %v602
        %604 = vdwg.mxu0
        %v605 = vsel %vm532, %v603, -inf
        %606 = vmax.xlane.f32.xlu0 %v605
        %v607 = vpop.xlane.xlu0 %606
        %v608 = vsub.f32 %v603, %v607
        %v609 = vmul.f32 %v608, 1.442695
        %v610 = vpow.pop %v609
        %v611 = vsel %vm532, %v610, 0.0
        %612 = vadd.xlane.f32.xlu0 %v611
        %v613 = vpop.xlane.xlu0 %612
        %v614 = vrcp.pop %v613
        %v615 = vmul.f32 %v610, %v614
        %616 = vrot.lane.b32.xlu0 %v493, 88
        %v617 = vpop.permute.xlu0 %616
        %618 = vrot.lane.b32.xlu0 %v496, 88
        %v619 = vpop.permute.xlu0 %618
        %v623 = vsel %vm532, %v615, 0
        %625 = vmatpush.msra.mxu0 0.0
        %626 = vmatpush.msra.mxu0 0.0
        %627 = vmatpush.msra.mxu0 0.0
        %628 = vmatpush.msra.mxu0 0.0
        %629 = vmatpush.msra.mxu0 0.0
        %630 = vmatpush.msra.mxu0 0.0
        %631 = vmatpush.msra.mxu0 0.0
        %632 = vmatpush.msra.mxu0 0.0
        %633 = vmatpush.msra.mxu0 0.0
        %634 = vmatpush.msra.mxu0 0.0
        %635 = vmatpush.msra.mxu0 0.0
        %636 = vmatpush.msra.mxu0 0.0
        %637 = vmatpush.msra.mxu0 0.0
        %638 = vmatpush.msra.mxu0 0.0
        %639 = vmatpush.msra.mxu0 %v619
        %640 = vmatpush.msra.mxu0 %v617
        %641 = vmatmul.f32.gmra.mxu0 %v623
        %v642 = vpop.f32.mrf.mxu0
        %v643 = vadd.f32 0.0, %v642
        %644 = vdwg.mxu0
        %v646 = vsel %vm502, %v643, 0
        %648 = vmatpush.msra.mxu0 0.0
        %649 = vmatpush.msra.mxu0 0.0
        %650 = vmatpush.msra.mxu0 0.0
        %651 = vmatpush.msra.mxu0 0.0
        %652 = vmatpush.msra.mxu0 0.0
        %653 = vmatpush.msra.mxu0 0.0
        %654 = vmatpush.msra.mxu0 0.0
        %655 = vmatpush.msra.mxu0 0.0
        %656 = vmatpush.msra.mxu0 0.0
        %657 = vmatpush.msra.mxu0 0.0
        %658 = vmatpush.msra.mxu0 0.0
        %659 = vmatpush.msra.mxu0 0.0
        %660 = vmatpush.msra.mxu0 0.0
        %661 = vmatpush.msra.mxu0 0.0
        %662 = vmatpush.msra.mxu0 0.0
        %663 = vmatpush.msra.mxu0 %v499
        %664 = vmatmul.f32.gmra.mxu0 %v646
        %v665 = vpop.f32.mrf.mxu0
        %v666 = vadd.f32 0.0, %v665
        %667 = vdwg.mxu0
        %v669 = vsel %vm502, %v571, 0
        %671 = vmatpush.msra.mxu0 0.0
        %672 = vmatpush.msra.mxu0 0.0
        %673 = vmatpush.msra.mxu0 0.0
        %674 = vmatpush.msra.mxu0 0.0
        %675 = vmatpush.msra.mxu0 0.0
        %676 = vmatpush.msra.mxu0 0.0
        %677 = vmatpush.msra.mxu0 0.0
        %678 = vmatpush.msra.mxu0 0.0
        %679 = vmatpush.msra.mxu0 0.0
        %680 = vmatpush.msra.mxu0 0.0
        %681 = vmatpush.msra.mxu0 0.0
        %682 = vmatpush.msra.mxu0 0.0
        %683 = vmatpush.msra.mxu0 0.0
        %684 = vmatpush.msra.mxu0 0.0
        %685 = vmatpush.msra.mxu0 0.0
        %686 = vmatpush.msra.mxu0 %v498
        %687 = vmatmul.f32.gmra.mxu0 %v669
        %v688 = vpop.f32.mrf.mxu0
        %v689 = vadd.f32 %v666, %v688
        %690 = vdwg.mxu0
        %691 = vrot.lane.b32.xlu0 %v460, 112
        %v692 = vpop.permute.xlu0 %691
        %693 = vrot.lane.b32.xlu0 %v493, 112
        %v694 = vpop.permute.xlu0 %693
        %695 = vrot.lane.b32.xlu0 %v496, 112
        %v696 = vpop.permute.xlu0 %695
        %v697 = vsel %vm502, %v692, 0
        %v699 = vsel %vm502, %v694, 0
        %v701 = vsel %vm502, %v696, 0
        %703 = vmatpush.xpose.msra.mxu0 0.0
        %704 = vmatpush.xpose.msra.mxu0 0.0
        %705 = vmatpush.xpose.msra.mxu0 0.0
        %706 = vmatpush.xpose.msra.mxu0 0.0
        %707 = vmatpush.xpose.msra.mxu0 0.0
        %708 = vmatpush.xpose.msra.mxu0 0.0
        %709 = vmatpush.xpose.msra.mxu0 0.0
        %710 = vmatpush.xpose.msra.mxu0 0.0
        %711 = vmatpush.xpose.msra.mxu0 0.0
        %712 = vmatpush.xpose.msra.mxu0 0.0
        %713 = vmatpush.xpose.msra.mxu0 0.0
        %714 = vmatpush.xpose.msra.mxu0 0.0
        %715 = vmatpush.xpose.msra.mxu0 0.0
        %716 = vmatpush.xpose.msra.mxu0 0.0
        %717 = vmatpush.xpose.msra.mxu0 %v701
        %718 = vmatpush.xpose.msra.mxu0 %v699
        %719 = vmatmul.f32.gmra.mxu0 %v697
        %v720 = vpop.f32.mrf.mxu0
        %v721 = vadd.f32 0.0, %v720
        %722 = vdwg.mxu0
        %v723 = vsel %vm532, %v721, -inf
        %724 = vmax.xlane.f32.xlu0 %v723
        %v725 = vpop.xlane.xlu0 %724
        %v726 = vsub.f32 %v721, %v725
        %v727 = vmul.f32 %v726, 1.442695
        %v728 = vpow.pop %v727
        %v729 = vsel %vm532, %v728, 0.0
        %730 = vadd.xlane.f32.xlu0 %v729
        %v731 = vpop.xlane.xlu0 %730
        %v732 = vrcp.pop %v731
        %v733 = vmul.f32 %v728, %v732
        %734 = vrot.lane.b32.xlu0 %v493, 80
        %v735 = vpop.permute.xlu0 %734
        %736 = vrot.lane.b32.xlu0 %v496, 80
        %v737 = vpop.permute.xlu0 %736
        %v741 = vsel %vm532, %v733, 0
        %743 = vmatpush.msra.mxu0 0.0
        %744 = vmatpush.msra.mxu0 0.0
        %745 = vmatpush.msra.mxu0 0.0
        %746 = vmatpush.msra.mxu0 0.0
        %747 = vmatpush.msra.mxu0 0.0
        %748 = vmatpush.msra.mxu0 0.0
        %749 = vmatpush.msra.mxu0 0.0
        %750 = vmatpush.msra.mxu0 0.0
        %751 = vmatpush.msra.mxu0 0.0
        %752 = vmatpush.msra.mxu0 0.0
        %753 = vmatpush.msra.mxu0 0.0
        %754 = vmatpush.msra.mxu0 0.0
        %755 = vmatpush.msra.mxu0 0.0
        %756 = vmatpush.msra.mxu0 0.0
        %757 = vmatpush.msra.mxu0 %v737
        %758 = vmatpush.msra.mxu0 %v735
        %759 = vmatmul.f32.gmra.mxu0 %v741
        %v760 = vpop.f32.mrf.mxu0
        %v761 = vadd.f32 0.0, %v760
        %762 = vdwg.mxu0
        %v764 = vsel %vm502, %v761, 0
        %766 = vmatpush.msra.mxu0 0.0
        %767 = vmatpush.msra.mxu0 0.0
        %768 = vmatpush.msra.mxu0 0.0
        %769 = vmatpush.msra.mxu0 0.0
        %770 = vmatpush.msra.mxu0 0.0
        %771 = vmatpush.msra.mxu0 0.0
        %772 = vmatpush.msra.mxu0 0.0
        %773 = vmatpush.msra.mxu0 0.0
        %774 = vmatpush.msra.mxu0 0.0
        %775 = vmatpush.msra.mxu0 0.0
        %776 = vmatpush.msra.mxu0 0.0
        %777 = vmatpush.msra.mxu0 0.0
        %778 = vmatpush.msra.mxu0 0.0
        %779 = vmatpush.msra.mxu0 0.0
        %780 = vmatpush.msra.mxu0 0.0
        %781 = vmatpush.msra.mxu0 %v500
        %782 = vmatmul.f32.gmra.mxu0 %v764
        %v783 = vpop.f32.mrf.mxu0
        %v784 = vadd.f32 0.0, %v783
        %785 = vdwg.mxu0
        %v786 = vadd.f32 %v689, %v784
        %787 = vrot.lane.b32.xlu0 %v460, 104
        %v788 = vpop.permute.xlu0 %787
        %789 = vrot.lane.b32.xlu0 %v493, 104
        %v790 = vpop.permute.xlu0 %789
        %791 = vrot.lane.b32.xlu0 %v496, 104
        %v792 = vpop.permute.xlu0 %791
        %v793 = vsel %vm502, %v788, 0
        %v795 = vsel %vm502, %v790, 0
        %v797 = vsel %vm502, %v792, 0
        %799 = vmatpush.xpose.msra.mxu0 0.0
        %800 = vmatpush.xpose.msra.mxu0 0.0
        %801 = vmatpush.xpose.msra.mxu0 0.0
        %802 = vmatpush.xpose.msra.mxu0 0.0
        %803 = vmatpush.xpose.msra.mxu0 0.0
        %804 = vmatpush.xpose.msra.mxu0 0.0
        %805 = vmatpush.xpose.msra.mxu0 0.0
        %806 = vmatpush.xpose.msra.mxu0 0.0
        %807 = vmatpush.xpose.msra.mxu0 0.0
        %808 = vmatpush.xpose.msra.mxu0 0.0
        %809 = vmatpush.xpose.msra.mxu0 0.0
        %810 = vmatpush.xpose.msra.mxu0 0.0
        %811 = vmatpush.xpose.msra.mxu0 0.0
        %812 = vmatpush.xpose.msra.mxu0 0.0
        %813 = vmatpush.xpose.msra.mxu0 %v797
        %814 = vmatpush.xpose.msra.mxu0 %v795
        %815 = vmatmul.f32.gmra.mxu0 %v793
        %v816 = vpop.f32.mrf.mxu0
        %v817 = vadd.f32 0.0, %v816
        %818 = vdwg.mxu0
        %v819 = vsel %vm532, %v817, -inf
        %820 = vmax.xlane.f32.xlu0 %v819
        %v821 = vpop.xlane.xlu0 %820
        %v822 = vsub.f32 %v817, %v821
        %v823 = vmul.f32 %v822, 1.442695
        %v824 = vpow.pop %v823
        %v825 = vsel %vm532, %v824, 0.0
        %826 = vadd.xlane.f32.xlu0 %v825
        %v827 = vpop.xlane.xlu0 %826
        %v828 = vrcp.pop %v827
        %v829 = vmul.f32 %v824, %v828
        %830 = vrot.lane.b32.xlu0 %v493, 72
        %v831 = vpop.permute.xlu0 %830
        %832 = vrot.lane.b32.xlu0 %v496, 72
        %v833 = vpop.permute.xlu0 %832
        %v837 = vsel %vm532, %v829, 0
        %839 = vmatpush.msra.mxu0 0.0
        %840 = vmatpush.msra.mxu0 0.0
        %841 = vmatpush.msra.mxu0 0.0
        %842 = vmatpush.msra.mxu0 0.0
        %843 = vmatpush.msra.mxu0 0.0
        %844 = vmatpush.msra.mxu0 0.0
        %845 = vmatpush.msra.mxu0 0.0
        %846 = vmatpush.msra.mxu0 0.0
        %847 = vmatpush.msra.mxu0 0.0
        %848 = vmatpush.msra.mxu0 0.0
        %849 = vmatpush.msra.mxu0 0.0
        %850 = vmatpush.msra.mxu0 0.0
        %851 = vmatpush.msra.mxu0 0.0
        %852 = vmatpush.msra.mxu0 0.0
        %853 = vmatpush.msra.mxu0 %v833
        %854 = vmatpush.msra.mxu0 %v831
        %855 = vmatmul.f32.gmra.mxu0 %v837
        %v856 = vpop.f32.mrf.mxu0
        %v857 = vadd.f32 0.0, %v856
        %858 = vdwg.mxu0
        %v860 = vsel %vm502, %v857, 0
        %862 = vmatpush.msra.mxu0 0.0
        %863 = vmatpush.msra.mxu0 0.0
        %864 = vmatpush.msra.mxu0 0.0
        %865 = vmatpush.msra.mxu0 0.0
        %866 = vmatpush.msra.mxu0 0.0
        %867 = vmatpush.msra.mxu0 0.0
        %868 = vmatpush.msra.mxu0 0.0
        %869 = vmatpush.msra.mxu0 0.0
        %870 = vmatpush.msra.mxu0 0.0
        %871 = vmatpush.msra.mxu0 0.0
        %872 = vmatpush.msra.mxu0 0.0
        %873 = vmatpush.msra.mxu0 0.0
        %874 = vmatpush.msra.mxu0 0.0
        %875 = vmatpush.msra.mxu0 0.0
        %876 = vmatpush.msra.mxu0 0.0
        %877 = vmatpush.msra.mxu0 %v501
        %878 = vmatmul.f32.gmra.mxu0 %v860
        %v879 = vpop.f32.mrf.mxu0
        %v880 = vadd.f32 0.0, %v879
        %881 = vdwg.mxu0
        %v882 = vadd.f32 %v786, %v880
        %v883 = vld [vmem:[%s7] sm:$0x1]
        %v885 = vperm.slane %v883, 0
        %v887 = vadd.f32 %v882, %v885
        %v888 = vadd.f32 %v425, %v887
        %v889 = vld [vmem:[%s8] sm:$0x1]
        %v890 = vld [vmem:[%s9] sm:$0x1]
        %v891 = vsel %vm436, %v888, 0.0
        %892 = vadd.xlane.f32.xlu0 %v891
        %v893 = vpop.xlane.xlu0 %892
        %v894 = vrcp.pop 32.0
        %v895 = vmul.f32 32.0, %v894
        %v896 = vsub.f32 1.0, %v895
        %v897 = vmul.f32 %v894, %v896
        %v898 = vadd.f32 %v894, %v897
        %vm899 = vweird.f32 %v894
        %v900 = vsel %vm899, %v894, %v898
        %v901 = vmul.f32 %v893, %v900
        %v902 = vsub.f32 %v888, %v901
        %v903 = vmul.f32 %v902, %v902
        %v904 = vsel %vm436, %v903, 0.0
        %905 = vadd.xlane.f32.xlu0 %v904
        %v906 = vpop.xlane.xlu0 %905
        %v907 = vmul.f32 %v906, %v900
        %v908 = vadd.f32 %v907, 1e-05
        %v909 = vrsqrt.pop %v908
        %v910 = vmul.f32 %v909, %v908
        %v911 = vmul.f32 %v910, %v909
        %v912 = vmul.f32 0.5, %v911
        %v913 = vsub.f32 1.5, %v912
        %v914 = vmul.f32 %v909, %v913
        %vm915 = vweird.f32 %v908
        %vm916 = vweird.f32 %v909
        %vm917 = vmor %vm915, %vm916
        %v918 = vsel %vm917, %v909, %v914
        %v919 = vmul.f32 %v902, %v918
        %v921 = vperm.slane %v889, 0
        %v923 = vmul.f32 %v919, %v921
        %v925 = vperm.slane %v890, 0
        %v927 = vadd.f32 %v923, %v925
        %928 = vst.msk [vmem:[%s424] sm:$0xff] %vm436, %v927
        %p929 = scmp.lt.s32.totalorder %s23, 1
        %s930 = scalar_select %p929, %s23, 1
        %s931 = smul.addr %s930, 8
        %s932 = scalar_lea.vmem %s10, %s931
        // Predicated region
        $region73: #{time_series_transformer.20} parent=59 // pred_check
          %p933 = pneg %p261
        $region74: #{time_series_transformer.20} parent=59 // pred_check_branch
          %935 = sbr.rel (%p933) target = $region76
        $region75: #{time_series_transformer.20} parent=59 // pred_region
          _
        $region76: #{time_series_transformer.20} parent=59 // pred_fallthru
          _
      $region60: #{time_series_transformer.20} parent=5 // pred_fallthru
        _
      %p936 = scmp.le.s32.totalorder 2, %s18
      // Predicated region
      $region77: #{time_series_transformer.20} parent=5 // pred_check
        %p937 = pneg %p936
      $region78: #{time_series_transformer.20} parent=5 // pred_check_branch
        %939 = sbr.rel (%p937) target = $region80
      $region79: #{time_series_transformer.20} parent=5 // pred_region
        %s940 = ssub.s32 %s18, 2
        // Predicated region
        $region81: #{time_series_transformer.20} parent=79 // pred_check
          %p941 = pneg %p267
        $region82: #{time_series_transformer.20} parent=79 // pred_check_branch
          %943 = sbr.rel (%p941) target = $region84
        $region83: #{time_series_transformer.20} parent=79 // pred_region
          %p944 = scmp.lt.s32.totalorder %s24, 1
          %s945 = scalar_select %p944, %s24, 1
          %s946 = smul.addr %s945, 8
          %s947 = scalar_lea.vmem %s10, %s946
        $region84: #{time_series_transformer.20} parent=79 // pred_fallthru
          _
      $region80: #{time_series_transformer.20} parent=5 // pred_fallthru
        _
    $region6: #{time_series_transformer.20} parent=1 // loop_footer
      %s22 = sadd.s32 1, %s18
    $region7: #{time_series_transformer.20} parent=1 // loop_footer_branch
      %17 = sbr.rel target = $region3
    $region8: #{time_series_transformer.20} parent=1 // loop_exit
      _
    %948 = vsyncpa [#allocation3], 1
    %s949 = scalar_lea.sflag [#allocation3], 1
    %950 = vsyncpa %s949, 1
    %951 = vsyncpa [#allocation5], 1

</llo_original>
